<compile_context>
chip_gen: v6e
topology: v6e:2x2x1
jax: 0.10.0
libtpu: 0.0.40
codegen_flags: <defaults>
</compile_context>

<pallas_src>
import functools

import jax
import jax.numpy as jnp
from jax.experimental import pallas as pl
from jax.experimental.pallas import tpu as pltpu

BN_EPS = 1e-5        # nn.BatchNorm2d default eps
LANE = 128           # TPU lane width; channels padded to a multiple of this


def _round_up(x, m):
    return (x + m - 1) // m * m


# ----------------------------------------------------------------------------
# fused kernel
# ----------------------------------------------------------------------------
def _basic_block_kernel(x_ref, w1_ref, g1_ref, b1_ref, w2_ref, g2_ref, b2_ref,
                        o_ref, pad_ref, *, eps):
    """conv3x3 -> BN -> ReLU -> conv3x3 -> BN -> +x -> ReLU, all in VMEM.

    x_ref   : (N, H, W, Cp)    f32   input, channels zero-padded to Cp (lane-dense)
    w*_ref  : (3, 3, Cp, Cp)   bf16  conv weights, layout (kh, kw, cin, cout)
    g*, b*  : (1, Cp)          f32   BN affine params (pad: gamma=1, beta=0)
    o_ref   : (N, H, W, Cp)    f32   output
    pad_ref : (N, H+2, W+2, Cp) f32  scratch reused for both convs' spatial padding
    """
    N, H, W, Cp = x_ref.shape
    M = N * H * W

    x = x_ref[...]                                              # (N, H, W, Cp) f32

    # Zero the padded scratch once; the 1-pixel border stays zero for both convs.
    pad_ref[...] = jnp.zeros(pad_ref.shape, pad_ref.dtype)
    pad_ref[:, 1:H + 1, 1:W + 1, :] = x

    def conv3x3(w_ref):
        # 9 per-tap MXU matmuls, bf16 operands, f32 accumulation.
        acc = jnp.zeros((M, Cp), jnp.float32)
        for kh in range(3):
            for kw in range(3):
                patch = pad_ref[:, kh:kh + H, kw:kw + W, :]      # (N, H, W, Cp)
                patch = patch.astype(jnp.bfloat16).reshape(M, Cp)
                acc = acc + jnp.dot(patch, w_ref[kh, kw],
                                    preferred_element_type=jnp.float32)
        return acc

    def batch_norm(y, g_ref, b_ref):
        # Training-mode BN: batch stats over all N*H*W rows, biased variance,
        # centered (two-pass) form to avoid E[x^2]-mean^2 cancellation.
        mean = jnp.mean(y, axis=0, keepdims=True)
        d = y - mean
        var = jnp.mean(d * d, axis=0, keepdims=True)
        return d * jax.lax.rsqrt(var + eps) * g_ref[...] + b_ref[...]

    # conv1 -> bn1 -> relu
    y = jnp.maximum(batch_norm(conv3x3(w1_ref), g1_ref, b1_ref), 0.0)

    # Re-pad the intermediate in the same scratch (border is still zero).
    pad_ref[:, 1:H + 1, 1:W + 1, :] = y.reshape(N, H, W, Cp)

    # conv2 -> bn2 -> + identity residual -> relu
    y = batch_norm(conv3x3(w2_ref), g2_ref, b2_ref)
    y = y + x.reshape(M, Cp)                                     # residual already in VMEM
    o_ref[...] = jnp.maximum(y, 0.0).reshape(N, H, W, Cp)


# ----------------------------------------------------------------------------
# wrapper
# ----------------------------------------------------------------------------
def basic_block_forward(x_nchw, params):
    """NCHW in / NCHW out, matching BasicBlock(inplanes=planes) with defaults."""
    # TODO(synk): stride != 1 and a user-supplied `downsample` module are not
    #             implemented; the module's defaults (stride=1, downsample=None,
    #             identity residual) are what this kernel reproduces.
    N, C, H, W = x_nchw.shape
    Cp = params["w1"].shape[-1]

    x = jnp.transpose(x_nchw, (0, 2, 3, 1)).astype(jnp.float32)      # NCHW -> NHWC
    if Cp != C:
        x = jnp.pad(x, ((0, 0), (0, 0), (0, 0), (0, Cp - C)))        # lane-dense channels

    flops = 2 * (2 * 9 * N * H * W * Cp * Cp)             # two 3x3 convs
    bytes_accessed = (2 * N * H * W * Cp * 4               # activation in + out
                      + 2 * 9 * Cp * Cp * 2                # bf16 weights
                      + 4 * Cp * 4)                        # BN params

    out = pl.pallas_call(
        functools.partial(_basic_block_kernel, eps=BN_EPS),
        out_shape=jax.ShapeDtypeStruct((N, H, W, Cp), jnp.float32),
        # Single fused grid step: training-mode BN couples every row of the batch,
        # and at these sizes the whole block fits VMEM many times over (~2 MiB).
        # TODO(synk): for large N*H*W, tile M with a two-pass BN (partial sums in
        #             scratch + finalize) and mark the M axis "parallel" for v7x.
        grid=(1,),
        in_specs=[
            pl.BlockSpec((N, H, W, Cp), lambda i: (0, 0, 0, 0)),
            pl.BlockSpec((3, 3, Cp, Cp), lambda i: (0, 0, 0, 0)),
            pl.BlockSpec((1, Cp), lambda i: (0, 0)),
            pl.BlockSpec((1, Cp), lambda i: (0, 0)),
            pl.BlockSpec((3, 3, Cp, Cp), lambda i: (0, 0, 0, 0)),
            pl.BlockSpec((1, Cp), lambda i: (0, 0)),
            pl.BlockSpec((1, Cp), lambda i: (0, 0)),
        ],
        out_specs=pl.BlockSpec((N, H, W, Cp), lambda i: (0, 0, 0, 0)),
        scratch_shapes=[pltpu.VMEM((N, H + 2, W + 2, Cp), jnp.float32)],
        compiler_params=pltpu.CompilerParams(
            dimension_semantics=("arbitrary",),
            vmem_limit_bytes=32 * 1024 * 1024,
        ),
        cost_estimate=pl.CostEstimate(flops=flops, transcendentals=2 * Cp,
                                      bytes_accessed=bytes_accessed),
    )(x, params["w1"], params["g1"], params["b1"],
      params["w2"], params["g2"], params["b2"])

    out = out[..., :C]                                               # drop channel padding
    return jnp.transpose(out, (0, 3, 1, 2))                          # NHWC -> NCHW


# ----------------------------------------------------------------------------
# parameter init (weights stored padded + bf16 once, so no per-step repacking)
# ----------------------------------------------------------------------------
def init_params(key, planes):
    cp = max(LANE, _round_up(planes, LANE))
    ks = jax.random.split(key, 6)

    def pad_w(w):    # (3,3,c,c) f32 -> (3,3,cp,cp) bf16, zero padded
        wp = jnp.zeros((3, 3, cp, cp), jnp.float32).at[:, :, :planes, :planes].set(w)
        return wp.astype(jnp.bfloat16)

    def pad_vec(v, fill):
        return jnp.full((1, cp), fill, jnp.float32).at[0, :planes].set(v)

    w1 = 0.1 * jax.random.normal(ks[0], (3, 3, planes, planes), jnp.float32)
    w2 = 0.1 * jax.random.normal(ks[1], (3, 3, planes, planes), jnp.float32)
    g1 = 1.0 + 0.1 * jax.random.normal(ks[2], (planes,), jnp.float32)
    b1 = 0.1 * jax.random.normal(ks[3], (planes,), jnp.float32)
    g2 = 1.0 + 0.1 * jax.random.normal(ks[4], (planes,), jnp.float32)
    b2 = 0.1 * jax.random.normal(ks[5], (planes,), jnp.float32)

    return dict(w1=pad_w(w1), g1=pad_vec(g1, 1.0), b1=pad_vec(b1, 0.0),
                w2=pad_w(w2), g2=pad_vec(g2, 1.0), b2=pad_vec(b2, 0.0))


# ----------------------------------------------------------------------------
# pure-JAX reference (same bf16 operand quantization as the kernel's matmuls)
# ----------------------------------------------------------------------------
def basic_block_reference(x_nchw, params, planes):
    x = jnp.transpose(x_nchw, (0, 2, 3, 1)).astype(jnp.float32)
    w1 = params["w1"][:, :, :planes, :planes].astype(jnp.float32)
    w2 = params["w2"][:, :, :planes, :planes].astype(jnp.float32)
    g1, b1 = params["g1"][0, :planes], params["b1"][0, :planes]
    g2, b2 = params["g2"][0, :planes], params["b2"][0, :planes]

    def conv(v, w):
        v = v.astype(jnp.bfloat16).astype(jnp.float32)
        return jax.lax.conv_general_dilated(
            v, w, window_strides=(1, 1), padding=((1, 1), (1, 1)),
            dimension_numbers=("NHWC", "HWIO", "NHWC"),
            precision=jax.lax.Precision.HIGHEST)

    def bn(v, g, b):
        mean = jnp.mean(v, axis=(0, 1, 2), keepdims=True)
        d = v - mean
        var = jnp.mean(d * d, axis=(0, 1, 2), keepdims=True)
        return d * jax.lax.rsqrt(var + BN_EPS) * g + b

    y = jax.nn.relu(bn(conv(x, w1), g1, b1))
    y = jax.nn.relu(bn(conv(y, w2), g2, b2) + x)
    return jnp.transpose(y, (0, 3, 1, 2))


if __name__ == "__main__":
    key = jax.random.PRNGKey(0)
    pkey, xkey = jax.random.split(key)

    N, C, H, W = 2, 4, 16, 16          # inplanes == planes, stride=1 (default BasicBlock)
    params = init_params(pkey, planes=C)
    x = jax.random.normal(xkey, (N, C, H, W), jnp.float32)

    out = basic_block_forward(x, params)
    jax.block_until_ready(out)

    assert out.shape == (N, C, H, W), out.shape
    assert bool(jnp.all(jnp.isfinite(out)))

    ref = basic_block_reference(x, params, planes=C)
    err = float(jnp.max(jnp.abs(out - ref)))
    assert bool(jnp.allclose(out, ref, rtol=1e-3, atol=1e-3)), err

    print("KERNEL_OK")
</pallas_src>

<mosaic_0001>
module attributes {stable_mosaic.version = 11 : i64} {
  func.func @_basic_block_kernel(%arg0: i32, %arg1: memref<2x16x16x128xf32, #tpu.memory_space<vmem>>, %arg2: memref<3x3x128x128xbf16, #tpu.memory_space<vmem>>, %arg3: memref<1x128xf32, #tpu.memory_space<vmem>>, %arg4: memref<1x128xf32, #tpu.memory_space<vmem>>, %arg5: memref<3x3x128x128xbf16, #tpu.memory_space<vmem>>, %arg6: memref<1x128xf32, #tpu.memory_space<vmem>>, %arg7: memref<1x128xf32, #tpu.memory_space<vmem>>, %arg8: memref<2x16x16x128xf32, #tpu.memory_space<vmem>>, %arg9: memref<2x18x18x128xf32, #tpu.memory_space<vmem>>) attributes {dimension_semantics = [#tpu.dimension_semantics<arbitrary>], iteration_bounds = array<i64: 1>, scalar_prefetch = 0 : i64, scratch_operands = 1 : i64, tpu.core_type = #tpu.core_type<tc>, window_params = [{pipeline_mode = #tpu.pipeline_mode<synchronous>, transform_indices = @transform_0, window_bounds = array<i64: 2, 16, 16, 128>}, {pipeline_mode = #tpu.pipeline_mode<synchronous>, transform_indices = @transform_1, window_bounds = array<i64: 3, 3, 128, 128>}, {pipeline_mode = #tpu.pipeline_mode<synchronous>, transform_indices = @transform_2, window_bounds = array<i64: 1, 128>}, {pipeline_mode = #tpu.pipeline_mode<synchronous>, transform_indices = @transform_3, window_bounds = array<i64: 1, 128>}, {pipeline_mode = #tpu.pipeline_mode<synchronous>, transform_indices = @transform_4, window_bounds = array<i64: 3, 3, 128, 128>}, {pipeline_mode = #tpu.pipeline_mode<synchronous>, transform_indices = @transform_5, window_bounds = array<i64: 1, 128>}, {pipeline_mode = #tpu.pipeline_mode<synchronous>, transform_indices = @transform_6, window_bounds = array<i64: 1, 128>}, {pipeline_mode = #tpu.pipeline_mode<synchronous>, transform_indices = @transform_7, window_bounds = array<i64: 2, 16, 16, 128>}]} {
    %c0 = arith.constant 0 : index
    %c0_0 = arith.constant 0 : index
    %c0_1 = arith.constant 0 : index
    %c0_2 = arith.constant 0 : index
    %0 = vector.load %arg1[%c0, %c0_0, %c0_1, %c0_2] : memref<2x16x16x128xf32, #tpu.memory_space<vmem>>, vector<2x16x16x128xf32>
    %cst = arith.constant 0.000000e+00 : f32
    %1 = vector.broadcast %cst : f32 to vector<2x18x18x128xf32>
    %c0_3 = arith.constant 0 : index
    %c0_4 = arith.constant 0 : index
    %c0_5 = arith.constant 0 : index
    %c0_6 = arith.constant 0 : index
    %2 = vector.load %arg9[%c0_3, %c0_4, %c0_5, %c0_6] : memref<2x18x18x128xf32, #tpu.memory_space<vmem>>, vector<2x18x18x128xf32>
    tpu.vector_store %arg9[%c0_3, %c0_4, %c0_5, %c0_6], %1 {strides = array<i32>} : memref<2x18x18x128xf32, #tpu.memory_space<vmem>>, vector<2x18x18x128xf32>,
    %c0_7 = arith.constant 0 : index
    %c1 = arith.constant 1 : index
    %c1_8 = arith.constant 1 : index
    %c0_9 = arith.constant 0 : index
    %3 = vector.load %arg9[%c0_7, %c1, %c1_8, %c0_9] : memref<2x18x18x128xf32, #tpu.memory_space<vmem>>, vector<2x16x16x128xf32>
    tpu.vector_store %arg9[%c0_7, %c1, %c1_8, %c0_9], %0 {strides = array<i32>} : memref<2x18x18x128xf32, #tpu.memory_space<vmem>>, vector<2x16x16x128xf32>,
    %cst_10 = arith.constant 0.000000e+00 : f32
    %4 = vector.broadcast %cst_10 : f32 to vector<512x128xf32>
    %c0_11 = arith.constant 0 : index
    %c0_12 = arith.constant 0 : index
    %c0_13 = arith.constant 0 : index
    %c0_14 = arith.constant 0 : index
    %5 = vector.load %arg9[%c0_11, %c0_12, %c0_13, %c0_14] : memref<2x18x18x128xf32, #tpu.memory_space<vmem>>, vector<2x16x16x128xf32>
    %6 = arith.truncf %5 : vector<2x16x16x128xf32> to vector<2x16x16x128xbf16>
    %7 = vector.shape_cast %6 : vector<2x16x16x128xbf16> to vector<512x128xbf16>
    %c0_15 = arith.constant 0 : index
    %c0_16 = arith.constant 0 : index
    %c0_17 = arith.constant 0 : index
    %c0_18 = arith.constant 0 : index
    %8 = vector.load %arg2[%c0_15, %c0_16, %c0_17, %c0_18] : memref<3x3x128x128xbf16, #tpu.memory_space<vmem>>, vector<1x1x128x128xbf16>
    %9 = vector.shape_cast %8 : vector<1x1x128x128xbf16> to vector<128x128xbf16>
    %cst_19 = arith.constant dense<0.000000e+00> : vector<512x128xf32>
    %10 = tpu.matmul %7, %9, %cst_19 {dimension_numbers = #tpu.dot_dimension_numbers<[1], [0], [0], [1], [0, 0, 1, 1], [], []>} : vector<512x128xbf16>, vector<128x128xbf16>, vector<512x128xf32> -> vector<512x128xf32>
    %11 = arith.addf %4, %10 : vector<512x128xf32>
    %c0_20 = arith.constant 0 : index
    %c0_21 = arith.constant 0 : index
    %c1_22 = arith.constant 1 : index
    %c0_23 = arith.constant 0 : index
    %12 = vector.load %arg9[%c0_20, %c0_21, %c1_22, %c0_23] : memref<2x18x18x128xf32, #tpu.memory_space<vmem>>, vector<2x16x16x128xf32>
    %13 = arith.truncf %12 : vector<2x16x16x128xf32> to vector<2x16x16x128xbf16>
    %14 = vector.shape_cast %13 : vector<2x16x16x128xbf16> to vector<512x128xbf16>
    %c0_24 = arith.constant 0 : index
    %c1_25 = arith.constant 1 : index
    %c0_26 = arith.constant 0 : index
    %c0_27 = arith.constant 0 : index
    %15 = vector.load %arg2[%c0_24, %c1_25, %c0_26, %c0_27] : memref<3x3x128x128xbf16, #tpu.memory_space<vmem>>, vector<1x1x128x128xbf16>
    %16 = vector.shape_cast %15 : vector<1x1x128x128xbf16> to vector<128x128xbf16>
    %cst_28 = arith.constant dense<0.000000e+00> : vector<512x128xf32>
    %17 = tpu.matmul %14, %16, %cst_28 {dimension_numbers = #tpu.dot_dimension_numbers<[1], [0], [0], [1], [0, 0, 1, 1], [], []>} : vector<512x128xbf16>, vector<128x128xbf16>, vector<512x128xf32> -> vector<512x128xf32>
    %18 = arith.addf %11, %17 : vector<512x128xf32>
    %c0_29 = arith.constant 0 : index
    %c0_30 = arith.constant 0 : index
    %c2 = arith.constant 2 : index
    %c0_31 = arith.constant 0 : index
    %19 = vector.load %arg9[%c0_29, %c0_30, %c2, %c0_31] : memref<2x18x18x128xf32, #tpu.memory_space<vmem>>, vector<2x16x16x128xf32>
    %20 = arith.truncf %19 : vector<2x16x16x128xf32> to vector<2x16x16x128xbf16>
    %21 = vector.shape_cast %20 : vector<2x16x16x128xbf16> to vector<512x128xbf16>
    %c0_32 = arith.constant 0 : index
    %c2_33 = arith.constant 2 : index
    %c0_34 = arith.constant 0 : index
    %c0_35 = arith.constant 0 : index
    %22 = vector.load %arg2[%c0_32, %c2_33, %c0_34, %c0_35] : memref<3x3x128x128xbf16, #tpu.memory_space<vmem>>, vector<1x1x128x128xbf16>
    %23 = vector.shape_cast %22 : vector<1x1x128x128xbf16> to vector<128x128xbf16>
    %cst_36 = arith.constant dense<0.000000e+00> : vector<512x128xf32>
    %24 = tpu.matmul %21, %23, %cst_36 {dimension_numbers = #tpu.dot_dimension_numbers<[1], [0], [0], [1], [0, 0, 1, 1], [], []>} : vector<512x128xbf16>, vector<128x128xbf16>, vector<512x128xf32> -> vector<512x128xf32>
    %25 = arith.addf %18, %24 : vector<512x128xf32>
    %c0_37 = arith.constant 0 : index
    %c1_38 = arith.constant 1 : index
    %c0_39 = arith.constant 0 : index
    %c0_40 = arith.constant 0 : index
    %26 = vector.load %arg9[%c0_37, %c1_38, %c0_39, %c0_40] : memref<2x18x18x128xf32, #tpu.memory_space<vmem>>, vector<2x16x16x128xf32>
    %27 = arith.truncf %26 : vector<2x16x16x128xf32> to vector<2x16x16x128xbf16>
    %28 = vector.shape_cast %27 : vector<2x16x16x128xbf16> to vector<512x128xbf16>
    %c1_41 = arith.constant 1 : index
    %c0_42 = arith.constant 0 : index
    %c0_43 = arith.constant 0 : index
    %c0_44 = arith.constant 0 : index
    %29 = vector.load %arg2[%c1_41, %c0_42, %c0_43, %c0_44] : memref<3x3x128x128xbf16, #tpu.memory_space<vmem>>, vector<1x1x128x128xbf16>
    %30 = vector.shape_cast %29 : vector<1x1x128x128xbf16> to vector<128x128xbf16>
    %cst_45 = arith.constant dense<0.000000e+00> : vector<512x128xf32>
    %31 = tpu.matmul %28, %30, %cst_45 {dimension_numbers = #tpu.dot_dimension_numbers<[1], [0], [0], [1], [0, 0, 1, 1], [], []>} : vector<512x128xbf16>, vector<128x128xbf16>, vector<512x128xf32> -> vector<512x128xf32>
    %32 = arith.addf %25, %31 : vector<512x128xf32>
    %c0_46 = arith.constant 0 : index
    %c1_47 = arith.constant 1 : index
    %c1_48 = arith.constant 1 : index
    %c0_49 = arith.constant 0 : index
    %33 = vector.load %arg9[%c0_46, %c1_47, %c1_48, %c0_49] : memref<2x18x18x128xf32, #tpu.memory_space<vmem>>, vector<2x16x16x128xf32>
    %34 = arith.truncf %33 : vector<2x16x16x128xf32> to vector<2x16x16x128xbf16>
    %35 = vector.shape_cast %34 : vector<2x16x16x128xbf16> to vector<512x128xbf16>
    %c1_50 = arith.constant 1 : index
    %c1_51 = arith.constant 1 : index
    %c0_52 = arith.constant 0 : index
    %c0_53 = arith.constant 0 : index
    %36 = vector.load %arg2[%c1_50, %c1_51, %c0_52, %c0_53] : memref<3x3x128x128xbf16, #tpu.memory_space<vmem>>, vector<1x1x128x128xbf16>
    %37 = vector.shape_cast %36 : vector<1x1x128x128xbf16> to vector<128x128xbf16>
    %cst_54 = arith.constant dense<0.000000e+00> : vector<512x128xf32>
    %38 = tpu.matmul %35, %37, %cst_54 {dimension_numbers = #tpu.dot_dimension_numbers<[1], [0], [0], [1], [0, 0, 1, 1], [], []>} : vector<512x128xbf16>, vector<128x128xbf16>, vector<512x128xf32> -> vector<512x128xf32>
    %39 = arith.addf %32, %38 : vector<512x128xf32>
    %c0_55 = arith.constant 0 : index
    %c1_56 = arith.constant 1 : index
    %c2_57 = arith.constant 2 : index
    %c0_58 = arith.constant 0 : index
    %40 = vector.load %arg9[%c0_55, %c1_56, %c2_57, %c0_58] : memref<2x18x18x128xf32, #tpu.memory_space<vmem>>, vector<2x16x16x128xf32>
    %41 = arith.truncf %40 : vector<2x16x16x128xf32> to vector<2x16x16x128xbf16>
    %42 = vector.shape_cast %41 : vector<2x16x16x128xbf16> to vector<512x128xbf16>
    %c1_59 = arith.constant 1 : index
    %c2_60 = arith.constant 2 : index
    %c0_61 = arith.constant 0 : index
    %c0_62 = arith.constant 0 : index
    %43 = vector.load %arg2[%c1_59, %c2_60, %c0_61, %c0_62] : memref<3x3x128x128xbf16, #tpu.memory_space<vmem>>, vector<1x1x128x128xbf16>
    %44 = vector.shape_cast %43 : vector<1x1x128x128xbf16> to vector<128x128xbf16>
    %cst_63 = arith.constant dense<0.000000e+00> : vector<512x128xf32>
    %45 = tpu.matmul %42, %44, %cst_63 {dimension_numbers = #tpu.dot_dimension_numbers<[1], [0], [0], [1], [0, 0, 1, 1], [], []>} : vector<512x128xbf16>, vector<128x128xbf16>, vector<512x128xf32> -> vector<512x128xf32>
    %46 = arith.addf %39, %45 : vector<512x128xf32>
    %c0_64 = arith.constant 0 : index
    %c2_65 = arith.constant 2 : index
    %c0_66 = arith.constant 0 : index
    %c0_67 = arith.constant 0 : index
    %47 = vector.load %arg9[%c0_64, %c2_65, %c0_66, %c0_67] : memref<2x18x18x128xf32, #tpu.memory_space<vmem>>, vector<2x16x16x128xf32>
    %48 = arith.truncf %47 : vector<2x16x16x128xf32> to vector<2x16x16x128xbf16>
    %49 = vector.shape_cast %48 : vector<2x16x16x128xbf16> to vector<512x128xbf16>
    %c2_68 = arith.constant 2 : index
    %c0_69 = arith.constant 0 : index
    %c0_70 = arith.constant 0 : index
    %c0_71 = arith.constant 0 : index
    %50 = vector.load %arg2[%c2_68, %c0_69, %c0_70, %c0_71] : memref<3x3x128x128xbf16, #tpu.memory_space<vmem>>, vector<1x1x128x128xbf16>
    %51 = vector.shape_cast %50 : vector<1x1x128x128xbf16> to vector<128x128xbf16>
    %cst_72 = arith.constant dense<0.000000e+00> : vector<512x128xf32>
    %52 = tpu.matmul %49, %51, %cst_72 {dimension_numbers = #tpu.dot_dimension_numbers<[1], [0], [0], [1], [0, 0, 1, 1], [], []>} : vector<512x128xbf16>, vector<128x128xbf16>, vector<512x128xf32> -> vector<512x128xf32>
    %53 = arith.addf %46, %52 : vector<512x128xf32>
    %c0_73 = arith.constant 0 : index
    %c2_74 = arith.constant 2 : index
    %c1_75 = arith.constant 1 : index
    %c0_76 = arith.constant 0 : index
    %54 = vector.load %arg9[%c0_73, %c2_74, %c1_75, %c0_76] : memref<2x18x18x128xf32, #tpu.memory_space<vmem>>, vector<2x16x16x128xf32>
    %55 = arith.truncf %54 : vector<2x16x16x128xf32> to vector<2x16x16x128xbf16>
    %56 = vector.shape_cast %55 : vector<2x16x16x128xbf16> to vector<512x128xbf16>
    %c2_77 = arith.constant 2 : index
    %c1_78 = arith.constant 1 : index
    %c0_79 = arith.constant 0 : index
    %c0_80 = arith.constant 0 : index
    %57 = vector.load %arg2[%c2_77, %c1_78, %c0_79, %c0_80] : memref<3x3x128x128xbf16, #tpu.memory_space<vmem>>, vector<1x1x128x128xbf16>
    %58 = vector.shape_cast %57 : vector<1x1x128x128xbf16> to vector<128x128xbf16>
    %cst_81 = arith.constant dense<0.000000e+00> : vector<512x128xf32>
    %59 = tpu.matmul %56, %58, %cst_81 {dimension_numbers = #tpu.dot_dimension_numbers<[1], [0], [0], [1], [0, 0, 1, 1], [], []>} : vector<512x128xbf16>, vector<128x128xbf16>, vector<512x128xf32> -> vector<512x128xf32>
    %60 = arith.addf %53, %59 : vector<512x128xf32>
    %c0_82 = arith.constant 0 : index
    %c2_83 = arith.constant 2 : index
    %c2_84 = arith.constant 2 : index
    %c0_85 = arith.constant 0 : index
    %61 = vector.load %arg9[%c0_82, %c2_83, %c2_84, %c0_85] : memref<2x18x18x128xf32, #tpu.memory_space<vmem>>, vector<2x16x16x128xf32>
    %62 = arith.truncf %61 : vector<2x16x16x128xf32> to vector<2x16x16x128xbf16>
    %63 = vector.shape_cast %62 : vector<2x16x16x128xbf16> to vector<512x128xbf16>
    %c2_86 = arith.constant 2 : index
    %c2_87 = arith.constant 2 : index
    %c0_88 = arith.constant 0 : index
    %c0_89 = arith.constant 0 : index
    %64 = vector.load %arg2[%c2_86, %c2_87, %c0_88, %c0_89] : memref<3x3x128x128xbf16, #tpu.memory_space<vmem>>, vector<1x1x128x128xbf16>
    %65 = vector.shape_cast %64 : vector<1x1x128x128xbf16> to vector<128x128xbf16>
    %cst_90 = arith.constant dense<0.000000e+00> : vector<512x128xf32>
    %66 = tpu.matmul %63, %65, %cst_90 {dimension_numbers = #tpu.dot_dimension_numbers<[1], [0], [0], [1], [0, 0, 1, 1], [], []>} : vector<512x128xbf16>, vector<128x128xbf16>, vector<512x128xf32> -> vector<512x128xf32>
    %67 = arith.addf %60, %66 : vector<512x128xf32>
    %cst_91 = arith.constant dense<0.000000e+00> : vector<128xf32>
    %68 = vector.multi_reduction <add>, %67, %cst_91 [0] : vector<512x128xf32> to vector<128xf32>
    %69 = vector.shape_cast %68 : vector<128xf32> to vector<1x128xf32>
    %cst_92 = arith.constant 5.120000e+02 : f32
    %70 = vector.broadcast %cst_92 : f32 to vector<1x128xf32>
    %71 = arith.divf %69, %70 : vector<1x128xf32>
    %72 = vector.broadcast %71 : vector<1x128xf32> to vector<512x128xf32>
    %73 = arith.subf %67, %72 : vector<512x128xf32>
    %74 = arith.mulf %73, %73 : vector<512x128xf32>
    %cst_93 = arith.constant dense<0.000000e+00> : vector<128xf32>
    %75 = vector.multi_reduction <add>, %74, %cst_93 [0] : vector<512x128xf32> to vector<128xf32>
    %76 = vector.shape_cast %75 : vector<128xf32> to vector<1x128xf32>
    %cst_94 = arith.constant 5.120000e+02 : f32
    %77 = vector.broadcast %cst_94 : f32 to vector<1x128xf32>
    %78 = arith.divf %76, %77 : vector<1x128xf32>
    %cst_95 = arith.constant 9.99999974E-6 : f32
    %79 = vector.broadcast %cst_95 : f32 to vector<1x128xf32>
    %80 = arith.addf %78, %79 : vector<1x128xf32>
    %81 = math.rsqrt %80 : vector<1x128xf32>
    %82 = vector.broadcast %81 : vector<1x128xf32> to vector<512x128xf32>
    %83 = arith.mulf %73, %82 : vector<512x128xf32>
    %c0_96 = arith.constant 0 : index
    %c0_97 = arith.constant 0 : index
    %84 = vector.load %arg3[%c0_96, %c0_97] : memref<1x128xf32, #tpu.memory_space<vmem>>, vector<1x128xf32>
    %85 = vector.broadcast %84 : vector<1x128xf32> to vector<512x128xf32>
    %86 = arith.mulf %83, %85 : vector<512x128xf32>
    %c0_98 = arith.constant 0 : index
    %c0_99 = arith.constant 0 : index
    %87 = vector.load %arg4[%c0_98, %c0_99] : memref<1x128xf32, #tpu.memory_space<vmem>>, vector<1x128xf32>
    %88 = vector.broadcast %87 : vector<1x128xf32> to vector<512x128xf32>
    %89 = arith.addf %86, %88 : vector<512x128xf32>
    %cst_100 = arith.constant 0.000000e+00 : f32
    %90 = vector.broadcast %cst_100 : f32 to vector<512x128xf32>
    %91 = arith.maximumf %89, %90 : vector<512x128xf32>
    %92 = vector.shape_cast %91 : vector<512x128xf32> to vector<2x16x16x128xf32>
    %c0_101 = arith.constant 0 : index
    %c1_102 = arith.constant 1 : index
    %c1_103 = arith.constant 1 : index
    %c0_104 = arith.constant 0 : index
    %93 = vector.load %arg9[%c0_101, %c1_102, %c1_103, %c0_104] : memref<2x18x18x128xf32, #tpu.memory_space<vmem>>, vector<2x16x16x128xf32>
    tpu.vector_store %arg9[%c0_101, %c1_102, %c1_103, %c0_104], %92 {strides = array<i32>} : memref<2x18x18x128xf32, #tpu.memory_space<vmem>>, vector<2x16x16x128xf32>,
    %cst_105 = arith.constant 0.000000e+00 : f32
    %94 = vector.broadcast %cst_105 : f32 to vector<512x128xf32>
    %c0_106 = arith.constant 0 : index
    %c0_107 = arith.constant 0 : index
    %c0_108 = arith.constant 0 : index
    %c0_109 = arith.constant 0 : index
    %95 = vector.load %arg9[%c0_106, %c0_107, %c0_108, %c0_109] : memref<2x18x18x128xf32, #tpu.memory_space<vmem>>, vector<2x16x16x128xf32>
    %96 = arith.truncf %95 : vector<2x16x16x128xf32> to vector<2x16x16x128xbf16>
    %97 = vector.shape_cast %96 : vector<2x16x16x128xbf16> to vector<512x128xbf16>
    %c0_110 = arith.constant 0 : index
    %c0_111 = arith.constant 0 : index
    %c0_112 = arith.constant 0 : index
    %c0_113 = arith.constant 0 : index
    %98 = vector.load %arg5[%c0_110, %c0_111, %c0_112, %c0_113] : memref<3x3x128x128xbf16, #tpu.memory_space<vmem>>, vector<1x1x128x128xbf16>
    %99 = vector.shape_cast %98 : vector<1x1x128x128xbf16> to vector<128x128xbf16>
    %cst_114 = arith.constant dense<0.000000e+00> : vector<512x128xf32>
    %100 = tpu.matmul %97, %99, %cst_114 {dimension_numbers = #tpu.dot_dimension_numbers<[1], [0], [0], [1], [0, 0, 1, 1], [], []>} : vector<512x128xbf16>, vector<128x128xbf16>, vector<512x128xf32> -> vector<512x128xf32>
    %101 = arith.addf %94, %100 : vector<512x128xf32>
    %c0_115 = arith.constant 0 : index
    %c0_116 = arith.constant 0 : index
    %c1_117 = arith.constant 1 : index
    %c0_118 = arith.constant 0 : index
    %102 = vector.load %arg9[%c0_115, %c0_116, %c1_117, %c0_118] : memref<2x18x18x128xf32, #tpu.memory_space<vmem>>, vector<2x16x16x128xf32>
    %103 = arith.truncf %102 : vector<2x16x16x128xf32> to vector<2x16x16x128xbf16>
    %104 = vector.shape_cast %103 : vector<2x16x16x128xbf16> to vector<512x128xbf16>
    %c0_119 = arith.constant 0 : index
    %c1_120 = arith.constant 1 : index
    %c0_121 = arith.constant 0 : index
    %c0_122 = arith.constant 0 : index
    %105 = vector.load %arg5[%c0_119, %c1_120, %c0_121, %c0_122] : memref<3x3x128x128xbf16, #tpu.memory_space<vmem>>, vector<1x1x128x128xbf16>
    %106 = vector.shape_cast %105 : vector<1x1x128x128xbf16> to vector<128x128xbf16>
    %cst_123 = arith.constant dense<0.000000e+00> : vector<512x128xf32>
    %107 = tpu.matmul %104, %106, %cst_123 {dimension_numbers = #tpu.dot_dimension_numbers<[1], [0], [0], [1], [0, 0, 1, 1], [], []>} : vector<512x128xbf16>, vector<128x128xbf16>, vector<512x128xf32> -> vector<512x128xf32>
    %108 = arith.addf %101, %107 : vector<512x128xf32>
    %c0_124 = arith.constant 0 : index
    %c0_125 = arith.constant 0 : index
    %c2_126 = arith.constant 2 : index
    %c0_127 = arith.constant 0 : index
    %109 = vector.load %arg9[%c0_124, %c0_125, %c2_126, %c0_127] : memref<2x18x18x128xf32, #tpu.memory_space<vmem>>, vector<2x16x16x128xf32>
    %110 = arith.truncf %109 : vector<2x16x16x128xf32> to vector<2x16x16x128xbf16>
    %111 = vector.shape_cast %110 : vector<2x16x16x128xbf16> to vector<512x128xbf16>
    %c0_128 = arith.constant 0 : index
    %c2_129 = arith.constant 2 : index
    %c0_130 = arith.constant 0 : index
    %c0_131 = arith.constant 0 : index
    %112 = vector.load %arg5[%c0_128, %c2_129, %c0_130, %c0_131] : memref<3x3x128x128xbf16, #tpu.memory_space<vmem>>, vector<1x1x128x128xbf16>
    %113 = vector.shape_cast %112 : vector<1x1x128x128xbf16> to vector<128x128xbf16>
    %cst_132 = arith.constant dense<0.000000e+00> : vector<512x128xf32>
    %114 = tpu.matmul %111, %113, %cst_132 {dimension_numbers = #tpu.dot_dimension_numbers<[1], [0], [0], [1], [0, 0, 1, 1], [], []>} : vector<512x128xbf16>, vector<128x128xbf16>, vector<512x128xf32> -> vector<512x128xf32>
    %115 = arith.addf %108, %114 : vector<512x128xf32>
    %c0_133 = arith.constant 0 : index
    %c1_134 = arith.constant 1 : index
    %c0_135 = arith.constant 0 : index
    %c0_136 = arith.constant 0 : index
    %116 = vector.load %arg9[%c0_133, %c1_134, %c0_135, %c0_136] : memref<2x18x18x128xf32, #tpu.memory_space<vmem>>, vector<2x16x16x128xf32>
    %117 = arith.truncf %116 : vector<2x16x16x128xf32> to vector<2x16x16x128xbf16>
    %118 = vector.shape_cast %117 : vector<2x16x16x128xbf16> to vector<512x128xbf16>
    %c1_137 = arith.constant 1 : index
    %c0_138 = arith.constant 0 : index
    %c0_139 = arith.constant 0 : index
    %c0_140 = arith.constant 0 : index
    %119 = vector.load %arg5[%c1_137, %c0_138, %c0_139, %c0_140] : memref<3x3x128x128xbf16, #tpu.memory_space<vmem>>, vector<1x1x128x128xbf16>
    %120 = vector.shape_cast %119 : vector<1x1x128x128xbf16> to vector<128x128xbf16>
    %cst_141 = arith.constant dense<0.000000e+00> : vector<512x128xf32>
    %121 = tpu.matmul %118, %120, %cst_141 {dimension_numbers = #tpu.dot_dimension_numbers<[1], [0], [0], [1], [0, 0, 1, 1], [], []>} : vector<512x128xbf16>, vector<128x128xbf16>, vector<512x128xf32> -> vector<512x128xf32>
    %122 = arith.addf %115, %121 : vector<512x128xf32>
    %c0_142 = arith.constant 0 : index
    %c1_143 = arith.constant 1 : index
    %c1_144 = arith.constant 1 : index
    %c0_145 = arith.constant 0 : index
    %123 = vector.load %arg9[%c0_142, %c1_143, %c1_144, %c0_145] : memref<2x18x18x128xf32, #tpu.memory_space<vmem>>, vector<2x16x16x128xf32>
    %124 = arith.truncf %123 : vector<2x16x16x128xf32> to vector<2x16x16x128xbf16>
    %125 = vector.shape_cast %124 : vector<2x16x16x128xbf16> to vector<512x128xbf16>
    %c1_146 = arith.constant 1 : index
    %c1_147 = arith.constant 1 : index
    %c0_148 = arith.constant 0 : index
    %c0_149 = arith.constant 0 : index
    %126 = vector.load %arg5[%c1_146, %c1_147, %c0_148, %c0_149] : memref<3x3x128x128xbf16, #tpu.memory_space<vmem>>, vector<1x1x128x128xbf16>
    %127 = vector.shape_cast %126 : vector<1x1x128x128xbf16> to vector<128x128xbf16>
    %cst_150 = arith.constant dense<0.000000e+00> : vector<512x128xf32>
    %128 = tpu.matmul %125, %127, %cst_150 {dimension_numbers = #tpu.dot_dimension_numbers<[1], [0], [0], [1], [0, 0, 1, 1], [], []>} : vector<512x128xbf16>, vector<128x128xbf16>, vector<512x128xf32> -> vector<512x128xf32>
    %129 = arith.addf %122, %128 : vector<512x128xf32>
    %c0_151 = arith.constant 0 : index
    %c1_152 = arith.constant 1 : index
    %c2_153 = arith.constant 2 : index
    %c0_154 = arith.constant 0 : index
    %130 = vector.load %arg9[%c0_151, %c1_152, %c2_153, %c0_154] : memref<2x18x18x128xf32, #tpu.memory_space<vmem>>, vector<2x16x16x128xf32>
    %131 = arith.truncf %130 : vector<2x16x16x128xf32> to vector<2x16x16x128xbf16>
    %132 = vector.shape_cast %131 : vector<2x16x16x128xbf16> to vector<512x128xbf16>
    %c1_155 = arith.constant 1 : index
    %c2_156 = arith.constant 2 : index
    %c0_157 = arith.constant 0 : index
    %c0_158 = arith.constant 0 : index
    %133 = vector.load %arg5[%c1_155, %c2_156, %c0_157, %c0_158] : memref<3x3x128x128xbf16, #tpu.memory_space<vmem>>, vector<1x1x128x128xbf16>
    %134 = vector.shape_cast %133 : vector<1x1x128x128xbf16> to vector<128x128xbf16>
    %cst_159 = arith.constant dense<0.000000e+00> : vector<512x128xf32>
    %135 = tpu.matmul %132, %134, %cst_159 {dimension_numbers = #tpu.dot_dimension_numbers<[1], [0], [0], [1], [0, 0, 1, 1], [], []>} : vector<512x128xbf16>, vector<128x128xbf16>, vector<512x128xf32> -> vector<512x128xf32>
    %136 = arith.addf %129, %135 : vector<512x128xf32>
    %c0_160 = arith.constant 0 : index
    %c2_161 = arith.constant 2 : index
    %c0_162 = arith.constant 0 : index
    %c0_163 = arith.constant 0 : index
    %137 = vector.load %arg9[%c0_160, %c2_161, %c0_162, %c0_163] : memref<2x18x18x128xf32, #tpu.memory_space<vmem>>, vector<2x16x16x128xf32>
    %138 = arith.truncf %137 : vector<2x16x16x128xf32> to vector<2x16x16x128xbf16>
    %139 = vector.shape_cast %138 : vector<2x16x16x128xbf16> to vector<512x128xbf16>
    %c2_164 = arith.constant 2 : index
    %c0_165 = arith.constant 0 : index
    %c0_166 = arith.constant 0 : index
    %c0_167 = arith.constant 0 : index
    %140 = vector.load %arg5[%c2_164, %c0_165, %c0_166, %c0_167] : memref<3x3x128x128xbf16, #tpu.memory_space<vmem>>, vector<1x1x128x128xbf16>
    %141 = vector.shape_cast %140 : vector<1x1x128x128xbf16> to vector<128x128xbf16>
    %cst_168 = arith.constant dense<0.000000e+00> : vector<512x128xf32>
    %142 = tpu.matmul %139, %141, %cst_168 {dimension_numbers = #tpu.dot_dimension_numbers<[1], [0], [0], [1], [0, 0, 1, 1], [], []>} : vector<512x128xbf16>, vector<128x128xbf16>, vector<512x128xf32> -> vector<512x128xf32>
    %143 = arith.addf %136, %142 : vector<512x128xf32>
    %c0_169 = arith.constant 0 : index
    %c2_170 = arith.constant 2 : index
    %c1_171 = arith.constant 1 : index
    %c0_172 = arith.constant 0 : index
    %144 = vector.load %arg9[%c0_169, %c2_170, %c1_171, %c0_172] : memref<2x18x18x128xf32, #tpu.memory_space<vmem>>, vector<2x16x16x128xf32>
    %145 = arith.truncf %144 : vector<2x16x16x128xf32> to vector<2x16x16x128xbf16>
    %146 = vector.shape_cast %145 : vector<2x16x16x128xbf16> to vector<512x128xbf16>
    %c2_173 = arith.constant 2 : index
    %c1_174 = arith.constant 1 : index
    %c0_175 = arith.constant 0 : index
    %c0_176 = arith.constant 0 : index
    %147 = vector.load %arg5[%c2_173, %c1_174, %c0_175, %c0_176] : memref<3x3x128x128xbf16, #tpu.memory_space<vmem>>, vector<1x1x128x128xbf16>
    %148 = vector.shape_cast %147 : vector<1x1x128x128xbf16> to vector<128x128xbf16>
    %cst_177 = arith.constant dense<0.000000e+00> : vector<512x128xf32>
    %149 = tpu.matmul %146, %148, %cst_177 {dimension_numbers = #tpu.dot_dimension_numbers<[1], [0], [0], [1], [0, 0, 1, 1], [], []>} : vector<512x128xbf16>, vector<128x128xbf16>, vector<512x128xf32> -> vector<512x128xf32>
    %150 = arith.addf %143, %149 : vector<512x128xf32>
    %c0_178 = arith.constant 0 : index
    %c2_179 = arith.constant 2 : index
    %c2_180 = arith.constant 2 : index
    %c0_181 = arith.constant 0 : index
    %151 = vector.load %arg9[%c0_178, %c2_179, %c2_180, %c0_181] : memref<2x18x18x128xf32, #tpu.memory_space<vmem>>, vector<2x16x16x128xf32>
    %152 = arith.truncf %151 : vector<2x16x16x128xf32> to vector<2x16x16x128xbf16>
    %153 = vector.shape_cast %152 : vector<2x16x16x128xbf16> to vector<512x128xbf16>
    %c2_182 = arith.constant 2 : index
    %c2_183 = arith.constant 2 : index
    %c0_184 = arith.constant 0 : index
    %c0_185 = arith.constant 0 : index
    %154 = vector.load %arg5[%c2_182, %c2_183, %c0_184, %c0_185] : memref<3x3x128x128xbf16, #tpu.memory_space<vmem>>, vector<1x1x128x128xbf16>
    %155 = vector.shape_cast %154 : vector<1x1x128x128xbf16> to vector<128x128xbf16>
    %cst_186 = arith.constant dense<0.000000e+00> : vector<512x128xf32>
    %156 = tpu.matmul %153, %155, %cst_186 {dimension_numbers = #tpu.dot_dimension_numbers<[1], [0], [0], [1], [0, 0, 1, 1], [], []>} : vector<512x128xbf16>, vector<128x128xbf16>, vector<512x128xf32> -> vector<512x128xf32>
    %157 = arith.addf %150, %156 : vector<512x128xf32>
    %cst_187 = arith.constant dense<0.000000e+00> : vector<128xf32>
    %158 = vector.multi_reduction <add>, %157, %cst_187 [0] : vector<512x128xf32> to vector<128xf32>
    %159 = vector.shape_cast %158 : vector<128xf32> to vector<1x128xf32>
    %cst_188 = arith.constant 5.120000e+02 : f32
    %160 = vector.broadcast %cst_188 : f32 to vector<1x128xf32>
    %161 = arith.divf %159, %160 : vector<1x128xf32>
    %162 = vector.broadcast %161 : vector<1x128xf32> to vector<512x128xf32>
    %163 = arith.subf %157, %162 : vector<512x128xf32>
    %164 = arith.mulf %163, %163 : vector<512x128xf32>
    %cst_189 = arith.constant dense<0.000000e+00> : vector<128xf32>
    %165 = vector.multi_reduction <add>, %164, %cst_189 [0] : vector<512x128xf32> to vector<128xf32>
    %166 = vector.shape_cast %165 : vector<128xf32> to vector<1x128xf32>
    %cst_190 = arith.constant 5.120000e+02 : f32
    %167 = vector.broadcast %cst_190 : f32 to vector<1x128xf32>
    %168 = arith.divf %166, %167 : vector<1x128xf32>
    %cst_191 = arith.constant 9.99999974E-6 : f32
    %169 = vector.broadcast %cst_191 : f32 to vector<1x128xf32>
    %170 = arith.addf %168, %169 : vector<1x128xf32>
    %171 = math.rsqrt %170 : vector<1x128xf32>
    %172 = vector.broadcast %171 : vector<1x128xf32> to vector<512x128xf32>
    %173 = arith.mulf %163, %172 : vector<512x128xf32>
    %c0_192 = arith.constant 0 : index
    %c0_193 = arith.constant 0 : index
    %174 = vector.load %arg6[%c0_192, %c0_193] : memref<1x128xf32, #tpu.memory_space<vmem>>, vector<1x128xf32>
    %175 = vector.broadcast %174 : vector<1x128xf32> to vector<512x128xf32>
    %176 = arith.mulf %173, %175 : vector<512x128xf32>
    %c0_194 = arith.constant 0 : index
    %c0_195 = arith.constant 0 : index
    %177 = vector.load %arg7[%c0_194, %c0_195] : memref<1x128xf32, #tpu.memory_space<vmem>>, vector<1x128xf32>
    %178 = vector.broadcast %177 : vector<1x128xf32> to vector<512x128xf32>
    %179 = arith.addf %176, %178 : vector<512x128xf32>
    %180 = vector.shape_cast %0 : vector<2x16x16x128xf32> to vector<512x128xf32>
    %181 = arith.addf %179, %180 : vector<512x128xf32>
    %cst_196 = arith.constant 0.000000e+00 : f32
    %182 = vector.broadcast %cst_196 : f32 to vector<512x128xf32>
    %183 = arith.maximumf %181, %182 : vector<512x128xf32>
    %184 = vector.shape_cast %183 : vector<512x128xf32> to vector<2x16x16x128xf32>
    %c0_197 = arith.constant 0 : index
    %c0_198 = arith.constant 0 : index
    %c0_199 = arith.constant 0 : index
    %c0_200 = arith.constant 0 : index
    %185 = vector.load %arg8[%c0_197, %c0_198, %c0_199, %c0_200] : memref<2x16x16x128xf32, #tpu.memory_space<vmem>>, vector<2x16x16x128xf32>
    tpu.vector_store %arg8[%c0_197, %c0_198, %c0_199, %c0_200], %184 {strides = array<i32>} : memref<2x16x16x128xf32, #tpu.memory_space<vmem>>, vector<2x16x16x128xf32>,
    return
  }
  func.func @transform_0(%arg0: i32) -> (i32, i32, i32, i32) {
    %c0_i32 = arith.constant 0 : i32
    %c0_i32_0 = arith.constant 0 : i32
    %c0_i32_1 = arith.constant 0 : i32
    %c0_i32_2 = arith.constant 0 : i32
    %c0_i32_3 = arith.constant 0 : i32
    return %c0_i32, %c0_i32_0, %c0_i32_1, %c0_i32_2 : i32, i32, i32, i32
  }
  func.func @transform_1(%arg0: i32) -> (i32, i32, i32, i32) {
    %c0_i32 = arith.constant 0 : i32
    %c0_i32_0 = arith.constant 0 : i32
    %c0_i32_1 = arith.constant 0 : i32
    %c0_i32_2 = arith.constant 0 : i32
    %c0_i32_3 = arith.constant 0 : i32
    return %c0_i32, %c0_i32_0, %c0_i32_1, %c0_i32_2 : i32, i32, i32, i32
  }
  func.func @transform_2(%arg0: i32) -> (i32, i32) {
    %c0_i32 = arith.constant 0 : i32
    %c0_i32_0 = arith.constant 0 : i32
    %c0_i32_1 = arith.constant 0 : i32
    return %c0_i32, %c0_i32_0 : i32, i32
  }
  func.func @transform_3(%arg0: i32) -> (i32, i32) {
    %c0_i32 = arith.constant 0 : i32
    %c0_i32_0 = arith.constant 0 : i32
    %c0_i32_1 = arith.constant 0 : i32
    return %c0_i32, %c0_i32_0 : i32, i32
  }
  func.func @transform_4(%arg0: i32) -> (i32, i32, i32, i32) {
    %c0_i32 = arith.constant 0 : i32
    %c0_i32_0 = arith.constant 0 : i32
    %c0_i32_1 = arith.constant 0 : i32
    %c0_i32_2 = arith.constant 0 : i32
    %c0_i32_3 = arith.constant 0 : i32
    return %c0_i32, %c0_i32_0, %c0_i32_1, %c0_i32_2 : i32, i32, i32, i32
  }
  func.func @transform_5(%arg0: i32) -> (i32, i32) {
    %c0_i32 = arith.constant 0 : i32
    %c0_i32_0 = arith.constant 0 : i32
    %c0_i32_1 = arith.constant 0 : i32
    return %c0_i32, %c0_i32_0 : i32, i32
  }
  func.func @transform_6(%arg0: i32) -> (i32, i32) {
    %c0_i32 = arith.constant 0 : i32
    %c0_i32_0 = arith.constant 0 : i32
    %c0_i32_1 = arith.constant 0 : i32
    return %c0_i32, %c0_i32_0 : i32, i32
  }
  func.func @transform_7(%arg0: i32) -> (i32, i32, i32, i32) {
    %c0_i32 = arith.constant 0 : i32
    %c0_i32_0 = arith.constant 0 : i32
    %c0_i32_1 = arith.constant 0 : i32
    %c0_i32_2 = arith.constant 0 : i32
    %c0_i32_3 = arith.constant 0 : i32
    return %c0_i32, %c0_i32_0, %c0_i32_1, %c0_i32_2 : i32, i32, i32, i32
  }
}

</mosaic_0001>

<llo_original>
// kernel: tpu_custom_call.1
$region0: #{tpu_custom_call.1}
  #allocation0 [shape = 'u32[]', space=smem, size = 0x4, offset = 0x4, fixed_abs, tag = 'smem constant byte address 0x4 - core index']
  #allocation1 [shape = 'u32[144,128]{1,0:T(1,128)}', space=vmem, size = 0x12000, scoped, tag = 'internal scratch']
  #allocation2 [shape = 'f32[2,18,18,128]{3,2,1,0:T(8,128)}', space=vmem, size = 0x6c000, scoped, tag = 'scratch operand']
  %s0 = inlined_call_operand.hbm [shape: f32[2,16,16,128], index: 0, kind: input, shape index: {}]
  %s1 = inlined_call_operand.hbm [shape: bf16[3,3,128,128], index: 1, kind: input, shape index: {}]
  %s2 = inlined_call_operand.vmem [shape: f32[1,128], index: 2, kind: input, shape index: {}]
  %s3 = inlined_call_operand.vmem [shape: f32[1,128], index: 3, kind: input, shape index: {}]
  %s4 = inlined_call_operand.hbm [shape: bf16[3,3,128,128], index: 4, kind: input, shape index: {}]
  %s5 = inlined_call_operand.vmem [shape: f32[1,128], index: 5, kind: input, shape index: {}]
  %s6 = inlined_call_operand.vmem [shape: f32[1,128], index: 6, kind: input, shape index: {}]
  %s7 = inlined_call_operand.hbm [shape: f32[2,16,16,128], index: 7, kind: output, shape index: {}]
  %s8 = sld [smem:[#allocation0]]
  $region50: #{tpu_custom_call.1} parent=0
    _
  %s10 = ssub.s32 1, %s8
  %s11 = scalar_select 0, %s10, %s8
  $region1: #{tpu_custom_call.1} parent=0
    #allocation3 [shape = 'u8[262144]{0}', space=vmem, size = 0x40000, scoped, tag = 'input window, operand 0, single buffered']
    #allocation4 [shape = 's32[1]{0}', space=sflag, size = 0x4, scoped, tag = 'scoped memory for tpu_custom_call.1']
    #allocation5 [shape = 's32[1]{0}', space=sflag, size = 0x4, scoped, tag = 'scoped memory for tpu_custom_call.1']
    #allocation6 [shape = 'u8[294912]{0}', space=vmem, size = 0x48000, scoped, tag = 'input window, operand 1, single buffered']
    #allocation7 [shape = 's32[1]{0}', space=sflag, size = 0x4, scoped, tag = 'scoped memory for tpu_custom_call.1']
    #allocation8 [shape = 'u8[294912]{0}', space=vmem, size = 0x48000, scoped, tag = 'input window, operand 4, single buffered']
    #allocation9 [shape = 'u8[262144]{0}', space=vmem, size = 0x40000, scoped, tag = 'output window, operand 0, single buffered']
    %12 = vsyncpa [#allocation4], 0
    %13 = vsyncpa [#allocation7], 0
    %14 = vsyncpa [#allocation5], 0
    // Predicated region
    $region2: #{tpu_custom_call.1} parent=1 // pred_check
      _
    $region3: #{tpu_custom_call.1} parent=1 // pred_check_branch
      %16 = sbr.rel (0) target = $region5
    $region4: #{tpu_custom_call.1} parent=1 // pred_region
      %s18 = ssub.s32 8192, 8192
      %19 = vsyncadd [#allocation4], %s18
      %s20 = sshll.u32 [#allocation3], 4
      %s21 = int_to_ptr.vmem [resolvable:$true] %s20
      %26 = dma.hbm_to_vmem [thread:$0]  %s0, 8192, %s21, [#allocation4], 128, 128, 8
    $region5: #{tpu_custom_call.1} parent=1 // pred_fallthru
      _
    // Predicated region
    $region6: #{tpu_custom_call.1} parent=1 // pred_check
      _
    $region7: #{tpu_custom_call.1} parent=1 // pred_check_branch
      %28 = sbr.rel (0) target = $region9
    $region8: #{tpu_custom_call.1} parent=1 // pred_region
      %s30 = ssub.s32 9216, 9216
      %31 = vsyncadd [#allocation7], %s30
      %s32 = sshll.u32 [#allocation6], 4
      %s33 = int_to_ptr.vmem [resolvable:$true] %s32
      %38 = dma.hbm_to_vmem [thread:$0]  %s1, 9216, %s33, [#allocation7], 64, 64, 4
    $region9: #{tpu_custom_call.1} parent=1 // pred_fallthru
      _
    // Predicated region
    $region10: #{tpu_custom_call.1} parent=1 // pred_check
      _
    $region11: #{tpu_custom_call.1} parent=1 // pred_check_branch
      %40 = sbr.rel (0) target = $region13
    $region12: #{tpu_custom_call.1} parent=1 // pred_region
      _
    $region13: #{tpu_custom_call.1} parent=1 // pred_fallthru
      _
    // Predicated region
    $region14: #{tpu_custom_call.1} parent=1 // pred_check
      _
    $region15: #{tpu_custom_call.1} parent=1 // pred_check_branch
      %42 = sbr.rel (0) target = $region17
    $region16: #{tpu_custom_call.1} parent=1 // pred_region
      _
    $region17: #{tpu_custom_call.1} parent=1 // pred_fallthru
      _
    // Predicated region
    $region18: #{tpu_custom_call.1} parent=1 // pred_check
      _
    $region19: #{tpu_custom_call.1} parent=1 // pred_check_branch
      %44 = sbr.rel (0) target = $region21
    $region20: #{tpu_custom_call.1} parent=1 // pred_region
      %s46 = ssub.s32 9216, 9216
      %47 = vsyncadd [#allocation7], %s46
      %s48 = sshll.u32 [#allocation8], 4
      %s49 = int_to_ptr.vmem [resolvable:$true] %s48
      %54 = dma.hbm_to_vmem [thread:$0]  %s4, 9216, %s49, [#allocation7], 64, 64, 4
    $region21: #{tpu_custom_call.1} parent=1 // pred_fallthru
      _
    // Predicated region
    $region22: #{tpu_custom_call.1} parent=1 // pred_check
      _
    $region23: #{tpu_custom_call.1} parent=1 // pred_check_branch
      %56 = sbr.rel (0) target = $region25
    $region24: #{tpu_custom_call.1} parent=1 // pred_region
      _
    $region25: #{tpu_custom_call.1} parent=1 // pred_fallthru
      _
    // Predicated region
    $region26: #{tpu_custom_call.1} parent=1 // pred_check
      _
    $region27: #{tpu_custom_call.1} parent=1 // pred_check_branch
      %58 = sbr.rel (0) target = $region29
    $region28: #{tpu_custom_call.1} parent=1 // pred_region
      _
    $region29: #{tpu_custom_call.1} parent=1 // pred_fallthru
      _
    // Predicated region
    $region30: #{tpu_custom_call.1} parent=1 // pred_check
      _
    $region31: #{tpu_custom_call.1} parent=1 // pred_check_branch
      %60 = sbr.rel (0) target = $region33
    $region32: #{tpu_custom_call.1} parent=1 // pred_region
      %61 = dma.done [#allocation4], 8192
    $region33: #{tpu_custom_call.1} parent=1 // pred_fallthru
      _
    // Predicated region
    $region34: #{tpu_custom_call.1} parent=1 // pred_check
      _
    $region35: #{tpu_custom_call.1} parent=1 // pred_check_branch
      %63 = sbr.rel (0) target = $region37
    $region36: #{tpu_custom_call.1} parent=1 // pred_region
      %64 = dma.done [#allocation7], 9216
    $region37: #{tpu_custom_call.1} parent=1 // pred_fallthru
      _
    // Predicated region
    $region38: #{tpu_custom_call.1} parent=1 // pred_check
      _
    $region39: #{tpu_custom_call.1} parent=1 // pred_check_branch
      %66 = sbr.rel (0) target = $region41
    $region40: #{tpu_custom_call.1} parent=1 // pred_region
      %67 = dma.done [#allocation7], 9216
    $region41: #{tpu_custom_call.1} parent=1 // pred_fallthru
      _
    %v69 = vld [vmem:[#allocation3] sm:$0xff]
    %v70 = vld [vmem:[#allocation3 + $0x8] sm:$0xff]
    %v71 = vld [vmem:[#allocation3 + $0x10] sm:$0xff]
    %v72 = vld [vmem:[#allocation3 + $0x18] sm:$0xff]
    %v73 = vld [vmem:[#allocation3 + $0x20] sm:$0xff]
    %v74 = vld [vmem:[#allocation3 + $0x28] sm:$0xff]
    %v75 = vld [vmem:[#allocation3 + $0x30] sm:$0xff]
    %v76 = vld [vmem:[#allocation3 + $0x38] sm:$0xff]
    %v77 = vld [vmem:[#allocation3 + $0x40] sm:$0xff]
    %v78 = vld [vmem:[#allocation3 + $0x48] sm:$0xff]
    %v79 = vld [vmem:[#allocation3 + $0x50] sm:$0xff]
    %v80 = vld [vmem:[#allocation3 + $0x58] sm:$0xff]
    %v81 = vld [vmem:[#allocation3 + $0x60] sm:$0xff]
    %v82 = vld [vmem:[#allocation3 + $0x68] sm:$0xff]
    %v83 = vld [vmem:[#allocation3 + $0x70] sm:$0xff]
    %v84 = vld [vmem:[#allocation3 + $0x78] sm:$0xff]
    %v85 = vld [vmem:[#allocation3 + $0x80] sm:$0xff]
    %v86 = vld [vmem:[#allocation3 + $0x88] sm:$0xff]
    %v87 = vld [vmem:[#allocation3 + $0x90] sm:$0xff]
    %v88 = vld [vmem:[#allocation3 + $0x98] sm:$0xff]
    %v89 = vld [vmem:[#allocation3 + $0xa0] sm:$0xff]
    %v90 = vld [vmem:[#allocation3 + $0xa8] sm:$0xff]
    %v91 = vld [vmem:[#allocation3 + $0xb0] sm:$0xff]
    %v92 = vld [vmem:[#allocation3 + $0xb8] sm:$0xff]
    %v93 = vld [vmem:[#allocation3 + $0xc0] sm:$0xff]
    %v94 = vld [vmem:[#allocation3 + $0xc8] sm:$0xff]
    %v95 = vld [vmem:[#allocation3 + $0xd0] sm:$0xff]
    %v96 = vld [vmem:[#allocation3 + $0xd8] sm:$0xff]
    %v97 = vld [vmem:[#allocation3 + $0xe0] sm:$0xff]
    %v98 = vld [vmem:[#allocation3 + $0xe8] sm:$0xff]
    %v99 = vld [vmem:[#allocation3 + $0xf0] sm:$0xff]
    %v100 = vld [vmem:[#allocation3 + $0xf8] sm:$0xff]
    %v101 = vld [vmem:[#allocation3 + $0x100] sm:$0xff]
    %v102 = vld [vmem:[#allocation3 + $0x108] sm:$0xff]
    %v103 = vld [vmem:[#allocation3 + $0x110] sm:$0xff]
    %v104 = vld [vmem:[#allocation3 + $0x118] sm:$0xff]
    %v105 = vld [vmem:[#allocation3 + $0x120] sm:$0xff]
    %v106 = vld [vmem:[#allocation3 + $0x128] sm:$0xff]
    %v107 = vld [vmem:[#allocation3 + $0x130] sm:$0xff]
    %v108 = vld [vmem:[#allocation3 + $0x138] sm:$0xff]
    %v109 = vld [vmem:[#allocation3 + $0x140] sm:$0xff]
    %v110 = vld [vmem:[#allocation3 + $0x148] sm:$0xff]
    %v111 = vld [vmem:[#allocation3 + $0x150] sm:$0xff]
    %v112 = vld [vmem:[#allocation3 + $0x158] sm:$0xff]
    %v113 = vld [vmem:[#allocation3 + $0x160] sm:$0xff]
    %v114 = vld [vmem:[#allocation3 + $0x168] sm:$0xff]
    %v115 = vld [vmem:[#allocation3 + $0x170] sm:$0xff]
    %v116 = vld [vmem:[#allocation3 + $0x178] sm:$0xff]
    %v117 = vld [vmem:[#allocation3 + $0x180] sm:$0xff]
    %v118 = vld [vmem:[#allocation3 + $0x188] sm:$0xff]
    %v119 = vld [vmem:[#allocation3 + $0x190] sm:$0xff]
    %v120 = vld [vmem:[#allocation3 + $0x198] sm:$0xff]
    %v121 = vld [vmem:[#allocation3 + $0x1a0] sm:$0xff]
    %v122 = vld [vmem:[#allocation3 + $0x1a8] sm:$0xff]
    %v123 = vld [vmem:[#allocation3 + $0x1b0] sm:$0xff]
    %v124 = vld [vmem:[#allocation3 + $0x1b8] sm:$0xff]
    %v125 = vld [vmem:[#allocation3 + $0x1c0] sm:$0xff]
    %v126 = vld [vmem:[#allocation3 + $0x1c8] sm:$0xff]
    %v127 = vld [vmem:[#allocation3 + $0x1d0] sm:$0xff]
    %v128 = vld [vmem:[#allocation3 + $0x1d8] sm:$0xff]
    %v129 = vld [vmem:[#allocation3 + $0x1e0] sm:$0xff]
    %v130 = vld [vmem:[#allocation3 + $0x1e8] sm:$0xff]
    %v131 = vld [vmem:[#allocation3 + $0x1f0] sm:$0xff]
    %v132 = vld [vmem:[#allocation3 + $0x1f8] sm:$0xff]
    %133 = vst [vmem:[#allocation2] sm:$0xff] 0.0
    %134 = vst [vmem:[#allocation2 + $0x8] sm:$0xff] 0.0
    %135 = vst [vmem:[#allocation2 + $0x10] sm:$0x3] 0.0
    %136 = vst [vmem:[#allocation2 + $0x18] sm:$0xff] 0.0
    %137 = vst [vmem:[#allocation2 + $0x20] sm:$0xff] 0.0
    %138 = vst [vmem:[#allocation2 + $0x28] sm:$0x3] 0.0
    %139 = vst [vmem:[#allocation2 + $0x30] sm:$0xff] 0.0
    %140 = vst [vmem:[#allocation2 + $0x38] sm:$0xff] 0.0
    %141 = vst [vmem:[#allocation2 + $0x40] sm:$0x3] 0.0
    %142 = vst [vmem:[#allocation2 + $0x48] sm:$0xff] 0.0
    %143 = vst [vmem:[#allocation2 + $0x50] sm:$0xff] 0.0
    %144 = vst [vmem:[#allocation2 + $0x58] sm:$0x3] 0.0
    %145 = vst [vmem:[#allocation2 + $0x60] sm:$0xff] 0.0
    %146 = vst [vmem:[#allocation2 + $0x68] sm:$0xff] 0.0
    %147 = vst [vmem:[#allocation2 + $0x70] sm:$0x3] 0.0
    %148 = vst [vmem:[#allocation2 + $0x78] sm:$0xff] 0.0
    %149 = vst [vmem:[#allocation2 + $0x80] sm:$0xff] 0.0
    %150 = vst [vmem:[#allocation2 + $0x88] sm:$0x3] 0.0
    %151 = vst [vmem:[#allocation2 + $0x90] sm:$0xff] 0.0
    %152 = vst [vmem:[#allocation2 + $0x98] sm:$0xff] 0.0
    %153 = vst [vmem:[#allocation2 + $0xa0] sm:$0x3] 0.0
    %154 = vst [vmem:[#allocation2 + $0xa8] sm:$0xff] 0.0
    %155 = vst [vmem:[#allocation2 + $0xb0] sm:$0xff] 0.0
    %156 = vst [vmem:[#allocation2 + $0xb8] sm:$0x3] 0.0
    %157 = vst [vmem:[#allocation2 + $0xc0] sm:$0xff] 0.0
    %158 = vst [vmem:[#allocation2 + $0xc8] sm:$0xff] 0.0
    %159 = vst [vmem:[#allocation2 + $0xd0] sm:$0x3] 0.0
    %160 = vst [vmem:[#allocation2 + $0xd8] sm:$0xff] 0.0
    %161 = vst [vmem:[#allocation2 + $0xe0] sm:$0xff] 0.0
    %162 = vst [vmem:[#allocation2 + $0xe8] sm:$0x3] 0.0
    %163 = vst [vmem:[#allocation2 + $0xf0] sm:$0xff] 0.0
    %164 = vst [vmem:[#allocation2 + $0xf8] sm:$0xff] 0.0
    %165 = vst [vmem:[#allocation2 + $0x100] sm:$0x3] 0.0
    %166 = vst [vmem:[#allocation2 + $0x108] sm:$0xff] 0.0
    %167 = vst [vmem:[#allocation2 + $0x110] sm:$0xff] 0.0
    %168 = vst [vmem:[#allocation2 + $0x118] sm:$0x3] 0.0
    %169 = vst [vmem:[#allocation2 + $0x120] sm:$0xff] 0.0
    %170 = vst [vmem:[#allocation2 + $0x128] sm:$0xff] 0.0
    %171 = vst [vmem:[#allocation2 + $0x130] sm:$0x3] 0.0
    %172 = vst [vmem:[#allocation2 + $0x138] sm:$0xff] 0.0
    %173 = vst [vmem:[#allocation2 + $0x140] sm:$0xff] 0.0
    %174 = vst [vmem:[#allocation2 + $0x148] sm:$0x3] 0.0
    %175 = vst [vmem:[#allocation2 + $0x150] sm:$0xff] 0.0
    %176 = vst [vmem:[#allocation2 + $0x158] sm:$0xff] 0.0
    %177 = vst [vmem:[#allocation2 + $0x160] sm:$0x3] 0.0
    %178 = vst [vmem:[#allocation2 + $0x168] sm:$0xff] 0.0
    %179 = vst [vmem:[#allocation2 + $0x170] sm:$0xff] 0.0
    %180 = vst [vmem:[#allocation2 + $0x178] sm:$0x3] 0.0
    %181 = vst [vmem:[#allocation2 + $0x180] sm:$0xff] 0.0
    %182 = vst [vmem:[#allocation2 + $0x188] sm:$0xff] 0.0
    %183 = vst [vmem:[#allocation2 + $0x190] sm:$0x3] 0.0
    %184 = vst [vmem:[#allocation2 + $0x198] sm:$0xff] 0.0
    %185 = vst [vmem:[#allocation2 + $0x1a0] sm:$0xff] 0.0
    %186 = vst [vmem:[#allocation2 + $0x1a8] sm:$0x3] 0.0
    %187 = vst [vmem:[#allocation2 + $0x1b0] sm:$0xff] 0.0
    %188 = vst [vmem:[#allocation2 + $0x1b8] sm:$0xff] 0.0
    %189 = vst [vmem:[#allocation2 + $0x1c0] sm:$0x3] 0.0
    %190 = vst [vmem:[#allocation2 + $0x1c8] sm:$0xff] 0.0
    %191 = vst [vmem:[#allocation2 + $0x1d0] sm:$0xff] 0.0
    %192 = vst [vmem:[#allocation2 + $0x1d8] sm:$0x3] 0.0
    %193 = vst [vmem:[#allocation2 + $0x1e0] sm:$0xff] 0.0
    %194 = vst [vmem:[#allocation2 + $0x1e8] sm:$0xff] 0.0
    %195 = vst [vmem:[#allocation2 + $0x1f0] sm:$0x3] 0.0
    %196 = vst [vmem:[#allocation2 + $0x1f8] sm:$0xff] 0.0
    %197 = vst [vmem:[#allocation2 + $0x200] sm:$0xff] 0.0
    %198 = vst [vmem:[#allocation2 + $0x208] sm:$0x3] 0.0
    %199 = vst [vmem:[#allocation2 + $0x210] sm:$0xff] 0.0
    %200 = vst [vmem:[#allocation2 + $0x218] sm:$0xff] 0.0
    %201 = vst [vmem:[#allocation2 + $0x220] sm:$0x3] 0.0
    %202 = vst [vmem:[#allocation2 + $0x228] sm:$0xff] 0.0
    %203 = vst [vmem:[#allocation2 + $0x230] sm:$0xff] 0.0
    %204 = vst [vmem:[#allocation2 + $0x238] sm:$0x3] 0.0
    %205 = vst [vmem:[#allocation2 + $0x240] sm:$0xff] 0.0
    %206 = vst [vmem:[#allocation2 + $0x248] sm:$0xff] 0.0
    %207 = vst [vmem:[#allocation2 + $0x250] sm:$0x3] 0.0
    %208 = vst [vmem:[#allocation2 + $0x258] sm:$0xff] 0.0
    %209 = vst [vmem:[#allocation2 + $0x260] sm:$0xff] 0.0
    %210 = vst [vmem:[#allocation2 + $0x268] sm:$0x3] 0.0
    %211 = vst [vmem:[#allocation2 + $0x270] sm:$0xff] 0.0
    %212 = vst [vmem:[#allocation2 + $0x278] sm:$0xff] 0.0
    %213 = vst [vmem:[#allocation2 + $0x280] sm:$0x3] 0.0
    %214 = vst [vmem:[#allocation2 + $0x288] sm:$0xff] 0.0
    %215 = vst [vmem:[#allocation2 + $0x290] sm:$0xff] 0.0
    %216 = vst [vmem:[#allocation2 + $0x298] sm:$0x3] 0.0
    %217 = vst [vmem:[#allocation2 + $0x2a0] sm:$0xff] 0.0
    %218 = vst [vmem:[#allocation2 + $0x2a8] sm:$0xff] 0.0
    %219 = vst [vmem:[#allocation2 + $0x2b0] sm:$0x3] 0.0
    %220 = vst [vmem:[#allocation2 + $0x2b8] sm:$0xff] 0.0
    %221 = vst [vmem:[#allocation2 + $0x2c0] sm:$0xff] 0.0
    %222 = vst [vmem:[#allocation2 + $0x2c8] sm:$0x3] 0.0
    %223 = vst [vmem:[#allocation2 + $0x2d0] sm:$0xff] 0.0
    %224 = vst [vmem:[#allocation2 + $0x2d8] sm:$0xff] 0.0
    %225 = vst [vmem:[#allocation2 + $0x2e0] sm:$0x3] 0.0
    %226 = vst [vmem:[#allocation2 + $0x2e8] sm:$0xff] 0.0
    %227 = vst [vmem:[#allocation2 + $0x2f0] sm:$0xff] 0.0
    %228 = vst [vmem:[#allocation2 + $0x2f8] sm:$0x3] 0.0
    %229 = vst [vmem:[#allocation2 + $0x300] sm:$0xff] 0.0
    %230 = vst [vmem:[#allocation2 + $0x308] sm:$0xff] 0.0
    %231 = vst [vmem:[#allocation2 + $0x310] sm:$0x3] 0.0
    %232 = vst [vmem:[#allocation2 + $0x318] sm:$0xff] 0.0
    %233 = vst [vmem:[#allocation2 + $0x320] sm:$0xff] 0.0
    %234 = vst [vmem:[#allocation2 + $0x328] sm:$0x3] 0.0
    %235 = vst [vmem:[#allocation2 + $0x330] sm:$0xff] 0.0
    %236 = vst [vmem:[#allocation2 + $0x338] sm:$0xff] 0.0
    %237 = vst [vmem:[#allocation2 + $0x340] sm:$0x3] 0.0
    %238 = vst [vmem:[#allocation2 + $0x348] sm:$0xff] 0.0
    %239 = vst [vmem:[#allocation2 + $0x350] sm:$0xff] 0.0
    %240 = vst [vmem:[#allocation2 + $0x358] sm:$0x3] 0.0
    %s241 = scalar_lea.vmem [#allocation2], 24
    %242 = vst [vmem:[%s241 + $0x1] sm:$0xff] %v69
    %243 = vst [vmem:[%s241 + $0x9] sm:$0xff] %v70
    %244 = vst [vmem:[%s241 + $0x19] sm:$0xff] %v71
    %245 = vst [vmem:[%s241 + $0x21] sm:$0xff] %v72
    %246 = vst [vmem:[%s241 + $0x31] sm:$0xff] %v73
    %247 = vst [vmem:[%s241 + $0x39] sm:$0xff] %v74
    %248 = vst [vmem:[%s241 + $0x49] sm:$0xff] %v75
    %249 = vst [vmem:[%s241 + $0x51] sm:$0xff] %v76
    %250 = vst [vmem:[%s241 + $0x61] sm:$0xff] %v77
    %251 = vst [vmem:[%s241 + $0x69] sm:$0xff] %v78
    %252 = vst [vmem:[%s241 + $0x79] sm:$0xff] %v79
    %253 = vst [vmem:[%s241 + $0x81] sm:$0xff] %v80
    %254 = vst [vmem:[%s241 + $0x91] sm:$0xff] %v81
    %255 = vst [vmem:[%s241 + $0x99] sm:$0xff] %v82
    %256 = vst [vmem:[%s241 + $0xa9] sm:$0xff] %v83
    %257 = vst [vmem:[%s241 + $0xb1] sm:$0xff] %v84
    %258 = vst [vmem:[%s241 + $0xc1] sm:$0xff] %v85
    %259 = vst [vmem:[%s241 + $0xc9] sm:$0xff] %v86
    %260 = vst [vmem:[%s241 + $0xd9] sm:$0xff] %v87
    %261 = vst [vmem:[%s241 + $0xe1] sm:$0xff] %v88
    %262 = vst [vmem:[%s241 + $0xf1] sm:$0xff] %v89
    %263 = vst [vmem:[%s241 + $0xf9] sm:$0xff] %v90
    %264 = vst [vmem:[%s241 + $0x109] sm:$0xff] %v91
    %265 = vst [vmem:[%s241 + $0x111] sm:$0xff] %v92
    %266 = vst [vmem:[%s241 + $0x121] sm:$0xff] %v93
    %267 = vst [vmem:[%s241 + $0x129] sm:$0xff] %v94
    %268 = vst [vmem:[%s241 + $0x139] sm:$0xff] %v95
    %269 = vst [vmem:[%s241 + $0x141] sm:$0xff] %v96
    %270 = vst [vmem:[%s241 + $0x151] sm:$0xff] %v97
    %271 = vst [vmem:[%s241 + $0x159] sm:$0xff] %v98
    %272 = vst [vmem:[%s241 + $0x169] sm:$0xff] %v99
    %273 = vst [vmem:[%s241 + $0x171] sm:$0xff] %v100
    %274 = vst [vmem:[%s241 + $0x1b1] sm:$0xff] %v101
    %275 = vst [vmem:[%s241 + $0x1b9] sm:$0xff] %v102
    %276 = vst [vmem:[%s241 + $0x1c9] sm:$0xff] %v103
    %277 = vst [vmem:[%s241 + $0x1d1] sm:$0xff] %v104
    %278 = vst [vmem:[%s241 + $0x1e1] sm:$0xff] %v105
    %279 = vst [vmem:[%s241 + $0x1e9] sm:$0xff] %v106
    %280 = vst [vmem:[%s241 + $0x1f9] sm:$0xff] %v107
    %281 = vst [vmem:[%s241 + $0x201] sm:$0xff] %v108
    %282 = vst [vmem:[%s241 + $0x211] sm:$0xff] %v109
    %283 = vst [vmem:[%s241 + $0x219] sm:$0xff] %v110
    %284 = vst [vmem:[%s241 + $0x229] sm:$0xff] %v111
    %285 = vst [vmem:[%s241 + $0x231] sm:$0xff] %v112
    %286 = vst [vmem:[%s241 + $0x241] sm:$0xff] %v113
    %287 = vst [vmem:[%s241 + $0x249] sm:$0xff] %v114
    %288 = vst [vmem:[%s241 + $0x259] sm:$0xff] %v115
    %289 = vst [vmem:[%s241 + $0x261] sm:$0xff] %v116
    %290 = vst [vmem:[%s241 + $0x271] sm:$0xff] %v117
    %291 = vst [vmem:[%s241 + $0x279] sm:$0xff] %v118
    %292 = vst [vmem:[%s241 + $0x289] sm:$0xff] %v119
    %293 = vst [vmem:[%s241 + $0x291] sm:$0xff] %v120
    %294 = vst [vmem:[%s241 + $0x2a1] sm:$0xff] %v121
    %295 = vst [vmem:[%s241 + $0x2a9] sm:$0xff] %v122
    %296 = vst [vmem:[%s241 + $0x2b9] sm:$0xff] %v123
    %297 = vst [vmem:[%s241 + $0x2c1] sm:$0xff] %v124
    %298 = vst [vmem:[%s241 + $0x2d1] sm:$0xff] %v125
    %299 = vst [vmem:[%s241 + $0x2d9] sm:$0xff] %v126
    %300 = vst [vmem:[%s241 + $0x2e9] sm:$0xff] %v127
    %301 = vst [vmem:[%s241 + $0x2f1] sm:$0xff] %v128
    %302 = vst [vmem:[%s241 + $0x301] sm:$0xff] %v129
    %303 = vst [vmem:[%s241 + $0x309] sm:$0xff] %v130
    %304 = vst [vmem:[%s241 + $0x319] sm:$0xff] %v131
    %305 = vst [vmem:[%s241 + $0x321] sm:$0xff] %v132
    %v306 = vld [vmem:[#allocation2] sm:$0xff]
    %v307 = vld [vmem:[#allocation2 + $0x8] sm:$0xff]
    %v308 = vld [vmem:[#allocation2 + $0x18] sm:$0xff]
    %v309 = vld [vmem:[#allocation2 + $0x20] sm:$0xff]
    %v310 = vld [vmem:[#allocation2 + $0x30] sm:$0xff]
    %v311 = vld [vmem:[#allocation2 + $0x38] sm:$0xff]
    %v312 = vld [vmem:[#allocation2 + $0x48] sm:$0xff]
    %v313 = vld [vmem:[#allocation2 + $0x50] sm:$0xff]
    %v314 = vld [vmem:[#allocation2 + $0x60] sm:$0xff]
    %v315 = vld [vmem:[#allocation2 + $0x68] sm:$0xff]
    %v316 = vld [vmem:[#allocation2 + $0x78] sm:$0xff]
    %v317 = vld [vmem:[#allocation2 + $0x80] sm:$0xff]
    %v318 = vld [vmem:[#allocation2 + $0x90] sm:$0xff]
    %v319 = vld [vmem:[#allocation2 + $0x98] sm:$0xff]
    %v320 = vld [vmem:[#allocation2 + $0xa8] sm:$0xff]
    %v321 = vld [vmem:[#allocation2 + $0xb0] sm:$0xff]
    %v322 = vld [vmem:[#allocation2 + $0xc0] sm:$0xff]
    %v323 = vld [vmem:[#allocation2 + $0xc8] sm:$0xff]
    %v324 = vld [vmem:[#allocation2 + $0xd8] sm:$0xff]
    %v325 = vld [vmem:[#allocation2 + $0xe0] sm:$0xff]
    %v326 = vld [vmem:[#allocation2 + $0xf0] sm:$0xff]
    %v327 = vld [vmem:[#allocation2 + $0xf8] sm:$0xff]
    %v328 = vld [vmem:[#allocation2 + $0x108] sm:$0xff]
    %v329 = vld [vmem:[#allocation2 + $0x110] sm:$0xff]
    %v330 = vld [vmem:[#allocation2 + $0x120] sm:$0xff]
    %v331 = vld [vmem:[#allocation2 + $0x128] sm:$0xff]
    %v332 = vld [vmem:[#allocation2 + $0x138] sm:$0xff]
    %v333 = vld [vmem:[#allocation2 + $0x140] sm:$0xff]
    %v334 = vld [vmem:[#allocation2 + $0x150] sm:$0xff]
    %v335 = vld [vmem:[#allocation2 + $0x158] sm:$0xff]
    %v336 = vld [vmem:[#allocation2 + $0x168] sm:$0xff]
    %v337 = vld [vmem:[#allocation2 + $0x170] sm:$0xff]
    %v338 = vld [vmem:[#allocation2 + $0x1b0] sm:$0xff]
    %v339 = vld [vmem:[#allocation2 + $0x1b8] sm:$0xff]
    %v340 = vld [vmem:[#allocation2 + $0x1c8] sm:$0xff]
    %v341 = vld [vmem:[#allocation2 + $0x1d0] sm:$0xff]
    %v342 = vld [vmem:[#allocation2 + $0x1e0] sm:$0xff]
    %v343 = vld [vmem:[#allocation2 + $0x1e8] sm:$0xff]
    %v344 = vld [vmem:[#allocation2 + $0x1f8] sm:$0xff]
    %v345 = vld [vmem:[#allocation2 + $0x200] sm:$0xff]
    %v346 = vld [vmem:[#allocation2 + $0x210] sm:$0xff]
    %v347 = vld [vmem:[#allocation2 + $0x218] sm:$0xff]
    %v348 = vld [vmem:[#allocation2 + $0x228] sm:$0xff]
    %v349 = vld [vmem:[#allocation2 + $0x230] sm:$0xff]
    %v350 = vld [vmem:[#allocation2 + $0x240] sm:$0xff]
    %v351 = vld [vmem:[#allocation2 + $0x248] sm:$0xff]
    %v352 = vld [vmem:[#allocation2 + $0x258] sm:$0xff]
    %v353 = vld [vmem:[#allocation2 + $0x260] sm:$0xff]
    %v354 = vld [vmem:[#allocation2 + $0x270] sm:$0xff]
    %v355 = vld [vmem:[#allocation2 + $0x278] sm:$0xff]
    %v356 = vld [vmem:[#allocation2 + $0x288] sm:$0xff]
    %v357 = vld [vmem:[#allocation2 + $0x290] sm:$0xff]
    %v358 = vld [vmem:[#allocation2 + $0x2a0] sm:$0xff]
    %v359 = vld [vmem:[#allocation2 + $0x2a8] sm:$0xff]
    %v360 = vld [vmem:[#allocation2 + $0x2b8] sm:$0xff]
    %v361 = vld [vmem:[#allocation2 + $0x2c0] sm:$0xff]
    %v362 = vld [vmem:[#allocation2 + $0x2d0] sm:$0xff]
    %v363 = vld [vmem:[#allocation2 + $0x2d8] sm:$0xff]
    %v364 = vld [vmem:[#allocation2 + $0x2e8] sm:$0xff]
    %v365 = vld [vmem:[#allocation2 + $0x2f0] sm:$0xff]
    %v366 = vld [vmem:[#allocation2 + $0x300] sm:$0xff]
    %v367 = vld [vmem:[#allocation2 + $0x308] sm:$0xff]
    %v368 = vld [vmem:[#allocation2 + $0x318] sm:$0xff]
    %v369 = vld [vmem:[#allocation2 + $0x320] sm:$0xff]
    %v370 = vpack.c.bf16 %v307, %v306
    %v371 = vpack.c.bf16 %v309, %v308
    %v372 = vpack.c.bf16 %v311, %v310
    %v373 = vpack.c.bf16 %v313, %v312
    %v374 = vpack.c.bf16 %v315, %v314
    %v375 = vpack.c.bf16 %v317, %v316
    %v376 = vpack.c.bf16 %v319, %v318
    %v377 = vpack.c.bf16 %v321, %v320
    %v378 = vpack.c.bf16 %v323, %v322
    %v379 = vpack.c.bf16 %v325, %v324
    %v380 = vpack.c.bf16 %v327, %v326
    %v381 = vpack.c.bf16 %v329, %v328
    %v382 = vpack.c.bf16 %v331, %v330
    %v383 = vpack.c.bf16 %v333, %v332
    %v384 = vpack.c.bf16 %v335, %v334
    %v385 = vpack.c.bf16 %v337, %v336
    %v386 = vpack.c.bf16 %v339, %v338
    %v387 = vpack.c.bf16 %v341, %v340
    %v388 = vpack.c.bf16 %v343, %v342
    %v389 = vpack.c.bf16 %v345, %v344
    %v390 = vpack.c.bf16 %v347, %v346
    %v391 = vpack.c.bf16 %v349, %v348
    %v392 = vpack.c.bf16 %v351, %v350
    %v393 = vpack.c.bf16 %v353, %v352
    %v394 = vpack.c.bf16 %v355, %v354
    %v395 = vpack.c.bf16 %v357, %v356
    %v396 = vpack.c.bf16 %v359, %v358
    %v397 = vpack.c.bf16 %v361, %v360
    %v398 = vpack.c.bf16 %v363, %v362
    %v399 = vpack.c.bf16 %v365, %v364
    %v400 = vpack.c.bf16 %v367, %v366
    %v401 = vpack.c.bf16 %v369, %v368
    %v402 = vld [vmem:[#allocation6] sm:$0xf]
    %v403 = vld [vmem:[#allocation6 + $0x4] sm:$0xf]
    %v404 = vld [vmem:[#allocation6 + $0x8] sm:$0xf]
    %v405 = vld [vmem:[#allocation6 + $0xc] sm:$0xf]
    %v406 = vld [vmem:[#allocation6 + $0x10] sm:$0xf]
    %v407 = vld [vmem:[#allocation6 + $0x14] sm:$0xf]
    %v408 = vld [vmem:[#allocation6 + $0x18] sm:$0xf]
    %v409 = vld [vmem:[#allocation6 + $0x1c] sm:$0xf]
    %v410 = vld [vmem:[#allocation6 + $0x20] sm:$0xf]
    %v411 = vld [vmem:[#allocation6 + $0x24] sm:$0xf]
    %v412 = vld [vmem:[#allocation6 + $0x28] sm:$0xf]
    %v413 = vld [vmem:[#allocation6 + $0x2c] sm:$0xf]
    %v414 = vld [vmem:[#allocation6 + $0x30] sm:$0xf]
    %v415 = vld [vmem:[#allocation6 + $0x34] sm:$0xf]
    %v416 = vld [vmem:[#allocation6 + $0x38] sm:$0xf]
    %v417 = vld [vmem:[#allocation6 + $0x3c] sm:$0xf]
    %v418 = vld [vmem:[#allocation2 + $0x1] sm:$0xff]
    %v419 = vld [vmem:[#allocation2 + $0x9] sm:$0xff]
    %v420 = vld [vmem:[#allocation2 + $0x19] sm:$0xff]
    %v421 = vld [vmem:[#allocation2 + $0x21] sm:$0xff]
    %v422 = vld [vmem:[#allocation2 + $0x31] sm:$0xff]
    %v423 = vld [vmem:[#allocation2 + $0x39] sm:$0xff]
    %v424 = vld [vmem:[#allocation2 + $0x49] sm:$0xff]
    %v425 = vld [vmem:[#allocation2 + $0x51] sm:$0xff]
    %v426 = vld [vmem:[#allocation2 + $0x61] sm:$0xff]
    %v427 = vld [vmem:[#allocation2 + $0x69] sm:$0xff]
    %v428 = vld [vmem:[#allocation2 + $0x79] sm:$0xff]
    %v429 = vld [vmem:[#allocation2 + $0x81] sm:$0xff]
    %v430 = vld [vmem:[#allocation2 + $0x91] sm:$0xff]
    %v431 = vld [vmem:[#allocation2 + $0x99] sm:$0xff]
    %v432 = vld [vmem:[#allocation2 + $0xa9] sm:$0xff]
    %v433 = vld [vmem:[#allocation2 + $0xb1] sm:$0xff]
    %v434 = vld [vmem:[#allocation2 + $0xc1] sm:$0xff]
    %v435 = vld [vmem:[#allocation2 + $0xc9] sm:$0xff]
    %v436 = vld [vmem:[#allocation2 + $0xd9] sm:$0xff]
    %v437 = vld [vmem:[#allocation2 + $0xe1] sm:$0xff]
    %v438 = vld [vmem:[#allocation2 + $0xf1] sm:$0xff]
    %v439 = vld [vmem:[#allocation2 + $0xf9] sm:$0xff]
    %v440 = vld [vmem:[#allocation2 + $0x109] sm:$0xff]
    %v441 = vld [vmem:[#allocation2 + $0x111] sm:$0xff]
    %v442 = vld [vmem:[#allocation2 + $0x121] sm:$0xff]
    %v443 = vld [vmem:[#allocation2 + $0x129] sm:$0xff]
    %v444 = vld [vmem:[#allocation2 + $0x139] sm:$0xff]
    %v445 = vld [vmem:[#allocation2 + $0x141] sm:$0xff]
    %v446 = vld [vmem:[#allocation2 + $0x151] sm:$0xff]
    %v447 = vld [vmem:[#allocation2 + $0x159] sm:$0xff]
    %v448 = vld [vmem:[#allocation2 + $0x169] sm:$0xff]
    %v449 = vld [vmem:[#allocation2 + $0x171] sm:$0xff]
    %v450 = vld [vmem:[#allocation2 + $0x1b1] sm:$0xff]
    %v451 = vld [vmem:[#allocation2 + $0x1b9] sm:$0xff]
    %v452 = vld [vmem:[#allocation2 + $0x1c9] sm:$0xff]
    %v453 = vld [vmem:[#allocation2 + $0x1d1] sm:$0xff]
    %v454 = vld [vmem:[#allocation2 + $0x1e1] sm:$0xff]
    %v455 = vld [vmem:[#allocation2 + $0x1e9] sm:$0xff]
    %v456 = vld [vmem:[#allocation2 + $0x1f9] sm:$0xff]
    %v457 = vld [vmem:[#allocation2 + $0x201] sm:$0xff]
    %v458 = vld [vmem:[#allocation2 + $0x211] sm:$0xff]
    %v459 = vld [vmem:[#allocation2 + $0x219] sm:$0xff]
    %v460 = vld [vmem:[#allocation2 + $0x229] sm:$0xff]
    %v461 = vld [vmem:[#allocation2 + $0x231] sm:$0xff]
    %v462 = vld [vmem:[#allocation2 + $0x241] sm:$0xff]
    %v463 = vld [vmem:[#allocation2 + $0x249] sm:$0xff]
    %v464 = vld [vmem:[#allocation2 + $0x259] sm:$0xff]
    %v465 = vld [vmem:[#allocation2 + $0x261] sm:$0xff]
    %v466 = vld [vmem:[#allocation2 + $0x271] sm:$0xff]
    %v467 = vld [vmem:[#allocation2 + $0x279] sm:$0xff]
    %v468 = vld [vmem:[#allocation2 + $0x289] sm:$0xff]
    %v469 = vld [vmem:[#allocation2 + $0x291] sm:$0xff]
    %v470 = vld [vmem:[#allocation2 + $0x2a1] sm:$0xff]
    %v471 = vld [vmem:[#allocation2 + $0x2a9] sm:$0xff]
    %v472 = vld [vmem:[#allocation2 + $0x2b9] sm:$0xff]
    %v473 = vld [vmem:[#allocation2 + $0x2c1] sm:$0xff]
    %v474 = vld [vmem:[#allocation2 + $0x2d1] sm:$0xff]
    %v475 = vld [vmem:[#allocation2 + $0x2d9] sm:$0xff]
    %v476 = vld [vmem:[#allocation2 + $0x2e9] sm:$0xff]
    %v477 = vld [vmem:[#allocation2 + $0x2f1] sm:$0xff]
    %v478 = vld [vmem:[#allocation2 + $0x301] sm:$0xff]
    %v479 = vld [vmem:[#allocation2 + $0x309] sm:$0xff]
    %v480 = vld [vmem:[#allocation2 + $0x319] sm:$0xff]
    %v481 = vld [vmem:[#allocation2 + $0x321] sm:$0xff]
    %v482 = vpack.c.bf16 %v419, %v418
    %v483 = vpack.c.bf16 %v421, %v420
    %v484 = vpack.c.bf16 %v423, %v422
    %v485 = vpack.c.bf16 %v425, %v424
    %v486 = vpack.c.bf16 %v427, %v426
    %v487 = vpack.c.bf16 %v429, %v428
    %v488 = vpack.c.bf16 %v431, %v430
    %v489 = vpack.c.bf16 %v433, %v432
    %v490 = vpack.c.bf16 %v435, %v434
    %v491 = vpack.c.bf16 %v437, %v436
    %v492 = vpack.c.bf16 %v439, %v438
    %v493 = vpack.c.bf16 %v441, %v440
    %v494 = vpack.c.bf16 %v443, %v442
    %v495 = vpack.c.bf16 %v445, %v444
    %v496 = vpack.c.bf16 %v447, %v446
    %v497 = vpack.c.bf16 %v449, %v448
    %v498 = vpack.c.bf16 %v451, %v450
    %v499 = vpack.c.bf16 %v453, %v452
    %v500 = vpack.c.bf16 %v455, %v454
    %v501 = vpack.c.bf16 %v457, %v456
    %v502 = vpack.c.bf16 %v459, %v458
    %v503 = vpack.c.bf16 %v461, %v460
    %v504 = vpack.c.bf16 %v463, %v462
    %v505 = vpack.c.bf16 %v465, %v464
    %v506 = vpack.c.bf16 %v467, %v466
    %v507 = vpack.c.bf16 %v469, %v468
    %v508 = vpack.c.bf16 %v471, %v470
    %v509 = vpack.c.bf16 %v473, %v472
    %v510 = vpack.c.bf16 %v475, %v474
    %v511 = vpack.c.bf16 %v477, %v476
    %v512 = vpack.c.bf16 %v479, %v478
    %v513 = vpack.c.bf16 %v481, %v480
    %s514 = scalar_lea.vmem [#allocation6], 64
    %v515 = vld [vmem:[%s514] sm:$0xf]
    %v516 = vld [vmem:[%s514 + $0x4] sm:$0xf]
    %v517 = vld [vmem:[%s514 + $0x8] sm:$0xf]
    %v518 = vld [vmem:[%s514 + $0xc] sm:$0xf]
    %v519 = vld [vmem:[%s514 + $0x10] sm:$0xf]
    %v520 = vld [vmem:[%s514 + $0x14] sm:$0xf]
    %v521 = vld [vmem:[%s514 + $0x18] sm:$0xf]
    %v522 = vld [vmem:[%s514 + $0x1c] sm:$0xf]
    %v523 = vld [vmem:[%s514 + $0x20] sm:$0xf]
    %v524 = vld [vmem:[%s514 + $0x24] sm:$0xf]
    %v525 = vld [vmem:[%s514 + $0x28] sm:$0xf]
    %v526 = vld [vmem:[%s514 + $0x2c] sm:$0xf]
    %v527 = vld [vmem:[%s514 + $0x30] sm:$0xf]
    %v528 = vld [vmem:[%s514 + $0x34] sm:$0xf]
    %v529 = vld [vmem:[%s514 + $0x38] sm:$0xf]
    %v530 = vld [vmem:[%s514 + $0x3c] sm:$0xf]
    %v547 = vunpack.c.l.b16 %v515
    %v548 = vunpack.c.l.b16 %v516
    %v549 = vunpack.c.l.b16 %v517
    %v550 = vunpack.c.l.b16 %v518
    %v551 = vunpack.c.l.b16 %v519
    %v552 = vunpack.c.l.b16 %v520
    %v553 = vunpack.c.l.b16 %v521
    %v554 = vunpack.c.l.b16 %v522
    %v555 = vunpack.c.l.b16 %v523
    %v556 = vunpack.c.l.b16 %v524
    %v557 = vunpack.c.l.b16 %v525
    %v558 = vunpack.c.l.b16 %v526
    %v559 = vunpack.c.l.b16 %v527
    %v560 = vunpack.c.l.b16 %v528
    %v561 = vunpack.c.l.b16 %v529
    %v562 = vunpack.c.l.b16 %v530
    %v563 = vpack.c.b16 %v548, %v547
    %v564 = vpack.c.b16 %v550, %v549
    %v565 = vpack.c.b16 %v552, %v551
    %v566 = vpack.c.b16 %v554, %v553
    %v567 = vpack.c.b16 %v556, %v555
    %v568 = vpack.c.b16 %v558, %v557
    %v569 = vpack.c.b16 %v560, %v559
    %v570 = vpack.c.b16 %v562, %v561
    %579 = vmatprep.subr.bf16.mxu0 0
    %580 = vmatpush1.bf16.msra.mxu0 %v570
    %581 = vmatprep.subr.bf16.mxu0 0
    %582 = vmatpush1.bf16.msra.mxu0 %v569
    %583 = vmatprep.subr.bf16.mxu0 0
    %584 = vmatpush1.bf16.msra.mxu0 %v568
    %585 = vmatprep.subr.bf16.mxu0 0
    %586 = vmatpush1.bf16.msra.mxu0 %v567
    %587 = vmatprep.subr.bf16.mxu0 0
    %588 = vmatpush1.bf16.msra.mxu0 %v566
    %589 = vmatprep.subr.bf16.mxu0 0
    %590 = vmatpush1.bf16.msra.mxu0 %v565
    %591 = vmatprep.subr.bf16.mxu0 0
    %592 = vmatpush1.bf16.msra.mxu0 %v564
    %593 = vmatprep.subr.bf16.mxu0 0
    %594 = vmatpush1.bf16.msra.mxu0 %v563
    %595 = vmatprep.subr.bf16.mxu0 0
    %596 = vmatpush2.bf16.msra.mxu0 0
    %597 = vmatprep.subr.bf16.mxu0 0
    %598 = vmatpush2.bf16.msra.mxu0 0
    %599 = vmatprep.subr.bf16.mxu0 0
    %600 = vmatpush2.bf16.msra.mxu0 0
    %601 = vmatprep.subr.bf16.mxu0 0
    %602 = vmatpush2.bf16.msra.mxu0 0
    %603 = vmatprep.subr.bf16.mxu0 0
    %604 = vmatpush2.bf16.msra.mxu0 0
    %605 = vmatprep.subr.bf16.mxu0 0
    %606 = vmatpush2.bf16.msra.mxu0 0
    %607 = vmatprep.subr.bf16.mxu0 0
    %608 = vmatpush2.bf16.msra.mxu0 0
    %609 = vmatprep.subr.bf16.mxu0 0
    %610 = vmatpush2.bf16.msra.mxu0 0
    %611 = vmatprep.mubr.bf16.mxu0 0
    %612 = vmatmul.mubr.bf16.gmra.mxu0 %v482
    %v613 = vpop.f32.mrf.mxu0
    %v614 = vadd.f32 0.0, %v613
    %v615 = vpop.f32.mrf.mxu0
    %v616 = vpop.f32.mrf.mxu0
    %v617 = vadd.f32 0.0, %v616
    %v618 = vpop.f32.mrf.mxu0
    %619 = vmatprep.mubr.bf16.mxu0 0
    %620 = vmatmul.mubr.bf16.gmra.mxu0 %v483
    %v621 = vpop.f32.mrf.mxu0
    %v622 = vadd.f32 0.0, %v621
    %v623 = vpop.f32.mrf.mxu0
    %v624 = vpop.f32.mrf.mxu0
    %v625 = vadd.f32 0.0, %v624
    %v626 = vpop.f32.mrf.mxu0
    %627 = vmatprep.mubr.bf16.mxu0 0
    %628 = vmatmul.mubr.bf16.gmra.mxu0 %v484
    %v629 = vpop.f32.mrf.mxu0
    %v630 = vadd.f32 0.0, %v629
    %v631 = vpop.f32.mrf.mxu0
    %v632 = vpop.f32.mrf.mxu0
    %v633 = vadd.f32 0.0, %v632
    %v634 = vpop.f32.mrf.mxu0
    %635 = vmatprep.mubr.bf16.mxu0 0
    %636 = vmatmul.mubr.bf16.gmra.mxu0 %v485
    %v637 = vpop.f32.mrf.mxu0
    %v638 = vadd.f32 0.0, %v637
    %v639 = vpop.f32.mrf.mxu0
    %v640 = vpop.f32.mrf.mxu0
    %v641 = vadd.f32 0.0, %v640
    %v642 = vpop.f32.mrf.mxu0
    %643 = vmatprep.mubr.bf16.mxu0 0
    %644 = vmatmul.mubr.bf16.gmra.mxu0 %v486
    %v645 = vpop.f32.mrf.mxu0
    %v646 = vadd.f32 0.0, %v645
    %v647 = vpop.f32.mrf.mxu0
    %v648 = vpop.f32.mrf.mxu0
    %v649 = vadd.f32 0.0, %v648
    %v650 = vpop.f32.mrf.mxu0
    %651 = vmatprep.mubr.bf16.mxu0 0
    %652 = vmatmul.mubr.bf16.gmra.mxu0 %v487
    %v653 = vpop.f32.mrf.mxu0
    %v654 = vadd.f32 0.0, %v653
    %v655 = vpop.f32.mrf.mxu0
    %v656 = vpop.f32.mrf.mxu0
    %v657 = vadd.f32 0.0, %v656
    %v658 = vpop.f32.mrf.mxu0
    %659 = vmatprep.mubr.bf16.mxu0 0
    %660 = vmatmul.mubr.bf16.gmra.mxu0 %v488
    %v661 = vpop.f32.mrf.mxu0
    %v662 = vadd.f32 0.0, %v661
    %v663 = vpop.f32.mrf.mxu0
    %v664 = vpop.f32.mrf.mxu0
    %v665 = vadd.f32 0.0, %v664
    %v666 = vpop.f32.mrf.mxu0
    %667 = vmatprep.mubr.bf16.mxu0 0
    %668 = vmatmul.mubr.bf16.gmra.mxu0 %v489
    %v669 = vpop.f32.mrf.mxu0
    %v670 = vadd.f32 0.0, %v669
    %v671 = vpop.f32.mrf.mxu0
    %v672 = vpop.f32.mrf.mxu0
    %v673 = vadd.f32 0.0, %v672
    %v674 = vpop.f32.mrf.mxu0
    %675 = vmatprep.mubr.bf16.mxu0 0
    %676 = vmatmul.mubr.bf16.gmra.mxu0 %v490
    %v677 = vpop.f32.mrf.mxu0
    %v678 = vadd.f32 0.0, %v677
    %v679 = vpop.f32.mrf.mxu0
    %v680 = vpop.f32.mrf.mxu0
    %v681 = vadd.f32 0.0, %v680
    %v682 = vpop.f32.mrf.mxu0
    %683 = vmatprep.mubr.bf16.mxu0 0
    %684 = vmatmul.mubr.bf16.gmra.mxu0 %v491
    %v685 = vpop.f32.mrf.mxu0
    %v686 = vadd.f32 0.0, %v685
    %v687 = vpop.f32.mrf.mxu0
    %v688 = vpop.f32.mrf.mxu0
    %v689 = vadd.f32 0.0, %v688
    %v690 = vpop.f32.mrf.mxu0
    %691 = vmatprep.mubr.bf16.mxu0 0
    %692 = vmatmul.mubr.bf16.gmra.mxu0 %v492
    %v693 = vpop.f32.mrf.mxu0
    %v694 = vadd.f32 0.0, %v693
    %v695 = vpop.f32.mrf.mxu0
    %v696 = vpop.f32.mrf.mxu0
    %v697 = vadd.f32 0.0, %v696
    %v698 = vpop.f32.mrf.mxu0
    %699 = vmatprep.mubr.bf16.mxu0 0
    %700 = vmatmul.mubr.bf16.gmra.mxu0 %v493
    %v701 = vpop.f32.mrf.mxu0
    %v702 = vadd.f32 0.0, %v701
    %v703 = vpop.f32.mrf.mxu0
    %v704 = vpop.f32.mrf.mxu0
    %v705 = vadd.f32 0.0, %v704
    %v706 = vpop.f32.mrf.mxu0
    %707 = vmatprep.mubr.bf16.mxu0 0
    %708 = vmatmul.mubr.bf16.gmra.mxu0 %v494
    %v709 = vpop.f32.mrf.mxu0
    %v710 = vadd.f32 0.0, %v709
    %v711 = vpop.f32.mrf.mxu0
    %v712 = vpop.f32.mrf.mxu0
    %v713 = vadd.f32 0.0, %v712
    %v714 = vpop.f32.mrf.mxu0
    %715 = vmatprep.mubr.bf16.mxu0 0
    %716 = vmatmul.mubr.bf16.gmra.mxu0 %v495
    %v717 = vpop.f32.mrf.mxu0
    %v718 = vadd.f32 0.0, %v717
    %v719 = vpop.f32.mrf.mxu0
    %v720 = vpop.f32.mrf.mxu0
    %v721 = vadd.f32 0.0, %v720
    %v722 = vpop.f32.mrf.mxu0
    %723 = vmatprep.mubr.bf16.mxu0 0
    %724 = vmatmul.mubr.bf16.gmra.mxu0 %v496
    %v725 = vpop.f32.mrf.mxu0
    %v726 = vadd.f32 0.0, %v725
    %v727 = vpop.f32.mrf.mxu0
    %v728 = vpop.f32.mrf.mxu0
    %v729 = vadd.f32 0.0, %v728
    %v730 = vpop.f32.mrf.mxu0
    %731 = vmatprep.mubr.bf16.mxu0 0
    %732 = vmatmul.mubr.bf16.gmra.mxu0 %v497
    %v733 = vpop.f32.mrf.mxu0
    %v734 = vadd.f32 0.0, %v733
    %v735 = vpop.f32.mrf.mxu0
    %v736 = vpop.f32.mrf.mxu0
    %v737 = vadd.f32 0.0, %v736
    %v738 = vpop.f32.mrf.mxu0
    %739 = vmatprep.mubr.bf16.mxu0 0
    %740 = vmatmul.mubr.bf16.gmra.mxu0 %v498
    %v741 = vpop.f32.mrf.mxu0
    %v742 = vadd.f32 0.0, %v741
    %v743 = vpop.f32.mrf.mxu0
    %v744 = vpop.f32.mrf.mxu0
    %v745 = vadd.f32 0.0, %v744
    %v746 = vpop.f32.mrf.mxu0
    %747 = vmatprep.mubr.bf16.mxu0 0
    %748 = vmatmul.mubr.bf16.gmra.mxu0 %v499
    %v749 = vpop.f32.mrf.mxu0
    %v750 = vadd.f32 0.0, %v749
    %v751 = vpop.f32.mrf.mxu0
    %v752 = vpop.f32.mrf.mxu0
    %v753 = vadd.f32 0.0, %v752
    %v754 = vpop.f32.mrf.mxu0
    %755 = vmatprep.mubr.bf16.mxu0 0
    %756 = vmatmul.mubr.bf16.gmra.mxu0 %v500
    %v757 = vpop.f32.mrf.mxu0
    %v758 = vadd.f32 0.0, %v757
    %v759 = vpop.f32.mrf.mxu0
    %v760 = vpop.f32.mrf.mxu0
    %v761 = vadd.f32 0.0, %v760
    %v762 = vpop.f32.mrf.mxu0
    %763 = vmatprep.mubr.bf16.mxu0 0
    %764 = vmatmul.mubr.bf16.gmra.mxu0 %v501
    %v765 = vpop.f32.mrf.mxu0
    %v766 = vadd.f32 0.0, %v765
    %v767 = vpop.f32.mrf.mxu0
    %v768 = vpop.f32.mrf.mxu0
    %v769 = vadd.f32 0.0, %v768
    %v770 = vpop.f32.mrf.mxu0
    %771 = vmatprep.mubr.bf16.mxu0 0
    %772 = vmatmul.mubr.bf16.gmra.mxu0 %v502
    %v773 = vpop.f32.mrf.mxu0
    %v774 = vadd.f32 0.0, %v773
    %v775 = vpop.f32.mrf.mxu0
    %v776 = vpop.f32.mrf.mxu0
    %v777 = vadd.f32 0.0, %v776
    %v778 = vpop.f32.mrf.mxu0
    %779 = vmatprep.mubr.bf16.mxu0 0
    %780 = vmatmul.mubr.bf16.gmra.mxu0 %v503
    %v781 = vpop.f32.mrf.mxu0
    %v782 = vadd.f32 0.0, %v781
    %v783 = vpop.f32.mrf.mxu0
    %v784 = vpop.f32.mrf.mxu0
    %v785 = vadd.f32 0.0, %v784
    %v786 = vpop.f32.mrf.mxu0
    %787 = vmatprep.mubr.bf16.mxu0 0
    %788 = vmatmul.mubr.bf16.gmra.mxu0 %v504
    %v789 = vpop.f32.mrf.mxu0
    %v790 = vadd.f32 0.0, %v789
    %v791 = vpop.f32.mrf.mxu0
    %v792 = vpop.f32.mrf.mxu0
    %v793 = vadd.f32 0.0, %v792
    %v794 = vpop.f32.mrf.mxu0
    %795 = vmatprep.mubr.bf16.mxu0 0
    %796 = vmatmul.mubr.bf16.gmra.mxu0 %v505
    %v797 = vpop.f32.mrf.mxu0
    %v798 = vadd.f32 0.0, %v797
    %v799 = vpop.f32.mrf.mxu0
    %v800 = vpop.f32.mrf.mxu0
    %v801 = vadd.f32 0.0, %v800
    %v802 = vpop.f32.mrf.mxu0
    %803 = vmatprep.mubr.bf16.mxu0 0
    %804 = vmatmul.mubr.bf16.gmra.mxu0 %v506
    %v805 = vpop.f32.mrf.mxu0
    %v806 = vadd.f32 0.0, %v805
    %v807 = vpop.f32.mrf.mxu0
    %v808 = vpop.f32.mrf.mxu0
    %v809 = vadd.f32 0.0, %v808
    %v810 = vpop.f32.mrf.mxu0
    %811 = vmatprep.mubr.bf16.mxu0 0
    %812 = vmatmul.mubr.bf16.gmra.mxu0 %v507
    %v813 = vpop.f32.mrf.mxu0
    %v814 = vadd.f32 0.0, %v813
    %v815 = vpop.f32.mrf.mxu0
    %v816 = vpop.f32.mrf.mxu0
    %v817 = vadd.f32 0.0, %v816
    %v818 = vpop.f32.mrf.mxu0
    %819 = vmatprep.mubr.bf16.mxu0 0
    %820 = vmatmul.mubr.bf16.gmra.mxu0 %v508
    %v821 = vpop.f32.mrf.mxu0
    %v822 = vadd.f32 0.0, %v821
    %v823 = vpop.f32.mrf.mxu0
    %v824 = vpop.f32.mrf.mxu0
    %v825 = vadd.f32 0.0, %v824
    %v826 = vpop.f32.mrf.mxu0
    %827 = vmatprep.mubr.bf16.mxu0 0
    %828 = vmatmul.mubr.bf16.gmra.mxu0 %v509
    %v829 = vpop.f32.mrf.mxu0
    %v830 = vadd.f32 0.0, %v829
    %v831 = vpop.f32.mrf.mxu0
    %v832 = vpop.f32.mrf.mxu0
    %v833 = vadd.f32 0.0, %v832
    %v834 = vpop.f32.mrf.mxu0
    %835 = vmatprep.mubr.bf16.mxu0 0
    %836 = vmatmul.mubr.bf16.gmra.mxu0 %v510
    %v837 = vpop.f32.mrf.mxu0
    %v838 = vadd.f32 0.0, %v837
    %v839 = vpop.f32.mrf.mxu0
    %v840 = vpop.f32.mrf.mxu0
    %v841 = vadd.f32 0.0, %v840
    %v842 = vpop.f32.mrf.mxu0
    %843 = vmatprep.mubr.bf16.mxu0 0
    %844 = vmatmul.mubr.bf16.gmra.mxu0 %v511
    %v845 = vpop.f32.mrf.mxu0
    %v846 = vadd.f32 0.0, %v845
    %v847 = vpop.f32.mrf.mxu0
    %v848 = vpop.f32.mrf.mxu0
    %v849 = vadd.f32 0.0, %v848
    %v850 = vpop.f32.mrf.mxu0
    %851 = vmatprep.mubr.bf16.mxu0 0
    %852 = vmatmul.mubr.bf16.gmra.mxu0 %v512
    %v853 = vpop.f32.mrf.mxu0
    %v854 = vadd.f32 0.0, %v853
    %v855 = vpop.f32.mrf.mxu0
    %v856 = vpop.f32.mrf.mxu0
    %v857 = vadd.f32 0.0, %v856
    %v858 = vpop.f32.mrf.mxu0
    %859 = vmatprep.mubr.bf16.mxu0 0
    %860 = vmatmul.mubr.bf16.gmra.mxu0 %v513
    %v861 = vpop.f32.mrf.mxu0
    %v862 = vadd.f32 0.0, %v861
    %v863 = vpop.f32.mrf.mxu0
    %v864 = vpop.f32.mrf.mxu0
    %v865 = vadd.f32 0.0, %v864
    %v866 = vpop.f32.mrf.mxu0
    %867 = vdwg.mxu0
    %v884 = vunpack.c.l.b16 %v402
    %v885 = vunpack.c.l.b16 %v403
    %v886 = vunpack.c.l.b16 %v404
    %v887 = vunpack.c.l.b16 %v405
    %v888 = vunpack.c.l.b16 %v406
    %v889 = vunpack.c.l.b16 %v407
    %v890 = vunpack.c.l.b16 %v408
    %v891 = vunpack.c.l.b16 %v409
    %v892 = vunpack.c.l.b16 %v410
    %v893 = vunpack.c.l.b16 %v411
    %v894 = vunpack.c.l.b16 %v412
    %v895 = vunpack.c.l.b16 %v413
    %v896 = vunpack.c.l.b16 %v414
    %v897 = vunpack.c.l.b16 %v415
    %v898 = vunpack.c.l.b16 %v416
    %v899 = vunpack.c.l.b16 %v417
    %v900 = vpack.c.b16 %v885, %v884
    %v901 = vpack.c.b16 %v887, %v886
    %v902 = vpack.c.b16 %v889, %v888
    %v903 = vpack.c.b16 %v891, %v890
    %v904 = vpack.c.b16 %v893, %v892
    %v905 = vpack.c.b16 %v895, %v894
    %v906 = vpack.c.b16 %v897, %v896
    %v907 = vpack.c.b16 %v899, %v898
    %916 = vmatprep.subr.bf16.mxu0 0
    %917 = vmatpush1.bf16.msra.mxu0 %v907
    %918 = vmatprep.subr.bf16.mxu0 0
    %919 = vmatpush1.bf16.msra.mxu0 %v906
    %920 = vmatprep.subr.bf16.mxu0 0
    %921 = vmatpush1.bf16.msra.mxu0 %v905
    %922 = vmatprep.subr.bf16.mxu0 0
    %923 = vmatpush1.bf16.msra.mxu0 %v904
    %924 = vmatprep.subr.bf16.mxu0 0
    %925 = vmatpush1.bf16.msra.mxu0 %v903
    %926 = vmatprep.subr.bf16.mxu0 0
    %927 = vmatpush1.bf16.msra.mxu0 %v902
    %928 = vmatprep.subr.bf16.mxu0 0
    %929 = vmatpush1.bf16.msra.mxu0 %v901
    %930 = vmatprep.subr.bf16.mxu0 0
    %931 = vmatpush1.bf16.msra.mxu0 %v900
    %932 = vmatprep.subr.bf16.mxu0 0
    %933 = vmatpush2.bf16.msra.mxu0 0
    %934 = vmatprep.subr.bf16.mxu0 0
    %935 = vmatpush2.bf16.msra.mxu0 0
    %936 = vmatprep.subr.bf16.mxu0 0
    %937 = vmatpush2.bf16.msra.mxu0 0
    %938 = vmatprep.subr.bf16.mxu0 0
    %939 = vmatpush2.bf16.msra.mxu0 0
    %940 = vmatprep.subr.bf16.mxu0 0
    %941 = vmatpush2.bf16.msra.mxu0 0
    %942 = vmatprep.subr.bf16.mxu0 0
    %943 = vmatpush2.bf16.msra.mxu0 0
    %944 = vmatprep.subr.bf16.mxu0 0
    %945 = vmatpush2.bf16.msra.mxu0 0
    %946 = vmatprep.subr.bf16.mxu0 0
    %947 = vmatpush2.bf16.msra.mxu0 0
    %948 = vmatprep.mubr.bf16.mxu0 0
    %949 = vmatmul.mubr.bf16.gmra.mxu0 %v370
    %v950 = vpop.f32.mrf.mxu0
    %v951 = vadd.f32 %v614, %v950
    %v952 = vpop.f32.mrf.mxu0
    %v953 = vpop.f32.mrf.mxu0
    %v954 = vadd.f32 %v617, %v953
    %v955 = vpop.f32.mrf.mxu0
    %956 = vmatprep.mubr.bf16.mxu0 0
    %957 = vmatmul.mubr.bf16.gmra.mxu0 %v371
    %v958 = vpop.f32.mrf.mxu0
    %v959 = vadd.f32 %v622, %v958
    %v960 = vpop.f32.mrf.mxu0
    %v961 = vpop.f32.mrf.mxu0
    %v962 = vadd.f32 %v625, %v961
    %v963 = vpop.f32.mrf.mxu0
    %964 = vmatprep.mubr.bf16.mxu0 0
    %965 = vmatmul.mubr.bf16.gmra.mxu0 %v372
    %v966 = vpop.f32.mrf.mxu0
    %v967 = vadd.f32 %v630, %v966
    %v968 = vpop.f32.mrf.mxu0
    %v969 = vpop.f32.mrf.mxu0
    %v970 = vadd.f32 %v633, %v969
    %v971 = vpop.f32.mrf.mxu0
    %972 = vmatprep.mubr.bf16.mxu0 0
    %973 = vmatmul.mubr.bf16.gmra.mxu0 %v373
    %v974 = vpop.f32.mrf.mxu0
    %v975 = vadd.f32 %v638, %v974
    %v976 = vpop.f32.mrf.mxu0
    %v977 = vpop.f32.mrf.mxu0
    %v978 = vadd.f32 %v641, %v977
    %v979 = vpop.f32.mrf.mxu0
    %980 = vmatprep.mubr.bf16.mxu0 0
    %981 = vmatmul.mubr.bf16.gmra.mxu0 %v374
    %v982 = vpop.f32.mrf.mxu0
    %v983 = vadd.f32 %v646, %v982
    %v984 = vpop.f32.mrf.mxu0
    %v985 = vpop.f32.mrf.mxu0
    %v986 = vadd.f32 %v649, %v985
    %v987 = vpop.f32.mrf.mxu0
    %988 = vmatprep.mubr.bf16.mxu0 0
    %989 = vmatmul.mubr.bf16.gmra.mxu0 %v375
    %v990 = vpop.f32.mrf.mxu0
    %v991 = vadd.f32 %v654, %v990
    %v992 = vpop.f32.mrf.mxu0
    %v993 = vpop.f32.mrf.mxu0
    %v994 = vadd.f32 %v657, %v993
    %v995 = vpop.f32.mrf.mxu0
    %996 = vmatprep.mubr.bf16.mxu0 0
    %997 = vmatmul.mubr.bf16.gmra.mxu0 %v376
    %v998 = vpop.f32.mrf.mxu0
    %v999 = vadd.f32 %v662, %v998
    %v1000 = vpop.f32.mrf.mxu0
    %v1001 = vpop.f32.mrf.mxu0
    %v1002 = vadd.f32 %v665, %v1001
    %v1003 = vpop.f32.mrf.mxu0
    %1004 = vmatprep.mubr.bf16.mxu0 0
    %1005 = vmatmul.mubr.bf16.gmra.mxu0 %v377
    %v1006 = vpop.f32.mrf.mxu0
    %v1007 = vadd.f32 %v670, %v1006
    %v1008 = vpop.f32.mrf.mxu0
    %v1009 = vpop.f32.mrf.mxu0
    %v1010 = vadd.f32 %v673, %v1009
    %v1011 = vpop.f32.mrf.mxu0
    %1012 = vmatprep.mubr.bf16.mxu0 0
    %1013 = vmatmul.mubr.bf16.gmra.mxu0 %v378
    %v1014 = vpop.f32.mrf.mxu0
    %v1015 = vadd.f32 %v678, %v1014
    %v1016 = vpop.f32.mrf.mxu0
    %v1017 = vpop.f32.mrf.mxu0
    %v1018 = vadd.f32 %v681, %v1017
    %v1019 = vpop.f32.mrf.mxu0
    %1020 = vmatprep.mubr.bf16.mxu0 0
    %1021 = vmatmul.mubr.bf16.gmra.mxu0 %v379
    %v1022 = vpop.f32.mrf.mxu0
    %v1023 = vadd.f32 %v686, %v1022
    %v1024 = vpop.f32.mrf.mxu0
    %v1025 = vpop.f32.mrf.mxu0
    %v1026 = vadd.f32 %v689, %v1025
    %v1027 = vpop.f32.mrf.mxu0
    %1028 = vmatprep.mubr.bf16.mxu0 0
    %1029 = vmatmul.mubr.bf16.gmra.mxu0 %v380
    %v1030 = vpop.f32.mrf.mxu0
    %v1031 = vadd.f32 %v694, %v1030
    %v1032 = vpop.f32.mrf.mxu0
    %v1033 = vpop.f32.mrf.mxu0
    %v1034 = vadd.f32 %v697, %v1033
    %v1035 = vpop.f32.mrf.mxu0
    %1036 = vmatprep.mubr.bf16.mxu0 0
    %1037 = vmatmul.mubr.bf16.gmra.mxu0 %v381
    %v1038 = vpop.f32.mrf.mxu0
    %v1039 = vadd.f32 %v702, %v1038
    %v1040 = vpop.f32.mrf.mxu0
    %v1041 = vpop.f32.mrf.mxu0
    %v1042 = vadd.f32 %v705, %v1041
    %v1043 = vpop.f32.mrf.mxu0
    %1044 = vmatprep.mubr.bf16.mxu0 0
    %1045 = vmatmul.mubr.bf16.gmra.mxu0 %v382
    %v1046 = vpop.f32.mrf.mxu0
    %v1047 = vadd.f32 %v710, %v1046
    %v1048 = vpop.f32.mrf.mxu0
    %v1049 = vpop.f32.mrf.mxu0
    %v1050 = vadd.f32 %v713, %v1049
    %v1051 = vpop.f32.mrf.mxu0
    %1052 = vmatprep.mubr.bf16.mxu0 0
    %1053 = vmatmul.mubr.bf16.gmra.mxu0 %v383
    %v1054 = vpop.f32.mrf.mxu0
    %v1055 = vadd.f32 %v718, %v1054
    %v1056 = vpop.f32.mrf.mxu0
    %v1057 = vpop.f32.mrf.mxu0
    %v1058 = vadd.f32 %v721, %v1057
    %v1059 = vpop.f32.mrf.mxu0
    %1060 = vmatprep.mubr.bf16.mxu0 0
    %1061 = vmatmul.mubr.bf16.gmra.mxu0 %v384
    %v1062 = vpop.f32.mrf.mxu0
    %v1063 = vadd.f32 %v726, %v1062
    %v1064 = vpop.f32.mrf.mxu0
    %v1065 = vpop.f32.mrf.mxu0
    %v1066 = vadd.f32 %v729, %v1065
    %v1067 = vpop.f32.mrf.mxu0
    %1068 = vmatprep.mubr.bf16.mxu0 0
    %1069 = vmatmul.mubr.bf16.gmra.mxu0 %v385
    %v1070 = vpop.f32.mrf.mxu0
    %v1071 = vadd.f32 %v734, %v1070
    %v1072 = vpop.f32.mrf.mxu0
    %v1073 = vpop.f32.mrf.mxu0
    %v1074 = vadd.f32 %v737, %v1073
    %v1075 = vpop.f32.mrf.mxu0
    %1076 = vmatprep.mubr.bf16.mxu0 0
    %1077 = vmatmul.mubr.bf16.gmra.mxu0 %v386
    %v1078 = vpop.f32.mrf.mxu0
    %v1079 = vadd.f32 %v742, %v1078
    %v1080 = vpop.f32.mrf.mxu0
    %v1081 = vpop.f32.mrf.mxu0
    %v1082 = vadd.f32 %v745, %v1081
    %v1083 = vpop.f32.mrf.mxu0
    %1084 = vmatprep.mubr.bf16.mxu0 0
    %1085 = vmatmul.mubr.bf16.gmra.mxu0 %v387
    %v1086 = vpop.f32.mrf.mxu0
    %v1087 = vadd.f32 %v750, %v1086
    %v1088 = vpop.f32.mrf.mxu0
    %v1089 = vpop.f32.mrf.mxu0
    %v1090 = vadd.f32 %v753, %v1089
    %v1091 = vpop.f32.mrf.mxu0
    %1092 = vmatprep.mubr.bf16.mxu0 0
    %1093 = vmatmul.mubr.bf16.gmra.mxu0 %v388
    %v1094 = vpop.f32.mrf.mxu0
    %v1095 = vadd.f32 %v758, %v1094
    %v1096 = vpop.f32.mrf.mxu0
    %v1097 = vpop.f32.mrf.mxu0
    %v1098 = vadd.f32 %v761, %v1097
    %v1099 = vpop.f32.mrf.mxu0
    %1100 = vmatprep.mubr.bf16.mxu0 0
    %1101 = vmatmul.mubr.bf16.gmra.mxu0 %v389
    %v1102 = vpop.f32.mrf.mxu0
    %v1103 = vadd.f32 %v766, %v1102
    %v1104 = vpop.f32.mrf.mxu0
    %v1105 = vpop.f32.mrf.mxu0
    %v1106 = vadd.f32 %v769, %v1105
    %v1107 = vpop.f32.mrf.mxu0
    %1108 = vmatprep.mubr.bf16.mxu0 0
    %1109 = vmatmul.mubr.bf16.gmra.mxu0 %v390
    %v1110 = vpop.f32.mrf.mxu0
    %v1111 = vadd.f32 %v774, %v1110
    %v1112 = vpop.f32.mrf.mxu0
    %v1113 = vpop.f32.mrf.mxu0
    %v1114 = vadd.f32 %v777, %v1113
    %v1115 = vpop.f32.mrf.mxu0
    %1116 = vmatprep.mubr.bf16.mxu0 0
    %1117 = vmatmul.mubr.bf16.gmra.mxu0 %v391
    %v1118 = vpop.f32.mrf.mxu0
    %v1119 = vadd.f32 %v782, %v1118
    %v1120 = vpop.f32.mrf.mxu0
    %v1121 = vpop.f32.mrf.mxu0
    %v1122 = vadd.f32 %v785, %v1121
    %v1123 = vpop.f32.mrf.mxu0
    %1124 = vmatprep.mubr.bf16.mxu0 0
    %1125 = vmatmul.mubr.bf16.gmra.mxu0 %v392
    %v1126 = vpop.f32.mrf.mxu0
    %v1127 = vadd.f32 %v790, %v1126
    %v1128 = vpop.f32.mrf.mxu0
    %v1129 = vpop.f32.mrf.mxu0
    %v1130 = vadd.f32 %v793, %v1129
    %v1131 = vpop.f32.mrf.mxu0
    %1132 = vmatprep.mubr.bf16.mxu0 0
    %1133 = vmatmul.mubr.bf16.gmra.mxu0 %v393
    %v1134 = vpop.f32.mrf.mxu0
    %v1135 = vadd.f32 %v798, %v1134
    %v1136 = vpop.f32.mrf.mxu0
    %v1137 = vpop.f32.mrf.mxu0
    %v1138 = vadd.f32 %v801, %v1137
    %v1139 = vpop.f32.mrf.mxu0
    %1140 = vmatprep.mubr.bf16.mxu0 0
    %1141 = vmatmul.mubr.bf16.gmra.mxu0 %v394
    %v1142 = vpop.f32.mrf.mxu0
    %v1143 = vadd.f32 %v806, %v1142
    %v1144 = vpop.f32.mrf.mxu0
    %v1145 = vpop.f32.mrf.mxu0
    %v1146 = vadd.f32 %v809, %v1145
    %v1147 = vpop.f32.mrf.mxu0
    %1148 = vmatprep.mubr.bf16.mxu0 0
    %1149 = vmatmul.mubr.bf16.gmra.mxu0 %v395
    %v1150 = vpop.f32.mrf.mxu0
    %v1151 = vadd.f32 %v814, %v1150
    %v1152 = vpop.f32.mrf.mxu0
    %v1153 = vpop.f32.mrf.mxu0
    %v1154 = vadd.f32 %v817, %v1153
    %v1155 = vpop.f32.mrf.mxu0
    %1156 = vmatprep.mubr.bf16.mxu0 0
    %1157 = vmatmul.mubr.bf16.gmra.mxu0 %v396
    %v1158 = vpop.f32.mrf.mxu0
    %v1159 = vadd.f32 %v822, %v1158
    %v1160 = vpop.f32.mrf.mxu0
    %v1161 = vpop.f32.mrf.mxu0
    %v1162 = vadd.f32 %v825, %v1161
    %v1163 = vpop.f32.mrf.mxu0
    %1164 = vmatprep.mubr.bf16.mxu0 0
    %1165 = vmatmul.mubr.bf16.gmra.mxu0 %v397
    %v1166 = vpop.f32.mrf.mxu0
    %v1167 = vadd.f32 %v830, %v1166
    %v1168 = vpop.f32.mrf.mxu0
    %v1169 = vpop.f32.mrf.mxu0
    %v1170 = vadd.f32 %v833, %v1169
    %v1171 = vpop.f32.mrf.mxu0
    %1172 = vmatprep.mubr.bf16.mxu0 0
    %1173 = vmatmul.mubr.bf16.gmra.mxu0 %v398
    %v1174 = vpop.f32.mrf.mxu0
    %v1175 = vadd.f32 %v838, %v1174
    %v1176 = vpop.f32.mrf.mxu0
    %v1177 = vpop.f32.mrf.mxu0
    %v1178 = vadd.f32 %v841, %v1177
    %v1179 = vpop.f32.mrf.mxu0
    %1180 = vmatprep.mubr.bf16.mxu0 0
    %1181 = vmatmul.mubr.bf16.gmra.mxu0 %v399
    %v1182 = vpop.f32.mrf.mxu0
    %v1183 = vadd.f32 %v846, %v1182
    %v1184 = vpop.f32.mrf.mxu0
    %v1185 = vpop.f32.mrf.mxu0
    %v1186 = vadd.f32 %v849, %v1185
    %v1187 = vpop.f32.mrf.mxu0
    %1188 = vmatprep.mubr.bf16.mxu0 0
    %1189 = vmatmul.mubr.bf16.gmra.mxu0 %v400
    %v1190 = vpop.f32.mrf.mxu0
    %v1191 = vadd.f32 %v854, %v1190
    %v1192 = vpop.f32.mrf.mxu0
    %v1193 = vpop.f32.mrf.mxu0
    %v1194 = vadd.f32 %v857, %v1193
    %v1195 = vpop.f32.mrf.mxu0
    %1196 = vmatprep.mubr.bf16.mxu0 0
    %1197 = vmatmul.mubr.bf16.gmra.mxu0 %v401
    %v1198 = vpop.f32.mrf.mxu0
    %v1199 = vadd.f32 %v862, %v1198
    %v1200 = vpop.f32.mrf.mxu0
    %v1201 = vpop.f32.mrf.mxu0
    %v1202 = vadd.f32 %v865, %v1201
    %v1203 = vpop.f32.mrf.mxu0
    %1204 = vdwg.mxu0
    %v1205 = vld [vmem:[#allocation2 + $0x2] sm:$0xff]
    %v1206 = vld [vmem:[#allocation2 + $0xa] sm:$0xff]
    %v1207 = vld [vmem:[#allocation2 + $0x1a] sm:$0xff]
    %v1208 = vld [vmem:[#allocation2 + $0x22] sm:$0xff]
    %v1209 = vld [vmem:[#allocation2 + $0x32] sm:$0xff]
    %v1210 = vld [vmem:[#allocation2 + $0x3a] sm:$0xff]
    %v1211 = vld [vmem:[#allocation2 + $0x4a] sm:$0xff]
    %v1212 = vld [vmem:[#allocation2 + $0x52] sm:$0xff]
    %v1213 = vld [vmem:[#allocation2 + $0x62] sm:$0xff]
    %v1214 = vld [vmem:[#allocation2 + $0x6a] sm:$0xff]
    %v1215 = vld [vmem:[#allocation2 + $0x7a] sm:$0xff]
    %v1216 = vld [vmem:[#allocation2 + $0x82] sm:$0xff]
    %v1217 = vld [vmem:[#allocation2 + $0x92] sm:$0xff]
    %v1218 = vld [vmem:[#allocation2 + $0x9a] sm:$0xff]
    %v1219 = vld [vmem:[#allocation2 + $0xaa] sm:$0xff]
    %v1220 = vld [vmem:[#allocation2 + $0xb2] sm:$0xff]
    %v1221 = vld [vmem:[#allocation2 + $0xc2] sm:$0xff]
    %v1222 = vld [vmem:[#allocation2 + $0xca] sm:$0xff]
    %v1223 = vld [vmem:[#allocation2 + $0xda] sm:$0xff]
    %v1224 = vld [vmem:[#allocation2 + $0xe2] sm:$0xff]
    %v1225 = vld [vmem:[#allocation2 + $0xf2] sm:$0xff]
    %v1226 = vld [vmem:[#allocation2 + $0xfa] sm:$0xff]
    %v1227 = vld [vmem:[#allocation2 + $0x10a] sm:$0xff]
    %v1228 = vld [vmem:[#allocation2 + $0x112] sm:$0xff]
    %v1229 = vld [vmem:[#allocation2 + $0x122] sm:$0xff]
    %v1230 = vld [vmem:[#allocation2 + $0x12a] sm:$0xff]
    %v1231 = vld [vmem:[#allocation2 + $0x13a] sm:$0xff]
    %v1232 = vld [vmem:[#allocation2 + $0x142] sm:$0xff]
    %v1233 = vld [vmem:[#allocation2 + $0x152] sm:$0xff]
    %v1234 = vld [vmem:[#allocation2 + $0x15a] sm:$0xff]
    %v1235 = vld [vmem:[#allocation2 + $0x16a] sm:$0xff]
    %v1236 = vld [vmem:[#allocation2 + $0x172] sm:$0xff]
    %v1237 = vld [vmem:[#allocation2 + $0x1b2] sm:$0xff]
    %v1238 = vld [vmem:[#allocation2 + $0x1ba] sm:$0xff]
    %v1239 = vld [vmem:[#allocation2 + $0x1ca] sm:$0xff]
    %v1240 = vld [vmem:[#allocation2 + $0x1d2] sm:$0xff]
    %v1241 = vld [vmem:[#allocation2 + $0x1e2] sm:$0xff]
    %v1242 = vld [vmem:[#allocation2 + $0x1ea] sm:$0xff]
    %v1243 = vld [vmem:[#allocation2 + $0x1fa] sm:$0xff]
    %v1244 = vld [vmem:[#allocation2 + $0x202] sm:$0xff]
    %v1245 = vld [vmem:[#allocation2 + $0x212] sm:$0xff]
    %v1246 = vld [vmem:[#allocation2 + $0x21a] sm:$0xff]
    %v1247 = vld [vmem:[#allocation2 + $0x22a] sm:$0xff]
    %v1248 = vld [vmem:[#allocation2 + $0x232] sm:$0xff]
    %v1249 = vld [vmem:[#allocation2 + $0x242] sm:$0xff]
    %v1250 = vld [vmem:[#allocation2 + $0x24a] sm:$0xff]
    %v1251 = vld [vmem:[#allocation2 + $0x25a] sm:$0xff]
    %v1252 = vld [vmem:[#allocation2 + $0x262] sm:$0xff]
    %v1253 = vld [vmem:[#allocation2 + $0x272] sm:$0xff]
    %v1254 = vld [vmem:[#allocation2 + $0x27a] sm:$0xff]
    %v1255 = vld [vmem:[#allocation2 + $0x28a] sm:$0xff]
    %v1256 = vld [vmem:[#allocation2 + $0x292] sm:$0xff]
    %v1257 = vld [vmem:[#allocation2 + $0x2a2] sm:$0xff]
    %v1258 = vld [vmem:[#allocation2 + $0x2aa] sm:$0xff]
    %v1259 = vld [vmem:[#allocation2 + $0x2ba] sm:$0xff]
    %v1260 = vld [vmem:[#allocation2 + $0x2c2] sm:$0xff]
    %v1261 = vld [vmem:[#allocation2 + $0x2d2] sm:$0xff]
    %v1262 = vld [vmem:[#allocation2 + $0x2da] sm:$0xff]
    %v1263 = vld [vmem:[#allocation2 + $0x2ea] sm:$0xff]
    %v1264 = vld [vmem:[#allocation2 + $0x2f2] sm:$0xff]
    %v1265 = vld [vmem:[#allocation2 + $0x302] sm:$0xff]
    %v1266 = vld [vmem:[#allocation2 + $0x30a] sm:$0xff]
    %v1267 = vld [vmem:[#allocation2 + $0x31a] sm:$0xff]
    %v1268 = vld [vmem:[#allocation2 + $0x322] sm:$0xff]
    %v1269 = vpack.c.bf16 %v1206, %v1205
    %v1270 = vpack.c.bf16 %v1208, %v1207
    %v1271 = vpack.c.bf16 %v1210, %v1209
    %v1272 = vpack.c.bf16 %v1212, %v1211
    %v1273 = vpack.c.bf16 %v1214, %v1213
    %v1274 = vpack.c.bf16 %v1216, %v1215
    %v1275 = vpack.c.bf16 %v1218, %v1217
    %v1276 = vpack.c.bf16 %v1220, %v1219
    %v1277 = vpack.c.bf16 %v1222, %v1221
    %v1278 = vpack.c.bf16 %v1224, %v1223
    %v1279 = vpack.c.bf16 %v1226, %v1225
    %v1280 = vpack.c.bf16 %v1228, %v1227
    %v1281 = vpack.c.bf16 %v1230, %v1229
    %v1282 = vpack.c.bf16 %v1232, %v1231
    %v1283 = vpack.c.bf16 %v1234, %v1233
    %v1284 = vpack.c.bf16 %v1236, %v1235
    %v1285 = vpack.c.bf16 %v1238, %v1237
    %v1286 = vpack.c.bf16 %v1240, %v1239
    %v1287 = vpack.c.bf16 %v1242, %v1241
    %v1288 = vpack.c.bf16 %v1244, %v1243
    %v1289 = vpack.c.bf16 %v1246, %v1245
    %v1290 = vpack.c.bf16 %v1248, %v1247
    %v1291 = vpack.c.bf16 %v1250, %v1249
    %v1292 = vpack.c.bf16 %v1252, %v1251
    %v1293 = vpack.c.bf16 %v1254, %v1253
    %v1294 = vpack.c.bf16 %v1256, %v1255
    %v1295 = vpack.c.bf16 %v1258, %v1257
    %v1296 = vpack.c.bf16 %v1260, %v1259
    %v1297 = vpack.c.bf16 %v1262, %v1261
    %v1298 = vpack.c.bf16 %v1264, %v1263
    %v1299 = vpack.c.bf16 %v1266, %v1265
    %v1300 = vpack.c.bf16 %v1268, %v1267
    %s1301 = scalar_lea.vmem [#allocation6], 128
    %v1302 = vld [vmem:[%s1301] sm:$0xf]
    %v1303 = vld [vmem:[%s1301 + $0x4] sm:$0xf]
    %v1304 = vld [vmem:[%s1301 + $0x8] sm:$0xf]
    %v1305 = vld [vmem:[%s1301 + $0xc] sm:$0xf]
    %v1306 = vld [vmem:[%s1301 + $0x10] sm:$0xf]
    %v1307 = vld [vmem:[%s1301 + $0x14] sm:$0xf]
    %v1308 = vld [vmem:[%s1301 + $0x18] sm:$0xf]
    %v1309 = vld [vmem:[%s1301 + $0x1c] sm:$0xf]
    %v1310 = vld [vmem:[%s1301 + $0x20] sm:$0xf]
    %v1311 = vld [vmem:[%s1301 + $0x24] sm:$0xf]
    %v1312 = vld [vmem:[%s1301 + $0x28] sm:$0xf]
    %v1313 = vld [vmem:[%s1301 + $0x2c] sm:$0xf]
    %v1314 = vld [vmem:[%s1301 + $0x30] sm:$0xf]
    %v1315 = vld [vmem:[%s1301 + $0x34] sm:$0xf]
    %v1316 = vld [vmem:[%s1301 + $0x38] sm:$0xf]
    %v1317 = vld [vmem:[%s1301 + $0x3c] sm:$0xf]
    %v1334 = vunpack.c.l.b16 %v1302
    %v1335 = vunpack.c.l.b16 %v1303
    %v1336 = vunpack.c.l.b16 %v1304
    %v1337 = vunpack.c.l.b16 %v1305
    %v1338 = vunpack.c.l.b16 %v1306
    %v1339 = vunpack.c.l.b16 %v1307
    %v1340 = vunpack.c.l.b16 %v1308
    %v1341 = vunpack.c.l.b16 %v1309
    %v1342 = vunpack.c.l.b16 %v1310
    %v1343 = vunpack.c.l.b16 %v1311
    %v1344 = vunpack.c.l.b16 %v1312
    %v1345 = vunpack.c.l.b16 %v1313
    %v1346 = vunpack.c.l.b16 %v1314
    %v1347 = vunpack.c.l.b16 %v1315
    %v1348 = vunpack.c.l.b16 %v1316
    %v1349 = vunpack.c.l.b16 %v1317
    %v1350 = vpack.c.b16 %v1335, %v1334
    %v1351 = vpack.c.b16 %v1337, %v1336
    %v1352 = vpack.c.b16 %v1339, %v1338
    %v1353 = vpack.c.b16 %v1341, %v1340
    %v1354 = vpack.c.b16 %v1343, %v1342
    %v1355 = vpack.c.b16 %v1345, %v1344
    %v1356 = vpack.c.b16 %v1347, %v1346
    %v1357 = vpack.c.b16 %v1349, %v1348
    %1366 = vmatprep.subr.bf16.mxu0 0
    %1367 = vmatpush1.bf16.msra.mxu0 %v1357
    %1368 = vmatprep.subr.bf16.mxu0 0
    %1369 = vmatpush1.bf16.msra.mxu0 %v1356
    %1370 = vmatprep.subr.bf16.mxu0 0
    %1371 = vmatpush1.bf16.msra.mxu0 %v1355
    %1372 = vmatprep.subr.bf16.mxu0 0
    %1373 = vmatpush1.bf16.msra.mxu0 %v1354
    %1374 = vmatprep.subr.bf16.mxu0 0
    %1375 = vmatpush1.bf16.msra.mxu0 %v1353
    %1376 = vmatprep.subr.bf16.mxu0 0
    %1377 = vmatpush1.bf16.msra.mxu0 %v1352
    %1378 = vmatprep.subr.bf16.mxu0 0
    %1379 = vmatpush1.bf16.msra.mxu0 %v1351
    %1380 = vmatprep.subr.bf16.mxu0 0
    %1381 = vmatpush1.bf16.msra.mxu0 %v1350
    %1382 = vmatprep.subr.bf16.mxu0 0
    %1383 = vmatpush2.bf16.msra.mxu0 0
    %1384 = vmatprep.subr.bf16.mxu0 0
    %1385 = vmatpush2.bf16.msra.mxu0 0
    %1386 = vmatprep.subr.bf16.mxu0 0
    %1387 = vmatpush2.bf16.msra.mxu0 0
    %1388 = vmatprep.subr.bf16.mxu0 0
    %1389 = vmatpush2.bf16.msra.mxu0 0
    %1390 = vmatprep.subr.bf16.mxu0 0
    %1391 = vmatpush2.bf16.msra.mxu0 0
    %1392 = vmatprep.subr.bf16.mxu0 0
    %1393 = vmatpush2.bf16.msra.mxu0 0
    %1394 = vmatprep.subr.bf16.mxu0 0
    %1395 = vmatpush2.bf16.msra.mxu0 0
    %1396 = vmatprep.subr.bf16.mxu0 0
    %1397 = vmatpush2.bf16.msra.mxu0 0
    %1398 = vmatprep.mubr.bf16.mxu0 0
    %1399 = vmatmul.mubr.bf16.gmra.mxu0 %v1269
    %v1400 = vpop.f32.mrf.mxu0
    %v1401 = vadd.f32 0.0, %v1400
    %v1402 = vpop.f32.mrf.mxu0
    %v1403 = vpop.f32.mrf.mxu0
    %v1404 = vadd.f32 0.0, %v1403
    %v1405 = vpop.f32.mrf.mxu0
    %1406 = vmatprep.mubr.bf16.mxu0 0
    %1407 = vmatmul.mubr.bf16.gmra.mxu0 %v1270
    %v1408 = vpop.f32.mrf.mxu0
    %v1409 = vadd.f32 0.0, %v1408
    %v1410 = vpop.f32.mrf.mxu0
    %v1411 = vpop.f32.mrf.mxu0
    %v1412 = vadd.f32 0.0, %v1411
    %v1413 = vpop.f32.mrf.mxu0
    %1414 = vmatprep.mubr.bf16.mxu0 0
    %1415 = vmatmul.mubr.bf16.gmra.mxu0 %v1271
    %v1416 = vpop.f32.mrf.mxu0
    %v1417 = vadd.f32 0.0, %v1416
    %v1418 = vpop.f32.mrf.mxu0
    %v1419 = vpop.f32.mrf.mxu0
    %v1420 = vadd.f32 0.0, %v1419
    %v1421 = vpop.f32.mrf.mxu0
    %1422 = vmatprep.mubr.bf16.mxu0 0
    %1423 = vmatmul.mubr.bf16.gmra.mxu0 %v1272
    %v1424 = vpop.f32.mrf.mxu0
    %v1425 = vadd.f32 0.0, %v1424
    %v1426 = vpop.f32.mrf.mxu0
    %v1427 = vpop.f32.mrf.mxu0
    %v1428 = vadd.f32 0.0, %v1427
    %v1429 = vpop.f32.mrf.mxu0
    %1430 = vmatprep.mubr.bf16.mxu0 0
    %1431 = vmatmul.mubr.bf16.gmra.mxu0 %v1273
    %v1432 = vpop.f32.mrf.mxu0
    %v1433 = vadd.f32 0.0, %v1432
    %v1434 = vpop.f32.mrf.mxu0
    %v1435 = vpop.f32.mrf.mxu0
    %v1436 = vadd.f32 0.0, %v1435
    %v1437 = vpop.f32.mrf.mxu0
    %1438 = vmatprep.mubr.bf16.mxu0 0
    %1439 = vmatmul.mubr.bf16.gmra.mxu0 %v1274
    %v1440 = vpop.f32.mrf.mxu0
    %v1441 = vadd.f32 0.0, %v1440
    %v1442 = vpop.f32.mrf.mxu0
    %v1443 = vpop.f32.mrf.mxu0
    %v1444 = vadd.f32 0.0, %v1443
    %v1445 = vpop.f32.mrf.mxu0
    %1446 = vmatprep.mubr.bf16.mxu0 0
    %1447 = vmatmul.mubr.bf16.gmra.mxu0 %v1275
    %v1448 = vpop.f32.mrf.mxu0
    %v1449 = vadd.f32 0.0, %v1448
    %v1450 = vpop.f32.mrf.mxu0
    %v1451 = vpop.f32.mrf.mxu0
    %v1452 = vadd.f32 0.0, %v1451
    %v1453 = vpop.f32.mrf.mxu0
    %1454 = vmatprep.mubr.bf16.mxu0 0
    %1455 = vmatmul.mubr.bf16.gmra.mxu0 %v1276
    %v1456 = vpop.f32.mrf.mxu0
    %v1457 = vadd.f32 0.0, %v1456
    %v1458 = vpop.f32.mrf.mxu0
    %v1459 = vpop.f32.mrf.mxu0
    %v1460 = vadd.f32 0.0, %v1459
    %v1461 = vpop.f32.mrf.mxu0
    %1462 = vmatprep.mubr.bf16.mxu0 0
    %1463 = vmatmul.mubr.bf16.gmra.mxu0 %v1277
    %v1464 = vpop.f32.mrf.mxu0
    %v1465 = vadd.f32 0.0, %v1464
    %v1466 = vpop.f32.mrf.mxu0
    %v1467 = vpop.f32.mrf.mxu0
    %v1468 = vadd.f32 0.0, %v1467
    %v1469 = vpop.f32.mrf.mxu0
    %1470 = vmatprep.mubr.bf16.mxu0 0
    %1471 = vmatmul.mubr.bf16.gmra.mxu0 %v1278
    %v1472 = vpop.f32.mrf.mxu0
    %v1473 = vadd.f32 0.0, %v1472
    %v1474 = vpop.f32.mrf.mxu0
    %v1475 = vpop.f32.mrf.mxu0
    %v1476 = vadd.f32 0.0, %v1475
    %v1477 = vpop.f32.mrf.mxu0
    %1478 = vmatprep.mubr.bf16.mxu0 0
    %1479 = vmatmul.mubr.bf16.gmra.mxu0 %v1279
    %v1480 = vpop.f32.mrf.mxu0
    %v1481 = vadd.f32 0.0, %v1480
    %v1482 = vpop.f32.mrf.mxu0
    %v1483 = vpop.f32.mrf.mxu0
    %v1484 = vadd.f32 0.0, %v1483
    %v1485 = vpop.f32.mrf.mxu0
    %1486 = vmatprep.mubr.bf16.mxu0 0
    %1487 = vmatmul.mubr.bf16.gmra.mxu0 %v1280
    %v1488 = vpop.f32.mrf.mxu0
    %v1489 = vadd.f32 0.0, %v1488
    %v1490 = vpop.f32.mrf.mxu0
    %v1491 = vpop.f32.mrf.mxu0
    %v1492 = vadd.f32 0.0, %v1491
    %v1493 = vpop.f32.mrf.mxu0
    %1494 = vmatprep.mubr.bf16.mxu0 0
    %1495 = vmatmul.mubr.bf16.gmra.mxu0 %v1281
    %v1496 = vpop.f32.mrf.mxu0
    %v1497 = vadd.f32 0.0, %v1496
    %v1498 = vpop.f32.mrf.mxu0
    %v1499 = vpop.f32.mrf.mxu0
    %v1500 = vadd.f32 0.0, %v1499
    %v1501 = vpop.f32.mrf.mxu0
    %1502 = vmatprep.mubr.bf16.mxu0 0
    %1503 = vmatmul.mubr.bf16.gmra.mxu0 %v1282
    %v1504 = vpop.f32.mrf.mxu0
    %v1505 = vadd.f32 0.0, %v1504
    %v1506 = vpop.f32.mrf.mxu0
    %v1507 = vpop.f32.mrf.mxu0
    %v1508 = vadd.f32 0.0, %v1507
    %v1509 = vpop.f32.mrf.mxu0
    %1510 = vmatprep.mubr.bf16.mxu0 0
    %1511 = vmatmul.mubr.bf16.gmra.mxu0 %v1283
    %v1512 = vpop.f32.mrf.mxu0
    %v1513 = vadd.f32 0.0, %v1512
    %v1514 = vpop.f32.mrf.mxu0
    %v1515 = vpop.f32.mrf.mxu0
    %v1516 = vadd.f32 0.0, %v1515
    %v1517 = vpop.f32.mrf.mxu0
    %1518 = vmatprep.mubr.bf16.mxu0 0
    %1519 = vmatmul.mubr.bf16.gmra.mxu0 %v1284
    %v1520 = vpop.f32.mrf.mxu0
    %v1521 = vadd.f32 0.0, %v1520
    %v1522 = vpop.f32.mrf.mxu0
    %v1523 = vpop.f32.mrf.mxu0
    %v1524 = vadd.f32 0.0, %v1523
    %v1525 = vpop.f32.mrf.mxu0
    %1526 = vmatprep.mubr.bf16.mxu0 0
    %1527 = vmatmul.mubr.bf16.gmra.mxu0 %v1285
    %v1528 = vpop.f32.mrf.mxu0
    %v1529 = vadd.f32 0.0, %v1528
    %v1530 = vpop.f32.mrf.mxu0
    %v1531 = vpop.f32.mrf.mxu0
    %v1532 = vadd.f32 0.0, %v1531
    %v1533 = vpop.f32.mrf.mxu0
    %1534 = vmatprep.mubr.bf16.mxu0 0
    %1535 = vmatmul.mubr.bf16.gmra.mxu0 %v1286
    %v1536 = vpop.f32.mrf.mxu0
    %v1537 = vadd.f32 0.0, %v1536
    %v1538 = vpop.f32.mrf.mxu0
    %v1539 = vpop.f32.mrf.mxu0
    %v1540 = vadd.f32 0.0, %v1539
    %v1541 = vpop.f32.mrf.mxu0
    %1542 = vmatprep.mubr.bf16.mxu0 0
    %1543 = vmatmul.mubr.bf16.gmra.mxu0 %v1287
    %v1544 = vpop.f32.mrf.mxu0
    %v1545 = vadd.f32 0.0, %v1544
    %v1546 = vpop.f32.mrf.mxu0
    %v1547 = vpop.f32.mrf.mxu0
    %v1548 = vadd.f32 0.0, %v1547
    %v1549 = vpop.f32.mrf.mxu0
    %1550 = vmatprep.mubr.bf16.mxu0 0
    %1551 = vmatmul.mubr.bf16.gmra.mxu0 %v1288
    %v1552 = vpop.f32.mrf.mxu0
    %v1553 = vadd.f32 0.0, %v1552
    %v1554 = vpop.f32.mrf.mxu0
    %v1555 = vpop.f32.mrf.mxu0
    %v1556 = vadd.f32 0.0, %v1555
    %v1557 = vpop.f32.mrf.mxu0
    %1558 = vmatprep.mubr.bf16.mxu0 0
    %1559 = vmatmul.mubr.bf16.gmra.mxu0 %v1289
    %v1560 = vpop.f32.mrf.mxu0
    %v1561 = vadd.f32 0.0, %v1560
    %v1562 = vpop.f32.mrf.mxu0
    %v1563 = vpop.f32.mrf.mxu0
    %v1564 = vadd.f32 0.0, %v1563
    %v1565 = vpop.f32.mrf.mxu0
    %1566 = vmatprep.mubr.bf16.mxu0 0
    %1567 = vmatmul.mubr.bf16.gmra.mxu0 %v1290
    %v1568 = vpop.f32.mrf.mxu0
    %v1569 = vadd.f32 0.0, %v1568
    %v1570 = vpop.f32.mrf.mxu0
    %v1571 = vpop.f32.mrf.mxu0
    %v1572 = vadd.f32 0.0, %v1571
    %v1573 = vpop.f32.mrf.mxu0
    %1574 = vmatprep.mubr.bf16.mxu0 0
    %1575 = vmatmul.mubr.bf16.gmra.mxu0 %v1291
    %v1576 = vpop.f32.mrf.mxu0
    %v1577 = vadd.f32 0.0, %v1576
    %v1578 = vpop.f32.mrf.mxu0
    %v1579 = vpop.f32.mrf.mxu0
    %v1580 = vadd.f32 0.0, %v1579
    %v1581 = vpop.f32.mrf.mxu0
    %1582 = vmatprep.mubr.bf16.mxu0 0
    %1583 = vmatmul.mubr.bf16.gmra.mxu0 %v1292
    %v1584 = vpop.f32.mrf.mxu0
    %v1585 = vadd.f32 0.0, %v1584
    %v1586 = vpop.f32.mrf.mxu0
    %v1587 = vpop.f32.mrf.mxu0
    %v1588 = vadd.f32 0.0, %v1587
    %v1589 = vpop.f32.mrf.mxu0
    %1590 = vmatprep.mubr.bf16.mxu0 0
    %1591 = vmatmul.mubr.bf16.gmra.mxu0 %v1293
    %v1592 = vpop.f32.mrf.mxu0
    %v1593 = vadd.f32 0.0, %v1592
    %v1594 = vpop.f32.mrf.mxu0
    %v1595 = vpop.f32.mrf.mxu0
    %v1596 = vadd.f32 0.0, %v1595
    %v1597 = vpop.f32.mrf.mxu0
    %1598 = vmatprep.mubr.bf16.mxu0 0
    %1599 = vmatmul.mubr.bf16.gmra.mxu0 %v1294
    %v1600 = vpop.f32.mrf.mxu0
    %v1601 = vadd.f32 0.0, %v1600
    %v1602 = vpop.f32.mrf.mxu0
    %v1603 = vpop.f32.mrf.mxu0
    %v1604 = vadd.f32 0.0, %v1603
    %v1605 = vpop.f32.mrf.mxu0
    %1606 = vmatprep.mubr.bf16.mxu0 0
    %1607 = vmatmul.mubr.bf16.gmra.mxu0 %v1295
    %v1608 = vpop.f32.mrf.mxu0
    %v1609 = vadd.f32 0.0, %v1608
    %v1610 = vpop.f32.mrf.mxu0
    %v1611 = vpop.f32.mrf.mxu0
    %v1612 = vadd.f32 0.0, %v1611
    %v1613 = vpop.f32.mrf.mxu0
    %1614 = vmatprep.mubr.bf16.mxu0 0
    %1615 = vmatmul.mubr.bf16.gmra.mxu0 %v1296
    %v1616 = vpop.f32.mrf.mxu0
    %v1617 = vadd.f32 0.0, %v1616
    %v1618 = vpop.f32.mrf.mxu0
    %v1619 = vpop.f32.mrf.mxu0
    %v1620 = vadd.f32 0.0, %v1619
    %v1621 = vpop.f32.mrf.mxu0
    %1622 = vmatprep.mubr.bf16.mxu0 0
    %1623 = vmatmul.mubr.bf16.gmra.mxu0 %v1297
    %v1624 = vpop.f32.mrf.mxu0
    %v1625 = vadd.f32 0.0, %v1624
    %v1626 = vpop.f32.mrf.mxu0
    %v1627 = vpop.f32.mrf.mxu0
    %v1628 = vadd.f32 0.0, %v1627
    %v1629 = vpop.f32.mrf.mxu0
    %1630 = vmatprep.mubr.bf16.mxu0 0
    %1631 = vmatmul.mubr.bf16.gmra.mxu0 %v1298
    %v1632 = vpop.f32.mrf.mxu0
    %v1633 = vadd.f32 0.0, %v1632
    %v1634 = vpop.f32.mrf.mxu0
    %v1635 = vpop.f32.mrf.mxu0
    %v1636 = vadd.f32 0.0, %v1635
    %v1637 = vpop.f32.mrf.mxu0
    %1638 = vmatprep.mubr.bf16.mxu0 0
    %1639 = vmatmul.mubr.bf16.gmra.mxu0 %v1299
    %v1640 = vpop.f32.mrf.mxu0
    %v1641 = vadd.f32 0.0, %v1640
    %v1642 = vpop.f32.mrf.mxu0
    %v1643 = vpop.f32.mrf.mxu0
    %v1644 = vadd.f32 0.0, %v1643
    %v1645 = vpop.f32.mrf.mxu0
    %1646 = vmatprep.mubr.bf16.mxu0 0
    %1647 = vmatmul.mubr.bf16.gmra.mxu0 %v1300
    %v1648 = vpop.f32.mrf.mxu0
    %v1649 = vadd.f32 0.0, %v1648
    %v1650 = vpop.f32.mrf.mxu0
    %v1651 = vpop.f32.mrf.mxu0
    %v1652 = vadd.f32 0.0, %v1651
    %v1653 = vpop.f32.mrf.mxu0
    %1654 = vdwg.mxu0
    %v1655 = vadd.f32 %v951, %v1401
    %v1656 = vadd.f32 %v954, %v1404
    %v1657 = vadd.f32 %v959, %v1409
    %v1658 = vadd.f32 %v962, %v1412
    %v1659 = vadd.f32 %v967, %v1417
    %v1660 = vadd.f32 %v970, %v1420
    %v1661 = vadd.f32 %v975, %v1425
    %v1662 = vadd.f32 %v978, %v1428
    %v1663 = vadd.f32 %v983, %v1433
    %v1664 = vadd.f32 %v986, %v1436
    %v1665 = vadd.f32 %v991, %v1441
    %v1666 = vadd.f32 %v994, %v1444
    %v1667 = vadd.f32 %v999, %v1449
    %v1668 = vadd.f32 %v1002, %v1452
    %v1669 = vadd.f32 %v1007, %v1457
    %v1670 = vadd.f32 %v1010, %v1460
    %v1671 = vadd.f32 %v1015, %v1465
    %v1672 = vadd.f32 %v1018, %v1468
    %v1673 = vadd.f32 %v1023, %v1473
    %v1674 = vadd.f32 %v1026, %v1476
    %v1675 = vadd.f32 %v1031, %v1481
    %v1676 = vadd.f32 %v1034, %v1484
    %v1677 = vadd.f32 %v1039, %v1489
    %v1678 = vadd.f32 %v1042, %v1492
    %v1679 = vadd.f32 %v1047, %v1497
    %v1680 = vadd.f32 %v1050, %v1500
    %v1681 = vadd.f32 %v1055, %v1505
    %v1682 = vadd.f32 %v1058, %v1508
    %v1683 = vadd.f32 %v1063, %v1513
    %v1684 = vadd.f32 %v1066, %v1516
    %v1685 = vadd.f32 %v1071, %v1521
    %v1686 = vadd.f32 %v1074, %v1524
    %v1687 = vadd.f32 %v1079, %v1529
    %v1688 = vadd.f32 %v1082, %v1532
    %v1689 = vadd.f32 %v1087, %v1537
    %v1690 = vadd.f32 %v1090, %v1540
    %v1691 = vadd.f32 %v1095, %v1545
    %v1692 = vadd.f32 %v1098, %v1548
    %v1693 = vadd.f32 %v1103, %v1553
    %v1694 = vadd.f32 %v1106, %v1556
    %v1695 = vadd.f32 %v1111, %v1561
    %v1696 = vadd.f32 %v1114, %v1564
    %v1697 = vadd.f32 %v1119, %v1569
    %v1698 = vadd.f32 %v1122, %v1572
    %v1699 = vadd.f32 %v1127, %v1577
    %v1700 = vadd.f32 %v1130, %v1580
    %v1701 = vadd.f32 %v1135, %v1585
    %v1702 = vadd.f32 %v1138, %v1588
    %v1703 = vadd.f32 %v1143, %v1593
    %v1704 = vadd.f32 %v1146, %v1596
    %v1705 = vadd.f32 %v1151, %v1601
    %v1706 = vadd.f32 %v1154, %v1604
    %v1707 = vadd.f32 %v1159, %v1609
    %v1708 = vadd.f32 %v1162, %v1612
    %v1709 = vadd.f32 %v1167, %v1617
    %v1710 = vadd.f32 %v1170, %v1620
    %v1711 = vadd.f32 %v1175, %v1625
    %v1712 = vadd.f32 %v1178, %v1628
    %v1713 = vadd.f32 %v1183, %v1633
    %v1714 = vadd.f32 %v1186, %v1636
    %v1715 = vadd.f32 %v1191, %v1641
    %v1716 = vadd.f32 %v1194, %v1644
    %v1717 = vadd.f32 %v1199, %v1649
    %v1718 = vadd.f32 %v1202, %v1652
    %v1719 = vld [vmem:[%s241] sm:$0xff]
    %v1720 = vld [vmem:[%s241 + $0x8] sm:$0xff]
    %v1721 = vld [vmem:[%s241 + $0x18] sm:$0xff]
    %v1722 = vld [vmem:[%s241 + $0x20] sm:$0xff]
    %v1723 = vld [vmem:[%s241 + $0x30] sm:$0xff]
    %v1724 = vld [vmem:[%s241 + $0x38] sm:$0xff]
    %v1725 = vld [vmem:[%s241 + $0x48] sm:$0xff]
    %v1726 = vld [vmem:[%s241 + $0x50] sm:$0xff]
    %v1727 = vld [vmem:[%s241 + $0x60] sm:$0xff]
    %v1728 = vld [vmem:[%s241 + $0x68] sm:$0xff]
    %v1729 = vld [vmem:[%s241 + $0x78] sm:$0xff]
    %v1730 = vld [vmem:[%s241 + $0x80] sm:$0xff]
    %v1731 = vld [vmem:[%s241 + $0x90] sm:$0xff]
    %v1732 = vld [vmem:[%s241 + $0x98] sm:$0xff]
    %v1733 = vld [vmem:[%s241 + $0xa8] sm:$0xff]
    %v1734 = vld [vmem:[%s241 + $0xb0] sm:$0xff]
    %v1735 = vld [vmem:[%s241 + $0xc0] sm:$0xff]
    %v1736 = vld [vmem:[%s241 + $0xc8] sm:$0xff]
    %v1737 = vld [vmem:[%s241 + $0xd8] sm:$0xff]
    %v1738 = vld [vmem:[%s241 + $0xe0] sm:$0xff]
    %v1739 = vld [vmem:[%s241 + $0xf0] sm:$0xff]
    %v1740 = vld [vmem:[%s241 + $0xf8] sm:$0xff]
    %v1741 = vld [vmem:[%s241 + $0x108] sm:$0xff]
    %v1742 = vld [vmem:[%s241 + $0x110] sm:$0xff]
    %v1743 = vld [vmem:[%s241 + $0x120] sm:$0xff]
    %v1744 = vld [vmem:[%s241 + $0x128] sm:$0xff]
    %v1745 = vld [vmem:[%s241 + $0x138] sm:$0xff]
    %v1746 = vld [vmem:[%s241 + $0x140] sm:$0xff]
    %v1747 = vld [vmem:[%s241 + $0x150] sm:$0xff]
    %v1748 = vld [vmem:[%s241 + $0x158] sm:$0xff]
    %v1749 = vld [vmem:[%s241 + $0x168] sm:$0xff]
    %v1750 = vld [vmem:[%s241 + $0x170] sm:$0xff]
    %v1751 = vld [vmem:[%s241 + $0x1b0] sm:$0xff]
    %v1752 = vld [vmem:[%s241 + $0x1b8] sm:$0xff]
    %v1753 = vld [vmem:[%s241 + $0x1c8] sm:$0xff]
    %v1754 = vld [vmem:[%s241 + $0x1d0] sm:$0xff]
    %v1755 = vld [vmem:[%s241 + $0x1e0] sm:$0xff]
    %v1756 = vld [vmem:[%s241 + $0x1e8] sm:$0xff]
    %v1757 = vld [vmem:[%s241 + $0x1f8] sm:$0xff]
    %v1758 = vld [vmem:[%s241 + $0x200] sm:$0xff]
    %v1759 = vld [vmem:[%s241 + $0x210] sm:$0xff]
    %v1760 = vld [vmem:[%s241 + $0x218] sm:$0xff]
    %v1761 = vld [vmem:[%s241 + $0x228] sm:$0xff]
    %v1762 = vld [vmem:[%s241 + $0x230] sm:$0xff]
    %v1763 = vld [vmem:[%s241 + $0x240] sm:$0xff]
    %v1764 = vld [vmem:[%s241 + $0x248] sm:$0xff]
    %v1765 = vld [vmem:[%s241 + $0x258] sm:$0xff]
    %v1766 = vld [vmem:[%s241 + $0x260] sm:$0xff]
    %v1767 = vld [vmem:[%s241 + $0x270] sm:$0xff]
    %v1768 = vld [vmem:[%s241 + $0x278] sm:$0xff]
    %v1769 = vld [vmem:[%s241 + $0x288] sm:$0xff]
    %v1770 = vld [vmem:[%s241 + $0x290] sm:$0xff]
    %v1771 = vld [vmem:[%s241 + $0x2a0] sm:$0xff]
    %v1772 = vld [vmem:[%s241 + $0x2a8] sm:$0xff]
    %v1773 = vld [vmem:[%s241 + $0x2b8] sm:$0xff]
    %v1774 = vld [vmem:[%s241 + $0x2c0] sm:$0xff]
    %v1775 = vld [vmem:[%s241 + $0x2d0] sm:$0xff]
    %v1776 = vld [vmem:[%s241 + $0x2d8] sm:$0xff]
    %v1777 = vld [vmem:[%s241 + $0x2e8] sm:$0xff]
    %v1778 = vld [vmem:[%s241 + $0x2f0] sm:$0xff]
    %v1779 = vld [vmem:[%s241 + $0x300] sm:$0xff]
    %v1780 = vld [vmem:[%s241 + $0x308] sm:$0xff]
    %v1781 = vld [vmem:[%s241 + $0x318] sm:$0xff]
    %v1782 = vld [vmem:[%s241 + $0x320] sm:$0xff]
    %v1783 = vpack.c.bf16 %v1720, %v1719
    %v1784 = vpack.c.bf16 %v1722, %v1721
    %v1785 = vpack.c.bf16 %v1724, %v1723
    %v1786 = vpack.c.bf16 %v1726, %v1725
    %v1787 = vpack.c.bf16 %v1728, %v1727
    %v1788 = vpack.c.bf16 %v1730, %v1729
    %v1789 = vpack.c.bf16 %v1732, %v1731
    %v1790 = vpack.c.bf16 %v1734, %v1733
    %v1791 = vpack.c.bf16 %v1736, %v1735
    %v1792 = vpack.c.bf16 %v1738, %v1737
    %v1793 = vpack.c.bf16 %v1740, %v1739
    %v1794 = vpack.c.bf16 %v1742, %v1741
    %v1795 = vpack.c.bf16 %v1744, %v1743
    %v1796 = vpack.c.bf16 %v1746, %v1745
    %v1797 = vpack.c.bf16 %v1748, %v1747
    %v1798 = vpack.c.bf16 %v1750, %v1749
    %v1799 = vpack.c.bf16 %v1752, %v1751
    %v1800 = vpack.c.bf16 %v1754, %v1753
    %v1801 = vpack.c.bf16 %v1756, %v1755
    %v1802 = vpack.c.bf16 %v1758, %v1757
    %v1803 = vpack.c.bf16 %v1760, %v1759
    %v1804 = vpack.c.bf16 %v1762, %v1761
    %v1805 = vpack.c.bf16 %v1764, %v1763
    %v1806 = vpack.c.bf16 %v1766, %v1765
    %v1807 = vpack.c.bf16 %v1768, %v1767
    %v1808 = vpack.c.bf16 %v1770, %v1769
    %v1809 = vpack.c.bf16 %v1772, %v1771
    %v1810 = vpack.c.bf16 %v1774, %v1773
    %v1811 = vpack.c.bf16 %v1776, %v1775
    %v1812 = vpack.c.bf16 %v1778, %v1777
    %v1813 = vpack.c.bf16 %v1780, %v1779
    %v1814 = vpack.c.bf16 %v1782, %v1781
    %s1815 = scalar_lea.vmem [#allocation6], 192
    %v1816 = vld [vmem:[%s1815] sm:$0xf]
    %v1817 = vld [vmem:[%s1815 + $0x4] sm:$0xf]
    %v1818 = vld [vmem:[%s1815 + $0x8] sm:$0xf]
    %v1819 = vld [vmem:[%s1815 + $0xc] sm:$0xf]
    %v1820 = vld [vmem:[%s1815 + $0x10] sm:$0xf]
    %v1821 = vld [vmem:[%s1815 + $0x14] sm:$0xf]
    %v1822 = vld [vmem:[%s1815 + $0x18] sm:$0xf]
    %v1823 = vld [vmem:[%s1815 + $0x1c] sm:$0xf]
    %v1824 = vld [vmem:[%s1815 + $0x20] sm:$0xf]
    %v1825 = vld [vmem:[%s1815 + $0x24] sm:$0xf]
    %v1826 = vld [vmem:[%s1815 + $0x28] sm:$0xf]
    %v1827 = vld [vmem:[%s1815 + $0x2c] sm:$0xf]
    %v1828 = vld [vmem:[%s1815 + $0x30] sm:$0xf]
    %v1829 = vld [vmem:[%s1815 + $0x34] sm:$0xf]
    %v1830 = vld [vmem:[%s1815 + $0x38] sm:$0xf]
    %v1831 = vld [vmem:[%s1815 + $0x3c] sm:$0xf]
    %v1848 = vunpack.c.l.b16 %v1816
    %v1849 = vunpack.c.l.b16 %v1817
    %v1850 = vunpack.c.l.b16 %v1818
    %v1851 = vunpack.c.l.b16 %v1819
    %v1852 = vunpack.c.l.b16 %v1820
    %v1853 = vunpack.c.l.b16 %v1821
    %v1854 = vunpack.c.l.b16 %v1822
    %v1855 = vunpack.c.l.b16 %v1823
    %v1856 = vunpack.c.l.b16 %v1824
    %v1857 = vunpack.c.l.b16 %v1825
    %v1858 = vunpack.c.l.b16 %v1826
    %v1859 = vunpack.c.l.b16 %v1827
    %v1860 = vunpack.c.l.b16 %v1828
    %v1861 = vunpack.c.l.b16 %v1829
    %v1862 = vunpack.c.l.b16 %v1830
    %v1863 = vunpack.c.l.b16 %v1831
    %v1864 = vpack.c.b16 %v1849, %v1848
    %v1865 = vpack.c.b16 %v1851, %v1850
    %v1866 = vpack.c.b16 %v1853, %v1852
    %v1867 = vpack.c.b16 %v1855, %v1854
    %v1868 = vpack.c.b16 %v1857, %v1856
    %v1869 = vpack.c.b16 %v1859, %v1858
    %v1870 = vpack.c.b16 %v1861, %v1860
    %v1871 = vpack.c.b16 %v1863, %v1862
    %1880 = vmatprep.subr.bf16.mxu0 0
    %1881 = vmatpush1.bf16.msra.mxu0 %v1871
    %1882 = vmatprep.subr.bf16.mxu0 0
    %1883 = vmatpush1.bf16.msra.mxu0 %v1870
    %1884 = vmatprep.subr.bf16.mxu0 0
    %1885 = vmatpush1.bf16.msra.mxu0 %v1869
    %1886 = vmatprep.subr.bf16.mxu0 0
    %1887 = vmatpush1.bf16.msra.mxu0 %v1868
    %1888 = vmatprep.subr.bf16.mxu0 0
    %1889 = vmatpush1.bf16.msra.mxu0 %v1867
    %1890 = vmatprep.subr.bf16.mxu0 0
    %1891 = vmatpush1.bf16.msra.mxu0 %v1866
    %1892 = vmatprep.subr.bf16.mxu0 0
    %1893 = vmatpush1.bf16.msra.mxu0 %v1865
    %1894 = vmatprep.subr.bf16.mxu0 0
    %1895 = vmatpush1.bf16.msra.mxu0 %v1864
    %1896 = vmatprep.subr.bf16.mxu0 0
    %1897 = vmatpush2.bf16.msra.mxu0 0
    %1898 = vmatprep.subr.bf16.mxu0 0
    %1899 = vmatpush2.bf16.msra.mxu0 0
    %1900 = vmatprep.subr.bf16.mxu0 0
    %1901 = vmatpush2.bf16.msra.mxu0 0
    %1902 = vmatprep.subr.bf16.mxu0 0
    %1903 = vmatpush2.bf16.msra.mxu0 0
    %1904 = vmatprep.subr.bf16.mxu0 0
    %1905 = vmatpush2.bf16.msra.mxu0 0
    %1906 = vmatprep.subr.bf16.mxu0 0
    %1907 = vmatpush2.bf16.msra.mxu0 0
    %1908 = vmatprep.subr.bf16.mxu0 0
    %1909 = vmatpush2.bf16.msra.mxu0 0
    %1910 = vmatprep.subr.bf16.mxu0 0
    %1911 = vmatpush2.bf16.msra.mxu0 0
    %1912 = vmatprep.mubr.bf16.mxu0 0
    %1913 = vmatmul.mubr.bf16.gmra.mxu0 %v1783
    %v1914 = vpop.f32.mrf.mxu0
    %v1915 = vadd.f32 0.0, %v1914
    %v1916 = vpop.f32.mrf.mxu0
    %v1917 = vpop.f32.mrf.mxu0
    %v1918 = vadd.f32 0.0, %v1917
    %v1919 = vpop.f32.mrf.mxu0
    %1920 = vmatprep.mubr.bf16.mxu0 0
    %1921 = vmatmul.mubr.bf16.gmra.mxu0 %v1784
    %v1922 = vpop.f32.mrf.mxu0
    %v1923 = vadd.f32 0.0, %v1922
    %v1924 = vpop.f32.mrf.mxu0
    %v1925 = vpop.f32.mrf.mxu0
    %v1926 = vadd.f32 0.0, %v1925
    %v1927 = vpop.f32.mrf.mxu0
    %1928 = vmatprep.mubr.bf16.mxu0 0
    %1929 = vmatmul.mubr.bf16.gmra.mxu0 %v1785
    %v1930 = vpop.f32.mrf.mxu0
    %v1931 = vadd.f32 0.0, %v1930
    %v1932 = vpop.f32.mrf.mxu0
    %v1933 = vpop.f32.mrf.mxu0
    %v1934 = vadd.f32 0.0, %v1933
    %v1935 = vpop.f32.mrf.mxu0
    %1936 = vmatprep.mubr.bf16.mxu0 0
    %1937 = vmatmul.mubr.bf16.gmra.mxu0 %v1786
    %v1938 = vpop.f32.mrf.mxu0
    %v1939 = vadd.f32 0.0, %v1938
    %v1940 = vpop.f32.mrf.mxu0
    %v1941 = vpop.f32.mrf.mxu0
    %v1942 = vadd.f32 0.0, %v1941
    %v1943 = vpop.f32.mrf.mxu0
    %1944 = vmatprep.mubr.bf16.mxu0 0
    %1945 = vmatmul.mubr.bf16.gmra.mxu0 %v1787
    %v1946 = vpop.f32.mrf.mxu0
    %v1947 = vadd.f32 0.0, %v1946
    %v1948 = vpop.f32.mrf.mxu0
    %v1949 = vpop.f32.mrf.mxu0
    %v1950 = vadd.f32 0.0, %v1949
    %v1951 = vpop.f32.mrf.mxu0
    %1952 = vmatprep.mubr.bf16.mxu0 0
    %1953 = vmatmul.mubr.bf16.gmra.mxu0 %v1788
    %v1954 = vpop.f32.mrf.mxu0
    %v1955 = vadd.f32 0.0, %v1954
    %v1956 = vpop.f32.mrf.mxu0
    %v1957 = vpop.f32.mrf.mxu0
    %v1958 = vadd.f32 0.0, %v1957
    %v1959 = vpop.f32.mrf.mxu0
    %1960 = vmatprep.mubr.bf16.mxu0 0
    %1961 = vmatmul.mubr.bf16.gmra.mxu0 %v1789
    %v1962 = vpop.f32.mrf.mxu0
    %v1963 = vadd.f32 0.0, %v1962
    %v1964 = vpop.f32.mrf.mxu0
    %v1965 = vpop.f32.mrf.mxu0
    %v1966 = vadd.f32 0.0, %v1965
    %v1967 = vpop.f32.mrf.mxu0
    %1968 = vmatprep.mubr.bf16.mxu0 0
    %1969 = vmatmul.mubr.bf16.gmra.mxu0 %v1790
    %v1970 = vpop.f32.mrf.mxu0
    %v1971 = vadd.f32 0.0, %v1970
    %v1972 = vpop.f32.mrf.mxu0
    %v1973 = vpop.f32.mrf.mxu0
    %v1974 = vadd.f32 0.0, %v1973
    %v1975 = vpop.f32.mrf.mxu0
    %1976 = vmatprep.mubr.bf16.mxu0 0
    %1977 = vmatmul.mubr.bf16.gmra.mxu0 %v1791
    %v1978 = vpop.f32.mrf.mxu0
    %v1979 = vadd.f32 0.0, %v1978
    %v1980 = vpop.f32.mrf.mxu0
    %v1981 = vpop.f32.mrf.mxu0
    %v1982 = vadd.f32 0.0, %v1981
    %v1983 = vpop.f32.mrf.mxu0
    %1984 = vmatprep.mubr.bf16.mxu0 0
    %1985 = vmatmul.mubr.bf16.gmra.mxu0 %v1792
    %v1986 = vpop.f32.mrf.mxu0
    %v1987 = vadd.f32 0.0, %v1986
    %v1988 = vpop.f32.mrf.mxu0
    %v1989 = vpop.f32.mrf.mxu0
    %v1990 = vadd.f32 0.0, %v1989
    %v1991 = vpop.f32.mrf.mxu0
    %1992 = vmatprep.mubr.bf16.mxu0 0
    %1993 = vmatmul.mubr.bf16.gmra.mxu0 %v1793
    %v1994 = vpop.f32.mrf.mxu0
    %v1995 = vadd.f32 0.0, %v1994
    %v1996 = vpop.f32.mrf.mxu0
    %v1997 = vpop.f32.mrf.mxu0
    %v1998 = vadd.f32 0.0, %v1997
    %v1999 = vpop.f32.mrf.mxu0
    %2000 = vmatprep.mubr.bf16.mxu0 0
    %2001 = vmatmul.mubr.bf16.gmra.mxu0 %v1794
    %v2002 = vpop.f32.mrf.mxu0
    %v2003 = vadd.f32 0.0, %v2002
    %v2004 = vpop.f32.mrf.mxu0
    %v2005 = vpop.f32.mrf.mxu0
    %v2006 = vadd.f32 0.0, %v2005
    %v2007 = vpop.f32.mrf.mxu0
    %2008 = vmatprep.mubr.bf16.mxu0 0
    %2009 = vmatmul.mubr.bf16.gmra.mxu0 %v1795
    %v2010 = vpop.f32.mrf.mxu0
    %v2011 = vadd.f32 0.0, %v2010
    %v2012 = vpop.f32.mrf.mxu0
    %v2013 = vpop.f32.mrf.mxu0
    %v2014 = vadd.f32 0.0, %v2013
    %v2015 = vpop.f32.mrf.mxu0
    %2016 = vmatprep.mubr.bf16.mxu0 0
    %2017 = vmatmul.mubr.bf16.gmra.mxu0 %v1796
    %v2018 = vpop.f32.mrf.mxu0
    %v2019 = vadd.f32 0.0, %v2018
    %v2020 = vpop.f32.mrf.mxu0
    %v2021 = vpop.f32.mrf.mxu0
    %v2022 = vadd.f32 0.0, %v2021
    %v2023 = vpop.f32.mrf.mxu0
    %2024 = vmatprep.mubr.bf16.mxu0 0
    %2025 = vmatmul.mubr.bf16.gmra.mxu0 %v1797
    %v2026 = vpop.f32.mrf.mxu0
    %v2027 = vadd.f32 0.0, %v2026
    %v2028 = vpop.f32.mrf.mxu0
    %v2029 = vpop.f32.mrf.mxu0
    %v2030 = vadd.f32 0.0, %v2029
    %v2031 = vpop.f32.mrf.mxu0
    %2032 = vmatprep.mubr.bf16.mxu0 0
    %2033 = vmatmul.mubr.bf16.gmra.mxu0 %v1798
    %v2034 = vpop.f32.mrf.mxu0
    %v2035 = vadd.f32 0.0, %v2034
    %v2036 = vpop.f32.mrf.mxu0
    %v2037 = vpop.f32.mrf.mxu0
    %v2038 = vadd.f32 0.0, %v2037
    %v2039 = vpop.f32.mrf.mxu0
    %2040 = vmatprep.mubr.bf16.mxu0 0
    %2041 = vmatmul.mubr.bf16.gmra.mxu0 %v1799
    %v2042 = vpop.f32.mrf.mxu0
    %v2043 = vadd.f32 0.0, %v2042
    %v2044 = vpop.f32.mrf.mxu0
    %v2045 = vpop.f32.mrf.mxu0
    %v2046 = vadd.f32 0.0, %v2045
    %v2047 = vpop.f32.mrf.mxu0
    %2048 = vmatprep.mubr.bf16.mxu0 0
    %2049 = vmatmul.mubr.bf16.gmra.mxu0 %v1800
    %v2050 = vpop.f32.mrf.mxu0
    %v2051 = vadd.f32 0.0, %v2050
    %v2052 = vpop.f32.mrf.mxu0
    %v2053 = vpop.f32.mrf.mxu0
    %v2054 = vadd.f32 0.0, %v2053
    %v2055 = vpop.f32.mrf.mxu0
    %2056 = vmatprep.mubr.bf16.mxu0 0
    %2057 = vmatmul.mubr.bf16.gmra.mxu0 %v1801
    %v2058 = vpop.f32.mrf.mxu0
    %v2059 = vadd.f32 0.0, %v2058
    %v2060 = vpop.f32.mrf.mxu0
    %v2061 = vpop.f32.mrf.mxu0
    %v2062 = vadd.f32 0.0, %v2061
    %v2063 = vpop.f32.mrf.mxu0
    %2064 = vmatprep.mubr.bf16.mxu0 0
    %2065 = vmatmul.mubr.bf16.gmra.mxu0 %v1802
    %v2066 = vpop.f32.mrf.mxu0
    %v2067 = vadd.f32 0.0, %v2066
    %v2068 = vpop.f32.mrf.mxu0
    %v2069 = vpop.f32.mrf.mxu0
    %v2070 = vadd.f32 0.0, %v2069
    %v2071 = vpop.f32.mrf.mxu0
    %2072 = vmatprep.mubr.bf16.mxu0 0
    %2073 = vmatmul.mubr.bf16.gmra.mxu0 %v1803
    %v2074 = vpop.f32.mrf.mxu0
    %v2075 = vadd.f32 0.0, %v2074
    %v2076 = vpop.f32.mrf.mxu0
    %v2077 = vpop.f32.mrf.mxu0
    %v2078 = vadd.f32 0.0, %v2077
    %v2079 = vpop.f32.mrf.mxu0
    %2080 = vmatprep.mubr.bf16.mxu0 0
    %2081 = vmatmul.mubr.bf16.gmra.mxu0 %v1804
    %v2082 = vpop.f32.mrf.mxu0
    %v2083 = vadd.f32 0.0, %v2082
    %v2084 = vpop.f32.mrf.mxu0
    %v2085 = vpop.f32.mrf.mxu0
    %v2086 = vadd.f32 0.0, %v2085
    %v2087 = vpop.f32.mrf.mxu0
    %2088 = vmatprep.mubr.bf16.mxu0 0
    %2089 = vmatmul.mubr.bf16.gmra.mxu0 %v1805
    %v2090 = vpop.f32.mrf.mxu0
    %v2091 = vadd.f32 0.0, %v2090
    %v2092 = vpop.f32.mrf.mxu0
    %v2093 = vpop.f32.mrf.mxu0
    %v2094 = vadd.f32 0.0, %v2093
    %v2095 = vpop.f32.mrf.mxu0
    %2096 = vmatprep.mubr.bf16.mxu0 0
    %2097 = vmatmul.mubr.bf16.gmra.mxu0 %v1806
    %v2098 = vpop.f32.mrf.mxu0
    %v2099 = vadd.f32 0.0, %v2098
    %v2100 = vpop.f32.mrf.mxu0
    %v2101 = vpop.f32.mrf.mxu0
    %v2102 = vadd.f32 0.0, %v2101
    %v2103 = vpop.f32.mrf.mxu0
    %2104 = vmatprep.mubr.bf16.mxu0 0
    %2105 = vmatmul.mubr.bf16.gmra.mxu0 %v1807
    %v2106 = vpop.f32.mrf.mxu0
    %v2107 = vadd.f32 0.0, %v2106
    %v2108 = vpop.f32.mrf.mxu0
    %v2109 = vpop.f32.mrf.mxu0
    %v2110 = vadd.f32 0.0, %v2109
    %v2111 = vpop.f32.mrf.mxu0
    %2112 = vmatprep.mubr.bf16.mxu0 0
    %2113 = vmatmul.mubr.bf16.gmra.mxu0 %v1808
    %v2114 = vpop.f32.mrf.mxu0
    %v2115 = vadd.f32 0.0, %v2114
    %v2116 = vpop.f32.mrf.mxu0
    %v2117 = vpop.f32.mrf.mxu0
    %v2118 = vadd.f32 0.0, %v2117
    %v2119 = vpop.f32.mrf.mxu0
    %2120 = vmatprep.mubr.bf16.mxu0 0
    %2121 = vmatmul.mubr.bf16.gmra.mxu0 %v1809
    %v2122 = vpop.f32.mrf.mxu0
    %v2123 = vadd.f32 0.0, %v2122
    %v2124 = vpop.f32.mrf.mxu0
    %v2125 = vpop.f32.mrf.mxu0
    %v2126 = vadd.f32 0.0, %v2125
    %v2127 = vpop.f32.mrf.mxu0
    %2128 = vmatprep.mubr.bf16.mxu0 0
    %2129 = vmatmul.mubr.bf16.gmra.mxu0 %v1810
    %v2130 = vpop.f32.mrf.mxu0
    %v2131 = vadd.f32 0.0, %v2130
    %v2132 = vpop.f32.mrf.mxu0
    %v2133 = vpop.f32.mrf.mxu0
    %v2134 = vadd.f32 0.0, %v2133
    %v2135 = vpop.f32.mrf.mxu0
    %2136 = vmatprep.mubr.bf16.mxu0 0
    %2137 = vmatmul.mubr.bf16.gmra.mxu0 %v1811
    %v2138 = vpop.f32.mrf.mxu0
    %v2139 = vadd.f32 0.0, %v2138
    %v2140 = vpop.f32.mrf.mxu0
    %v2141 = vpop.f32.mrf.mxu0
    %v2142 = vadd.f32 0.0, %v2141
    %v2143 = vpop.f32.mrf.mxu0
    %2144 = vmatprep.mubr.bf16.mxu0 0
    %2145 = vmatmul.mubr.bf16.gmra.mxu0 %v1812
    %v2146 = vpop.f32.mrf.mxu0
    %v2147 = vadd.f32 0.0, %v2146
    %v2148 = vpop.f32.mrf.mxu0
    %v2149 = vpop.f32.mrf.mxu0
    %v2150 = vadd.f32 0.0, %v2149
    %v2151 = vpop.f32.mrf.mxu0
    %2152 = vmatprep.mubr.bf16.mxu0 0
    %2153 = vmatmul.mubr.bf16.gmra.mxu0 %v1813
    %v2154 = vpop.f32.mrf.mxu0
    %v2155 = vadd.f32 0.0, %v2154
    %v2156 = vpop.f32.mrf.mxu0
    %v2157 = vpop.f32.mrf.mxu0
    %v2158 = vadd.f32 0.0, %v2157
    %v2159 = vpop.f32.mrf.mxu0
    %2160 = vmatprep.mubr.bf16.mxu0 0
    %2161 = vmatmul.mubr.bf16.gmra.mxu0 %v1814
    %v2162 = vpop.f32.mrf.mxu0
    %v2163 = vadd.f32 0.0, %v2162
    %v2164 = vpop.f32.mrf.mxu0
    %v2165 = vpop.f32.mrf.mxu0
    %v2166 = vadd.f32 0.0, %v2165
    %v2167 = vpop.f32.mrf.mxu0
    %2168 = vdwg.mxu0
    %v2169 = vadd.f32 %v1655, %v1915
    %v2170 = vadd.f32 %v1656, %v1918
    %v2171 = vadd.f32 %v1657, %v1923
    %v2172 = vadd.f32 %v1658, %v1926
    %v2173 = vadd.f32 %v1659, %v1931
    %v2174 = vadd.f32 %v1660, %v1934
    %v2175 = vadd.f32 %v1661, %v1939
    %v2176 = vadd.f32 %v1662, %v1942
    %v2177 = vadd.f32 %v1663, %v1947
    %v2178 = vadd.f32 %v1664, %v1950
    %v2179 = vadd.f32 %v1665, %v1955
    %v2180 = vadd.f32 %v1666, %v1958
    %v2181 = vadd.f32 %v1667, %v1963
    %v2182 = vadd.f32 %v1668, %v1966
    %v2183 = vadd.f32 %v1669, %v1971
    %v2184 = vadd.f32 %v1670, %v1974
    %v2185 = vadd.f32 %v1671, %v1979
    %v2186 = vadd.f32 %v1672, %v1982
    %v2187 = vadd.f32 %v1673, %v1987
    %v2188 = vadd.f32 %v1674, %v1990
    %v2189 = vadd.f32 %v1675, %v1995
    %v2190 = vadd.f32 %v1676, %v1998
    %v2191 = vadd.f32 %v1677, %v2003
    %v2192 = vadd.f32 %v1678, %v2006
    %v2193 = vadd.f32 %v1679, %v2011
    %v2194 = vadd.f32 %v1680, %v2014
    %v2195 = vadd.f32 %v1681, %v2019
    %v2196 = vadd.f32 %v1682, %v2022
    %v2197 = vadd.f32 %v1683, %v2027
    %v2198 = vadd.f32 %v1684, %v2030
    %v2199 = vadd.f32 %v1685, %v2035
    %v2200 = vadd.f32 %v1686, %v2038
    %v2201 = vadd.f32 %v1687, %v2043
    %v2202 = vadd.f32 %v1688, %v2046
    %v2203 = vadd.f32 %v1689, %v2051
    %v2204 = vadd.f32 %v1690, %v2054
    %v2205 = vadd.f32 %v1691, %v2059
    %v2206 = vadd.f32 %v1692, %v2062
    %v2207 = vadd.f32 %v1693, %v2067
    %v2208 = vadd.f32 %v1694, %v2070
    %v2209 = vadd.f32 %v1695, %v2075
    %v2210 = vadd.f32 %v1696, %v2078
    %v2211 = vadd.f32 %v1697, %v2083
    %v2212 = vadd.f32 %v1698, %v2086
    %v2213 = vadd.f32 %v1699, %v2091
    %v2214 = vadd.f32 %v1700, %v2094
    %v2215 = vadd.f32 %v1701, %v2099
    %v2216 = vadd.f32 %v1702, %v2102
    %v2217 = vadd.f32 %v1703, %v2107
    %v2218 = vadd.f32 %v1704, %v2110
    %v2219 = vadd.f32 %v1705, %v2115
    %v2220 = vadd.f32 %v1706, %v2118
    %v2221 = vadd.f32 %v1707, %v2123
    %v2222 = vadd.f32 %v1708, %v2126
    %v2223 = vadd.f32 %v1709, %v2131
    %v2224 = vadd.f32 %v1710, %v2134
    %v2225 = vadd.f32 %v1711, %v2139
    %v2226 = vadd.f32 %v1712, %v2142
    %v2227 = vadd.f32 %v1713, %v2147
    %v2228 = vadd.f32 %v1714, %v2150
    %v2229 = vadd.f32 %v1715, %v2155
    %v2230 = vadd.f32 %v1716, %v2158
    %v2231 = vadd.f32 %v1717, %v2163
    %v2232 = vadd.f32 %v1718, %v2166
    %v2233 = vld [vmem:[%s241 + $0x1] sm:$0xff]
    %v2234 = vld [vmem:[%s241 + $0x9] sm:$0xff]
    %v2235 = vld [vmem:[%s241 + $0x19] sm:$0xff]
    %v2236 = vld [vmem:[%s241 + $0x21] sm:$0xff]
    %v2237 = vld [vmem:[%s241 + $0x31] sm:$0xff]
    %v2238 = vld [vmem:[%s241 + $0x39] sm:$0xff]
    %v2239 = vld [vmem:[%s241 + $0x49] sm:$0xff]
    %v2240 = vld [vmem:[%s241 + $0x51] sm:$0xff]
    %v2241 = vld [vmem:[%s241 + $0x61] sm:$0xff]
    %v2242 = vld [vmem:[%s241 + $0x69] sm:$0xff]
    %v2243 = vld [vmem:[%s241 + $0x79] sm:$0xff]
    %v2244 = vld [vmem:[%s241 + $0x81] sm:$0xff]
    %v2245 = vld [vmem:[%s241 + $0x91] sm:$0xff]
    %v2246 = vld [vmem:[%s241 + $0x99] sm:$0xff]
    %v2247 = vld [vmem:[%s241 + $0xa9] sm:$0xff]
    %v2248 = vld [vmem:[%s241 + $0xb1] sm:$0xff]
    %v2249 = vld [vmem:[%s241 + $0xc1] sm:$0xff]
    %v2250 = vld [vmem:[%s241 + $0xc9] sm:$0xff]
    %v2251 = vld [vmem:[%s241 + $0xd9] sm:$0xff]
    %v2252 = vld [vmem:[%s241 + $0xe1] sm:$0xff]
    %v2253 = vld [vmem:[%s241 + $0xf1] sm:$0xff]
    %v2254 = vld [vmem:[%s241 + $0xf9] sm:$0xff]
    %v2255 = vld [vmem:[%s241 + $0x109] sm:$0xff]
    %v2256 = vld [vmem:[%s241 + $0x111] sm:$0xff]
    %v2257 = vld [vmem:[%s241 + $0x121] sm:$0xff]
    %v2258 = vld [vmem:[%s241 + $0x129] sm:$0xff]
    %v2259 = vld [vmem:[%s241 + $0x139] sm:$0xff]
    %v2260 = vld [vmem:[%s241 + $0x141] sm:$0xff]
    %v2261 = vld [vmem:[%s241 + $0x151] sm:$0xff]
    %v2262 = vld [vmem:[%s241 + $0x159] sm:$0xff]
    %v2263 = vld [vmem:[%s241 + $0x169] sm:$0xff]
    %v2264 = vld [vmem:[%s241 + $0x171] sm:$0xff]
    %v2265 = vld [vmem:[%s241 + $0x1b1] sm:$0xff]
    %v2266 = vld [vmem:[%s241 + $0x1b9] sm:$0xff]
    %v2267 = vld [vmem:[%s241 + $0x1c9] sm:$0xff]
    %v2268 = vld [vmem:[%s241 + $0x1d1] sm:$0xff]
    %v2269 = vld [vmem:[%s241 + $0x1e1] sm:$0xff]
    %v2270 = vld [vmem:[%s241 + $0x1e9] sm:$0xff]
    %v2271 = vld [vmem:[%s241 + $0x1f9] sm:$0xff]
    %v2272 = vld [vmem:[%s241 + $0x201] sm:$0xff]
    %v2273 = vld [vmem:[%s241 + $0x211] sm:$0xff]
    %v2274 = vld [vmem:[%s241 + $0x219] sm:$0xff]
    %v2275 = vld [vmem:[%s241 + $0x229] sm:$0xff]
    %v2276 = vld [vmem:[%s241 + $0x231] sm:$0xff]
    %v2277 = vld [vmem:[%s241 + $0x241] sm:$0xff]
    %v2278 = vld [vmem:[%s241 + $0x249] sm:$0xff]
    %v2279 = vld [vmem:[%s241 + $0x259] sm:$0xff]
    %v2280 = vld [vmem:[%s241 + $0x261] sm:$0xff]
    %v2281 = vld [vmem:[%s241 + $0x271] sm:$0xff]
    %v2282 = vld [vmem:[%s241 + $0x279] sm:$0xff]
    %v2283 = vld [vmem:[%s241 + $0x289] sm:$0xff]
    %v2284 = vld [vmem:[%s241 + $0x291] sm:$0xff]
    %v2285 = vld [vmem:[%s241 + $0x2a1] sm:$0xff]
    %v2286 = vld [vmem:[%s241 + $0x2a9] sm:$0xff]
    %v2287 = vld [vmem:[%s241 + $0x2b9] sm:$0xff]
    %v2288 = vld [vmem:[%s241 + $0x2c1] sm:$0xff]
    %v2289 = vld [vmem:[%s241 + $0x2d1] sm:$0xff]
    %v2290 = vld [vmem:[%s241 + $0x2d9] sm:$0xff]
    %v2291 = vld [vmem:[%s241 + $0x2e9] sm:$0xff]
    %v2292 = vld [vmem:[%s241 + $0x2f1] sm:$0xff]
    %v2293 = vld [vmem:[%s241 + $0x301] sm:$0xff]
    %v2294 = vld [vmem:[%s241 + $0x309] sm:$0xff]
    %v2295 = vld [vmem:[%s241 + $0x319] sm:$0xff]
    %v2296 = vld [vmem:[%s241 + $0x321] sm:$0xff]
    %v2297 = vpack.c.bf16 %v2234, %v2233
    %v2298 = vpack.c.bf16 %v2236, %v2235
    %v2299 = vpack.c.bf16 %v2238, %v2237
    %v2300 = vpack.c.bf16 %v2240, %v2239
    %v2301 = vpack.c.bf16 %v2242, %v2241
    %v2302 = vpack.c.bf16 %v2244, %v2243
    %v2303 = vpack.c.bf16 %v2246, %v2245
    %v2304 = vpack.c.bf16 %v2248, %v2247
    %v2305 = vpack.c.bf16 %v2250, %v2249
    %v2306 = vpack.c.bf16 %v2252, %v2251
    %v2307 = vpack.c.bf16 %v2254, %v2253
    %v2308 = vpack.c.bf16 %v2256, %v2255
    %v2309 = vpack.c.bf16 %v2258, %v2257
    %v2310 = vpack.c.bf16 %v2260, %v2259
    %v2311 = vpack.c.bf16 %v2262, %v2261
    %v2312 = vpack.c.bf16 %v2264, %v2263
    %v2313 = vpack.c.bf16 %v2266, %v2265
    %v2314 = vpack.c.bf16 %v2268, %v2267
    %v2315 = vpack.c.bf16 %v2270, %v2269
    %v2316 = vpack.c.bf16 %v2272, %v2271
    %v2317 = vpack.c.bf16 %v2274, %v2273
    %v2318 = vpack.c.bf16 %v2276, %v2275
    %v2319 = vpack.c.bf16 %v2278, %v2277
    %v2320 = vpack.c.bf16 %v2280, %v2279
    %v2321 = vpack.c.bf16 %v2282, %v2281
    %v2322 = vpack.c.bf16 %v2284, %v2283
    %v2323 = vpack.c.bf16 %v2286, %v2285
    %v2324 = vpack.c.bf16 %v2288, %v2287
    %v2325 = vpack.c.bf16 %v2290, %v2289
    %v2326 = vpack.c.bf16 %v2292, %v2291
    %v2327 = vpack.c.bf16 %v2294, %v2293
    %v2328 = vpack.c.bf16 %v2296, %v2295
    %s2329 = scalar_lea.vmem [#allocation6], 256
    %v2330 = vld [vmem:[%s2329] sm:$0xf]
    %v2331 = vld [vmem:[%s2329 + $0x4] sm:$0xf]
    %v2332 = vld [vmem:[%s2329 + $0x8] sm:$0xf]
    %v2333 = vld [vmem:[%s2329 + $0xc] sm:$0xf]
    %v2334 = vld [vmem:[%s2329 + $0x10] sm:$0xf]
    %v2335 = vld [vmem:[%s2329 + $0x14] sm:$0xf]
    %v2336 = vld [vmem:[%s2329 + $0x18] sm:$0xf]
    %v2337 = vld [vmem:[%s2329 + $0x1c] sm:$0xf]
    %v2338 = vld [vmem:[%s2329 + $0x20] sm:$0xf]
    %v2339 = vld [vmem:[%s2329 + $0x24] sm:$0xf]
    %v2340 = vld [vmem:[%s2329 + $0x28] sm:$0xf]
    %v2341 = vld [vmem:[%s2329 + $0x2c] sm:$0xf]
    %v2342 = vld [vmem:[%s2329 + $0x30] sm:$0xf]
    %v2343 = vld [vmem:[%s2329 + $0x34] sm:$0xf]
    %v2344 = vld [vmem:[%s2329 + $0x38] sm:$0xf]
    %v2345 = vld [vmem:[%s2329 + $0x3c] sm:$0xf]
    %v2362 = vunpack.c.l.b16 %v2330
    %v2363 = vunpack.c.l.b16 %v2331
    %v2364 = vunpack.c.l.b16 %v2332
    %v2365 = vunpack.c.l.b16 %v2333
    %v2366 = vunpack.c.l.b16 %v2334
    %v2367 = vunpack.c.l.b16 %v2335
    %v2368 = vunpack.c.l.b16 %v2336
    %v2369 = vunpack.c.l.b16 %v2337
    %v2370 = vunpack.c.l.b16 %v2338
    %v2371 = vunpack.c.l.b16 %v2339
    %v2372 = vunpack.c.l.b16 %v2340
    %v2373 = vunpack.c.l.b16 %v2341
    %v2374 = vunpack.c.l.b16 %v2342
    %v2375 = vunpack.c.l.b16 %v2343
    %v2376 = vunpack.c.l.b16 %v2344
    %v2377 = vunpack.c.l.b16 %v2345
    %v2378 = vpack.c.b16 %v2363, %v2362
    %v2379 = vpack.c.b16 %v2365, %v2364
    %v2380 = vpack.c.b16 %v2367, %v2366
    %v2381 = vpack.c.b16 %v2369, %v2368
    %v2382 = vpack.c.b16 %v2371, %v2370
    %v2383 = vpack.c.b16 %v2373, %v2372
    %v2384 = vpack.c.b16 %v2375, %v2374
    %v2385 = vpack.c.b16 %v2377, %v2376
    %2394 = vmatprep.subr.bf16.mxu0 0
    %2395 = vmatpush1.bf16.msra.mxu0 %v2385
    %2396 = vmatprep.subr.bf16.mxu0 0
    %2397 = vmatpush1.bf16.msra.mxu0 %v2384
    %2398 = vmatprep.subr.bf16.mxu0 0
    %2399 = vmatpush1.bf16.msra.mxu0 %v2383
    %2400 = vmatprep.subr.bf16.mxu0 0
    %2401 = vmatpush1.bf16.msra.mxu0 %v2382
    %2402 = vmatprep.subr.bf16.mxu0 0
    %2403 = vmatpush1.bf16.msra.mxu0 %v2381
    %2404 = vmatprep.subr.bf16.mxu0 0
    %2405 = vmatpush1.bf16.msra.mxu0 %v2380
    %2406 = vmatprep.subr.bf16.mxu0 0
    %2407 = vmatpush1.bf16.msra.mxu0 %v2379
    %2408 = vmatprep.subr.bf16.mxu0 0
    %2409 = vmatpush1.bf16.msra.mxu0 %v2378
    %2410 = vmatprep.subr.bf16.mxu0 0
    %2411 = vmatpush2.bf16.msra.mxu0 0
    %2412 = vmatprep.subr.bf16.mxu0 0
    %2413 = vmatpush2.bf16.msra.mxu0 0
    %2414 = vmatprep.subr.bf16.mxu0 0
    %2415 = vmatpush2.bf16.msra.mxu0 0
    %2416 = vmatprep.subr.bf16.mxu0 0
    %2417 = vmatpush2.bf16.msra.mxu0 0
    %2418 = vmatprep.subr.bf16.mxu0 0
    %2419 = vmatpush2.bf16.msra.mxu0 0
    %2420 = vmatprep.subr.bf16.mxu0 0
    %2421 = vmatpush2.bf16.msra.mxu0 0
    %2422 = vmatprep.subr.bf16.mxu0 0
    %2423 = vmatpush2.bf16.msra.mxu0 0
    %2424 = vmatprep.subr.bf16.mxu0 0
    %2425 = vmatpush2.bf16.msra.mxu0 0
    %2426 = vmatprep.mubr.bf16.mxu0 0
    %2427 = vmatmul.mubr.bf16.gmra.mxu0 %v2297
    %v2428 = vpop.f32.mrf.mxu0
    %v2429 = vadd.f32 0.0, %v2428
    %v2430 = vpop.f32.mrf.mxu0
    %v2431 = vpop.f32.mrf.mxu0
    %v2432 = vadd.f32 0.0, %v2431
    %v2433 = vpop.f32.mrf.mxu0
    %2434 = vmatprep.mubr.bf16.mxu0 0
    %2435 = vmatmul.mubr.bf16.gmra.mxu0 %v2298
    %v2436 = vpop.f32.mrf.mxu0
    %v2437 = vadd.f32 0.0, %v2436
    %v2438 = vpop.f32.mrf.mxu0
    %v2439 = vpop.f32.mrf.mxu0
    %v2440 = vadd.f32 0.0, %v2439
    %v2441 = vpop.f32.mrf.mxu0
    %2442 = vmatprep.mubr.bf16.mxu0 0
    %2443 = vmatmul.mubr.bf16.gmra.mxu0 %v2299
    %v2444 = vpop.f32.mrf.mxu0
    %v2445 = vadd.f32 0.0, %v2444
    %v2446 = vpop.f32.mrf.mxu0
    %v2447 = vpop.f32.mrf.mxu0
    %v2448 = vadd.f32 0.0, %v2447
    %v2449 = vpop.f32.mrf.mxu0
    %2450 = vmatprep.mubr.bf16.mxu0 0
    %2451 = vmatmul.mubr.bf16.gmra.mxu0 %v2300
    %v2452 = vpop.f32.mrf.mxu0
    %v2453 = vadd.f32 0.0, %v2452
    %v2454 = vpop.f32.mrf.mxu0
    %v2455 = vpop.f32.mrf.mxu0
    %v2456 = vadd.f32 0.0, %v2455
    %v2457 = vpop.f32.mrf.mxu0
    %2458 = vmatprep.mubr.bf16.mxu0 0
    %2459 = vmatmul.mubr.bf16.gmra.mxu0 %v2301
    %v2460 = vpop.f32.mrf.mxu0
    %v2461 = vadd.f32 0.0, %v2460
    %v2462 = vpop.f32.mrf.mxu0
    %v2463 = vpop.f32.mrf.mxu0
    %v2464 = vadd.f32 0.0, %v2463
    %v2465 = vpop.f32.mrf.mxu0
    %2466 = vmatprep.mubr.bf16.mxu0 0
    %2467 = vmatmul.mubr.bf16.gmra.mxu0 %v2302
    %v2468 = vpop.f32.mrf.mxu0
    %v2469 = vadd.f32 0.0, %v2468
    %v2470 = vpop.f32.mrf.mxu0
    %v2471 = vpop.f32.mrf.mxu0
    %v2472 = vadd.f32 0.0, %v2471
    %v2473 = vpop.f32.mrf.mxu0
    %2474 = vmatprep.mubr.bf16.mxu0 0
    %2475 = vmatmul.mubr.bf16.gmra.mxu0 %v2303
    %v2476 = vpop.f32.mrf.mxu0
    %v2477 = vadd.f32 0.0, %v2476
    %v2478 = vpop.f32.mrf.mxu0
    %v2479 = vpop.f32.mrf.mxu0
    %v2480 = vadd.f32 0.0, %v2479
    %v2481 = vpop.f32.mrf.mxu0
    %2482 = vmatprep.mubr.bf16.mxu0 0
    %2483 = vmatmul.mubr.bf16.gmra.mxu0 %v2304
    %v2484 = vpop.f32.mrf.mxu0
    %v2485 = vadd.f32 0.0, %v2484
    %v2486 = vpop.f32.mrf.mxu0
    %v2487 = vpop.f32.mrf.mxu0
    %v2488 = vadd.f32 0.0, %v2487
    %v2489 = vpop.f32.mrf.mxu0
    %2490 = vmatprep.mubr.bf16.mxu0 0
    %2491 = vmatmul.mubr.bf16.gmra.mxu0 %v2305
    %v2492 = vpop.f32.mrf.mxu0
    %v2493 = vadd.f32 0.0, %v2492
    %v2494 = vpop.f32.mrf.mxu0
    %v2495 = vpop.f32.mrf.mxu0
    %v2496 = vadd.f32 0.0, %v2495
    %v2497 = vpop.f32.mrf.mxu0
    %2498 = vmatprep.mubr.bf16.mxu0 0
    %2499 = vmatmul.mubr.bf16.gmra.mxu0 %v2306
    %v2500 = vpop.f32.mrf.mxu0
    %v2501 = vadd.f32 0.0, %v2500
    %v2502 = vpop.f32.mrf.mxu0
    %v2503 = vpop.f32.mrf.mxu0
    %v2504 = vadd.f32 0.0, %v2503
    %v2505 = vpop.f32.mrf.mxu0
    %2506 = vmatprep.mubr.bf16.mxu0 0
    %2507 = vmatmul.mubr.bf16.gmra.mxu0 %v2307
    %v2508 = vpop.f32.mrf.mxu0
    %v2509 = vadd.f32 0.0, %v2508
    %v2510 = vpop.f32.mrf.mxu0
    %v2511 = vpop.f32.mrf.mxu0
    %v2512 = vadd.f32 0.0, %v2511
    %v2513 = vpop.f32.mrf.mxu0
    %2514 = vmatprep.mubr.bf16.mxu0 0
    %2515 = vmatmul.mubr.bf16.gmra.mxu0 %v2308
    %v2516 = vpop.f32.mrf.mxu0
    %v2517 = vadd.f32 0.0, %v2516
    %v2518 = vpop.f32.mrf.mxu0
    %v2519 = vpop.f32.mrf.mxu0
    %v2520 = vadd.f32 0.0, %v2519
    %v2521 = vpop.f32.mrf.mxu0
    %2522 = vmatprep.mubr.bf16.mxu0 0
    %2523 = vmatmul.mubr.bf16.gmra.mxu0 %v2309
    %v2524 = vpop.f32.mrf.mxu0
    %v2525 = vadd.f32 0.0, %v2524
    %v2526 = vpop.f32.mrf.mxu0
    %v2527 = vpop.f32.mrf.mxu0
    %v2528 = vadd.f32 0.0, %v2527
    %v2529 = vpop.f32.mrf.mxu0
    %2530 = vmatprep.mubr.bf16.mxu0 0
    %2531 = vmatmul.mubr.bf16.gmra.mxu0 %v2310
    %v2532 = vpop.f32.mrf.mxu0
    %v2533 = vadd.f32 0.0, %v2532
    %v2534 = vpop.f32.mrf.mxu0
    %v2535 = vpop.f32.mrf.mxu0
    %v2536 = vadd.f32 0.0, %v2535
    %v2537 = vpop.f32.mrf.mxu0
    %2538 = vmatprep.mubr.bf16.mxu0 0
    %2539 = vmatmul.mubr.bf16.gmra.mxu0 %v2311
    %v2540 = vpop.f32.mrf.mxu0
    %v2541 = vadd.f32 0.0, %v2540
    %v2542 = vpop.f32.mrf.mxu0
    %v2543 = vpop.f32.mrf.mxu0
    %v2544 = vadd.f32 0.0, %v2543
    %v2545 = vpop.f32.mrf.mxu0
    %2546 = vmatprep.mubr.bf16.mxu0 0
    %2547 = vmatmul.mubr.bf16.gmra.mxu0 %v2312
    %v2548 = vpop.f32.mrf.mxu0
    %v2549 = vadd.f32 0.0, %v2548
    %v2550 = vpop.f32.mrf.mxu0
    %v2551 = vpop.f32.mrf.mxu0
    %v2552 = vadd.f32 0.0, %v2551
    %v2553 = vpop.f32.mrf.mxu0
    %2554 = vmatprep.mubr.bf16.mxu0 0
    %2555 = vmatmul.mubr.bf16.gmra.mxu0 %v2313
    %v2556 = vpop.f32.mrf.mxu0
    %v2557 = vadd.f32 0.0, %v2556
    %v2558 = vpop.f32.mrf.mxu0
    %v2559 = vpop.f32.mrf.mxu0
    %v2560 = vadd.f32 0.0, %v2559
    %v2561 = vpop.f32.mrf.mxu0
    %2562 = vmatprep.mubr.bf16.mxu0 0
    %2563 = vmatmul.mubr.bf16.gmra.mxu0 %v2314
    %v2564 = vpop.f32.mrf.mxu0
    %v2565 = vadd.f32 0.0, %v2564
    %v2566 = vpop.f32.mrf.mxu0
    %v2567 = vpop.f32.mrf.mxu0
    %v2568 = vadd.f32 0.0, %v2567
    %v2569 = vpop.f32.mrf.mxu0
    %2570 = vmatprep.mubr.bf16.mxu0 0
    %2571 = vmatmul.mubr.bf16.gmra.mxu0 %v2315
    %v2572 = vpop.f32.mrf.mxu0
    %v2573 = vadd.f32 0.0, %v2572
    %v2574 = vpop.f32.mrf.mxu0
    %v2575 = vpop.f32.mrf.mxu0
    %v2576 = vadd.f32 0.0, %v2575
    %v2577 = vpop.f32.mrf.mxu0
    %2578 = vmatprep.mubr.bf16.mxu0 0
    %2579 = vmatmul.mubr.bf16.gmra.mxu0 %v2316
    %v2580 = vpop.f32.mrf.mxu0
    %v2581 = vadd.f32 0.0, %v2580
    %v2582 = vpop.f32.mrf.mxu0
    %v2583 = vpop.f32.mrf.mxu0
    %v2584 = vadd.f32 0.0, %v2583
    %v2585 = vpop.f32.mrf.mxu0
    %2586 = vmatprep.mubr.bf16.mxu0 0
    %2587 = vmatmul.mubr.bf16.gmra.mxu0 %v2317
    %v2588 = vpop.f32.mrf.mxu0
    %v2589 = vadd.f32 0.0, %v2588
    %v2590 = vpop.f32.mrf.mxu0
    %v2591 = vpop.f32.mrf.mxu0
    %v2592 = vadd.f32 0.0, %v2591
    %v2593 = vpop.f32.mrf.mxu0
    %2594 = vmatprep.mubr.bf16.mxu0 0
    %2595 = vmatmul.mubr.bf16.gmra.mxu0 %v2318
    %v2596 = vpop.f32.mrf.mxu0
    %v2597 = vadd.f32 0.0, %v2596
    %v2598 = vpop.f32.mrf.mxu0
    %v2599 = vpop.f32.mrf.mxu0
    %v2600 = vadd.f32 0.0, %v2599
    %v2601 = vpop.f32.mrf.mxu0
    %2602 = vmatprep.mubr.bf16.mxu0 0
    %2603 = vmatmul.mubr.bf16.gmra.mxu0 %v2319
    %v2604 = vpop.f32.mrf.mxu0
    %v2605 = vadd.f32 0.0, %v2604
    %v2606 = vpop.f32.mrf.mxu0
    %v2607 = vpop.f32.mrf.mxu0
    %v2608 = vadd.f32 0.0, %v2607
    %v2609 = vpop.f32.mrf.mxu0
    %2610 = vmatprep.mubr.bf16.mxu0 0
    %2611 = vmatmul.mubr.bf16.gmra.mxu0 %v2320
    %v2612 = vpop.f32.mrf.mxu0
    %v2613 = vadd.f32 0.0, %v2612
    %v2614 = vpop.f32.mrf.mxu0
    %v2615 = vpop.f32.mrf.mxu0
    %v2616 = vadd.f32 0.0, %v2615
    %v2617 = vpop.f32.mrf.mxu0
    %2618 = vmatprep.mubr.bf16.mxu0 0
    %2619 = vmatmul.mubr.bf16.gmra.mxu0 %v2321
    %v2620 = vpop.f32.mrf.mxu0
    %v2621 = vadd.f32 0.0, %v2620
    %v2622 = vpop.f32.mrf.mxu0
    %v2623 = vpop.f32.mrf.mxu0
    %v2624 = vadd.f32 0.0, %v2623
    %v2625 = vpop.f32.mrf.mxu0
    %2626 = vmatprep.mubr.bf16.mxu0 0
    %2627 = vmatmul.mubr.bf16.gmra.mxu0 %v2322
    %v2628 = vpop.f32.mrf.mxu0
    %v2629 = vadd.f32 0.0, %v2628
    %v2630 = vpop.f32.mrf.mxu0
    %v2631 = vpop.f32.mrf.mxu0
    %v2632 = vadd.f32 0.0, %v2631
    %v2633 = vpop.f32.mrf.mxu0
    %2634 = vmatprep.mubr.bf16.mxu0 0
    %2635 = vmatmul.mubr.bf16.gmra.mxu0 %v2323
    %v2636 = vpop.f32.mrf.mxu0
    %v2637 = vadd.f32 0.0, %v2636
    %v2638 = vpop.f32.mrf.mxu0
    %v2639 = vpop.f32.mrf.mxu0
    %v2640 = vadd.f32 0.0, %v2639
    %v2641 = vpop.f32.mrf.mxu0
    %2642 = vmatprep.mubr.bf16.mxu0 0
    %2643 = vmatmul.mubr.bf16.gmra.mxu0 %v2324
    %v2644 = vpop.f32.mrf.mxu0
    %v2645 = vadd.f32 0.0, %v2644
    %v2646 = vpop.f32.mrf.mxu0
    %v2647 = vpop.f32.mrf.mxu0
    %v2648 = vadd.f32 0.0, %v2647
    %v2649 = vpop.f32.mrf.mxu0
    %2650 = vmatprep.mubr.bf16.mxu0 0
    %2651 = vmatmul.mubr.bf16.gmra.mxu0 %v2325
    %v2652 = vpop.f32.mrf.mxu0
    %v2653 = vadd.f32 0.0, %v2652
    %v2654 = vpop.f32.mrf.mxu0
    %v2655 = vpop.f32.mrf.mxu0
    %v2656 = vadd.f32 0.0, %v2655
    %v2657 = vpop.f32.mrf.mxu0
    %2658 = vmatprep.mubr.bf16.mxu0 0
    %2659 = vmatmul.mubr.bf16.gmra.mxu0 %v2326
    %v2660 = vpop.f32.mrf.mxu0
    %v2661 = vadd.f32 0.0, %v2660
    %v2662 = vpop.f32.mrf.mxu0
    %v2663 = vpop.f32.mrf.mxu0
    %v2664 = vadd.f32 0.0, %v2663
    %v2665 = vpop.f32.mrf.mxu0
    %2666 = vmatprep.mubr.bf16.mxu0 0
    %2667 = vmatmul.mubr.bf16.gmra.mxu0 %v2327
    %v2668 = vpop.f32.mrf.mxu0
    %v2669 = vadd.f32 0.0, %v2668
    %v2670 = vpop.f32.mrf.mxu0
    %v2671 = vpop.f32.mrf.mxu0
    %v2672 = vadd.f32 0.0, %v2671
    %v2673 = vpop.f32.mrf.mxu0
    %2674 = vmatprep.mubr.bf16.mxu0 0
    %2675 = vmatmul.mubr.bf16.gmra.mxu0 %v2328
    %v2676 = vpop.f32.mrf.mxu0
    %v2677 = vadd.f32 0.0, %v2676
    %v2678 = vpop.f32.mrf.mxu0
    %v2679 = vpop.f32.mrf.mxu0
    %v2680 = vadd.f32 0.0, %v2679
    %v2681 = vpop.f32.mrf.mxu0
    %2682 = vdwg.mxu0
    %v2683 = vadd.f32 %v2169, %v2429
    %v2684 = vadd.f32 %v2170, %v2432
    %v2685 = vadd.f32 %v2171, %v2437
    %v2686 = vadd.f32 %v2172, %v2440
    %v2687 = vadd.f32 %v2173, %v2445
    %v2688 = vadd.f32 %v2174, %v2448
    %v2689 = vadd.f32 %v2175, %v2453
    %v2690 = vadd.f32 %v2176, %v2456
    %v2691 = vadd.f32 %v2177, %v2461
    %v2692 = vadd.f32 %v2178, %v2464
    %v2693 = vadd.f32 %v2179, %v2469
    %v2694 = vadd.f32 %v2180, %v2472
    %v2695 = vadd.f32 %v2181, %v2477
    %v2696 = vadd.f32 %v2182, %v2480
    %v2697 = vadd.f32 %v2183, %v2485
    %v2698 = vadd.f32 %v2184, %v2488
    %v2699 = vadd.f32 %v2185, %v2493
    %v2700 = vadd.f32 %v2186, %v2496
    %v2701 = vadd.f32 %v2187, %v2501
    %v2702 = vadd.f32 %v2188, %v2504
    %v2703 = vadd.f32 %v2189, %v2509
    %v2704 = vadd.f32 %v2190, %v2512
    %v2705 = vadd.f32 %v2191, %v2517
    %v2706 = vadd.f32 %v2192, %v2520
    %v2707 = vadd.f32 %v2193, %v2525
    %v2708 = vadd.f32 %v2194, %v2528
    %v2709 = vadd.f32 %v2195, %v2533
    %v2710 = vadd.f32 %v2196, %v2536
    %v2711 = vadd.f32 %v2197, %v2541
    %v2712 = vadd.f32 %v2198, %v2544
    %v2713 = vadd.f32 %v2199, %v2549
    %v2714 = vadd.f32 %v2200, %v2552
    %v2715 = vadd.f32 %v2201, %v2557
    %v2716 = vadd.f32 %v2202, %v2560
    %v2717 = vadd.f32 %v2203, %v2565
    %v2718 = vadd.f32 %v2204, %v2568
    %v2719 = vadd.f32 %v2205, %v2573
    %v2720 = vadd.f32 %v2206, %v2576
    %v2721 = vadd.f32 %v2207, %v2581
    %v2722 = vadd.f32 %v2208, %v2584
    %v2723 = vadd.f32 %v2209, %v2589
    %v2724 = vadd.f32 %v2210, %v2592
    %v2725 = vadd.f32 %v2211, %v2597
    %v2726 = vadd.f32 %v2212, %v2600
    %v2727 = vadd.f32 %v2213, %v2605
    %v2728 = vadd.f32 %v2214, %v2608
    %v2729 = vadd.f32 %v2215, %v2613
    %v2730 = vadd.f32 %v2216, %v2616
    %v2731 = vadd.f32 %v2217, %v2621
    %v2732 = vadd.f32 %v2218, %v2624
    %v2733 = vadd.f32 %v2219, %v2629
    %v2734 = vadd.f32 %v2220, %v2632
    %v2735 = vadd.f32 %v2221, %v2637
    %v2736 = vadd.f32 %v2222, %v2640
    %v2737 = vadd.f32 %v2223, %v2645
    %v2738 = vadd.f32 %v2224, %v2648
    %v2739 = vadd.f32 %v2225, %v2653
    %v2740 = vadd.f32 %v2226, %v2656
    %v2741 = vadd.f32 %v2227, %v2661
    %v2742 = vadd.f32 %v2228, %v2664
    %v2743 = vadd.f32 %v2229, %v2669
    %v2744 = vadd.f32 %v2230, %v2672
    %v2745 = vadd.f32 %v2231, %v2677
    %v2746 = vadd.f32 %v2232, %v2680
    %v2747 = vld [vmem:[%s241 + $0x2] sm:$0xff]
    %v2748 = vld [vmem:[%s241 + $0xa] sm:$0xff]
    %v2749 = vld [vmem:[%s241 + $0x1a] sm:$0xff]
    %v2750 = vld [vmem:[%s241 + $0x22] sm:$0xff]
    %v2751 = vld [vmem:[%s241 + $0x32] sm:$0xff]
    %v2752 = vld [vmem:[%s241 + $0x3a] sm:$0xff]
    %v2753 = vld [vmem:[%s241 + $0x4a] sm:$0xff]
    %v2754 = vld [vmem:[%s241 + $0x52] sm:$0xff]
    %v2755 = vld [vmem:[%s241 + $0x62] sm:$0xff]
    %v2756 = vld [vmem:[%s241 + $0x6a] sm:$0xff]
    %v2757 = vld [vmem:[%s241 + $0x7a] sm:$0xff]
    %v2758 = vld [vmem:[%s241 + $0x82] sm:$0xff]
    %v2759 = vld [vmem:[%s241 + $0x92] sm:$0xff]
    %v2760 = vld [vmem:[%s241 + $0x9a] sm:$0xff]
    %v2761 = vld [vmem:[%s241 + $0xaa] sm:$0xff]
    %v2762 = vld [vmem:[%s241 + $0xb2] sm:$0xff]
    %v2763 = vld [vmem:[%s241 + $0xc2] sm:$0xff]
    %v2764 = vld [vmem:[%s241 + $0xca] sm:$0xff]
    %v2765 = vld [vmem:[%s241 + $0xda] sm:$0xff]
    %v2766 = vld [vmem:[%s241 + $0xe2] sm:$0xff]
    %v2767 = vld [vmem:[%s241 + $0xf2] sm:$0xff]
    %v2768 = vld [vmem:[%s241 + $0xfa] sm:$0xff]
    %v2769 = vld [vmem:[%s241 + $0x10a] sm:$0xff]
    %v2770 = vld [vmem:[%s241 + $0x112] sm:$0xff]
    %v2771 = vld [vmem:[%s241 + $0x122] sm:$0xff]
    %v2772 = vld [vmem:[%s241 + $0x12a] sm:$0xff]
    %v2773 = vld [vmem:[%s241 + $0x13a] sm:$0xff]
    %v2774 = vld [vmem:[%s241 + $0x142] sm:$0xff]
    %v2775 = vld [vmem:[%s241 + $0x152] sm:$0xff]
    %v2776 = vld [vmem:[%s241 + $0x15a] sm:$0xff]
    %v2777 = vld [vmem:[%s241 + $0x16a] sm:$0xff]
    %v2778 = vld [vmem:[%s241 + $0x172] sm:$0xff]
    %v2779 = vld [vmem:[%s241 + $0x1b2] sm:$0xff]
    %v2780 = vld [vmem:[%s241 + $0x1ba] sm:$0xff]
    %v2781 = vld [vmem:[%s241 + $0x1ca] sm:$0xff]
    %v2782 = vld [vmem:[%s241 + $0x1d2] sm:$0xff]
    %v2783 = vld [vmem:[%s241 + $0x1e2] sm:$0xff]
    %v2784 = vld [vmem:[%s241 + $0x1ea] sm:$0xff]
    %v2785 = vld [vmem:[%s241 + $0x1fa] sm:$0xff]
    %v2786 = vld [vmem:[%s241 + $0x202] sm:$0xff]
    %v2787 = vld [vmem:[%s241 + $0x212] sm:$0xff]
    %v2788 = vld [vmem:[%s241 + $0x21a] sm:$0xff]
    %v2789 = vld [vmem:[%s241 + $0x22a] sm:$0xff]
    %v2790 = vld [vmem:[%s241 + $0x232] sm:$0xff]
    %v2791 = vld [vmem:[%s241 + $0x242] sm:$0xff]
    %v2792 = vld [vmem:[%s241 + $0x24a] sm:$0xff]
    %v2793 = vld [vmem:[%s241 + $0x25a] sm:$0xff]
    %v2794 = vld [vmem:[%s241 + $0x262] sm:$0xff]
    %v2795 = vld [vmem:[%s241 + $0x272] sm:$0xff]
    %v2796 = vld [vmem:[%s241 + $0x27a] sm:$0xff]
    %v2797 = vld [vmem:[%s241 + $0x28a] sm:$0xff]
    %v2798 = vld [vmem:[%s241 + $0x292] sm:$0xff]
    %v2799 = vld [vmem:[%s241 + $0x2a2] sm:$0xff]
    %v2800 = vld [vmem:[%s241 + $0x2aa] sm:$0xff]
    %v2801 = vld [vmem:[%s241 + $0x2ba] sm:$0xff]
    %v2802 = vld [vmem:[%s241 + $0x2c2] sm:$0xff]
    %v2803 = vld [vmem:[%s241 + $0x2d2] sm:$0xff]
    %v2804 = vld [vmem:[%s241 + $0x2da] sm:$0xff]
    %v2805 = vld [vmem:[%s241 + $0x2ea] sm:$0xff]
    %v2806 = vld [vmem:[%s241 + $0x2f2] sm:$0xff]
    %v2807 = vld [vmem:[%s241 + $0x302] sm:$0xff]
    %v2808 = vld [vmem:[%s241 + $0x30a] sm:$0xff]
    %v2809 = vld [vmem:[%s241 + $0x31a] sm:$0xff]
    %v2810 = vld [vmem:[%s241 + $0x322] sm:$0xff]
    %v2811 = vpack.c.bf16 %v2748, %v2747
    %v2812 = vpack.c.bf16 %v2750, %v2749
    %v2813 = vpack.c.bf16 %v2752, %v2751
    %v2814 = vpack.c.bf16 %v2754, %v2753
    %v2815 = vpack.c.bf16 %v2756, %v2755
    %v2816 = vpack.c.bf16 %v2758, %v2757
    %v2817 = vpack.c.bf16 %v2760, %v2759
    %v2818 = vpack.c.bf16 %v2762, %v2761
    %v2819 = vpack.c.bf16 %v2764, %v2763
    %v2820 = vpack.c.bf16 %v2766, %v2765
    %v2821 = vpack.c.bf16 %v2768, %v2767
    %v2822 = vpack.c.bf16 %v2770, %v2769
    %v2823 = vpack.c.bf16 %v2772, %v2771
    %v2824 = vpack.c.bf16 %v2774, %v2773
    %v2825 = vpack.c.bf16 %v2776, %v2775
    %v2826 = vpack.c.bf16 %v2778, %v2777
    %v2827 = vpack.c.bf16 %v2780, %v2779
    %v2828 = vpack.c.bf16 %v2782, %v2781
    %v2829 = vpack.c.bf16 %v2784, %v2783
    %v2830 = vpack.c.bf16 %v2786, %v2785
    %v2831 = vpack.c.bf16 %v2788, %v2787
    %v2832 = vpack.c.bf16 %v2790, %v2789
    %v2833 = vpack.c.bf16 %v2792, %v2791
    %v2834 = vpack.c.bf16 %v2794, %v2793
    %v2835 = vpack.c.bf16 %v2796, %v2795
    %v2836 = vpack.c.bf16 %v2798, %v2797
    %v2837 = vpack.c.bf16 %v2800, %v2799
    %v2838 = vpack.c.bf16 %v2802, %v2801
    %v2839 = vpack.c.bf16 %v2804, %v2803
    %v2840 = vpack.c.bf16 %v2806, %v2805
    %v2841 = vpack.c.bf16 %v2808, %v2807
    %v2842 = vpack.c.bf16 %v2810, %v2809
    %s2843 = scalar_lea.vmem [#allocation6], 320
    %v2844 = vld [vmem:[%s2843] sm:$0xf]
    %v2845 = vld [vmem:[%s2843 + $0x4] sm:$0xf]
    %v2846 = vld [vmem:[%s2843 + $0x8] sm:$0xf]
    %v2847 = vld [vmem:[%s2843 + $0xc] sm:$0xf]
    %v2848 = vld [vmem:[%s2843 + $0x10] sm:$0xf]
    %v2849 = vld [vmem:[%s2843 + $0x14] sm:$0xf]
    %v2850 = vld [vmem:[%s2843 + $0x18] sm:$0xf]
    %v2851 = vld [vmem:[%s2843 + $0x1c] sm:$0xf]
    %v2852 = vld [vmem:[%s2843 + $0x20] sm:$0xf]
    %v2853 = vld [vmem:[%s2843 + $0x24] sm:$0xf]
    %v2854 = vld [vmem:[%s2843 + $0x28] sm:$0xf]
    %v2855 = vld [vmem:[%s2843 + $0x2c] sm:$0xf]
    %v2856 = vld [vmem:[%s2843 + $0x30] sm:$0xf]
    %v2857 = vld [vmem:[%s2843 + $0x34] sm:$0xf]
    %v2858 = vld [vmem:[%s2843 + $0x38] sm:$0xf]
    %v2859 = vld [vmem:[%s2843 + $0x3c] sm:$0xf]
    %v2876 = vunpack.c.l.b16 %v2844
    %v2877 = vunpack.c.l.b16 %v2845
    %v2878 = vunpack.c.l.b16 %v2846
    %v2879 = vunpack.c.l.b16 %v2847
    %v2880 = vunpack.c.l.b16 %v2848
    %v2881 = vunpack.c.l.b16 %v2849
    %v2882 = vunpack.c.l.b16 %v2850
    %v2883 = vunpack.c.l.b16 %v2851
    %v2884 = vunpack.c.l.b16 %v2852
    %v2885 = vunpack.c.l.b16 %v2853
    %v2886 = vunpack.c.l.b16 %v2854
    %v2887 = vunpack.c.l.b16 %v2855
    %v2888 = vunpack.c.l.b16 %v2856
    %v2889 = vunpack.c.l.b16 %v2857
    %v2890 = vunpack.c.l.b16 %v2858
    %v2891 = vunpack.c.l.b16 %v2859
    %v2892 = vpack.c.b16 %v2877, %v2876
    %v2893 = vpack.c.b16 %v2879, %v2878
    %v2894 = vpack.c.b16 %v2881, %v2880
    %v2895 = vpack.c.b16 %v2883, %v2882
    %v2896 = vpack.c.b16 %v2885, %v2884
    %v2897 = vpack.c.b16 %v2887, %v2886
    %v2898 = vpack.c.b16 %v2889, %v2888
    %v2899 = vpack.c.b16 %v2891, %v2890
    %2908 = vmatprep.subr.bf16.mxu0 0
    %2909 = vmatpush1.bf16.msra.mxu0 %v2899
    %2910 = vmatprep.subr.bf16.mxu0 0
    %2911 = vmatpush1.bf16.msra.mxu0 %v2898
    %2912 = vmatprep.subr.bf16.mxu0 0
    %2913 = vmatpush1.bf16.msra.mxu0 %v2897
    %2914 = vmatprep.subr.bf16.mxu0 0
    %2915 = vmatpush1.bf16.msra.mxu0 %v2896
    %2916 = vmatprep.subr.bf16.mxu0 0
    %2917 = vmatpush1.bf16.msra.mxu0 %v2895
    %2918 = vmatprep.subr.bf16.mxu0 0
    %2919 = vmatpush1.bf16.msra.mxu0 %v2894
    %2920 = vmatprep.subr.bf16.mxu0 0
    %2921 = vmatpush1.bf16.msra.mxu0 %v2893
    %2922 = vmatprep.subr.bf16.mxu0 0
    %2923 = vmatpush1.bf16.msra.mxu0 %v2892
    %2924 = vmatprep.subr.bf16.mxu0 0
    %2925 = vmatpush2.bf16.msra.mxu0 0
    %2926 = vmatprep.subr.bf16.mxu0 0
    %2927 = vmatpush2.bf16.msra.mxu0 0
    %2928 = vmatprep.subr.bf16.mxu0 0
    %2929 = vmatpush2.bf16.msra.mxu0 0
    %2930 = vmatprep.subr.bf16.mxu0 0
    %2931 = vmatpush2.bf16.msra.mxu0 0
    %2932 = vmatprep.subr.bf16.mxu0 0
    %2933 = vmatpush2.bf16.msra.mxu0 0
    %2934 = vmatprep.subr.bf16.mxu0 0
    %2935 = vmatpush2.bf16.msra.mxu0 0
    %2936 = vmatprep.subr.bf16.mxu0 0
    %2937 = vmatpush2.bf16.msra.mxu0 0
    %2938 = vmatprep.subr.bf16.mxu0 0
    %2939 = vmatpush2.bf16.msra.mxu0 0
    %2940 = vmatprep.mubr.bf16.mxu0 0
    %2941 = vmatmul.mubr.bf16.gmra.mxu0 %v2811
    %v2942 = vpop.f32.mrf.mxu0
    %v2943 = vadd.f32 0.0, %v2942
    %v2944 = vpop.f32.mrf.mxu0
    %v2945 = vpop.f32.mrf.mxu0
    %v2946 = vadd.f32 0.0, %v2945
    %v2947 = vpop.f32.mrf.mxu0
    %2948 = vmatprep.mubr.bf16.mxu0 0
    %2949 = vmatmul.mubr.bf16.gmra.mxu0 %v2812
    %v2950 = vpop.f32.mrf.mxu0
    %v2951 = vadd.f32 0.0, %v2950
    %v2952 = vpop.f32.mrf.mxu0
    %v2953 = vpop.f32.mrf.mxu0
    %v2954 = vadd.f32 0.0, %v2953
    %v2955 = vpop.f32.mrf.mxu0
    %2956 = vmatprep.mubr.bf16.mxu0 0
    %2957 = vmatmul.mubr.bf16.gmra.mxu0 %v2813
    %v2958 = vpop.f32.mrf.mxu0
    %v2959 = vadd.f32 0.0, %v2958
    %v2960 = vpop.f32.mrf.mxu0
    %v2961 = vpop.f32.mrf.mxu0
    %v2962 = vadd.f32 0.0, %v2961
    %v2963 = vpop.f32.mrf.mxu0
    %2964 = vmatprep.mubr.bf16.mxu0 0
    %2965 = vmatmul.mubr.bf16.gmra.mxu0 %v2814
    %v2966 = vpop.f32.mrf.mxu0
    %v2967 = vadd.f32 0.0, %v2966
    %v2968 = vpop.f32.mrf.mxu0
    %v2969 = vpop.f32.mrf.mxu0
    %v2970 = vadd.f32 0.0, %v2969
    %v2971 = vpop.f32.mrf.mxu0
    %2972 = vmatprep.mubr.bf16.mxu0 0
    %2973 = vmatmul.mubr.bf16.gmra.mxu0 %v2815
    %v2974 = vpop.f32.mrf.mxu0
    %v2975 = vadd.f32 0.0, %v2974
    %v2976 = vpop.f32.mrf.mxu0
    %v2977 = vpop.f32.mrf.mxu0
    %v2978 = vadd.f32 0.0, %v2977
    %v2979 = vpop.f32.mrf.mxu0
    %2980 = vmatprep.mubr.bf16.mxu0 0
    %2981 = vmatmul.mubr.bf16.gmra.mxu0 %v2816
    %v2982 = vpop.f32.mrf.mxu0
    %v2983 = vadd.f32 0.0, %v2982
    %v2984 = vpop.f32.mrf.mxu0
    %v2985 = vpop.f32.mrf.mxu0
    %v2986 = vadd.f32 0.0, %v2985
    %v2987 = vpop.f32.mrf.mxu0
    %2988 = vmatprep.mubr.bf16.mxu0 0
    %2989 = vmatmul.mubr.bf16.gmra.mxu0 %v2817
    %v2990 = vpop.f32.mrf.mxu0
    %v2991 = vadd.f32 0.0, %v2990
    %v2992 = vpop.f32.mrf.mxu0
    %v2993 = vpop.f32.mrf.mxu0
    %v2994 = vadd.f32 0.0, %v2993
    %v2995 = vpop.f32.mrf.mxu0
    %2996 = vmatprep.mubr.bf16.mxu0 0
    %2997 = vmatmul.mubr.bf16.gmra.mxu0 %v2818
    %v2998 = vpop.f32.mrf.mxu0
    %v2999 = vadd.f32 0.0, %v2998
    %v3000 = vpop.f32.mrf.mxu0
    %v3001 = vpop.f32.mrf.mxu0
    %v3002 = vadd.f32 0.0, %v3001
    %v3003 = vpop.f32.mrf.mxu0
    %3004 = vmatprep.mubr.bf16.mxu0 0
    %3005 = vmatmul.mubr.bf16.gmra.mxu0 %v2819
    %v3006 = vpop.f32.mrf.mxu0
    %v3007 = vadd.f32 0.0, %v3006
    %v3008 = vpop.f32.mrf.mxu0
    %v3009 = vpop.f32.mrf.mxu0
    %v3010 = vadd.f32 0.0, %v3009
    %v3011 = vpop.f32.mrf.mxu0
    %3012 = vmatprep.mubr.bf16.mxu0 0
    %3013 = vmatmul.mubr.bf16.gmra.mxu0 %v2820
    %v3014 = vpop.f32.mrf.mxu0
    %v3015 = vadd.f32 0.0, %v3014
    %v3016 = vpop.f32.mrf.mxu0
    %v3017 = vpop.f32.mrf.mxu0
    %v3018 = vadd.f32 0.0, %v3017
    %v3019 = vpop.f32.mrf.mxu0
    %3020 = vmatprep.mubr.bf16.mxu0 0
    %3021 = vmatmul.mubr.bf16.gmra.mxu0 %v2821
    %v3022 = vpop.f32.mrf.mxu0
    %v3023 = vadd.f32 0.0, %v3022
    %v3024 = vpop.f32.mrf.mxu0
    %v3025 = vpop.f32.mrf.mxu0
    %v3026 = vadd.f32 0.0, %v3025
    %v3027 = vpop.f32.mrf.mxu0
    %3028 = vmatprep.mubr.bf16.mxu0 0
    %3029 = vmatmul.mubr.bf16.gmra.mxu0 %v2822
    %v3030 = vpop.f32.mrf.mxu0
    %v3031 = vadd.f32 0.0, %v3030
    %v3032 = vpop.f32.mrf.mxu0
    %v3033 = vpop.f32.mrf.mxu0
    %v3034 = vadd.f32 0.0, %v3033
    %v3035 = vpop.f32.mrf.mxu0
    %3036 = vmatprep.mubr.bf16.mxu0 0
    %3037 = vmatmul.mubr.bf16.gmra.mxu0 %v2823
    %v3038 = vpop.f32.mrf.mxu0
    %v3039 = vadd.f32 0.0, %v3038
    %v3040 = vpop.f32.mrf.mxu0
    %v3041 = vpop.f32.mrf.mxu0
    %v3042 = vadd.f32 0.0, %v3041
    %v3043 = vpop.f32.mrf.mxu0
    %3044 = vmatprep.mubr.bf16.mxu0 0
    %3045 = vmatmul.mubr.bf16.gmra.mxu0 %v2824
    %v3046 = vpop.f32.mrf.mxu0
    %v3047 = vadd.f32 0.0, %v3046
    %v3048 = vpop.f32.mrf.mxu0
    %v3049 = vpop.f32.mrf.mxu0
    %v3050 = vadd.f32 0.0, %v3049
    %v3051 = vpop.f32.mrf.mxu0
    %3052 = vmatprep.mubr.bf16.mxu0 0
    %3053 = vmatmul.mubr.bf16.gmra.mxu0 %v2825
    %v3054 = vpop.f32.mrf.mxu0
    %v3055 = vadd.f32 0.0, %v3054
    %v3056 = vpop.f32.mrf.mxu0
    %v3057 = vpop.f32.mrf.mxu0
    %v3058 = vadd.f32 0.0, %v3057
    %v3059 = vpop.f32.mrf.mxu0
    %3060 = vmatprep.mubr.bf16.mxu0 0
    %3061 = vmatmul.mubr.bf16.gmra.mxu0 %v2826
    %v3062 = vpop.f32.mrf.mxu0
    %v3063 = vadd.f32 0.0, %v3062
    %v3064 = vpop.f32.mrf.mxu0
    %v3065 = vpop.f32.mrf.mxu0
    %v3066 = vadd.f32 0.0, %v3065
    %v3067 = vpop.f32.mrf.mxu0
    %3068 = vmatprep.mubr.bf16.mxu0 0
    %3069 = vmatmul.mubr.bf16.gmra.mxu0 %v2827
    %v3070 = vpop.f32.mrf.mxu0
    %v3071 = vadd.f32 0.0, %v3070
    %v3072 = vpop.f32.mrf.mxu0
    %v3073 = vpop.f32.mrf.mxu0
    %v3074 = vadd.f32 0.0, %v3073
    %v3075 = vpop.f32.mrf.mxu0
    %3076 = vmatprep.mubr.bf16.mxu0 0
    %3077 = vmatmul.mubr.bf16.gmra.mxu0 %v2828
    %v3078 = vpop.f32.mrf.mxu0
    %v3079 = vadd.f32 0.0, %v3078
    %v3080 = vpop.f32.mrf.mxu0
    %v3081 = vpop.f32.mrf.mxu0
    %v3082 = vadd.f32 0.0, %v3081
    %v3083 = vpop.f32.mrf.mxu0
    %3084 = vmatprep.mubr.bf16.mxu0 0
    %3085 = vmatmul.mubr.bf16.gmra.mxu0 %v2829
    %v3086 = vpop.f32.mrf.mxu0
    %v3087 = vadd.f32 0.0, %v3086
    %v3088 = vpop.f32.mrf.mxu0
    %v3089 = vpop.f32.mrf.mxu0
    %v3090 = vadd.f32 0.0, %v3089
    %v3091 = vpop.f32.mrf.mxu0
    %3092 = vmatprep.mubr.bf16.mxu0 0
    %3093 = vmatmul.mubr.bf16.gmra.mxu0 %v2830
    %v3094 = vpop.f32.mrf.mxu0
    %v3095 = vadd.f32 0.0, %v3094
    %v3096 = vpop.f32.mrf.mxu0
    %v3097 = vpop.f32.mrf.mxu0
    %v3098 = vadd.f32 0.0, %v3097
    %v3099 = vpop.f32.mrf.mxu0
    %3100 = vmatprep.mubr.bf16.mxu0 0
    %3101 = vmatmul.mubr.bf16.gmra.mxu0 %v2831
    %v3102 = vpop.f32.mrf.mxu0
    %v3103 = vadd.f32 0.0, %v3102
    %v3104 = vpop.f32.mrf.mxu0
    %v3105 = vpop.f32.mrf.mxu0
    %v3106 = vadd.f32 0.0, %v3105
    %v3107 = vpop.f32.mrf.mxu0
    %3108 = vmatprep.mubr.bf16.mxu0 0
    %3109 = vmatmul.mubr.bf16.gmra.mxu0 %v2832
    %v3110 = vpop.f32.mrf.mxu0
    %v3111 = vadd.f32 0.0, %v3110
    %v3112 = vpop.f32.mrf.mxu0
    %v3113 = vpop.f32.mrf.mxu0
    %v3114 = vadd.f32 0.0, %v3113
    %v3115 = vpop.f32.mrf.mxu0
    %3116 = vmatprep.mubr.bf16.mxu0 0
    %3117 = vmatmul.mubr.bf16.gmra.mxu0 %v2833
    %v3118 = vpop.f32.mrf.mxu0
    %v3119 = vadd.f32 0.0, %v3118
    %v3120 = vpop.f32.mrf.mxu0
    %v3121 = vpop.f32.mrf.mxu0
    %v3122 = vadd.f32 0.0, %v3121
    %v3123 = vpop.f32.mrf.mxu0
    %3124 = vmatprep.mubr.bf16.mxu0 0
    %3125 = vmatmul.mubr.bf16.gmra.mxu0 %v2834
    %v3126 = vpop.f32.mrf.mxu0
    %v3127 = vadd.f32 0.0, %v3126
    %v3128 = vpop.f32.mrf.mxu0
    %v3129 = vpop.f32.mrf.mxu0
    %v3130 = vadd.f32 0.0, %v3129
    %v3131 = vpop.f32.mrf.mxu0
    %3132 = vmatprep.mubr.bf16.mxu0 0
    %3133 = vmatmul.mubr.bf16.gmra.mxu0 %v2835
    %v3134 = vpop.f32.mrf.mxu0
    %v3135 = vadd.f32 0.0, %v3134
    %v3136 = vpop.f32.mrf.mxu0
    %v3137 = vpop.f32.mrf.mxu0
    %v3138 = vadd.f32 0.0, %v3137
    %v3139 = vpop.f32.mrf.mxu0
    %3140 = vmatprep.mubr.bf16.mxu0 0
    %3141 = vmatmul.mubr.bf16.gmra.mxu0 %v2836
    %v3142 = vpop.f32.mrf.mxu0
    %v3143 = vadd.f32 0.0, %v3142
    %v3144 = vpop.f32.mrf.mxu0
    %v3145 = vpop.f32.mrf.mxu0
    %v3146 = vadd.f32 0.0, %v3145
    %v3147 = vpop.f32.mrf.mxu0
    %3148 = vmatprep.mubr.bf16.mxu0 0
    %3149 = vmatmul.mubr.bf16.gmra.mxu0 %v2837
    %v3150 = vpop.f32.mrf.mxu0
    %v3151 = vadd.f32 0.0, %v3150
    %v3152 = vpop.f32.mrf.mxu0
    %v3153 = vpop.f32.mrf.mxu0
    %v3154 = vadd.f32 0.0, %v3153
    %v3155 = vpop.f32.mrf.mxu0
    %3156 = vmatprep.mubr.bf16.mxu0 0
    %3157 = vmatmul.mubr.bf16.gmra.mxu0 %v2838
    %v3158 = vpop.f32.mrf.mxu0
    %v3159 = vadd.f32 0.0, %v3158
    %v3160 = vpop.f32.mrf.mxu0
    %v3161 = vpop.f32.mrf.mxu0
    %v3162 = vadd.f32 0.0, %v3161
    %v3163 = vpop.f32.mrf.mxu0
    %3164 = vmatprep.mubr.bf16.mxu0 0
    %3165 = vmatmul.mubr.bf16.gmra.mxu0 %v2839
    %v3166 = vpop.f32.mrf.mxu0
    %v3167 = vadd.f32 0.0, %v3166
    %v3168 = vpop.f32.mrf.mxu0
    %v3169 = vpop.f32.mrf.mxu0
    %v3170 = vadd.f32 0.0, %v3169
    %v3171 = vpop.f32.mrf.mxu0
    %3172 = vmatprep.mubr.bf16.mxu0 0
    %3173 = vmatmul.mubr.bf16.gmra.mxu0 %v2840
    %v3174 = vpop.f32.mrf.mxu0
    %v3175 = vadd.f32 0.0, %v3174
    %v3176 = vpop.f32.mrf.mxu0
    %v3177 = vpop.f32.mrf.mxu0
    %v3178 = vadd.f32 0.0, %v3177
    %v3179 = vpop.f32.mrf.mxu0
    %3180 = vmatprep.mubr.bf16.mxu0 0
    %3181 = vmatmul.mubr.bf16.gmra.mxu0 %v2841
    %v3182 = vpop.f32.mrf.mxu0
    %v3183 = vadd.f32 0.0, %v3182
    %v3184 = vpop.f32.mrf.mxu0
    %v3185 = vpop.f32.mrf.mxu0
    %v3186 = vadd.f32 0.0, %v3185
    %v3187 = vpop.f32.mrf.mxu0
    %3188 = vmatprep.mubr.bf16.mxu0 0
    %3189 = vmatmul.mubr.bf16.gmra.mxu0 %v2842
    %v3190 = vpop.f32.mrf.mxu0
    %v3191 = vadd.f32 0.0, %v3190
    %v3192 = vpop.f32.mrf.mxu0
    %v3193 = vpop.f32.mrf.mxu0
    %v3194 = vadd.f32 0.0, %v3193
    %v3195 = vpop.f32.mrf.mxu0
    %3196 = vdwg.mxu0
    %v3197 = vadd.f32 %v2683, %v2943
    %v3198 = vadd.f32 %v2684, %v2946
    %v3199 = vadd.f32 %v2685, %v2951
    %v3200 = vadd.f32 %v2686, %v2954
    %v3201 = vadd.f32 %v2687, %v2959
    %v3202 = vadd.f32 %v2688, %v2962
    %v3203 = vadd.f32 %v2689, %v2967
    %v3204 = vadd.f32 %v2690, %v2970
    %v3205 = vadd.f32 %v2691, %v2975
    %v3206 = vadd.f32 %v2692, %v2978
    %v3207 = vadd.f32 %v2693, %v2983
    %v3208 = vadd.f32 %v2694, %v2986
    %v3209 = vadd.f32 %v2695, %v2991
    %v3210 = vadd.f32 %v2696, %v2994
    %v3211 = vadd.f32 %v2697, %v2999
    %v3212 = vadd.f32 %v2698, %v3002
    %v3213 = vadd.f32 %v2699, %v3007
    %v3214 = vadd.f32 %v2700, %v3010
    %v3215 = vadd.f32 %v2701, %v3015
    %v3216 = vadd.f32 %v2702, %v3018
    %v3217 = vadd.f32 %v2703, %v3023
    %v3218 = vadd.f32 %v2704, %v3026
    %v3219 = vadd.f32 %v2705, %v3031
    %v3220 = vadd.f32 %v2706, %v3034
    %v3221 = vadd.f32 %v2707, %v3039
    %v3222 = vadd.f32 %v2708, %v3042
    %v3223 = vadd.f32 %v2709, %v3047
    %v3224 = vadd.f32 %v2710, %v3050
    %v3225 = vadd.f32 %v2711, %v3055
    %v3226 = vadd.f32 %v2712, %v3058
    %v3227 = vadd.f32 %v2713, %v3063
    %v3228 = vadd.f32 %v2714, %v3066
    %v3229 = vadd.f32 %v2715, %v3071
    %v3230 = vadd.f32 %v2716, %v3074
    %v3231 = vadd.f32 %v2717, %v3079
    %v3232 = vadd.f32 %v2718, %v3082
    %v3233 = vadd.f32 %v2719, %v3087
    %v3234 = vadd.f32 %v2720, %v3090
    %v3235 = vadd.f32 %v2721, %v3095
    %v3236 = vadd.f32 %v2722, %v3098
    %v3237 = vadd.f32 %v2723, %v3103
    %v3238 = vadd.f32 %v2724, %v3106
    %v3239 = vadd.f32 %v2725, %v3111
    %v3240 = vadd.f32 %v2726, %v3114
    %v3241 = vadd.f32 %v2727, %v3119
    %v3242 = vadd.f32 %v2728, %v3122
    %v3243 = vadd.f32 %v2729, %v3127
    %v3244 = vadd.f32 %v2730, %v3130
    %v3245 = vadd.f32 %v2731, %v3135
    %v3246 = vadd.f32 %v2732, %v3138
    %v3247 = vadd.f32 %v2733, %v3143
    %v3248 = vadd.f32 %v2734, %v3146
    %v3249 = vadd.f32 %v2735, %v3151
    %v3250 = vadd.f32 %v2736, %v3154
    %v3251 = vadd.f32 %v2737, %v3159
    %v3252 = vadd.f32 %v2738, %v3162
    %v3253 = vadd.f32 %v2739, %v3167
    %v3254 = vadd.f32 %v2740, %v3170
    %v3255 = vadd.f32 %v2741, %v3175
    %v3256 = vadd.f32 %v2742, %v3178
    %v3257 = vadd.f32 %v2743, %v3183
    %v3258 = vadd.f32 %v2744, %v3186
    %v3259 = vadd.f32 %v2745, %v3191
    %v3260 = vadd.f32 %v2746, %v3194
    %s3261 = scalar_lea.vmem [#allocation2], 48
    %v3262 = vld [vmem:[%s3261] sm:$0xff]
    %v3263 = vld [vmem:[%s3261 + $0x8] sm:$0xff]
    %v3264 = vld [vmem:[%s3261 + $0x18] sm:$0xff]
    %v3265 = vld [vmem:[%s3261 + $0x20] sm:$0xff]
    %v3266 = vld [vmem:[%s3261 + $0x30] sm:$0xff]
    %v3267 = vld [vmem:[%s3261 + $0x38] sm:$0xff]
    %v3268 = vld [vmem:[%s3261 + $0x48] sm:$0xff]
    %v3269 = vld [vmem:[%s3261 + $0x50] sm:$0xff]
    %v3270 = vld [vmem:[%s3261 + $0x60] sm:$0xff]
    %v3271 = vld [vmem:[%s3261 + $0x68] sm:$0xff]
    %v3272 = vld [vmem:[%s3261 + $0x78] sm:$0xff]
    %v3273 = vld [vmem:[%s3261 + $0x80] sm:$0xff]
    %v3274 = vld [vmem:[%s3261 + $0x90] sm:$0xff]
    %v3275 = vld [vmem:[%s3261 + $0x98] sm:$0xff]
    %v3276 = vld [vmem:[%s3261 + $0xa8] sm:$0xff]
    %v3277 = vld [vmem:[%s3261 + $0xb0] sm:$0xff]
    %v3278 = vld [vmem:[%s3261 + $0xc0] sm:$0xff]
    %v3279 = vld [vmem:[%s3261 + $0xc8] sm:$0xff]
    %v3280 = vld [vmem:[%s3261 + $0xd8] sm:$0xff]
    %v3281 = vld [vmem:[%s3261 + $0xe0] sm:$0xff]
    %v3282 = vld [vmem:[%s3261 + $0xf0] sm:$0xff]
    %v3283 = vld [vmem:[%s3261 + $0xf8] sm:$0xff]
    %v3284 = vld [vmem:[%s3261 + $0x108] sm:$0xff]
    %v3285 = vld [vmem:[%s3261 + $0x110] sm:$0xff]
    %v3286 = vld [vmem:[%s3261 + $0x120] sm:$0xff]
    %v3287 = vld [vmem:[%s3261 + $0x128] sm:$0xff]
    %v3288 = vld [vmem:[%s3261 + $0x138] sm:$0xff]
    %v3289 = vld [vmem:[%s3261 + $0x140] sm:$0xff]
    %v3290 = vld [vmem:[%s3261 + $0x150] sm:$0xff]
    %v3291 = vld [vmem:[%s3261 + $0x158] sm:$0xff]
    %v3292 = vld [vmem:[%s3261 + $0x168] sm:$0xff]
    %v3293 = vld [vmem:[%s3261 + $0x170] sm:$0xff]
    %v3294 = vld [vmem:[%s3261 + $0x1b0] sm:$0xff]
    %v3295 = vld [vmem:[%s3261 + $0x1b8] sm:$0xff]
    %v3296 = vld [vmem:[%s3261 + $0x1c8] sm:$0xff]
    %v3297 = vld [vmem:[%s3261 + $0x1d0] sm:$0xff]
    %v3298 = vld [vmem:[%s3261 + $0x1e0] sm:$0xff]
    %v3299 = vld [vmem:[%s3261 + $0x1e8] sm:$0xff]
    %v3300 = vld [vmem:[%s3261 + $0x1f8] sm:$0xff]
    %v3301 = vld [vmem:[%s3261 + $0x200] sm:$0xff]
    %v3302 = vld [vmem:[%s3261 + $0x210] sm:$0xff]
    %v3303 = vld [vmem:[%s3261 + $0x218] sm:$0xff]
    %v3304 = vld [vmem:[%s3261 + $0x228] sm:$0xff]
    %v3305 = vld [vmem:[%s3261 + $0x230] sm:$0xff]
    %v3306 = vld [vmem:[%s3261 + $0x240] sm:$0xff]
    %v3307 = vld [vmem:[%s3261 + $0x248] sm:$0xff]
    %v3308 = vld [vmem:[%s3261 + $0x258] sm:$0xff]
    %v3309 = vld [vmem:[%s3261 + $0x260] sm:$0xff]
    %v3310 = vld [vmem:[%s3261 + $0x270] sm:$0xff]
    %v3311 = vld [vmem:[%s3261 + $0x278] sm:$0xff]
    %v3312 = vld [vmem:[%s3261 + $0x288] sm:$0xff]
    %v3313 = vld [vmem:[%s3261 + $0x290] sm:$0xff]
    %v3314 = vld [vmem:[%s3261 + $0x2a0] sm:$0xff]
    %v3315 = vld [vmem:[%s3261 + $0x2a8] sm:$0xff]
    %v3316 = vld [vmem:[%s3261 + $0x2b8] sm:$0xff]
    %v3317 = vld [vmem:[%s3261 + $0x2c0] sm:$0xff]
    %v3318 = vld [vmem:[%s3261 + $0x2d0] sm:$0xff]
    %v3319 = vld [vmem:[%s3261 + $0x2d8] sm:$0xff]
    %v3320 = vld [vmem:[%s3261 + $0x2e8] sm:$0xff]
    %v3321 = vld [vmem:[%s3261 + $0x2f0] sm:$0xff]
    %v3322 = vld [vmem:[%s3261 + $0x300] sm:$0xff]
    %v3323 = vld [vmem:[%s3261 + $0x308] sm:$0xff]
    %v3324 = vld [vmem:[%s3261 + $0x318] sm:$0xff]
    %v3325 = vld [vmem:[%s3261 + $0x320] sm:$0xff]
    %v3326 = vpack.c.bf16 %v3263, %v3262
    %v3327 = vpack.c.bf16 %v3265, %v3264
    %v3328 = vpack.c.bf16 %v3267, %v3266
    %v3329 = vpack.c.bf16 %v3269, %v3268
    %v3330 = vpack.c.bf16 %v3271, %v3270
    %v3331 = vpack.c.bf16 %v3273, %v3272
    %v3332 = vpack.c.bf16 %v3275, %v3274
    %v3333 = vpack.c.bf16 %v3277, %v3276
    %v3334 = vpack.c.bf16 %v3279, %v3278
    %v3335 = vpack.c.bf16 %v3281, %v3280
    %v3336 = vpack.c.bf16 %v3283, %v3282
    %v3337 = vpack.c.bf16 %v3285, %v3284
    %v3338 = vpack.c.bf16 %v3287, %v3286
    %v3339 = vpack.c.bf16 %v3289, %v3288
    %v3340 = vpack.c.bf16 %v3291, %v3290
    %v3341 = vpack.c.bf16 %v3293, %v3292
    %v3342 = vpack.c.bf16 %v3295, %v3294
    %v3343 = vpack.c.bf16 %v3297, %v3296
    %v3344 = vpack.c.bf16 %v3299, %v3298
    %v3345 = vpack.c.bf16 %v3301, %v3300
    %v3346 = vpack.c.bf16 %v3303, %v3302
    %v3347 = vpack.c.bf16 %v3305, %v3304
    %v3348 = vpack.c.bf16 %v3307, %v3306
    %v3349 = vpack.c.bf16 %v3309, %v3308
    %v3350 = vpack.c.bf16 %v3311, %v3310
    %v3351 = vpack.c.bf16 %v3313, %v3312
    %v3352 = vpack.c.bf16 %v3315, %v3314
    %v3353 = vpack.c.bf16 %v3317, %v3316
    %v3354 = vpack.c.bf16 %v3319, %v3318
    %v3355 = vpack.c.bf16 %v3321, %v3320
    %v3356 = vpack.c.bf16 %v3323, %v3322
    %v3357 = vpack.c.bf16 %v3325, %v3324
    %s3358 = scalar_lea.vmem [#allocation6], 384
    %v3359 = vld [vmem:[%s3358] sm:$0xf]
    %v3360 = vld [vmem:[%s3358 + $0x4] sm:$0xf]
    %v3361 = vld [vmem:[%s3358 + $0x8] sm:$0xf]
    %v3362 = vld [vmem:[%s3358 + $0xc] sm:$0xf]
    %v3363 = vld [vmem:[%s3358 + $0x10] sm:$0xf]
    %v3364 = vld [vmem:[%s3358 + $0x14] sm:$0xf]
    %v3365 = vld [vmem:[%s3358 + $0x18] sm:$0xf]
    %v3366 = vld [vmem:[%s3358 + $0x1c] sm:$0xf]
    %v3367 = vld [vmem:[%s3358 + $0x20] sm:$0xf]
    %v3368 = vld [vmem:[%s3358 + $0x24] sm:$0xf]
    %v3369 = vld [vmem:[%s3358 + $0x28] sm:$0xf]
    %v3370 = vld [vmem:[%s3358 + $0x2c] sm:$0xf]
    %v3371 = vld [vmem:[%s3358 + $0x30] sm:$0xf]
    %v3372 = vld [vmem:[%s3358 + $0x34] sm:$0xf]
    %v3373 = vld [vmem:[%s3358 + $0x38] sm:$0xf]
    %v3374 = vld [vmem:[%s3358 + $0x3c] sm:$0xf]
    %v3391 = vunpack.c.l.b16 %v3359
    %v3392 = vunpack.c.l.b16 %v3360
    %v3393 = vunpack.c.l.b16 %v3361
    %v3394 = vunpack.c.l.b16 %v3362
    %v3395 = vunpack.c.l.b16 %v3363
    %v3396 = vunpack.c.l.b16 %v3364
    %v3397 = vunpack.c.l.b16 %v3365
    %v3398 = vunpack.c.l.b16 %v3366
    %v3399 = vunpack.c.l.b16 %v3367
    %v3400 = vunpack.c.l.b16 %v3368
    %v3401 = vunpack.c.l.b16 %v3369
    %v3402 = vunpack.c.l.b16 %v3370
    %v3403 = vunpack.c.l.b16 %v3371
    %v3404 = vunpack.c.l.b16 %v3372
    %v3405 = vunpack.c.l.b16 %v3373
    %v3406 = vunpack.c.l.b16 %v3374
    %v3407 = vpack.c.b16 %v3392, %v3391
    %v3408 = vpack.c.b16 %v3394, %v3393
    %v3409 = vpack.c.b16 %v3396, %v3395
    %v3410 = vpack.c.b16 %v3398, %v3397
    %v3411 = vpack.c.b16 %v3400, %v3399
    %v3412 = vpack.c.b16 %v3402, %v3401
    %v3413 = vpack.c.b16 %v3404, %v3403
    %v3414 = vpack.c.b16 %v3406, %v3405
    %3423 = vmatprep.subr.bf16.mxu0 0
    %3424 = vmatpush1.bf16.msra.mxu0 %v3414
    %3425 = vmatprep.subr.bf16.mxu0 0
    %3426 = vmatpush1.bf16.msra.mxu0 %v3413
    %3427 = vmatprep.subr.bf16.mxu0 0
    %3428 = vmatpush1.bf16.msra.mxu0 %v3412
    %3429 = vmatprep.subr.bf16.mxu0 0
    %3430 = vmatpush1.bf16.msra.mxu0 %v3411
    %3431 = vmatprep.subr.bf16.mxu0 0
    %3432 = vmatpush1.bf16.msra.mxu0 %v3410
    %3433 = vmatprep.subr.bf16.mxu0 0
    %3434 = vmatpush1.bf16.msra.mxu0 %v3409
    %3435 = vmatprep.subr.bf16.mxu0 0
    %3436 = vmatpush1.bf16.msra.mxu0 %v3408
    %3437 = vmatprep.subr.bf16.mxu0 0
    %3438 = vmatpush1.bf16.msra.mxu0 %v3407
    %3439 = vmatprep.subr.bf16.mxu0 0
    %3440 = vmatpush2.bf16.msra.mxu0 0
    %3441 = vmatprep.subr.bf16.mxu0 0
    %3442 = vmatpush2.bf16.msra.mxu0 0
    %3443 = vmatprep.subr.bf16.mxu0 0
    %3444 = vmatpush2.bf16.msra.mxu0 0
    %3445 = vmatprep.subr.bf16.mxu0 0
    %3446 = vmatpush2.bf16.msra.mxu0 0
    %3447 = vmatprep.subr.bf16.mxu0 0
    %3448 = vmatpush2.bf16.msra.mxu0 0
    %3449 = vmatprep.subr.bf16.mxu0 0
    %3450 = vmatpush2.bf16.msra.mxu0 0
    %3451 = vmatprep.subr.bf16.mxu0 0
    %3452 = vmatpush2.bf16.msra.mxu0 0
    %3453 = vmatprep.subr.bf16.mxu0 0
    %3454 = vmatpush2.bf16.msra.mxu0 0
    %3455 = vmatprep.mubr.bf16.mxu0 0
    %3456 = vmatmul.mubr.bf16.gmra.mxu0 %v3326
    %v3457 = vpop.f32.mrf.mxu0
    %v3458 = vadd.f32 0.0, %v3457
    %v3459 = vpop.f32.mrf.mxu0
    %v3460 = vpop.f32.mrf.mxu0
    %v3461 = vadd.f32 0.0, %v3460
    %v3462 = vpop.f32.mrf.mxu0
    %3463 = vmatprep.mubr.bf16.mxu0 0
    %3464 = vmatmul.mubr.bf16.gmra.mxu0 %v3327
    %v3465 = vpop.f32.mrf.mxu0
    %v3466 = vadd.f32 0.0, %v3465
    %v3467 = vpop.f32.mrf.mxu0
    %v3468 = vpop.f32.mrf.mxu0
    %v3469 = vadd.f32 0.0, %v3468
    %v3470 = vpop.f32.mrf.mxu0
    %3471 = vmatprep.mubr.bf16.mxu0 0
    %3472 = vmatmul.mubr.bf16.gmra.mxu0 %v3328
    %v3473 = vpop.f32.mrf.mxu0
    %v3474 = vadd.f32 0.0, %v3473
    %v3475 = vpop.f32.mrf.mxu0
    %v3476 = vpop.f32.mrf.mxu0
    %v3477 = vadd.f32 0.0, %v3476
    %v3478 = vpop.f32.mrf.mxu0
    %3479 = vmatprep.mubr.bf16.mxu0 0
    %3480 = vmatmul.mubr.bf16.gmra.mxu0 %v3329
    %v3481 = vpop.f32.mrf.mxu0
    %v3482 = vadd.f32 0.0, %v3481
    %v3483 = vpop.f32.mrf.mxu0
    %v3484 = vpop.f32.mrf.mxu0
    %v3485 = vadd.f32 0.0, %v3484
    %v3486 = vpop.f32.mrf.mxu0
    %3487 = vmatprep.mubr.bf16.mxu0 0
    %3488 = vmatmul.mubr.bf16.gmra.mxu0 %v3330
    %v3489 = vpop.f32.mrf.mxu0
    %v3490 = vadd.f32 0.0, %v3489
    %v3491 = vpop.f32.mrf.mxu0
    %v3492 = vpop.f32.mrf.mxu0
    %v3493 = vadd.f32 0.0, %v3492
    %v3494 = vpop.f32.mrf.mxu0
    %3495 = vmatprep.mubr.bf16.mxu0 0
    %3496 = vmatmul.mubr.bf16.gmra.mxu0 %v3331
    %v3497 = vpop.f32.mrf.mxu0
    %v3498 = vadd.f32 0.0, %v3497
    %v3499 = vpop.f32.mrf.mxu0
    %v3500 = vpop.f32.mrf.mxu0
    %v3501 = vadd.f32 0.0, %v3500
    %v3502 = vpop.f32.mrf.mxu0
    %3503 = vmatprep.mubr.bf16.mxu0 0
    %3504 = vmatmul.mubr.bf16.gmra.mxu0 %v3332
    %v3505 = vpop.f32.mrf.mxu0
    %v3506 = vadd.f32 0.0, %v3505
    %v3507 = vpop.f32.mrf.mxu0
    %v3508 = vpop.f32.mrf.mxu0
    %v3509 = vadd.f32 0.0, %v3508
    %v3510 = vpop.f32.mrf.mxu0
    %3511 = vmatprep.mubr.bf16.mxu0 0
    %3512 = vmatmul.mubr.bf16.gmra.mxu0 %v3333
    %v3513 = vpop.f32.mrf.mxu0
    %v3514 = vadd.f32 0.0, %v3513
    %v3515 = vpop.f32.mrf.mxu0
    %v3516 = vpop.f32.mrf.mxu0
    %v3517 = vadd.f32 0.0, %v3516
    %v3518 = vpop.f32.mrf.mxu0
    %3519 = vmatprep.mubr.bf16.mxu0 0
    %3520 = vmatmul.mubr.bf16.gmra.mxu0 %v3334
    %v3521 = vpop.f32.mrf.mxu0
    %v3522 = vadd.f32 0.0, %v3521
    %v3523 = vpop.f32.mrf.mxu0
    %v3524 = vpop.f32.mrf.mxu0
    %v3525 = vadd.f32 0.0, %v3524
    %v3526 = vpop.f32.mrf.mxu0
    %3527 = vmatprep.mubr.bf16.mxu0 0
    %3528 = vmatmul.mubr.bf16.gmra.mxu0 %v3335
    %v3529 = vpop.f32.mrf.mxu0
    %v3530 = vadd.f32 0.0, %v3529
    %v3531 = vpop.f32.mrf.mxu0
    %v3532 = vpop.f32.mrf.mxu0
    %v3533 = vadd.f32 0.0, %v3532
    %v3534 = vpop.f32.mrf.mxu0
    %3535 = vmatprep.mubr.bf16.mxu0 0
    %3536 = vmatmul.mubr.bf16.gmra.mxu0 %v3336
    %v3537 = vpop.f32.mrf.mxu0
    %v3538 = vadd.f32 0.0, %v3537
    %v3539 = vpop.f32.mrf.mxu0
    %v3540 = vpop.f32.mrf.mxu0
    %v3541 = vadd.f32 0.0, %v3540
    %v3542 = vpop.f32.mrf.mxu0
    %3543 = vmatprep.mubr.bf16.mxu0 0
    %3544 = vmatmul.mubr.bf16.gmra.mxu0 %v3337
    %v3545 = vpop.f32.mrf.mxu0
    %v3546 = vadd.f32 0.0, %v3545
    %v3547 = vpop.f32.mrf.mxu0
    %v3548 = vpop.f32.mrf.mxu0
    %v3549 = vadd.f32 0.0, %v3548
    %v3550 = vpop.f32.mrf.mxu0
    %3551 = vmatprep.mubr.bf16.mxu0 0
    %3552 = vmatmul.mubr.bf16.gmra.mxu0 %v3338
    %v3553 = vpop.f32.mrf.mxu0
    %v3554 = vadd.f32 0.0, %v3553
    %v3555 = vpop.f32.mrf.mxu0
    %v3556 = vpop.f32.mrf.mxu0
    %v3557 = vadd.f32 0.0, %v3556
    %v3558 = vpop.f32.mrf.mxu0
    %3559 = vmatprep.mubr.bf16.mxu0 0
    %3560 = vmatmul.mubr.bf16.gmra.mxu0 %v3339
    %v3561 = vpop.f32.mrf.mxu0
    %v3562 = vadd.f32 0.0, %v3561
    %v3563 = vpop.f32.mrf.mxu0
    %v3564 = vpop.f32.mrf.mxu0
    %v3565 = vadd.f32 0.0, %v3564
    %v3566 = vpop.f32.mrf.mxu0
    %3567 = vmatprep.mubr.bf16.mxu0 0
    %3568 = vmatmul.mubr.bf16.gmra.mxu0 %v3340
    %v3569 = vpop.f32.mrf.mxu0
    %v3570 = vadd.f32 0.0, %v3569
    %v3571 = vpop.f32.mrf.mxu0
    %v3572 = vpop.f32.mrf.mxu0
    %v3573 = vadd.f32 0.0, %v3572
    %v3574 = vpop.f32.mrf.mxu0
    %3575 = vmatprep.mubr.bf16.mxu0 0
    %3576 = vmatmul.mubr.bf16.gmra.mxu0 %v3341
    %v3577 = vpop.f32.mrf.mxu0
    %v3578 = vadd.f32 0.0, %v3577
    %v3579 = vpop.f32.mrf.mxu0
    %v3580 = vpop.f32.mrf.mxu0
    %v3581 = vadd.f32 0.0, %v3580
    %v3582 = vpop.f32.mrf.mxu0
    %3583 = vmatprep.mubr.bf16.mxu0 0
    %3584 = vmatmul.mubr.bf16.gmra.mxu0 %v3342
    %v3585 = vpop.f32.mrf.mxu0
    %v3586 = vadd.f32 0.0, %v3585
    %v3587 = vpop.f32.mrf.mxu0
    %v3588 = vpop.f32.mrf.mxu0
    %v3589 = vadd.f32 0.0, %v3588
    %v3590 = vpop.f32.mrf.mxu0
    %3591 = vmatprep.mubr.bf16.mxu0 0
    %3592 = vmatmul.mubr.bf16.gmra.mxu0 %v3343
    %v3593 = vpop.f32.mrf.mxu0
    %v3594 = vadd.f32 0.0, %v3593
    %v3595 = vpop.f32.mrf.mxu0
    %v3596 = vpop.f32.mrf.mxu0
    %v3597 = vadd.f32 0.0, %v3596
    %v3598 = vpop.f32.mrf.mxu0
    %3599 = vmatprep.mubr.bf16.mxu0 0
    %3600 = vmatmul.mubr.bf16.gmra.mxu0 %v3344
    %v3601 = vpop.f32.mrf.mxu0
    %v3602 = vadd.f32 0.0, %v3601
    %v3603 = vpop.f32.mrf.mxu0
    %v3604 = vpop.f32.mrf.mxu0
    %v3605 = vadd.f32 0.0, %v3604
    %v3606 = vpop.f32.mrf.mxu0
    %3607 = vmatprep.mubr.bf16.mxu0 0
    %3608 = vmatmul.mubr.bf16.gmra.mxu0 %v3345
    %v3609 = vpop.f32.mrf.mxu0
    %v3610 = vadd.f32 0.0, %v3609
    %v3611 = vpop.f32.mrf.mxu0
    %v3612 = vpop.f32.mrf.mxu0
    %v3613 = vadd.f32 0.0, %v3612
    %v3614 = vpop.f32.mrf.mxu0
    %3615 = vmatprep.mubr.bf16.mxu0 0
    %3616 = vmatmul.mubr.bf16.gmra.mxu0 %v3346
    %v3617 = vpop.f32.mrf.mxu0
    %v3618 = vadd.f32 0.0, %v3617
    %v3619 = vpop.f32.mrf.mxu0
    %v3620 = vpop.f32.mrf.mxu0
    %v3621 = vadd.f32 0.0, %v3620
    %v3622 = vpop.f32.mrf.mxu0
    %3623 = vmatprep.mubr.bf16.mxu0 0
    %3624 = vmatmul.mubr.bf16.gmra.mxu0 %v3347
    %v3625 = vpop.f32.mrf.mxu0
    %v3626 = vadd.f32 0.0, %v3625
    %v3627 = vpop.f32.mrf.mxu0
    %v3628 = vpop.f32.mrf.mxu0
    %v3629 = vadd.f32 0.0, %v3628
    %v3630 = vpop.f32.mrf.mxu0
    %3631 = vmatprep.mubr.bf16.mxu0 0
    %3632 = vmatmul.mubr.bf16.gmra.mxu0 %v3348
    %v3633 = vpop.f32.mrf.mxu0
    %v3634 = vadd.f32 0.0, %v3633
    %v3635 = vpop.f32.mrf.mxu0
    %v3636 = vpop.f32.mrf.mxu0
    %v3637 = vadd.f32 0.0, %v3636
    %v3638 = vpop.f32.mrf.mxu0
    %3639 = vmatprep.mubr.bf16.mxu0 0
    %3640 = vmatmul.mubr.bf16.gmra.mxu0 %v3349
    %v3641 = vpop.f32.mrf.mxu0
    %v3642 = vadd.f32 0.0, %v3641
    %v3643 = vpop.f32.mrf.mxu0
    %v3644 = vpop.f32.mrf.mxu0
    %v3645 = vadd.f32 0.0, %v3644
    %v3646 = vpop.f32.mrf.mxu0
    %3647 = vmatprep.mubr.bf16.mxu0 0
    %3648 = vmatmul.mubr.bf16.gmra.mxu0 %v3350
    %v3649 = vpop.f32.mrf.mxu0
    %v3650 = vadd.f32 0.0, %v3649
    %v3651 = vpop.f32.mrf.mxu0
    %v3652 = vpop.f32.mrf.mxu0
    %v3653 = vadd.f32 0.0, %v3652
    %v3654 = vpop.f32.mrf.mxu0
    %3655 = vmatprep.mubr.bf16.mxu0 0
    %3656 = vmatmul.mubr.bf16.gmra.mxu0 %v3351
    %v3657 = vpop.f32.mrf.mxu0
    %v3658 = vadd.f32 0.0, %v3657
    %v3659 = vpop.f32.mrf.mxu0
    %v3660 = vpop.f32.mrf.mxu0
    %v3661 = vadd.f32 0.0, %v3660
    %v3662 = vpop.f32.mrf.mxu0
    %3663 = vmatprep.mubr.bf16.mxu0 0
    %3664 = vmatmul.mubr.bf16.gmra.mxu0 %v3352
    %v3665 = vpop.f32.mrf.mxu0
    %v3666 = vadd.f32 0.0, %v3665
    %v3667 = vpop.f32.mrf.mxu0
    %v3668 = vpop.f32.mrf.mxu0
    %v3669 = vadd.f32 0.0, %v3668
    %v3670 = vpop.f32.mrf.mxu0
    %3671 = vmatprep.mubr.bf16.mxu0 0
    %3672 = vmatmul.mubr.bf16.gmra.mxu0 %v3353
    %v3673 = vpop.f32.mrf.mxu0
    %v3674 = vadd.f32 0.0, %v3673
    %v3675 = vpop.f32.mrf.mxu0
    %v3676 = vpop.f32.mrf.mxu0
    %v3677 = vadd.f32 0.0, %v3676
    %v3678 = vpop.f32.mrf.mxu0
    %3679 = vmatprep.mubr.bf16.mxu0 0
    %3680 = vmatmul.mubr.bf16.gmra.mxu0 %v3354
    %v3681 = vpop.f32.mrf.mxu0
    %v3682 = vadd.f32 0.0, %v3681
    %v3683 = vpop.f32.mrf.mxu0
    %v3684 = vpop.f32.mrf.mxu0
    %v3685 = vadd.f32 0.0, %v3684
    %v3686 = vpop.f32.mrf.mxu0
    %3687 = vmatprep.mubr.bf16.mxu0 0
    %3688 = vmatmul.mubr.bf16.gmra.mxu0 %v3355
    %v3689 = vpop.f32.mrf.mxu0
    %v3690 = vadd.f32 0.0, %v3689
    %v3691 = vpop.f32.mrf.mxu0
    %v3692 = vpop.f32.mrf.mxu0
    %v3693 = vadd.f32 0.0, %v3692
    %v3694 = vpop.f32.mrf.mxu0
    %3695 = vmatprep.mubr.bf16.mxu0 0
    %3696 = vmatmul.mubr.bf16.gmra.mxu0 %v3356
    %v3697 = vpop.f32.mrf.mxu0
    %v3698 = vadd.f32 0.0, %v3697
    %v3699 = vpop.f32.mrf.mxu0
    %v3700 = vpop.f32.mrf.mxu0
    %v3701 = vadd.f32 0.0, %v3700
    %v3702 = vpop.f32.mrf.mxu0
    %3703 = vmatprep.mubr.bf16.mxu0 0
    %3704 = vmatmul.mubr.bf16.gmra.mxu0 %v3357
    %v3705 = vpop.f32.mrf.mxu0
    %v3706 = vadd.f32 0.0, %v3705
    %v3707 = vpop.f32.mrf.mxu0
    %v3708 = vpop.f32.mrf.mxu0
    %v3709 = vadd.f32 0.0, %v3708
    %v3710 = vpop.f32.mrf.mxu0
    %3711 = vdwg.mxu0
    %v3712 = vadd.f32 %v3197, %v3458
    %v3713 = vadd.f32 %v3198, %v3461
    %v3714 = vadd.f32 %v3199, %v3466
    %v3715 = vadd.f32 %v3200, %v3469
    %v3716 = vadd.f32 %v3201, %v3474
    %v3717 = vadd.f32 %v3202, %v3477
    %v3718 = vadd.f32 %v3203, %v3482
    %v3719 = vadd.f32 %v3204, %v3485
    %v3720 = vadd.f32 %v3205, %v3490
    %v3721 = vadd.f32 %v3206, %v3493
    %v3722 = vadd.f32 %v3207, %v3498
    %v3723 = vadd.f32 %v3208, %v3501
    %v3724 = vadd.f32 %v3209, %v3506
    %v3725 = vadd.f32 %v3210, %v3509
    %v3726 = vadd.f32 %v3211, %v3514
    %v3727 = vadd.f32 %v3212, %v3517
    %v3728 = vadd.f32 %v3213, %v3522
    %v3729 = vadd.f32 %v3214, %v3525
    %v3730 = vadd.f32 %v3215, %v3530
    %v3731 = vadd.f32 %v3216, %v3533
    %v3732 = vadd.f32 %v3217, %v3538
    %v3733 = vadd.f32 %v3218, %v3541
    %v3734 = vadd.f32 %v3219, %v3546
    %v3735 = vadd.f32 %v3220, %v3549
    %v3736 = vadd.f32 %v3221, %v3554
    %v3737 = vadd.f32 %v3222, %v3557
    %v3738 = vadd.f32 %v3223, %v3562
    %v3739 = vadd.f32 %v3224, %v3565
    %v3740 = vadd.f32 %v3225, %v3570
    %v3741 = vadd.f32 %v3226, %v3573
    %v3742 = vadd.f32 %v3227, %v3578
    %v3743 = vadd.f32 %v3228, %v3581
    %v3744 = vadd.f32 %v3229, %v3586
    %v3745 = vadd.f32 %v3230, %v3589
    %v3746 = vadd.f32 %v3231, %v3594
    %v3747 = vadd.f32 %v3232, %v3597
    %v3748 = vadd.f32 %v3233, %v3602
    %v3749 = vadd.f32 %v3234, %v3605
    %v3750 = vadd.f32 %v3235, %v3610
    %v3751 = vadd.f32 %v3236, %v3613
    %v3752 = vadd.f32 %v3237, %v3618
    %v3753 = vadd.f32 %v3238, %v3621
    %v3754 = vadd.f32 %v3239, %v3626
    %v3755 = vadd.f32 %v3240, %v3629
    %v3756 = vadd.f32 %v3241, %v3634
    %v3757 = vadd.f32 %v3242, %v3637
    %v3758 = vadd.f32 %v3243, %v3642
    %v3759 = vadd.f32 %v3244, %v3645
    %v3760 = vadd.f32 %v3245, %v3650
    %v3761 = vadd.f32 %v3246, %v3653
    %v3762 = vadd.f32 %v3247, %v3658
    %v3763 = vadd.f32 %v3248, %v3661
    %v3764 = vadd.f32 %v3249, %v3666
    %v3765 = vadd.f32 %v3250, %v3669
    %v3766 = vadd.f32 %v3251, %v3674
    %v3767 = vadd.f32 %v3252, %v3677
    %v3768 = vadd.f32 %v3253, %v3682
    %v3769 = vadd.f32 %v3254, %v3685
    %v3770 = vadd.f32 %v3255, %v3690
    %v3771 = vadd.f32 %v3256, %v3693
    %v3772 = vadd.f32 %v3257, %v3698
    %v3773 = vadd.f32 %v3258, %v3701
    %v3774 = vadd.f32 %v3259, %v3706
    %v3775 = vadd.f32 %v3260, %v3709
    %v3776 = vld [vmem:[%s3261 + $0x1] sm:$0xff]
    %v3777 = vld [vmem:[%s3261 + $0x9] sm:$0xff]
    %v3778 = vld [vmem:[%s3261 + $0x19] sm:$0xff]
    %v3779 = vld [vmem:[%s3261 + $0x21] sm:$0xff]
    %v3780 = vld [vmem:[%s3261 + $0x31] sm:$0xff]
    %v3781 = vld [vmem:[%s3261 + $0x39] sm:$0xff]
    %v3782 = vld [vmem:[%s3261 + $0x49] sm:$0xff]
    %v3783 = vld [vmem:[%s3261 + $0x51] sm:$0xff]
    %v3784 = vld [vmem:[%s3261 + $0x61] sm:$0xff]
    %v3785 = vld [vmem:[%s3261 + $0x69] sm:$0xff]
    %v3786 = vld [vmem:[%s3261 + $0x79] sm:$0xff]
    %v3787 = vld [vmem:[%s3261 + $0x81] sm:$0xff]
    %v3788 = vld [vmem:[%s3261 + $0x91] sm:$0xff]
    %v3789 = vld [vmem:[%s3261 + $0x99] sm:$0xff]
    %v3790 = vld [vmem:[%s3261 + $0xa9] sm:$0xff]
    %v3791 = vld [vmem:[%s3261 + $0xb1] sm:$0xff]
    %v3792 = vld [vmem:[%s3261 + $0xc1] sm:$0xff]
    %v3793 = vld [vmem:[%s3261 + $0xc9] sm:$0xff]
    %v3794 = vld [vmem:[%s3261 + $0xd9] sm:$0xff]
    %v3795 = vld [vmem:[%s3261 + $0xe1] sm:$0xff]
    %v3796 = vld [vmem:[%s3261 + $0xf1] sm:$0xff]
    %v3797 = vld [vmem:[%s3261 + $0xf9] sm:$0xff]
    %v3798 = vld [vmem:[%s3261 + $0x109] sm:$0xff]
    %v3799 = vld [vmem:[%s3261 + $0x111] sm:$0xff]
    %v3800 = vld [vmem:[%s3261 + $0x121] sm:$0xff]
    %v3801 = vld [vmem:[%s3261 + $0x129] sm:$0xff]
    %v3802 = vld [vmem:[%s3261 + $0x139] sm:$0xff]
    %v3803 = vld [vmem:[%s3261 + $0x141] sm:$0xff]
    %v3804 = vld [vmem:[%s3261 + $0x151] sm:$0xff]
    %v3805 = vld [vmem:[%s3261 + $0x159] sm:$0xff]
    %v3806 = vld [vmem:[%s3261 + $0x169] sm:$0xff]
    %v3807 = vld [vmem:[%s3261 + $0x171] sm:$0xff]
    %v3808 = vld [vmem:[%s3261 + $0x1b1] sm:$0xff]
    %v3809 = vld [vmem:[%s3261 + $0x1b9] sm:$0xff]
    %v3810 = vld [vmem:[%s3261 + $0x1c9] sm:$0xff]
    %v3811 = vld [vmem:[%s3261 + $0x1d1] sm:$0xff]
    %v3812 = vld [vmem:[%s3261 + $0x1e1] sm:$0xff]
    %v3813 = vld [vmem:[%s3261 + $0x1e9] sm:$0xff]
    %v3814 = vld [vmem:[%s3261 + $0x1f9] sm:$0xff]
    %v3815 = vld [vmem:[%s3261 + $0x201] sm:$0xff]
    %v3816 = vld [vmem:[%s3261 + $0x211] sm:$0xff]
    %v3817 = vld [vmem:[%s3261 + $0x219] sm:$0xff]
    %v3818 = vld [vmem:[%s3261 + $0x229] sm:$0xff]
    %v3819 = vld [vmem:[%s3261 + $0x231] sm:$0xff]
    %v3820 = vld [vmem:[%s3261 + $0x241] sm:$0xff]
    %v3821 = vld [vmem:[%s3261 + $0x249] sm:$0xff]
    %v3822 = vld [vmem:[%s3261 + $0x259] sm:$0xff]
    %v3823 = vld [vmem:[%s3261 + $0x261] sm:$0xff]
    %v3824 = vld [vmem:[%s3261 + $0x271] sm:$0xff]
    %v3825 = vld [vmem:[%s3261 + $0x279] sm:$0xff]
    %v3826 = vld [vmem:[%s3261 + $0x289] sm:$0xff]
    %v3827 = vld [vmem:[%s3261 + $0x291] sm:$0xff]
    %v3828 = vld [vmem:[%s3261 + $0x2a1] sm:$0xff]
    %v3829 = vld [vmem:[%s3261 + $0x2a9] sm:$0xff]
    %v3830 = vld [vmem:[%s3261 + $0x2b9] sm:$0xff]
    %v3831 = vld [vmem:[%s3261 + $0x2c1] sm:$0xff]
    %v3832 = vld [vmem:[%s3261 + $0x2d1] sm:$0xff]
    %v3833 = vld [vmem:[%s3261 + $0x2d9] sm:$0xff]
    %v3834 = vld [vmem:[%s3261 + $0x2e9] sm:$0xff]
    %v3835 = vld [vmem:[%s3261 + $0x2f1] sm:$0xff]
    %v3836 = vld [vmem:[%s3261 + $0x301] sm:$0xff]
    %v3837 = vld [vmem:[%s3261 + $0x309] sm:$0xff]
    %v3838 = vld [vmem:[%s3261 + $0x319] sm:$0xff]
    %v3839 = vld [vmem:[%s3261 + $0x321] sm:$0xff]
    %v3840 = vpack.c.bf16 %v3777, %v3776
    %v3841 = vpack.c.bf16 %v3779, %v3778
    %v3842 = vpack.c.bf16 %v3781, %v3780
    %v3843 = vpack.c.bf16 %v3783, %v3782
    %v3844 = vpack.c.bf16 %v3785, %v3784
    %v3845 = vpack.c.bf16 %v3787, %v3786
    %v3846 = vpack.c.bf16 %v3789, %v3788
    %v3847 = vpack.c.bf16 %v3791, %v3790
    %v3848 = vpack.c.bf16 %v3793, %v3792
    %v3849 = vpack.c.bf16 %v3795, %v3794
    %v3850 = vpack.c.bf16 %v3797, %v3796
    %v3851 = vpack.c.bf16 %v3799, %v3798
    %v3852 = vpack.c.bf16 %v3801, %v3800
    %v3853 = vpack.c.bf16 %v3803, %v3802
    %v3854 = vpack.c.bf16 %v3805, %v3804
    %v3855 = vpack.c.bf16 %v3807, %v3806
    %v3856 = vpack.c.bf16 %v3809, %v3808
    %v3857 = vpack.c.bf16 %v3811, %v3810
    %v3858 = vpack.c.bf16 %v3813, %v3812
    %v3859 = vpack.c.bf16 %v3815, %v3814
    %v3860 = vpack.c.bf16 %v3817, %v3816
    %v3861 = vpack.c.bf16 %v3819, %v3818
    %v3862 = vpack.c.bf16 %v3821, %v3820
    %v3863 = vpack.c.bf16 %v3823, %v3822
    %v3864 = vpack.c.bf16 %v3825, %v3824
    %v3865 = vpack.c.bf16 %v3827, %v3826
    %v3866 = vpack.c.bf16 %v3829, %v3828
    %v3867 = vpack.c.bf16 %v3831, %v3830
    %v3868 = vpack.c.bf16 %v3833, %v3832
    %v3869 = vpack.c.bf16 %v3835, %v3834
    %v3870 = vpack.c.bf16 %v3837, %v3836
    %v3871 = vpack.c.bf16 %v3839, %v3838
    %s3872 = scalar_lea.vmem [#allocation6], 448
    %v3873 = vld [vmem:[%s3872] sm:$0xf]
    %v3874 = vld [vmem:[%s3872 + $0x4] sm:$0xf]
    %v3875 = vld [vmem:[%s3872 + $0x8] sm:$0xf]
    %v3876 = vld [vmem:[%s3872 + $0xc] sm:$0xf]
    %v3877 = vld [vmem:[%s3872 + $0x10] sm:$0xf]
    %v3878 = vld [vmem:[%s3872 + $0x14] sm:$0xf]
    %v3879 = vld [vmem:[%s3872 + $0x18] sm:$0xf]
    %v3880 = vld [vmem:[%s3872 + $0x1c] sm:$0xf]
    %v3881 = vld [vmem:[%s3872 + $0x20] sm:$0xf]
    %v3882 = vld [vmem:[%s3872 + $0x24] sm:$0xf]
    %v3883 = vld [vmem:[%s3872 + $0x28] sm:$0xf]
    %v3884 = vld [vmem:[%s3872 + $0x2c] sm:$0xf]
    %v3885 = vld [vmem:[%s3872 + $0x30] sm:$0xf]
    %v3886 = vld [vmem:[%s3872 + $0x34] sm:$0xf]
    %v3887 = vld [vmem:[%s3872 + $0x38] sm:$0xf]
    %v3888 = vld [vmem:[%s3872 + $0x3c] sm:$0xf]
    %v3905 = vunpack.c.l.b16 %v3873
    %v3906 = vunpack.c.l.b16 %v3874
    %v3907 = vunpack.c.l.b16 %v3875
    %v3908 = vunpack.c.l.b16 %v3876
    %v3909 = vunpack.c.l.b16 %v3877
    %v3910 = vunpack.c.l.b16 %v3878
    %v3911 = vunpack.c.l.b16 %v3879
    %v3912 = vunpack.c.l.b16 %v3880
    %v3913 = vunpack.c.l.b16 %v3881
    %v3914 = vunpack.c.l.b16 %v3882
    %v3915 = vunpack.c.l.b16 %v3883
    %v3916 = vunpack.c.l.b16 %v3884
    %v3917 = vunpack.c.l.b16 %v3885
    %v3918 = vunpack.c.l.b16 %v3886
    %v3919 = vunpack.c.l.b16 %v3887
    %v3920 = vunpack.c.l.b16 %v3888
    %v3921 = vpack.c.b16 %v3906, %v3905
    %v3922 = vpack.c.b16 %v3908, %v3907
    %v3923 = vpack.c.b16 %v3910, %v3909
    %v3924 = vpack.c.b16 %v3912, %v3911
    %v3925 = vpack.c.b16 %v3914, %v3913
    %v3926 = vpack.c.b16 %v3916, %v3915
    %v3927 = vpack.c.b16 %v3918, %v3917
    %v3928 = vpack.c.b16 %v3920, %v3919
    %3937 = vmatprep.subr.bf16.mxu0 0
    %3938 = vmatpush1.bf16.msra.mxu0 %v3928
    %3939 = vmatprep.subr.bf16.mxu0 0
    %3940 = vmatpush1.bf16.msra.mxu0 %v3927
    %3941 = vmatprep.subr.bf16.mxu0 0
    %3942 = vmatpush1.bf16.msra.mxu0 %v3926
    %3943 = vmatprep.subr.bf16.mxu0 0
    %3944 = vmatpush1.bf16.msra.mxu0 %v3925
    %3945 = vmatprep.subr.bf16.mxu0 0
    %3946 = vmatpush1.bf16.msra.mxu0 %v3924
    %3947 = vmatprep.subr.bf16.mxu0 0
    %3948 = vmatpush1.bf16.msra.mxu0 %v3923
    %3949 = vmatprep.subr.bf16.mxu0 0
    %3950 = vmatpush1.bf16.msra.mxu0 %v3922
    %3951 = vmatprep.subr.bf16.mxu0 0
    %3952 = vmatpush1.bf16.msra.mxu0 %v3921
    %3953 = vmatprep.subr.bf16.mxu0 0
    %3954 = vmatpush2.bf16.msra.mxu0 0
    %3955 = vmatprep.subr.bf16.mxu0 0
    %3956 = vmatpush2.bf16.msra.mxu0 0
    %3957 = vmatprep.subr.bf16.mxu0 0
    %3958 = vmatpush2.bf16.msra.mxu0 0
    %3959 = vmatprep.subr.bf16.mxu0 0
    %3960 = vmatpush2.bf16.msra.mxu0 0
    %3961 = vmatprep.subr.bf16.mxu0 0
    %3962 = vmatpush2.bf16.msra.mxu0 0
    %3963 = vmatprep.subr.bf16.mxu0 0
    %3964 = vmatpush2.bf16.msra.mxu0 0
    %3965 = vmatprep.subr.bf16.mxu0 0
    %3966 = vmatpush2.bf16.msra.mxu0 0
    %3967 = vmatprep.subr.bf16.mxu0 0
    %3968 = vmatpush2.bf16.msra.mxu0 0
    %3969 = vmatprep.mubr.bf16.mxu0 0
    %3970 = vmatmul.mubr.bf16.gmra.mxu0 %v3840
    %v3971 = vpop.f32.mrf.mxu0
    %v3972 = vadd.f32 0.0, %v3971
    %v3973 = vpop.f32.mrf.mxu0
    %v3974 = vpop.f32.mrf.mxu0
    %v3975 = vadd.f32 0.0, %v3974
    %v3976 = vpop.f32.mrf.mxu0
    %3977 = vmatprep.mubr.bf16.mxu0 0
    %3978 = vmatmul.mubr.bf16.gmra.mxu0 %v3841
    %v3979 = vpop.f32.mrf.mxu0
    %v3980 = vadd.f32 0.0, %v3979
    %v3981 = vpop.f32.mrf.mxu0
    %v3982 = vpop.f32.mrf.mxu0
    %v3983 = vadd.f32 0.0, %v3982
    %v3984 = vpop.f32.mrf.mxu0
    %3985 = vmatprep.mubr.bf16.mxu0 0
    %3986 = vmatmul.mubr.bf16.gmra.mxu0 %v3842
    %v3987 = vpop.f32.mrf.mxu0
    %v3988 = vadd.f32 0.0, %v3987
    %v3989 = vpop.f32.mrf.mxu0
    %v3990 = vpop.f32.mrf.mxu0
    %v3991 = vadd.f32 0.0, %v3990
    %v3992 = vpop.f32.mrf.mxu0
    %3993 = vmatprep.mubr.bf16.mxu0 0
    %3994 = vmatmul.mubr.bf16.gmra.mxu0 %v3843
    %v3995 = vpop.f32.mrf.mxu0
    %v3996 = vadd.f32 0.0, %v3995
    %v3997 = vpop.f32.mrf.mxu0
    %v3998 = vpop.f32.mrf.mxu0
    %v3999 = vadd.f32 0.0, %v3998
    %v4000 = vpop.f32.mrf.mxu0
    %4001 = vmatprep.mubr.bf16.mxu0 0
    %4002 = vmatmul.mubr.bf16.gmra.mxu0 %v3844
    %v4003 = vpop.f32.mrf.mxu0
    %v4004 = vadd.f32 0.0, %v4003
    %v4005 = vpop.f32.mrf.mxu0
    %v4006 = vpop.f32.mrf.mxu0
    %v4007 = vadd.f32 0.0, %v4006
    %v4008 = vpop.f32.mrf.mxu0
    %4009 = vmatprep.mubr.bf16.mxu0 0
    %4010 = vmatmul.mubr.bf16.gmra.mxu0 %v3845
    %v4011 = vpop.f32.mrf.mxu0
    %v4012 = vadd.f32 0.0, %v4011
    %v4013 = vpop.f32.mrf.mxu0
    %v4014 = vpop.f32.mrf.mxu0
    %v4015 = vadd.f32 0.0, %v4014
    %v4016 = vpop.f32.mrf.mxu0
    %4017 = vmatprep.mubr.bf16.mxu0 0
    %4018 = vmatmul.mubr.bf16.gmra.mxu0 %v3846
    %v4019 = vpop.f32.mrf.mxu0
    %v4020 = vadd.f32 0.0, %v4019
    %v4021 = vpop.f32.mrf.mxu0
    %v4022 = vpop.f32.mrf.mxu0
    %v4023 = vadd.f32 0.0, %v4022
    %v4024 = vpop.f32.mrf.mxu0
    %4025 = vmatprep.mubr.bf16.mxu0 0
    %4026 = vmatmul.mubr.bf16.gmra.mxu0 %v3847
    %v4027 = vpop.f32.mrf.mxu0
    %v4028 = vadd.f32 0.0, %v4027
    %v4029 = vpop.f32.mrf.mxu0
    %v4030 = vpop.f32.mrf.mxu0
    %v4031 = vadd.f32 0.0, %v4030
    %v4032 = vpop.f32.mrf.mxu0
    %4033 = vmatprep.mubr.bf16.mxu0 0
    %4034 = vmatmul.mubr.bf16.gmra.mxu0 %v3848
    %v4035 = vpop.f32.mrf.mxu0
    %v4036 = vadd.f32 0.0, %v4035
    %v4037 = vpop.f32.mrf.mxu0
    %v4038 = vpop.f32.mrf.mxu0
    %v4039 = vadd.f32 0.0, %v4038
    %v4040 = vpop.f32.mrf.mxu0
    %4041 = vmatprep.mubr.bf16.mxu0 0
    %4042 = vmatmul.mubr.bf16.gmra.mxu0 %v3849
    %v4043 = vpop.f32.mrf.mxu0
    %v4044 = vadd.f32 0.0, %v4043
    %v4045 = vpop.f32.mrf.mxu0
    %v4046 = vpop.f32.mrf.mxu0
    %v4047 = vadd.f32 0.0, %v4046
    %v4048 = vpop.f32.mrf.mxu0
    %4049 = vmatprep.mubr.bf16.mxu0 0
    %4050 = vmatmul.mubr.bf16.gmra.mxu0 %v3850
    %v4051 = vpop.f32.mrf.mxu0
    %v4052 = vadd.f32 0.0, %v4051
    %v4053 = vpop.f32.mrf.mxu0
    %v4054 = vpop.f32.mrf.mxu0
    %v4055 = vadd.f32 0.0, %v4054
    %v4056 = vpop.f32.mrf.mxu0
    %4057 = vmatprep.mubr.bf16.mxu0 0
    %4058 = vmatmul.mubr.bf16.gmra.mxu0 %v3851
    %v4059 = vpop.f32.mrf.mxu0
    %v4060 = vadd.f32 0.0, %v4059
    %v4061 = vpop.f32.mrf.mxu0
    %v4062 = vpop.f32.mrf.mxu0
    %v4063 = vadd.f32 0.0, %v4062
    %v4064 = vpop.f32.mrf.mxu0
    %4065 = vmatprep.mubr.bf16.mxu0 0
    %4066 = vmatmul.mubr.bf16.gmra.mxu0 %v3852
    %v4067 = vpop.f32.mrf.mxu0
    %v4068 = vadd.f32 0.0, %v4067
    %v4069 = vpop.f32.mrf.mxu0
    %v4070 = vpop.f32.mrf.mxu0
    %v4071 = vadd.f32 0.0, %v4070
    %v4072 = vpop.f32.mrf.mxu0
    %4073 = vmatprep.mubr.bf16.mxu0 0
    %4074 = vmatmul.mubr.bf16.gmra.mxu0 %v3853
    %v4075 = vpop.f32.mrf.mxu0
    %v4076 = vadd.f32 0.0, %v4075
    %v4077 = vpop.f32.mrf.mxu0
    %v4078 = vpop.f32.mrf.mxu0
    %v4079 = vadd.f32 0.0, %v4078
    %v4080 = vpop.f32.mrf.mxu0
    %4081 = vmatprep.mubr.bf16.mxu0 0
    %4082 = vmatmul.mubr.bf16.gmra.mxu0 %v3854
    %v4083 = vpop.f32.mrf.mxu0
    %v4084 = vadd.f32 0.0, %v4083
    %v4085 = vpop.f32.mrf.mxu0
    %v4086 = vpop.f32.mrf.mxu0
    %v4087 = vadd.f32 0.0, %v4086
    %v4088 = vpop.f32.mrf.mxu0
    %4089 = vmatprep.mubr.bf16.mxu0 0
    %4090 = vmatmul.mubr.bf16.gmra.mxu0 %v3855
    %v4091 = vpop.f32.mrf.mxu0
    %v4092 = vadd.f32 0.0, %v4091
    %v4093 = vpop.f32.mrf.mxu0
    %v4094 = vpop.f32.mrf.mxu0
    %v4095 = vadd.f32 0.0, %v4094
    %v4096 = vpop.f32.mrf.mxu0
    %4097 = vmatprep.mubr.bf16.mxu0 0
    %4098 = vmatmul.mubr.bf16.gmra.mxu0 %v3856
    %v4099 = vpop.f32.mrf.mxu0
    %v4100 = vadd.f32 0.0, %v4099
    %v4101 = vpop.f32.mrf.mxu0
    %v4102 = vpop.f32.mrf.mxu0
    %v4103 = vadd.f32 0.0, %v4102
    %v4104 = vpop.f32.mrf.mxu0
    %4105 = vmatprep.mubr.bf16.mxu0 0
    %4106 = vmatmul.mubr.bf16.gmra.mxu0 %v3857
    %v4107 = vpop.f32.mrf.mxu0
    %v4108 = vadd.f32 0.0, %v4107
    %v4109 = vpop.f32.mrf.mxu0
    %v4110 = vpop.f32.mrf.mxu0
    %v4111 = vadd.f32 0.0, %v4110
    %v4112 = vpop.f32.mrf.mxu0
    %4113 = vmatprep.mubr.bf16.mxu0 0
    %4114 = vmatmul.mubr.bf16.gmra.mxu0 %v3858
    %v4115 = vpop.f32.mrf.mxu0
    %v4116 = vadd.f32 0.0, %v4115
    %v4117 = vpop.f32.mrf.mxu0
    %v4118 = vpop.f32.mrf.mxu0
    %v4119 = vadd.f32 0.0, %v4118
    %v4120 = vpop.f32.mrf.mxu0
    %4121 = vmatprep.mubr.bf16.mxu0 0
    %4122 = vmatmul.mubr.bf16.gmra.mxu0 %v3859
    %v4123 = vpop.f32.mrf.mxu0
    %v4124 = vadd.f32 0.0, %v4123
    %v4125 = vpop.f32.mrf.mxu0
    %v4126 = vpop.f32.mrf.mxu0
    %v4127 = vadd.f32 0.0, %v4126
    %v4128 = vpop.f32.mrf.mxu0
    %4129 = vmatprep.mubr.bf16.mxu0 0
    %4130 = vmatmul.mubr.bf16.gmra.mxu0 %v3860
    %v4131 = vpop.f32.mrf.mxu0
    %v4132 = vadd.f32 0.0, %v4131
    %v4133 = vpop.f32.mrf.mxu0
    %v4134 = vpop.f32.mrf.mxu0
    %v4135 = vadd.f32 0.0, %v4134
    %v4136 = vpop.f32.mrf.mxu0
    %4137 = vmatprep.mubr.bf16.mxu0 0
    %4138 = vmatmul.mubr.bf16.gmra.mxu0 %v3861
    %v4139 = vpop.f32.mrf.mxu0
    %v4140 = vadd.f32 0.0, %v4139
    %v4141 = vpop.f32.mrf.mxu0
    %v4142 = vpop.f32.mrf.mxu0
    %v4143 = vadd.f32 0.0, %v4142
    %v4144 = vpop.f32.mrf.mxu0
    %4145 = vmatprep.mubr.bf16.mxu0 0
    %4146 = vmatmul.mubr.bf16.gmra.mxu0 %v3862
    %v4147 = vpop.f32.mrf.mxu0
    %v4148 = vadd.f32 0.0, %v4147
    %v4149 = vpop.f32.mrf.mxu0
    %v4150 = vpop.f32.mrf.mxu0
    %v4151 = vadd.f32 0.0, %v4150
    %v4152 = vpop.f32.mrf.mxu0
    %4153 = vmatprep.mubr.bf16.mxu0 0
    %4154 = vmatmul.mubr.bf16.gmra.mxu0 %v3863
    %v4155 = vpop.f32.mrf.mxu0
    %v4156 = vadd.f32 0.0, %v4155
    %v4157 = vpop.f32.mrf.mxu0
    %v4158 = vpop.f32.mrf.mxu0
    %v4159 = vadd.f32 0.0, %v4158
    %v4160 = vpop.f32.mrf.mxu0
    %4161 = vmatprep.mubr.bf16.mxu0 0
    %4162 = vmatmul.mubr.bf16.gmra.mxu0 %v3864
    %v4163 = vpop.f32.mrf.mxu0
    %v4164 = vadd.f32 0.0, %v4163
    %v4165 = vpop.f32.mrf.mxu0
    %v4166 = vpop.f32.mrf.mxu0
    %v4167 = vadd.f32 0.0, %v4166
    %v4168 = vpop.f32.mrf.mxu0
    %4169 = vmatprep.mubr.bf16.mxu0 0
    %4170 = vmatmul.mubr.bf16.gmra.mxu0 %v3865
    %v4171 = vpop.f32.mrf.mxu0
    %v4172 = vadd.f32 0.0, %v4171
    %v4173 = vpop.f32.mrf.mxu0
    %v4174 = vpop.f32.mrf.mxu0
    %v4175 = vadd.f32 0.0, %v4174
    %v4176 = vpop.f32.mrf.mxu0
    %4177 = vmatprep.mubr.bf16.mxu0 0
    %4178 = vmatmul.mubr.bf16.gmra.mxu0 %v3866
    %v4179 = vpop.f32.mrf.mxu0
    %v4180 = vadd.f32 0.0, %v4179
    %v4181 = vpop.f32.mrf.mxu0
    %v4182 = vpop.f32.mrf.mxu0
    %v4183 = vadd.f32 0.0, %v4182
    %v4184 = vpop.f32.mrf.mxu0
    %4185 = vmatprep.mubr.bf16.mxu0 0
    %4186 = vmatmul.mubr.bf16.gmra.mxu0 %v3867
    %v4187 = vpop.f32.mrf.mxu0
    %v4188 = vadd.f32 0.0, %v4187
    %v4189 = vpop.f32.mrf.mxu0
    %v4190 = vpop.f32.mrf.mxu0
    %v4191 = vadd.f32 0.0, %v4190
    %v4192 = vpop.f32.mrf.mxu0
    %4193 = vmatprep.mubr.bf16.mxu0 0
    %4194 = vmatmul.mubr.bf16.gmra.mxu0 %v3868
    %v4195 = vpop.f32.mrf.mxu0
    %v4196 = vadd.f32 0.0, %v4195
    %v4197 = vpop.f32.mrf.mxu0
    %v4198 = vpop.f32.mrf.mxu0
    %v4199 = vadd.f32 0.0, %v4198
    %v4200 = vpop.f32.mrf.mxu0
    %4201 = vmatprep.mubr.bf16.mxu0 0
    %4202 = vmatmul.mubr.bf16.gmra.mxu0 %v3869
    %v4203 = vpop.f32.mrf.mxu0
    %v4204 = vadd.f32 0.0, %v4203
    %v4205 = vpop.f32.mrf.mxu0
    %v4206 = vpop.f32.mrf.mxu0
    %v4207 = vadd.f32 0.0, %v4206
    %v4208 = vpop.f32.mrf.mxu0
    %4209 = vmatprep.mubr.bf16.mxu0 0
    %4210 = vmatmul.mubr.bf16.gmra.mxu0 %v3870
    %v4211 = vpop.f32.mrf.mxu0
    %v4212 = vadd.f32 0.0, %v4211
    %v4213 = vpop.f32.mrf.mxu0
    %v4214 = vpop.f32.mrf.mxu0
    %v4215 = vadd.f32 0.0, %v4214
    %v4216 = vpop.f32.mrf.mxu0
    %4217 = vmatprep.mubr.bf16.mxu0 0
    %4218 = vmatmul.mubr.bf16.gmra.mxu0 %v3871
    %v4219 = vpop.f32.mrf.mxu0
    %v4220 = vadd.f32 0.0, %v4219
    %v4221 = vpop.f32.mrf.mxu0
    %v4222 = vpop.f32.mrf.mxu0
    %v4223 = vadd.f32 0.0, %v4222
    %v4224 = vpop.f32.mrf.mxu0
    %4225 = vdwg.mxu0
    %v4226 = vadd.f32 %v3712, %v3972
    %v4227 = vadd.f32 %v3713, %v3975
    %v4228 = vadd.f32 %v3714, %v3980
    %v4229 = vadd.f32 %v3715, %v3983
    %v4230 = vadd.f32 %v3716, %v3988
    %v4231 = vadd.f32 %v3717, %v3991
    %v4232 = vadd.f32 %v3718, %v3996
    %v4233 = vadd.f32 %v3719, %v3999
    %v4234 = vadd.f32 %v3720, %v4004
    %v4235 = vadd.f32 %v3721, %v4007
    %v4236 = vadd.f32 %v3722, %v4012
    %v4237 = vadd.f32 %v3723, %v4015
    %v4238 = vadd.f32 %v3724, %v4020
    %v4239 = vadd.f32 %v3725, %v4023
    %v4240 = vadd.f32 %v3726, %v4028
    %v4241 = vadd.f32 %v3727, %v4031
    %v4242 = vadd.f32 %v3728, %v4036
    %v4243 = vadd.f32 %v3729, %v4039
    %v4244 = vadd.f32 %v3730, %v4044
    %v4245 = vadd.f32 %v3731, %v4047
    %v4246 = vadd.f32 %v3732, %v4052
    %v4247 = vadd.f32 %v3733, %v4055
    %v4248 = vadd.f32 %v3734, %v4060
    %v4249 = vadd.f32 %v3735, %v4063
    %v4250 = vadd.f32 %v3736, %v4068
    %v4251 = vadd.f32 %v3737, %v4071
    %v4252 = vadd.f32 %v3738, %v4076
    %v4253 = vadd.f32 %v3739, %v4079
    %v4254 = vadd.f32 %v3740, %v4084
    %v4255 = vadd.f32 %v3741, %v4087
    %v4256 = vadd.f32 %v3742, %v4092
    %v4257 = vadd.f32 %v3743, %v4095
    %v4258 = vadd.f32 %v3744, %v4100
    %v4259 = vadd.f32 %v3745, %v4103
    %v4260 = vadd.f32 %v3746, %v4108
    %v4261 = vadd.f32 %v3747, %v4111
    %v4262 = vadd.f32 %v3748, %v4116
    %v4263 = vadd.f32 %v3749, %v4119
    %v4264 = vadd.f32 %v3750, %v4124
    %v4265 = vadd.f32 %v3751, %v4127
    %v4266 = vadd.f32 %v3752, %v4132
    %v4267 = vadd.f32 %v3753, %v4135
    %v4268 = vadd.f32 %v3754, %v4140
    %v4269 = vadd.f32 %v3755, %v4143
    %v4270 = vadd.f32 %v3756, %v4148
    %v4271 = vadd.f32 %v3757, %v4151
    %v4272 = vadd.f32 %v3758, %v4156
    %v4273 = vadd.f32 %v3759, %v4159
    %v4274 = vadd.f32 %v3760, %v4164
    %v4275 = vadd.f32 %v3761, %v4167
    %v4276 = vadd.f32 %v3762, %v4172
    %v4277 = vadd.f32 %v3763, %v4175
    %v4278 = vadd.f32 %v3764, %v4180
    %v4279 = vadd.f32 %v3765, %v4183
    %v4280 = vadd.f32 %v3766, %v4188
    %v4281 = vadd.f32 %v3767, %v4191
    %v4282 = vadd.f32 %v3768, %v4196
    %v4283 = vadd.f32 %v3769, %v4199
    %v4284 = vadd.f32 %v3770, %v4204
    %v4285 = vadd.f32 %v3771, %v4207
    %v4286 = vadd.f32 %v3772, %v4212
    %v4287 = vadd.f32 %v3773, %v4215
    %v4288 = vadd.f32 %v3774, %v4220
    %v4289 = vadd.f32 %v3775, %v4223
    %v4290 = vld [vmem:[%s3261 + $0x2] sm:$0xff]
    %v4291 = vld [vmem:[%s3261 + $0xa] sm:$0xff]
    %v4292 = vld [vmem:[%s3261 + $0x1a] sm:$0xff]
    %v4293 = vld [vmem:[%s3261 + $0x22] sm:$0xff]
    %v4294 = vld [vmem:[%s3261 + $0x32] sm:$0xff]
    %v4295 = vld [vmem:[%s3261 + $0x3a] sm:$0xff]
    %v4296 = vld [vmem:[%s3261 + $0x4a] sm:$0xff]
    %v4297 = vld [vmem:[%s3261 + $0x52] sm:$0xff]
    %v4298 = vld [vmem:[%s3261 + $0x62] sm:$0xff]
    %v4299 = vld [vmem:[%s3261 + $0x6a] sm:$0xff]
    %v4300 = vld [vmem:[%s3261 + $0x7a] sm:$0xff]
    %v4301 = vld [vmem:[%s3261 + $0x82] sm:$0xff]
    %v4302 = vld [vmem:[%s3261 + $0x92] sm:$0xff]
    %v4303 = vld [vmem:[%s3261 + $0x9a] sm:$0xff]
    %v4304 = vld [vmem:[%s3261 + $0xaa] sm:$0xff]
    %v4305 = vld [vmem:[%s3261 + $0xb2] sm:$0xff]
    %v4306 = vld [vmem:[%s3261 + $0xc2] sm:$0xff]
    %v4307 = vld [vmem:[%s3261 + $0xca] sm:$0xff]
    %v4308 = vld [vmem:[%s3261 + $0xda] sm:$0xff]
    %v4309 = vld [vmem:[%s3261 + $0xe2] sm:$0xff]
    %v4310 = vld [vmem:[%s3261 + $0xf2] sm:$0xff]
    %v4311 = vld [vmem:[%s3261 + $0xfa] sm:$0xff]
    %v4312 = vld [vmem:[%s3261 + $0x10a] sm:$0xff]
    %v4313 = vld [vmem:[%s3261 + $0x112] sm:$0xff]
    %v4314 = vld [vmem:[%s3261 + $0x122] sm:$0xff]
    %v4315 = vld [vmem:[%s3261 + $0x12a] sm:$0xff]
    %v4316 = vld [vmem:[%s3261 + $0x13a] sm:$0xff]
    %v4317 = vld [vmem:[%s3261 + $0x142] sm:$0xff]
    %v4318 = vld [vmem:[%s3261 + $0x152] sm:$0xff]
    %v4319 = vld [vmem:[%s3261 + $0x15a] sm:$0xff]
    %v4320 = vld [vmem:[%s3261 + $0x16a] sm:$0xff]
    %v4321 = vld [vmem:[%s3261 + $0x172] sm:$0xff]
    %v4322 = vld [vmem:[%s3261 + $0x1b2] sm:$0xff]
    %v4323 = vld [vmem:[%s3261 + $0x1ba] sm:$0xff]
    %v4324 = vld [vmem:[%s3261 + $0x1ca] sm:$0xff]
    %v4325 = vld [vmem:[%s3261 + $0x1d2] sm:$0xff]
    %v4326 = vld [vmem:[%s3261 + $0x1e2] sm:$0xff]
    %v4327 = vld [vmem:[%s3261 + $0x1ea] sm:$0xff]
    %v4328 = vld [vmem:[%s3261 + $0x1fa] sm:$0xff]
    %v4329 = vld [vmem:[%s3261 + $0x202] sm:$0xff]
    %v4330 = vld [vmem:[%s3261 + $0x212] sm:$0xff]
    %v4331 = vld [vmem:[%s3261 + $0x21a] sm:$0xff]
    %v4332 = vld [vmem:[%s3261 + $0x22a] sm:$0xff]
    %v4333 = vld [vmem:[%s3261 + $0x232] sm:$0xff]
    %v4334 = vld [vmem:[%s3261 + $0x242] sm:$0xff]
    %v4335 = vld [vmem:[%s3261 + $0x24a] sm:$0xff]
    %v4336 = vld [vmem:[%s3261 + $0x25a] sm:$0xff]
    %v4337 = vld [vmem:[%s3261 + $0x262] sm:$0xff]
    %v4338 = vld [vmem:[%s3261 + $0x272] sm:$0xff]
    %v4339 = vld [vmem:[%s3261 + $0x27a] sm:$0xff]
    %v4340 = vld [vmem:[%s3261 + $0x28a] sm:$0xff]
    %v4341 = vld [vmem:[%s3261 + $0x292] sm:$0xff]
    %v4342 = vld [vmem:[%s3261 + $0x2a2] sm:$0xff]
    %v4343 = vld [vmem:[%s3261 + $0x2aa] sm:$0xff]
    %v4344 = vld [vmem:[%s3261 + $0x2ba] sm:$0xff]
    %v4345 = vld [vmem:[%s3261 + $0x2c2] sm:$0xff]
    %v4346 = vld [vmem:[%s3261 + $0x2d2] sm:$0xff]
    %v4347 = vld [vmem:[%s3261 + $0x2da] sm:$0xff]
    %v4348 = vld [vmem:[%s3261 + $0x2ea] sm:$0xff]
    %v4349 = vld [vmem:[%s3261 + $0x2f2] sm:$0xff]
    %v4350 = vld [vmem:[%s3261 + $0x302] sm:$0xff]
    %v4351 = vld [vmem:[%s3261 + $0x30a] sm:$0xff]
    %v4352 = vld [vmem:[%s3261 + $0x31a] sm:$0xff]
    %v4353 = vld [vmem:[%s3261 + $0x322] sm:$0xff]
    %v4354 = vpack.c.bf16 %v4291, %v4290
    %v4355 = vpack.c.bf16 %v4293, %v4292
    %v4356 = vpack.c.bf16 %v4295, %v4294
    %v4357 = vpack.c.bf16 %v4297, %v4296
    %v4358 = vpack.c.bf16 %v4299, %v4298
    %v4359 = vpack.c.bf16 %v4301, %v4300
    %v4360 = vpack.c.bf16 %v4303, %v4302
    %v4361 = vpack.c.bf16 %v4305, %v4304
    %v4362 = vpack.c.bf16 %v4307, %v4306
    %v4363 = vpack.c.bf16 %v4309, %v4308
    %v4364 = vpack.c.bf16 %v4311, %v4310
    %v4365 = vpack.c.bf16 %v4313, %v4312
    %v4366 = vpack.c.bf16 %v4315, %v4314
    %v4367 = vpack.c.bf16 %v4317, %v4316
    %v4368 = vpack.c.bf16 %v4319, %v4318
    %v4369 = vpack.c.bf16 %v4321, %v4320
    %v4370 = vpack.c.bf16 %v4323, %v4322
    %v4371 = vpack.c.bf16 %v4325, %v4324
    %v4372 = vpack.c.bf16 %v4327, %v4326
    %v4373 = vpack.c.bf16 %v4329, %v4328
    %v4374 = vpack.c.bf16 %v4331, %v4330
    %v4375 = vpack.c.bf16 %v4333, %v4332
    %v4376 = vpack.c.bf16 %v4335, %v4334
    %v4377 = vpack.c.bf16 %v4337, %v4336
    %v4378 = vpack.c.bf16 %v4339, %v4338
    %v4379 = vpack.c.bf16 %v4341, %v4340
    %v4380 = vpack.c.bf16 %v4343, %v4342
    %v4381 = vpack.c.bf16 %v4345, %v4344
    %v4382 = vpack.c.bf16 %v4347, %v4346
    %v4383 = vpack.c.bf16 %v4349, %v4348
    %v4384 = vpack.c.bf16 %v4351, %v4350
    %v4385 = vpack.c.bf16 %v4353, %v4352
    %s4386 = scalar_lea.vmem [#allocation6], 512
    %v4387 = vld [vmem:[%s4386] sm:$0xf]
    %v4388 = vld [vmem:[%s4386 + $0x4] sm:$0xf]
    %v4389 = vld [vmem:[%s4386 + $0x8] sm:$0xf]
    %v4390 = vld [vmem:[%s4386 + $0xc] sm:$0xf]
    %v4391 = vld [vmem:[%s4386 + $0x10] sm:$0xf]
    %v4392 = vld [vmem:[%s4386 + $0x14] sm:$0xf]
    %v4393 = vld [vmem:[%s4386 + $0x18] sm:$0xf]
    %v4394 = vld [vmem:[%s4386 + $0x1c] sm:$0xf]
    %v4395 = vld [vmem:[%s4386 + $0x20] sm:$0xf]
    %v4396 = vld [vmem:[%s4386 + $0x24] sm:$0xf]
    %v4397 = vld [vmem:[%s4386 + $0x28] sm:$0xf]
    %v4398 = vld [vmem:[%s4386 + $0x2c] sm:$0xf]
    %v4399 = vld [vmem:[%s4386 + $0x30] sm:$0xf]
    %v4400 = vld [vmem:[%s4386 + $0x34] sm:$0xf]
    %v4401 = vld [vmem:[%s4386 + $0x38] sm:$0xf]
    %v4402 = vld [vmem:[%s4386 + $0x3c] sm:$0xf]
    %v4419 = vunpack.c.l.b16 %v4387
    %v4420 = vunpack.c.l.b16 %v4388
    %v4421 = vunpack.c.l.b16 %v4389
    %v4422 = vunpack.c.l.b16 %v4390
    %v4423 = vunpack.c.l.b16 %v4391
    %v4424 = vunpack.c.l.b16 %v4392
    %v4425 = vunpack.c.l.b16 %v4393
    %v4426 = vunpack.c.l.b16 %v4394
    %v4427 = vunpack.c.l.b16 %v4395
    %v4428 = vunpack.c.l.b16 %v4396
    %v4429 = vunpack.c.l.b16 %v4397
    %v4430 = vunpack.c.l.b16 %v4398
    %v4431 = vunpack.c.l.b16 %v4399
    %v4432 = vunpack.c.l.b16 %v4400
    %v4433 = vunpack.c.l.b16 %v4401
    %v4434 = vunpack.c.l.b16 %v4402
    %v4435 = vpack.c.b16 %v4420, %v4419
    %v4436 = vpack.c.b16 %v4422, %v4421
    %v4437 = vpack.c.b16 %v4424, %v4423
    %v4438 = vpack.c.b16 %v4426, %v4425
    %v4439 = vpack.c.b16 %v4428, %v4427
    %v4440 = vpack.c.b16 %v4430, %v4429
    %v4441 = vpack.c.b16 %v4432, %v4431
    %v4442 = vpack.c.b16 %v4434, %v4433
    %4451 = vmatprep.subr.bf16.mxu0 0
    %4452 = vmatpush1.bf16.msra.mxu0 %v4442
    %4453 = vmatprep.subr.bf16.mxu0 0
    %4454 = vmatpush1.bf16.msra.mxu0 %v4441
    %4455 = vmatprep.subr.bf16.mxu0 0
    %4456 = vmatpush1.bf16.msra.mxu0 %v4440
    %4457 = vmatprep.subr.bf16.mxu0 0
    %4458 = vmatpush1.bf16.msra.mxu0 %v4439
    %4459 = vmatprep.subr.bf16.mxu0 0
    %4460 = vmatpush1.bf16.msra.mxu0 %v4438
    %4461 = vmatprep.subr.bf16.mxu0 0
    %4462 = vmatpush1.bf16.msra.mxu0 %v4437
    %4463 = vmatprep.subr.bf16.mxu0 0
    %4464 = vmatpush1.bf16.msra.mxu0 %v4436
    %4465 = vmatprep.subr.bf16.mxu0 0
    %4466 = vmatpush1.bf16.msra.mxu0 %v4435
    %4467 = vmatprep.subr.bf16.mxu0 0
    %4468 = vmatpush2.bf16.msra.mxu0 0
    %4469 = vmatprep.subr.bf16.mxu0 0
    %4470 = vmatpush2.bf16.msra.mxu0 0
    %4471 = vmatprep.subr.bf16.mxu0 0
    %4472 = vmatpush2.bf16.msra.mxu0 0
    %4473 = vmatprep.subr.bf16.mxu0 0
    %4474 = vmatpush2.bf16.msra.mxu0 0
    %4475 = vmatprep.subr.bf16.mxu0 0
    %4476 = vmatpush2.bf16.msra.mxu0 0
    %4477 = vmatprep.subr.bf16.mxu0 0
    %4478 = vmatpush2.bf16.msra.mxu0 0
    %4479 = vmatprep.subr.bf16.mxu0 0
    %4480 = vmatpush2.bf16.msra.mxu0 0
    %4481 = vmatprep.subr.bf16.mxu0 0
    %4482 = vmatpush2.bf16.msra.mxu0 0
    %4483 = vmatprep.mubr.bf16.mxu0 0
    %4484 = vmatmul.mubr.bf16.gmra.mxu0 %v4354
    %v4485 = vpop.f32.mrf.mxu0
    %v4486 = vadd.f32 0.0, %v4485
    %v4487 = vpop.f32.mrf.mxu0
    %v4488 = vpop.f32.mrf.mxu0
    %v4489 = vadd.f32 0.0, %v4488
    %v4490 = vpop.f32.mrf.mxu0
    %4491 = vmatprep.mubr.bf16.mxu0 0
    %4492 = vmatmul.mubr.bf16.gmra.mxu0 %v4355
    %v4493 = vpop.f32.mrf.mxu0
    %v4494 = vadd.f32 0.0, %v4493
    %v4495 = vpop.f32.mrf.mxu0
    %v4496 = vpop.f32.mrf.mxu0
    %v4497 = vadd.f32 0.0, %v4496
    %v4498 = vpop.f32.mrf.mxu0
    %4499 = vmatprep.mubr.bf16.mxu0 0
    %4500 = vmatmul.mubr.bf16.gmra.mxu0 %v4356
    %v4501 = vpop.f32.mrf.mxu0
    %v4502 = vadd.f32 0.0, %v4501
    %v4503 = vpop.f32.mrf.mxu0
    %v4504 = vpop.f32.mrf.mxu0
    %v4505 = vadd.f32 0.0, %v4504
    %v4506 = vpop.f32.mrf.mxu0
    %4507 = vmatprep.mubr.bf16.mxu0 0
    %4508 = vmatmul.mubr.bf16.gmra.mxu0 %v4357
    %v4509 = vpop.f32.mrf.mxu0
    %v4510 = vadd.f32 0.0, %v4509
    %v4511 = vpop.f32.mrf.mxu0
    %v4512 = vpop.f32.mrf.mxu0
    %v4513 = vadd.f32 0.0, %v4512
    %v4514 = vpop.f32.mrf.mxu0
    %4515 = vmatprep.mubr.bf16.mxu0 0
    %4516 = vmatmul.mubr.bf16.gmra.mxu0 %v4358
    %v4517 = vpop.f32.mrf.mxu0
    %v4518 = vadd.f32 0.0, %v4517
    %v4519 = vpop.f32.mrf.mxu0
    %v4520 = vpop.f32.mrf.mxu0
    %v4521 = vadd.f32 0.0, %v4520
    %v4522 = vpop.f32.mrf.mxu0
    %4523 = vmatprep.mubr.bf16.mxu0 0
    %4524 = vmatmul.mubr.bf16.gmra.mxu0 %v4359
    %v4525 = vpop.f32.mrf.mxu0
    %v4526 = vadd.f32 0.0, %v4525
    %v4527 = vpop.f32.mrf.mxu0
    %v4528 = vpop.f32.mrf.mxu0
    %v4529 = vadd.f32 0.0, %v4528
    %v4530 = vpop.f32.mrf.mxu0
    %4531 = vmatprep.mubr.bf16.mxu0 0
    %4532 = vmatmul.mubr.bf16.gmra.mxu0 %v4360
    %v4533 = vpop.f32.mrf.mxu0
    %v4534 = vadd.f32 0.0, %v4533
    %v4535 = vpop.f32.mrf.mxu0
    %v4536 = vpop.f32.mrf.mxu0
    %v4537 = vadd.f32 0.0, %v4536
    %v4538 = vpop.f32.mrf.mxu0
    %4539 = vmatprep.mubr.bf16.mxu0 0
    %4540 = vmatmul.mubr.bf16.gmra.mxu0 %v4361
    %v4541 = vpop.f32.mrf.mxu0
    %v4542 = vadd.f32 0.0, %v4541
    %v4543 = vpop.f32.mrf.mxu0
    %v4544 = vpop.f32.mrf.mxu0
    %v4545 = vadd.f32 0.0, %v4544
    %v4546 = vpop.f32.mrf.mxu0
    %4547 = vmatprep.mubr.bf16.mxu0 0
    %4548 = vmatmul.mubr.bf16.gmra.mxu0 %v4362
    %v4549 = vpop.f32.mrf.mxu0
    %v4550 = vadd.f32 0.0, %v4549
    %v4551 = vpop.f32.mrf.mxu0
    %v4552 = vpop.f32.mrf.mxu0
    %v4553 = vadd.f32 0.0, %v4552
    %v4554 = vpop.f32.mrf.mxu0
    %4555 = vmatprep.mubr.bf16.mxu0 0
    %4556 = vmatmul.mubr.bf16.gmra.mxu0 %v4363
    %v4557 = vpop.f32.mrf.mxu0
    %v4558 = vadd.f32 0.0, %v4557
    %v4559 = vpop.f32.mrf.mxu0
    %v4560 = vpop.f32.mrf.mxu0
    %v4561 = vadd.f32 0.0, %v4560
    %v4562 = vpop.f32.mrf.mxu0
    %4563 = vmatprep.mubr.bf16.mxu0 0
    %4564 = vmatmul.mubr.bf16.gmra.mxu0 %v4364
    %v4565 = vpop.f32.mrf.mxu0
    %v4566 = vadd.f32 0.0, %v4565
    %v4567 = vpop.f32.mrf.mxu0
    %v4568 = vpop.f32.mrf.mxu0
    %v4569 = vadd.f32 0.0, %v4568
    %v4570 = vpop.f32.mrf.mxu0
    %4571 = vmatprep.mubr.bf16.mxu0 0
    %4572 = vmatmul.mubr.bf16.gmra.mxu0 %v4365
    %v4573 = vpop.f32.mrf.mxu0
    %v4574 = vadd.f32 0.0, %v4573
    %v4575 = vpop.f32.mrf.mxu0
    %v4576 = vpop.f32.mrf.mxu0
    %v4577 = vadd.f32 0.0, %v4576
    %v4578 = vpop.f32.mrf.mxu0
    %4579 = vmatprep.mubr.bf16.mxu0 0
    %4580 = vmatmul.mubr.bf16.gmra.mxu0 %v4366
    %v4581 = vpop.f32.mrf.mxu0
    %v4582 = vadd.f32 0.0, %v4581
    %v4583 = vpop.f32.mrf.mxu0
    %v4584 = vpop.f32.mrf.mxu0
    %v4585 = vadd.f32 0.0, %v4584
    %v4586 = vpop.f32.mrf.mxu0
    %4587 = vmatprep.mubr.bf16.mxu0 0
    %4588 = vmatmul.mubr.bf16.gmra.mxu0 %v4367
    %v4589 = vpop.f32.mrf.mxu0
    %v4590 = vadd.f32 0.0, %v4589
    %v4591 = vpop.f32.mrf.mxu0
    %v4592 = vpop.f32.mrf.mxu0
    %v4593 = vadd.f32 0.0, %v4592
    %v4594 = vpop.f32.mrf.mxu0
    %4595 = vmatprep.mubr.bf16.mxu0 0
    %4596 = vmatmul.mubr.bf16.gmra.mxu0 %v4368
    %v4597 = vpop.f32.mrf.mxu0
    %v4598 = vadd.f32 0.0, %v4597
    %v4599 = vpop.f32.mrf.mxu0
    %v4600 = vpop.f32.mrf.mxu0
    %v4601 = vadd.f32 0.0, %v4600
    %v4602 = vpop.f32.mrf.mxu0
    %4603 = vmatprep.mubr.bf16.mxu0 0
    %4604 = vmatmul.mubr.bf16.gmra.mxu0 %v4369
    %v4605 = vpop.f32.mrf.mxu0
    %v4606 = vadd.f32 0.0, %v4605
    %v4607 = vpop.f32.mrf.mxu0
    %v4608 = vpop.f32.mrf.mxu0
    %v4609 = vadd.f32 0.0, %v4608
    %v4610 = vpop.f32.mrf.mxu0
    %4611 = vmatprep.mubr.bf16.mxu0 0
    %4612 = vmatmul.mubr.bf16.gmra.mxu0 %v4370
    %v4613 = vpop.f32.mrf.mxu0
    %v4614 = vadd.f32 0.0, %v4613
    %v4615 = vpop.f32.mrf.mxu0
    %v4616 = vpop.f32.mrf.mxu0
    %v4617 = vadd.f32 0.0, %v4616
    %v4618 = vpop.f32.mrf.mxu0
    %4619 = vmatprep.mubr.bf16.mxu0 0
    %4620 = vmatmul.mubr.bf16.gmra.mxu0 %v4371
    %v4621 = vpop.f32.mrf.mxu0
    %v4622 = vadd.f32 0.0, %v4621
    %v4623 = vpop.f32.mrf.mxu0
    %v4624 = vpop.f32.mrf.mxu0
    %v4625 = vadd.f32 0.0, %v4624
    %v4626 = vpop.f32.mrf.mxu0
    %4627 = vmatprep.mubr.bf16.mxu0 0
    %4628 = vmatmul.mubr.bf16.gmra.mxu0 %v4372
    %v4629 = vpop.f32.mrf.mxu0
    %v4630 = vadd.f32 0.0, %v4629
    %v4631 = vpop.f32.mrf.mxu0
    %v4632 = vpop.f32.mrf.mxu0
    %v4633 = vadd.f32 0.0, %v4632
    %v4634 = vpop.f32.mrf.mxu0
    %4635 = vmatprep.mubr.bf16.mxu0 0
    %4636 = vmatmul.mubr.bf16.gmra.mxu0 %v4373
    %v4637 = vpop.f32.mrf.mxu0
    %v4638 = vadd.f32 0.0, %v4637
    %v4639 = vpop.f32.mrf.mxu0
    %v4640 = vpop.f32.mrf.mxu0
    %v4641 = vadd.f32 0.0, %v4640
    %v4642 = vpop.f32.mrf.mxu0
    %4643 = vmatprep.mubr.bf16.mxu0 0
    %4644 = vmatmul.mubr.bf16.gmra.mxu0 %v4374
    %v4645 = vpop.f32.mrf.mxu0
    %v4646 = vadd.f32 0.0, %v4645
    %v4647 = vpop.f32.mrf.mxu0
    %v4648 = vpop.f32.mrf.mxu0
    %v4649 = vadd.f32 0.0, %v4648
    %v4650 = vpop.f32.mrf.mxu0
    %4651 = vmatprep.mubr.bf16.mxu0 0
    %4652 = vmatmul.mubr.bf16.gmra.mxu0 %v4375
    %v4653 = vpop.f32.mrf.mxu0
    %v4654 = vadd.f32 0.0, %v4653
    %v4655 = vpop.f32.mrf.mxu0
    %v4656 = vpop.f32.mrf.mxu0
    %v4657 = vadd.f32 0.0, %v4656
    %v4658 = vpop.f32.mrf.mxu0
    %4659 = vmatprep.mubr.bf16.mxu0 0
    %4660 = vmatmul.mubr.bf16.gmra.mxu0 %v4376
    %v4661 = vpop.f32.mrf.mxu0
    %v4662 = vadd.f32 0.0, %v4661
    %v4663 = vpop.f32.mrf.mxu0
    %v4664 = vpop.f32.mrf.mxu0
    %v4665 = vadd.f32 0.0, %v4664
    %v4666 = vpop.f32.mrf.mxu0
    %4667 = vmatprep.mubr.bf16.mxu0 0
    %4668 = vmatmul.mubr.bf16.gmra.mxu0 %v4377
    %v4669 = vpop.f32.mrf.mxu0
    %v4670 = vadd.f32 0.0, %v4669
    %v4671 = vpop.f32.mrf.mxu0
    %v4672 = vpop.f32.mrf.mxu0
    %v4673 = vadd.f32 0.0, %v4672
    %v4674 = vpop.f32.mrf.mxu0
    %4675 = vmatprep.mubr.bf16.mxu0 0
    %4676 = vmatmul.mubr.bf16.gmra.mxu0 %v4378
    %v4677 = vpop.f32.mrf.mxu0
    %v4678 = vadd.f32 0.0, %v4677
    %v4679 = vpop.f32.mrf.mxu0
    %v4680 = vpop.f32.mrf.mxu0
    %v4681 = vadd.f32 0.0, %v4680
    %v4682 = vpop.f32.mrf.mxu0
    %4683 = vmatprep.mubr.bf16.mxu0 0
    %4684 = vmatmul.mubr.bf16.gmra.mxu0 %v4379
    %v4685 = vpop.f32.mrf.mxu0
    %v4686 = vadd.f32 0.0, %v4685
    %v4687 = vpop.f32.mrf.mxu0
    %v4688 = vpop.f32.mrf.mxu0
    %v4689 = vadd.f32 0.0, %v4688
    %v4690 = vpop.f32.mrf.mxu0
    %4691 = vmatprep.mubr.bf16.mxu0 0
    %4692 = vmatmul.mubr.bf16.gmra.mxu0 %v4380
    %v4693 = vpop.f32.mrf.mxu0
    %v4694 = vadd.f32 0.0, %v4693
    %v4695 = vpop.f32.mrf.mxu0
    %v4696 = vpop.f32.mrf.mxu0
    %v4697 = vadd.f32 0.0, %v4696
    %v4698 = vpop.f32.mrf.mxu0
    %4699 = vmatprep.mubr.bf16.mxu0 0
    %4700 = vmatmul.mubr.bf16.gmra.mxu0 %v4381
    %v4701 = vpop.f32.mrf.mxu0
    %v4702 = vadd.f32 0.0, %v4701
    %v4703 = vpop.f32.mrf.mxu0
    %v4704 = vpop.f32.mrf.mxu0
    %v4705 = vadd.f32 0.0, %v4704
    %v4706 = vpop.f32.mrf.mxu0
    %4707 = vmatprep.mubr.bf16.mxu0 0
    %4708 = vmatmul.mubr.bf16.gmra.mxu0 %v4382
    %v4709 = vpop.f32.mrf.mxu0
    %v4710 = vadd.f32 0.0, %v4709
    %v4711 = vpop.f32.mrf.mxu0
    %v4712 = vpop.f32.mrf.mxu0
    %v4713 = vadd.f32 0.0, %v4712
    %v4714 = vpop.f32.mrf.mxu0
    %4715 = vmatprep.mubr.bf16.mxu0 0
    %4716 = vmatmul.mubr.bf16.gmra.mxu0 %v4383
    %v4717 = vpop.f32.mrf.mxu0
    %v4718 = vadd.f32 0.0, %v4717
    %v4719 = vpop.f32.mrf.mxu0
    %v4720 = vpop.f32.mrf.mxu0
    %v4721 = vadd.f32 0.0, %v4720
    %v4722 = vpop.f32.mrf.mxu0
    %4723 = vmatprep.mubr.bf16.mxu0 0
    %4724 = vmatmul.mubr.bf16.gmra.mxu0 %v4384
    %v4725 = vpop.f32.mrf.mxu0
    %v4726 = vadd.f32 0.0, %v4725
    %v4727 = vpop.f32.mrf.mxu0
    %v4728 = vpop.f32.mrf.mxu0
    %v4729 = vadd.f32 0.0, %v4728
    %v4730 = vpop.f32.mrf.mxu0
    %4731 = vmatprep.mubr.bf16.mxu0 0
    %4732 = vmatmul.mubr.bf16.gmra.mxu0 %v4385
    %v4733 = vpop.f32.mrf.mxu0
    %v4734 = vadd.f32 0.0, %v4733
    %v4735 = vpop.f32.mrf.mxu0
    %v4736 = vpop.f32.mrf.mxu0
    %v4737 = vadd.f32 0.0, %v4736
    %v4738 = vpop.f32.mrf.mxu0
    %4739 = vdwg.mxu0
    %v4740 = vadd.f32 %v4226, %v4486
    %v4741 = vadd.f32 %v4227, %v4489
    %v4742 = vadd.f32 %v4228, %v4494
    %v4743 = vadd.f32 %v4229, %v4497
    %v4744 = vadd.f32 %v4230, %v4502
    %v4745 = vadd.f32 %v4231, %v4505
    %v4746 = vadd.f32 %v4232, %v4510
    %v4747 = vadd.f32 %v4233, %v4513
    %v4748 = vadd.f32 %v4234, %v4518
    %v4749 = vadd.f32 %v4235, %v4521
    %v4750 = vadd.f32 %v4236, %v4526
    %v4751 = vadd.f32 %v4237, %v4529
    %v4752 = vadd.f32 %v4238, %v4534
    %v4753 = vadd.f32 %v4239, %v4537
    %v4754 = vadd.f32 %v4240, %v4542
    %v4755 = vadd.f32 %v4241, %v4545
    %v4756 = vadd.f32 %v4242, %v4550
    %v4757 = vadd.f32 %v4243, %v4553
    %v4758 = vadd.f32 %v4244, %v4558
    %v4759 = vadd.f32 %v4245, %v4561
    %v4760 = vadd.f32 %v4246, %v4566
    %v4761 = vadd.f32 %v4247, %v4569
    %v4762 = vadd.f32 %v4248, %v4574
    %v4763 = vadd.f32 %v4249, %v4577
    %v4764 = vadd.f32 %v4250, %v4582
    %v4765 = vadd.f32 %v4251, %v4585
    %v4766 = vadd.f32 %v4252, %v4590
    %v4767 = vadd.f32 %v4253, %v4593
    %v4768 = vadd.f32 %v4254, %v4598
    %v4769 = vadd.f32 %v4255, %v4601
    %v4770 = vadd.f32 %v4256, %v4606
    %v4771 = vadd.f32 %v4257, %v4609
    %v4772 = vadd.f32 %v4258, %v4614
    %v4773 = vadd.f32 %v4259, %v4617
    %v4774 = vadd.f32 %v4260, %v4622
    %v4775 = vadd.f32 %v4261, %v4625
    %v4776 = vadd.f32 %v4262, %v4630
    %v4777 = vadd.f32 %v4263, %v4633
    %v4778 = vadd.f32 %v4264, %v4638
    %v4779 = vadd.f32 %v4265, %v4641
    %v4780 = vadd.f32 %v4266, %v4646
    %v4781 = vadd.f32 %v4267, %v4649
    %v4782 = vadd.f32 %v4268, %v4654
    %v4783 = vadd.f32 %v4269, %v4657
    %v4784 = vadd.f32 %v4270, %v4662
    %v4785 = vadd.f32 %v4271, %v4665
    %v4786 = vadd.f32 %v4272, %v4670
    %v4787 = vadd.f32 %v4273, %v4673
    %v4788 = vadd.f32 %v4274, %v4678
    %v4789 = vadd.f32 %v4275, %v4681
    %v4790 = vadd.f32 %v4276, %v4686
    %v4791 = vadd.f32 %v4277, %v4689
    %v4792 = vadd.f32 %v4278, %v4694
    %v4793 = vadd.f32 %v4279, %v4697
    %v4794 = vadd.f32 %v4280, %v4702
    %v4795 = vadd.f32 %v4281, %v4705
    %v4796 = vadd.f32 %v4282, %v4710
    %v4797 = vadd.f32 %v4283, %v4713
    %v4798 = vadd.f32 %v4284, %v4718
    %v4799 = vadd.f32 %v4285, %v4721
    %v4800 = vadd.f32 %v4286, %v4726
    %v4801 = vadd.f32 %v4287, %v4729
    %v4802 = vadd.f32 %v4288, %v4734
    %v4803 = vadd.f32 %v4289, %v4737
    %v4804 = vadd.f32 %v4740, %v4741
    %v4805 = vadd.f32 %v4804, %v4742
    %v4806 = vadd.f32 %v4805, %v4743
    %v4807 = vadd.f32 %v4806, %v4744
    %v4808 = vadd.f32 %v4807, %v4745
    %v4809 = vadd.f32 %v4808, %v4746
    %v4810 = vadd.f32 %v4809, %v4747
    %v4811 = vadd.f32 %v4810, %v4748
    %v4812 = vadd.f32 %v4811, %v4749
    %v4813 = vadd.f32 %v4812, %v4750
    %v4814 = vadd.f32 %v4813, %v4751
    %v4815 = vadd.f32 %v4814, %v4752
    %v4816 = vadd.f32 %v4815, %v4753
    %v4817 = vadd.f32 %v4816, %v4754
    %v4818 = vadd.f32 %v4817, %v4755
    %v4819 = vadd.f32 %v4818, %v4756
    %v4820 = vadd.f32 %v4819, %v4757
    %v4821 = vadd.f32 %v4820, %v4758
    %v4822 = vadd.f32 %v4821, %v4759
    %v4823 = vadd.f32 %v4822, %v4760
    %v4824 = vadd.f32 %v4823, %v4761
    %v4825 = vadd.f32 %v4824, %v4762
    %v4826 = vadd.f32 %v4825, %v4763
    %v4827 = vadd.f32 %v4826, %v4764
    %v4828 = vadd.f32 %v4827, %v4765
    %v4829 = vadd.f32 %v4828, %v4766
    %v4830 = vadd.f32 %v4829, %v4767
    %v4831 = vadd.f32 %v4830, %v4768
    %v4832 = vadd.f32 %v4831, %v4769
    %v4833 = vadd.f32 %v4832, %v4770
    %v4834 = vadd.f32 %v4833, %v4771
    %v4835 = vadd.f32 %v4834, %v4772
    %v4836 = vadd.f32 %v4835, %v4773
    %v4837 = vadd.f32 %v4836, %v4774
    %v4838 = vadd.f32 %v4837, %v4775
    %v4839 = vadd.f32 %v4838, %v4776
    %v4840 = vadd.f32 %v4839, %v4777
    %v4841 = vadd.f32 %v4840, %v4778
    %v4842 = vadd.f32 %v4841, %v4779
    %v4843 = vadd.f32 %v4842, %v4780
    %v4844 = vadd.f32 %v4843, %v4781
    %v4845 = vadd.f32 %v4844, %v4782
    %v4846 = vadd.f32 %v4845, %v4783
    %v4847 = vadd.f32 %v4846, %v4784
    %v4848 = vadd.f32 %v4847, %v4785
    %v4849 = vadd.f32 %v4848, %v4786
    %v4850 = vadd.f32 %v4849, %v4787
    %v4851 = vadd.f32 %v4850, %v4788
    %v4852 = vadd.f32 %v4851, %v4789
    %v4853 = vadd.f32 %v4852, %v4790
    %v4854 = vadd.f32 %v4853, %v4791
    %v4855 = vadd.f32 %v4854, %v4792
    %v4856 = vadd.f32 %v4855, %v4793
    %v4857 = vadd.f32 %v4856, %v4794
    %v4858 = vadd.f32 %v4857, %v4795
    %v4859 = vadd.f32 %v4858, %v4796
    %v4860 = vadd.f32 %v4859, %v4797
    %v4861 = vadd.f32 %v4860, %v4798
    %v4862 = vadd.f32 %v4861, %v4799
    %v4863 = vadd.f32 %v4862, %v4800
    %v4864 = vadd.f32 %v4863, %v4801
    %v4865 = vadd.f32 %v4864, %v4802
    %v4866 = vadd.f32 %v4865, %v4803
    %v4867 = vrot.slane %v4866, 4
    %v4868 = vadd.f32 %v4866, %v4867
    %v4869 = vrot.slane %v4868, 2
    %v4870 = vadd.f32 %v4868, %v4869
    %v4871 = vrot.slane %v4870, 1
    %v4872 = vadd.f32 %v4870, %v4871
    %v4873 = vrcp.pop 512.0
    %v4874 = vmul.f32 %v4872, %v4873
    %v4875 = vsub.f32 %v4740, %v4874
    %v4876 = vsub.f32 %v4741, %v4874
    %v4877 = vsub.f32 %v4742, %v4874
    %v4878 = vsub.f32 %v4743, %v4874
    %v4879 = vsub.f32 %v4744, %v4874
    %v4880 = vsub.f32 %v4745, %v4874
    %v4881 = vsub.f32 %v4746, %v4874
    %v4882 = vsub.f32 %v4747, %v4874
    %v4883 = vsub.f32 %v4748, %v4874
    %v4884 = vsub.f32 %v4749, %v4874
    %v4885 = vsub.f32 %v4750, %v4874
    %v4886 = vsub.f32 %v4751, %v4874
    %v4887 = vsub.f32 %v4752, %v4874
    %v4888 = vsub.f32 %v4753, %v4874
    %v4889 = vsub.f32 %v4754, %v4874
    %v4890 = vsub.f32 %v4755, %v4874
    %v4891 = vsub.f32 %v4756, %v4874
    %v4892 = vsub.f32 %v4757, %v4874
    %v4893 = vsub.f32 %v4758, %v4874
    %v4894 = vsub.f32 %v4759, %v4874
    %v4895 = vsub.f32 %v4760, %v4874
    %v4896 = vsub.f32 %v4761, %v4874
    %v4897 = vsub.f32 %v4762, %v4874
    %v4898 = vsub.f32 %v4763, %v4874
    %v4899 = vsub.f32 %v4764, %v4874
    %v4900 = vsub.f32 %v4765, %v4874
    %v4901 = vsub.f32 %v4766, %v4874
    %v4902 = vsub.f32 %v4767, %v4874
    %v4903 = vsub.f32 %v4768, %v4874
    %v4904 = vsub.f32 %v4769, %v4874
    %v4905 = vsub.f32 %v4770, %v4874
    %v4906 = vsub.f32 %v4771, %v4874
    %v4907 = vsub.f32 %v4772, %v4874
    %v4908 = vsub.f32 %v4773, %v4874
    %v4909 = vsub.f32 %v4774, %v4874
    %v4910 = vsub.f32 %v4775, %v4874
    %v4911 = vsub.f32 %v4776, %v4874
    %v4912 = vsub.f32 %v4777, %v4874
    %v4913 = vsub.f32 %v4778, %v4874
    %v4914 = vsub.f32 %v4779, %v4874
    %v4915 = vsub.f32 %v4780, %v4874
    %v4916 = vsub.f32 %v4781, %v4874
    %v4917 = vsub.f32 %v4782, %v4874
    %v4918 = vsub.f32 %v4783, %v4874
    %v4919 = vsub.f32 %v4784, %v4874
    %v4920 = vsub.f32 %v4785, %v4874
    %v4921 = vsub.f32 %v4786, %v4874
    %v4922 = vsub.f32 %v4787, %v4874
    %v4923 = vsub.f32 %v4788, %v4874
    %v4924 = vsub.f32 %v4789, %v4874
    %v4925 = vsub.f32 %v4790, %v4874
    %v4926 = vsub.f32 %v4791, %v4874
    %v4927 = vsub.f32 %v4792, %v4874
    %v4928 = vsub.f32 %v4793, %v4874
    %v4929 = vsub.f32 %v4794, %v4874
    %v4930 = vsub.f32 %v4795, %v4874
    %v4931 = vsub.f32 %v4796, %v4874
    %v4932 = vsub.f32 %v4797, %v4874
    %v4933 = vsub.f32 %v4798, %v4874
    %v4934 = vsub.f32 %v4799, %v4874
    %v4935 = vsub.f32 %v4800, %v4874
    %v4936 = vsub.f32 %v4801, %v4874
    %v4937 = vsub.f32 %v4802, %v4874
    %v4938 = vsub.f32 %v4803, %v4874
    %v4939 = vmul.f32 %v4875, %v4875
    %v4940 = vmul.f32 %v4876, %v4876
    %v4941 = vmul.f32 %v4877, %v4877
    %v4942 = vmul.f32 %v4878, %v4878
    %v4943 = vmul.f32 %v4879, %v4879
    %v4944 = vmul.f32 %v4880, %v4880
    %v4945 = vmul.f32 %v4881, %v4881
    %v4946 = vmul.f32 %v4882, %v4882
    %v4947 = vmul.f32 %v4883, %v4883
    %v4948 = vmul.f32 %v4884, %v4884
    %v4949 = vmul.f32 %v4885, %v4885
    %v4950 = vmul.f32 %v4886, %v4886
    %v4951 = vmul.f32 %v4887, %v4887
    %v4952 = vmul.f32 %v4888, %v4888
    %v4953 = vmul.f32 %v4889, %v4889
    %v4954 = vmul.f32 %v4890, %v4890
    %v4955 = vmul.f32 %v4891, %v4891
    %v4956 = vmul.f32 %v4892, %v4892
    %v4957 = vmul.f32 %v4893, %v4893
    %v4958 = vmul.f32 %v4894, %v4894
    %v4959 = vmul.f32 %v4895, %v4895
    %v4960 = vmul.f32 %v4896, %v4896
    %v4961 = vmul.f32 %v4897, %v4897
    %v4962 = vmul.f32 %v4898, %v4898
    %v4963 = vmul.f32 %v4899, %v4899
    %v4964 = vmul.f32 %v4900, %v4900
    %v4965 = vmul.f32 %v4901, %v4901
    %v4966 = vmul.f32 %v4902, %v4902
    %v4967 = vmul.f32 %v4903, %v4903
    %v4968 = vmul.f32 %v4904, %v4904
    %v4969 = vmul.f32 %v4905, %v4905
    %v4970 = vmul.f32 %v4906, %v4906
    %v4971 = vmul.f32 %v4907, %v4907
    %v4972 = vmul.f32 %v4908, %v4908
    %v4973 = vmul.f32 %v4909, %v4909
    %v4974 = vmul.f32 %v4910, %v4910
    %v4975 = vmul.f32 %v4911, %v4911
    %v4976 = vmul.f32 %v4912, %v4912
    %v4977 = vmul.f32 %v4913, %v4913
    %v4978 = vmul.f32 %v4914, %v4914
    %v4979 = vmul.f32 %v4915, %v4915
    %v4980 = vmul.f32 %v4916, %v4916
    %v4981 = vmul.f32 %v4917, %v4917
    %v4982 = vmul.f32 %v4918, %v4918
    %v4983 = vmul.f32 %v4919, %v4919
    %v4984 = vmul.f32 %v4920, %v4920
    %v4985 = vmul.f32 %v4921, %v4921
    %v4986 = vmul.f32 %v4922, %v4922
    %v4987 = vmul.f32 %v4923, %v4923
    %v4988 = vmul.f32 %v4924, %v4924
    %v4989 = vmul.f32 %v4925, %v4925
    %v4990 = vmul.f32 %v4926, %v4926
    %v4991 = vmul.f32 %v4927, %v4927
    %v4992 = vmul.f32 %v4928, %v4928
    %v4993 = vmul.f32 %v4929, %v4929
    %v4994 = vmul.f32 %v4930, %v4930
    %v4995 = vmul.f32 %v4931, %v4931
    %v4996 = vmul.f32 %v4932, %v4932
    %v4997 = vmul.f32 %v4933, %v4933
    %v4998 = vmul.f32 %v4934, %v4934
    %v4999 = vmul.f32 %v4935, %v4935
    %v5000 = vmul.f32 %v4936, %v4936
    %v5001 = vmul.f32 %v4937, %v4937
    %v5002 = vmul.f32 %v4938, %v4938
    %v5003 = vadd.f32 %v4939, %v4940
    %v5004 = vadd.f32 %v5003, %v4941
    %v5005 = vadd.f32 %v5004, %v4942
    %v5006 = vadd.f32 %v5005, %v4943
    %v5007 = vadd.f32 %v5006, %v4944
    %v5008 = vadd.f32 %v5007, %v4945
    %v5009 = vadd.f32 %v5008, %v4946
    %v5010 = vadd.f32 %v5009, %v4947
    %v5011 = vadd.f32 %v5010, %v4948
    %v5012 = vadd.f32 %v5011, %v4949
    %v5013 = vadd.f32 %v5012, %v4950
    %v5014 = vadd.f32 %v5013, %v4951
    %v5015 = vadd.f32 %v5014, %v4952
    %v5016 = vadd.f32 %v5015, %v4953
    %v5017 = vadd.f32 %v5016, %v4954
    %v5018 = vadd.f32 %v5017, %v4955
    %v5019 = vadd.f32 %v5018, %v4956
    %v5020 = vadd.f32 %v5019, %v4957
    %v5021 = vadd.f32 %v5020, %v4958
    %v5022 = vadd.f32 %v5021, %v4959
    %v5023 = vadd.f32 %v5022, %v4960
    %v5024 = vadd.f32 %v5023, %v4961
    %v5025 = vadd.f32 %v5024, %v4962
    %v5026 = vadd.f32 %v5025, %v4963
    %v5027 = vadd.f32 %v5026, %v4964
    %v5028 = vadd.f32 %v5027, %v4965
    %v5029 = vadd.f32 %v5028, %v4966
    %v5030 = vadd.f32 %v5029, %v4967
    %v5031 = vadd.f32 %v5030, %v4968
    %v5032 = vadd.f32 %v5031, %v4969
    %v5033 = vadd.f32 %v5032, %v4970
    %v5034 = vadd.f32 %v5033, %v4971
    %v5035 = vadd.f32 %v5034, %v4972
    %v5036 = vadd.f32 %v5035, %v4973
    %v5037 = vadd.f32 %v5036, %v4974
    %v5038 = vadd.f32 %v5037, %v4975
    %v5039 = vadd.f32 %v5038, %v4976
    %v5040 = vadd.f32 %v5039, %v4977
    %v5041 = vadd.f32 %v5040, %v4978
    %v5042 = vadd.f32 %v5041, %v4979
    %v5043 = vadd.f32 %v5042, %v4980
    %v5044 = vadd.f32 %v5043, %v4981
    %v5045 = vadd.f32 %v5044, %v4982
    %v5046 = vadd.f32 %v5045, %v4983
    %v5047 = vadd.f32 %v5046, %v4984
    %v5048 = vadd.f32 %v5047, %v4985
    %v5049 = vadd.f32 %v5048, %v4986
    %v5050 = vadd.f32 %v5049, %v4987
    %v5051 = vadd.f32 %v5050, %v4988
    %v5052 = vadd.f32 %v5051, %v4989
    %v5053 = vadd.f32 %v5052, %v4990
    %v5054 = vadd.f32 %v5053, %v4991
    %v5055 = vadd.f32 %v5054, %v4992
    %v5056 = vadd.f32 %v5055, %v4993
    %v5057 = vadd.f32 %v5056, %v4994
    %v5058 = vadd.f32 %v5057, %v4995
    %v5059 = vadd.f32 %v5058, %v4996
    %v5060 = vadd.f32 %v5059, %v4997
    %v5061 = vadd.f32 %v5060, %v4998
    %v5062 = vadd.f32 %v5061, %v4999
    %v5063 = vadd.f32 %v5062, %v5000
    %v5064 = vadd.f32 %v5063, %v5001
    %v5065 = vadd.f32 %v5064, %v5002
    %v5066 = vrot.slane %v5065, 4
    %v5067 = vadd.f32 %v5065, %v5066
    %v5068 = vrot.slane %v5067, 2
    %v5069 = vadd.f32 %v5067, %v5068
    %v5070 = vrot.slane %v5069, 1
    %v5071 = vadd.f32 %v5069, %v5070
    %v5072 = vmul.f32 %v5071, %v4873
    %v5073 = vadd.f32 %v5072, 1e-05
    %v5074 = vrsqrt.pop %v5073
    %v5075 = vmul.f32 %v4875, %v5074
    %v5076 = vmul.f32 %v4876, %v5074
    %v5077 = vmul.f32 %v4877, %v5074
    %v5078 = vmul.f32 %v4878, %v5074
    %v5079 = vmul.f32 %v4879, %v5074
    %v5080 = vmul.f32 %v4880, %v5074
    %v5081 = vmul.f32 %v4881, %v5074
    %v5082 = vmul.f32 %v4882, %v5074
    %v5083 = vmul.f32 %v4883, %v5074
    %v5084 = vmul.f32 %v4884, %v5074
    %v5085 = vmul.f32 %v4885, %v5074
    %v5086 = vmul.f32 %v4886, %v5074
    %v5087 = vmul.f32 %v4887, %v5074
    %v5088 = vmul.f32 %v4888, %v5074
    %v5089 = vmul.f32 %v4889, %v5074
    %v5090 = vmul.f32 %v4890, %v5074
    %v5091 = vmul.f32 %v4891, %v5074
    %v5092 = vmul.f32 %v4892, %v5074
    %v5093 = vmul.f32 %v4893, %v5074
    %v5094 = vmul.f32 %v4894, %v5074
    %v5095 = vmul.f32 %v4895, %v5074
    %v5096 = vmul.f32 %v4896, %v5074
    %v5097 = vmul.f32 %v4897, %v5074
    %v5098 = vmul.f32 %v4898, %v5074
    %v5099 = vmul.f32 %v4899, %v5074
    %v5100 = vmul.f32 %v4900, %v5074
    %v5101 = vmul.f32 %v4901, %v5074
    %v5102 = vmul.f32 %v4902, %v5074
    %v5103 = vmul.f32 %v4903, %v5074
    %v5104 = vmul.f32 %v4904, %v5074
    %v5105 = vmul.f32 %v4905, %v5074
    %v5106 = vmul.f32 %v4906, %v5074
    %v5107 = vmul.f32 %v4907, %v5074
    %v5108 = vmul.f32 %v4908, %v5074
    %v5109 = vmul.f32 %v4909, %v5074
    %v5110 = vmul.f32 %v4910, %v5074
    %v5111 = vmul.f32 %v4911, %v5074
    %v5112 = vmul.f32 %v4912, %v5074
    %v5113 = vmul.f32 %v4913, %v5074
    %v5114 = vmul.f32 %v4914, %v5074
    %v5115 = vmul.f32 %v4915, %v5074
    %v5116 = vmul.f32 %v4916, %v5074
    %v5117 = vmul.f32 %v4917, %v5074
    %v5118 = vmul.f32 %v4918, %v5074
    %v5119 = vmul.f32 %v4919, %v5074
    %v5120 = vmul.f32 %v4920, %v5074
    %v5121 = vmul.f32 %v4921, %v5074
    %v5122 = vmul.f32 %v4922, %v5074
    %v5123 = vmul.f32 %v4923, %v5074
    %v5124 = vmul.f32 %v4924, %v5074
    %v5125 = vmul.f32 %v4925, %v5074
    %v5126 = vmul.f32 %v4926, %v5074
    %v5127 = vmul.f32 %v4927, %v5074
    %v5128 = vmul.f32 %v4928, %v5074
    %v5129 = vmul.f32 %v4929, %v5074
    %v5130 = vmul.f32 %v4930, %v5074
    %v5131 = vmul.f32 %v4931, %v5074
    %v5132 = vmul.f32 %v4932, %v5074
    %v5133 = vmul.f32 %v4933, %v5074
    %v5134 = vmul.f32 %v4934, %v5074
    %v5135 = vmul.f32 %v4935, %v5074
    %v5136 = vmul.f32 %v4936, %v5074
    %v5137 = vmul.f32 %v4937, %v5074
    %v5138 = vmul.f32 %v4938, %v5074
    %v5139 = vld [vmem:[%s2] sm:$0x1]
    %v5141 = vlaneseq
    %v5142 = vshrl.u32 %v5141, 7
    %v5143 = vsub.s32 0, %v5142
    %v5144 = vrot.slane %v5139, %v5143
    %v5146 = vmul.f32 %v5075, %v5144
    %v5147 = vmul.f32 %v5076, %v5144
    %v5148 = vmul.f32 %v5077, %v5144
    %v5149 = vmul.f32 %v5078, %v5144
    %v5150 = vmul.f32 %v5079, %v5144
    %v5151 = vmul.f32 %v5080, %v5144
    %v5152 = vmul.f32 %v5081, %v5144
    %v5153 = vmul.f32 %v5082, %v5144
    %v5154 = vmul.f32 %v5083, %v5144
    %v5155 = vmul.f32 %v5084, %v5144
    %v5156 = vmul.f32 %v5085, %v5144
    %v5157 = vmul.f32 %v5086, %v5144
    %v5158 = vmul.f32 %v5087, %v5144
    %v5159 = vmul.f32 %v5088, %v5144
    %v5160 = vmul.f32 %v5089, %v5144
    %v5161 = vmul.f32 %v5090, %v5144
    %v5162 = vmul.f32 %v5091, %v5144
    %v5163 = vmul.f32 %v5092, %v5144
    %v5164 = vmul.f32 %v5093, %v5144
    %v5165 = vmul.f32 %v5094, %v5144
    %v5166 = vmul.f32 %v5095, %v5144
    %v5167 = vmul.f32 %v5096, %v5144
    %v5168 = vmul.f32 %v5097, %v5144
    %v5169 = vmul.f32 %v5098, %v5144
    %v5170 = vmul.f32 %v5099, %v5144
    %v5171 = vmul.f32 %v5100, %v5144
    %v5172 = vmul.f32 %v5101, %v5144
    %v5173 = vmul.f32 %v5102, %v5144
    %v5174 = vmul.f32 %v5103, %v5144
    %v5175 = vmul.f32 %v5104, %v5144
    %v5176 = vmul.f32 %v5105, %v5144
    %v5177 = vmul.f32 %v5106, %v5144
    %v5178 = vmul.f32 %v5107, %v5144
    %v5179 = vmul.f32 %v5108, %v5144
    %v5180 = vmul.f32 %v5109, %v5144
    %v5181 = vmul.f32 %v5110, %v5144
    %v5182 = vmul.f32 %v5111, %v5144
    %v5183 = vmul.f32 %v5112, %v5144
    %v5184 = vmul.f32 %v5113, %v5144
    %v5185 = vmul.f32 %v5114, %v5144
    %v5186 = vmul.f32 %v5115, %v5144
    %v5187 = vmul.f32 %v5116, %v5144
    %v5188 = vmul.f32 %v5117, %v5144
    %v5189 = vmul.f32 %v5118, %v5144
    %v5190 = vmul.f32 %v5119, %v5144
    %v5191 = vmul.f32 %v5120, %v5144
    %v5192 = vmul.f32 %v5121, %v5144
    %v5193 = vmul.f32 %v5122, %v5144
    %v5194 = vmul.f32 %v5123, %v5144
    %v5195 = vmul.f32 %v5124, %v5144
    %v5196 = vmul.f32 %v5125, %v5144
    %v5197 = vmul.f32 %v5126, %v5144
    %v5198 = vmul.f32 %v5127, %v5144
    %v5199 = vmul.f32 %v5128, %v5144
    %v5200 = vmul.f32 %v5129, %v5144
    %v5201 = vmul.f32 %v5130, %v5144
    %v5202 = vmul.f32 %v5131, %v5144
    %v5203 = vmul.f32 %v5132, %v5144
    %v5204 = vmul.f32 %v5133, %v5144
    %v5205 = vmul.f32 %v5134, %v5144
    %v5206 = vmul.f32 %v5135, %v5144
    %v5207 = vmul.f32 %v5136, %v5144
    %v5208 = vmul.f32 %v5137, %v5144
    %v5209 = vmul.f32 %v5138, %v5144
    %v5210 = vld [vmem:[%s3] sm:$0x1]
    %v5212 = vlaneseq
    %v5213 = vshrl.u32 %v5212, 7
    %v5214 = vsub.s32 0, %v5213
    %v5215 = vrot.slane %v5210, %v5214
    %v5217 = vadd.f32 %v5146, %v5215
    %v5218 = vadd.f32 %v5147, %v5215
    %v5219 = vadd.f32 %v5148, %v5215
    %v5220 = vadd.f32 %v5149, %v5215
    %v5221 = vadd.f32 %v5150, %v5215
    %v5222 = vadd.f32 %v5151, %v5215
    %v5223 = vadd.f32 %v5152, %v5215
    %v5224 = vadd.f32 %v5153, %v5215
    %v5225 = vadd.f32 %v5154, %v5215
    %v5226 = vadd.f32 %v5155, %v5215
    %v5227 = vadd.f32 %v5156, %v5215
    %v5228 = vadd.f32 %v5157, %v5215
    %v5229 = vadd.f32 %v5158, %v5215
    %v5230 = vadd.f32 %v5159, %v5215
    %v5231 = vadd.f32 %v5160, %v5215
    %v5232 = vadd.f32 %v5161, %v5215
    %v5233 = vadd.f32 %v5162, %v5215
    %v5234 = vadd.f32 %v5163, %v5215
    %v5235 = vadd.f32 %v5164, %v5215
    %v5236 = vadd.f32 %v5165, %v5215
    %v5237 = vadd.f32 %v5166, %v5215
    %v5238 = vadd.f32 %v5167, %v5215
    %v5239 = vadd.f32 %v5168, %v5215
    %v5240 = vadd.f32 %v5169, %v5215
    %v5241 = vadd.f32 %v5170, %v5215
    %v5242 = vadd.f32 %v5171, %v5215
    %v5243 = vadd.f32 %v5172, %v5215
    %v5244 = vadd.f32 %v5173, %v5215
    %v5245 = vadd.f32 %v5174, %v5215
    %v5246 = vadd.f32 %v5175, %v5215
    %v5247 = vadd.f32 %v5176, %v5215
    %v5248 = vadd.f32 %v5177, %v5215
    %v5249 = vadd.f32 %v5178, %v5215
    %v5250 = vadd.f32 %v5179, %v5215
    %v5251 = vadd.f32 %v5180, %v5215
    %v5252 = vadd.f32 %v5181, %v5215
    %v5253 = vadd.f32 %v5182, %v5215
    %v5254 = vadd.f32 %v5183, %v5215
    %v5255 = vadd.f32 %v5184, %v5215
    %v5256 = vadd.f32 %v5185, %v5215
    %v5257 = vadd.f32 %v5186, %v5215
    %v5258 = vadd.f32 %v5187, %v5215
    %v5259 = vadd.f32 %v5188, %v5215
    %v5260 = vadd.f32 %v5189, %v5215
    %v5261 = vadd.f32 %v5190, %v5215
    %v5262 = vadd.f32 %v5191, %v5215
    %v5263 = vadd.f32 %v5192, %v5215
    %v5264 = vadd.f32 %v5193, %v5215
    %v5265 = vadd.f32 %v5194, %v5215
    %v5266 = vadd.f32 %v5195, %v5215
    %v5267 = vadd.f32 %v5196, %v5215
    %v5268 = vadd.f32 %v5197, %v5215
    %v5269 = vadd.f32 %v5198, %v5215
    %v5270 = vadd.f32 %v5199, %v5215
    %v5271 = vadd.f32 %v5200, %v5215
    %v5272 = vadd.f32 %v5201, %v5215
    %v5273 = vadd.f32 %v5202, %v5215
    %v5274 = vadd.f32 %v5203, %v5215
    %v5275 = vadd.f32 %v5204, %v5215
    %v5276 = vadd.f32 %v5205, %v5215
    %v5277 = vadd.f32 %v5206, %v5215
    %v5278 = vadd.f32 %v5207, %v5215
    %v5279 = vadd.f32 %v5208, %v5215
    %v5280 = vadd.f32 %v5209, %v5215
    %v5281 = vmax.f32 %v5217, 0.0
    %v5282 = vmax.f32 %v5218, 0.0
    %v5283 = vmax.f32 %v5219, 0.0
    %v5284 = vmax.f32 %v5220, 0.0
    %v5285 = vmax.f32 %v5221, 0.0
    %v5286 = vmax.f32 %v5222, 0.0
    %v5287 = vmax.f32 %v5223, 0.0
    %v5288 = vmax.f32 %v5224, 0.0
    %v5289 = vmax.f32 %v5225, 0.0
    %v5290 = vmax.f32 %v5226, 0.0
    %v5291 = vmax.f32 %v5227, 0.0
    %v5292 = vmax.f32 %v5228, 0.0
    %v5293 = vmax.f32 %v5229, 0.0
    %v5294 = vmax.f32 %v5230, 0.0
    %v5295 = vmax.f32 %v5231, 0.0
    %v5296 = vmax.f32 %v5232, 0.0
    %v5297 = vmax.f32 %v5233, 0.0
    %v5298 = vmax.f32 %v5234, 0.0
    %v5299 = vmax.f32 %v5235, 0.0
    %v5300 = vmax.f32 %v5236, 0.0
    %v5301 = vmax.f32 %v5237, 0.0
    %v5302 = vmax.f32 %v5238, 0.0
    %v5303 = vmax.f32 %v5239, 0.0
    %v5304 = vmax.f32 %v5240, 0.0
    %v5305 = vmax.f32 %v5241, 0.0
    %v5306 = vmax.f32 %v5242, 0.0
    %v5307 = vmax.f32 %v5243, 0.0
    %v5308 = vmax.f32 %v5244, 0.0
    %v5309 = vmax.f32 %v5245, 0.0
    %v5310 = vmax.f32 %v5246, 0.0
    %v5311 = vmax.f32 %v5247, 0.0
    %v5312 = vmax.f32 %v5248, 0.0
    %v5313 = vmax.f32 %v5249, 0.0
    %v5314 = vmax.f32 %v5250, 0.0
    %v5315 = vmax.f32 %v5251, 0.0
    %v5316 = vmax.f32 %v5252, 0.0
    %v5317 = vmax.f32 %v5253, 0.0
    %v5318 = vmax.f32 %v5254, 0.0
    %v5319 = vmax.f32 %v5255, 0.0
    %v5320 = vmax.f32 %v5256, 0.0
    %v5321 = vmax.f32 %v5257, 0.0
    %v5322 = vmax.f32 %v5258, 0.0
    %v5323 = vmax.f32 %v5259, 0.0
    %v5324 = vmax.f32 %v5260, 0.0
    %v5325 = vmax.f32 %v5261, 0.0
    %v5326 = vmax.f32 %v5262, 0.0
    %v5327 = vmax.f32 %v5263, 0.0
    %v5328 = vmax.f32 %v5264, 0.0
    %v5329 = vmax.f32 %v5265, 0.0
    %v5330 = vmax.f32 %v5266, 0.0
    %v5331 = vmax.f32 %v5267, 0.0
    %v5332 = vmax.f32 %v5268, 0.0
    %v5333 = vmax.f32 %v5269, 0.0
    %v5334 = vmax.f32 %v5270, 0.0
    %v5335 = vmax.f32 %v5271, 0.0
    %v5336 = vmax.f32 %v5272, 0.0
    %v5337 = vmax.f32 %v5273, 0.0
    %v5338 = vmax.f32 %v5274, 0.0
    %v5339 = vmax.f32 %v5275, 0.0
    %v5340 = vmax.f32 %v5276, 0.0
    %v5341 = vmax.f32 %v5277, 0.0
    %v5342 = vmax.f32 %v5278, 0.0
    %v5343 = vmax.f32 %v5279, 0.0
    %v5344 = vmax.f32 %v5280, 0.0
    %5345 = vst [vmem:[%s241 + $0x1] sm:$0xff] %v5281
    %5346 = vst [vmem:[%s241 + $0x9] sm:$0xff] %v5282
    %5347 = vst [vmem:[%s241 + $0x19] sm:$0xff] %v5283
    %5348 = vst [vmem:[%s241 + $0x21] sm:$0xff] %v5284
    %5349 = vst [vmem:[%s241 + $0x31] sm:$0xff] %v5285
    %5350 = vst [vmem:[%s241 + $0x39] sm:$0xff] %v5286
    %5351 = vst [vmem:[%s241 + $0x49] sm:$0xff] %v5287
    %5352 = vst [vmem:[%s241 + $0x51] sm:$0xff] %v5288
    %5353 = vst [vmem:[%s241 + $0x61] sm:$0xff] %v5289
    %5354 = vst [vmem:[%s241 + $0x69] sm:$0xff] %v5290
    %5355 = vst [vmem:[%s241 + $0x79] sm:$0xff] %v5291
    %5356 = vst [vmem:[%s241 + $0x81] sm:$0xff] %v5292
    %5357 = vst [vmem:[%s241 + $0x91] sm:$0xff] %v5293
    %5358 = vst [vmem:[%s241 + $0x99] sm:$0xff] %v5294
    %5359 = vst [vmem:[%s241 + $0xa9] sm:$0xff] %v5295
    %5360 = vst [vmem:[%s241 + $0xb1] sm:$0xff] %v5296
    %5361 = vst [vmem:[%s241 + $0xc1] sm:$0xff] %v5297
    %5362 = vst [vmem:[%s241 + $0xc9] sm:$0xff] %v5298
    %5363 = vst [vmem:[%s241 + $0xd9] sm:$0xff] %v5299
    %5364 = vst [vmem:[%s241 + $0xe1] sm:$0xff] %v5300
    %5365 = vst [vmem:[%s241 + $0xf1] sm:$0xff] %v5301
    %5366 = vst [vmem:[%s241 + $0xf9] sm:$0xff] %v5302
    %5367 = vst [vmem:[%s241 + $0x109] sm:$0xff] %v5303
    %5368 = vst [vmem:[%s241 + $0x111] sm:$0xff] %v5304
    %5369 = vst [vmem:[%s241 + $0x121] sm:$0xff] %v5305
    %5370 = vst [vmem:[%s241 + $0x129] sm:$0xff] %v5306
    %5371 = vst [vmem:[%s241 + $0x139] sm:$0xff] %v5307
    %5372 = vst [vmem:[%s241 + $0x141] sm:$0xff] %v5308
    %5373 = vst [vmem:[%s241 + $0x151] sm:$0xff] %v5309
    %5374 = vst [vmem:[%s241 + $0x159] sm:$0xff] %v5310
    %5375 = vst [vmem:[%s241 + $0x169] sm:$0xff] %v5311
    %5376 = vst [vmem:[%s241 + $0x171] sm:$0xff] %v5312
    %5377 = vst [vmem:[%s241 + $0x1b1] sm:$0xff] %v5313
    %5378 = vst [vmem:[%s241 + $0x1b9] sm:$0xff] %v5314
    %5379 = vst [vmem:[%s241 + $0x1c9] sm:$0xff] %v5315
    %5380 = vst [vmem:[%s241 + $0x1d1] sm:$0xff] %v5316
    %5381 = vst [vmem:[%s241 + $0x1e1] sm:$0xff] %v5317
    %5382 = vst [vmem:[%s241 + $0x1e9] sm:$0xff] %v5318
    %5383 = vst [vmem:[%s241 + $0x1f9] sm:$0xff] %v5319
    %5384 = vst [vmem:[%s241 + $0x201] sm:$0xff] %v5320
    %5385 = vst [vmem:[%s241 + $0x211] sm:$0xff] %v5321
    %5386 = vst [vmem:[%s241 + $0x219] sm:$0xff] %v5322
    %5387 = vst [vmem:[%s241 + $0x229] sm:$0xff] %v5323
    %5388 = vst [vmem:[%s241 + $0x231] sm:$0xff] %v5324
    %5389 = vst [vmem:[%s241 + $0x241] sm:$0xff] %v5325
    %5390 = vst [vmem:[%s241 + $0x249] sm:$0xff] %v5326
    %5391 = vst [vmem:[%s241 + $0x259] sm:$0xff] %v5327
    %5392 = vst [vmem:[%s241 + $0x261] sm:$0xff] %v5328
    %5393 = vst [vmem:[%s241 + $0x271] sm:$0xff] %v5329
    %5394 = vst [vmem:[%s241 + $0x279] sm:$0xff] %v5330
    %5395 = vst [vmem:[%s241 + $0x289] sm:$0xff] %v5331
    %5396 = vst [vmem:[%s241 + $0x291] sm:$0xff] %v5332
    %5397 = vst [vmem:[%s241 + $0x2a1] sm:$0xff] %v5333
    %5398 = vst [vmem:[%s241 + $0x2a9] sm:$0xff] %v5334
    %5399 = vst [vmem:[%s241 + $0x2b9] sm:$0xff] %v5335
    %5400 = vst [vmem:[%s241 + $0x2c1] sm:$0xff] %v5336
    %5401 = vst [vmem:[%s241 + $0x2d1] sm:$0xff] %v5337
    %5402 = vst [vmem:[%s241 + $0x2d9] sm:$0xff] %v5338
    %5403 = vst [vmem:[%s241 + $0x2e9] sm:$0xff] %v5339
    %5404 = vst [vmem:[%s241 + $0x2f1] sm:$0xff] %v5340
    %5405 = vst [vmem:[%s241 + $0x301] sm:$0xff] %v5341
    %5406 = vst [vmem:[%s241 + $0x309] sm:$0xff] %v5342
    %5407 = vst [vmem:[%s241 + $0x319] sm:$0xff] %v5343
    %5408 = vst [vmem:[%s241 + $0x321] sm:$0xff] %v5344
    %v5409 = vld [vmem:[#allocation2] sm:$0xff]
    %v5410 = vld [vmem:[#allocation2 + $0x8] sm:$0xff]
    %v5411 = vld [vmem:[#allocation2 + $0x18] sm:$0xff]
    %v5412 = vld [vmem:[#allocation2 + $0x20] sm:$0xff]
    %v5413 = vld [vmem:[#allocation2 + $0x30] sm:$0xff]
    %v5414 = vld [vmem:[#allocation2 + $0x38] sm:$0xff]
    %v5415 = vld [vmem:[#allocation2 + $0x48] sm:$0xff]
    %v5416 = vld [vmem:[#allocation2 + $0x50] sm:$0xff]
    %v5417 = vld [vmem:[#allocation2 + $0x60] sm:$0xff]
    %v5418 = vld [vmem:[#allocation2 + $0x68] sm:$0xff]
    %v5419 = vld [vmem:[#allocation2 + $0x78] sm:$0xff]
    %v5420 = vld [vmem:[#allocation2 + $0x80] sm:$0xff]
    %v5421 = vld [vmem:[#allocation2 + $0x90] sm:$0xff]
    %v5422 = vld [vmem:[#allocation2 + $0x98] sm:$0xff]
    %v5423 = vld [vmem:[#allocation2 + $0xa8] sm:$0xff]
    %v5424 = vld [vmem:[#allocation2 + $0xb0] sm:$0xff]
    %v5425 = vld [vmem:[#allocation2 + $0xc0] sm:$0xff]
    %v5426 = vld [vmem:[#allocation2 + $0xc8] sm:$0xff]
    %v5427 = vld [vmem:[#allocation2 + $0xd8] sm:$0xff]
    %v5428 = vld [vmem:[#allocation2 + $0xe0] sm:$0xff]
    %v5429 = vld [vmem:[#allocation2 + $0xf0] sm:$0xff]
    %v5430 = vld [vmem:[#allocation2 + $0xf8] sm:$0xff]
    %v5431 = vld [vmem:[#allocation2 + $0x108] sm:$0xff]
    %v5432 = vld [vmem:[#allocation2 + $0x110] sm:$0xff]
    %v5433 = vld [vmem:[#allocation2 + $0x120] sm:$0xff]
    %v5434 = vld [vmem:[#allocation2 + $0x128] sm:$0xff]
    %v5435 = vld [vmem:[#allocation2 + $0x138] sm:$0xff]
    %v5436 = vld [vmem:[#allocation2 + $0x140] sm:$0xff]
    %v5437 = vld [vmem:[#allocation2 + $0x150] sm:$0xff]
    %v5438 = vld [vmem:[#allocation2 + $0x158] sm:$0xff]
    %v5439 = vld [vmem:[#allocation2 + $0x168] sm:$0xff]
    %v5440 = vld [vmem:[#allocation2 + $0x170] sm:$0xff]
    %v5441 = vld [vmem:[#allocation2 + $0x1b0] sm:$0xff]
    %v5442 = vld [vmem:[#allocation2 + $0x1b8] sm:$0xff]
    %v5443 = vld [vmem:[#allocation2 + $0x1c8] sm:$0xff]
    %v5444 = vld [vmem:[#allocation2 + $0x1d0] sm:$0xff]
    %v5445 = vld [vmem:[#allocation2 + $0x1e0] sm:$0xff]
    %v5446 = vld [vmem:[#allocation2 + $0x1e8] sm:$0xff]
    %v5447 = vld [vmem:[#allocation2 + $0x1f8] sm:$0xff]
    %v5448 = vld [vmem:[#allocation2 + $0x200] sm:$0xff]
    %v5449 = vld [vmem:[#allocation2 + $0x210] sm:$0xff]
    %v5450 = vld [vmem:[#allocation2 + $0x218] sm:$0xff]
    %v5451 = vld [vmem:[#allocation2 + $0x228] sm:$0xff]
    %v5452 = vld [vmem:[#allocation2 + $0x230] sm:$0xff]
    %v5453 = vld [vmem:[#allocation2 + $0x240] sm:$0xff]
    %v5454 = vld [vmem:[#allocation2 + $0x248] sm:$0xff]
    %v5455 = vld [vmem:[#allocation2 + $0x258] sm:$0xff]
    %v5456 = vld [vmem:[#allocation2 + $0x260] sm:$0xff]
    %v5457 = vld [vmem:[#allocation2 + $0x270] sm:$0xff]
    %v5458 = vld [vmem:[#allocation2 + $0x278] sm:$0xff]
    %v5459 = vld [vmem:[#allocation2 + $0x288] sm:$0xff]
    %v5460 = vld [vmem:[#allocation2 + $0x290] sm:$0xff]
    %v5461 = vld [vmem:[#allocation2 + $0x2a0] sm:$0xff]
    %v5462 = vld [vmem:[#allocation2 + $0x2a8] sm:$0xff]
    %v5463 = vld [vmem:[#allocation2 + $0x2b8] sm:$0xff]
    %v5464 = vld [vmem:[#allocation2 + $0x2c0] sm:$0xff]
    %v5465 = vld [vmem:[#allocation2 + $0x2d0] sm:$0xff]
    %v5466 = vld [vmem:[#allocation2 + $0x2d8] sm:$0xff]
    %v5467 = vld [vmem:[#allocation2 + $0x2e8] sm:$0xff]
    %v5468 = vld [vmem:[#allocation2 + $0x2f0] sm:$0xff]
    %v5469 = vld [vmem:[#allocation2 + $0x300] sm:$0xff]
    %v5470 = vld [vmem:[#allocation2 + $0x308] sm:$0xff]
    %v5471 = vld [vmem:[#allocation2 + $0x318] sm:$0xff]
    %v5472 = vld [vmem:[#allocation2 + $0x320] sm:$0xff]
    %v5473 = vpack.c.bf16 %v5410, %v5409
    %v5474 = vpack.c.bf16 %v5412, %v5411
    %v5475 = vpack.c.bf16 %v5414, %v5413
    %v5476 = vpack.c.bf16 %v5416, %v5415
    %v5477 = vpack.c.bf16 %v5418, %v5417
    %v5478 = vpack.c.bf16 %v5420, %v5419
    %v5479 = vpack.c.bf16 %v5422, %v5421
    %v5480 = vpack.c.bf16 %v5424, %v5423
    %v5481 = vpack.c.bf16 %v5426, %v5425
    %v5482 = vpack.c.bf16 %v5428, %v5427
    %v5483 = vpack.c.bf16 %v5430, %v5429
    %v5484 = vpack.c.bf16 %v5432, %v5431
    %v5485 = vpack.c.bf16 %v5434, %v5433
    %v5486 = vpack.c.bf16 %v5436, %v5435
    %v5487 = vpack.c.bf16 %v5438, %v5437
    %v5488 = vpack.c.bf16 %v5440, %v5439
    %v5489 = vpack.c.bf16 %v5442, %v5441
    %v5490 = vpack.c.bf16 %v5444, %v5443
    %v5491 = vpack.c.bf16 %v5446, %v5445
    %v5492 = vpack.c.bf16 %v5448, %v5447
    %v5493 = vpack.c.bf16 %v5450, %v5449
    %v5494 = vpack.c.bf16 %v5452, %v5451
    %v5495 = vpack.c.bf16 %v5454, %v5453
    %v5496 = vpack.c.bf16 %v5456, %v5455
    %v5497 = vpack.c.bf16 %v5458, %v5457
    %v5498 = vpack.c.bf16 %v5460, %v5459
    %v5499 = vpack.c.bf16 %v5462, %v5461
    %v5500 = vpack.c.bf16 %v5464, %v5463
    %v5501 = vpack.c.bf16 %v5466, %v5465
    %v5502 = vpack.c.bf16 %v5468, %v5467
    %v5503 = vpack.c.bf16 %v5470, %v5469
    %v5504 = vpack.c.bf16 %v5472, %v5471
    %v5505 = vld [vmem:[#allocation8] sm:$0xf]
    %v5506 = vld [vmem:[#allocation8 + $0x4] sm:$0xf]
    %v5507 = vld [vmem:[#allocation8 + $0x8] sm:$0xf]
    %v5508 = vld [vmem:[#allocation8 + $0xc] sm:$0xf]
    %v5509 = vld [vmem:[#allocation8 + $0x10] sm:$0xf]
    %v5510 = vld [vmem:[#allocation8 + $0x14] sm:$0xf]
    %v5511 = vld [vmem:[#allocation8 + $0x18] sm:$0xf]
    %v5512 = vld [vmem:[#allocation8 + $0x1c] sm:$0xf]
    %v5513 = vld [vmem:[#allocation8 + $0x20] sm:$0xf]
    %v5514 = vld [vmem:[#allocation8 + $0x24] sm:$0xf]
    %v5515 = vld [vmem:[#allocation8 + $0x28] sm:$0xf]
    %v5516 = vld [vmem:[#allocation8 + $0x2c] sm:$0xf]
    %v5517 = vld [vmem:[#allocation8 + $0x30] sm:$0xf]
    %v5518 = vld [vmem:[#allocation8 + $0x34] sm:$0xf]
    %v5519 = vld [vmem:[#allocation8 + $0x38] sm:$0xf]
    %v5520 = vld [vmem:[#allocation8 + $0x3c] sm:$0xf]
    %v5521 = vld [vmem:[#allocation2 + $0x1] sm:$0xff]
    %v5522 = vld [vmem:[#allocation2 + $0x9] sm:$0xff]
    %v5523 = vld [vmem:[#allocation2 + $0x19] sm:$0xff]
    %v5524 = vld [vmem:[#allocation2 + $0x21] sm:$0xff]
    %v5525 = vld [vmem:[#allocation2 + $0x31] sm:$0xff]
    %v5526 = vld [vmem:[#allocation2 + $0x39] sm:$0xff]
    %v5527 = vld [vmem:[#allocation2 + $0x49] sm:$0xff]
    %v5528 = vld [vmem:[#allocation2 + $0x51] sm:$0xff]
    %v5529 = vld [vmem:[#allocation2 + $0x61] sm:$0xff]
    %v5530 = vld [vmem:[#allocation2 + $0x69] sm:$0xff]
    %v5531 = vld [vmem:[#allocation2 + $0x79] sm:$0xff]
    %v5532 = vld [vmem:[#allocation2 + $0x81] sm:$0xff]
    %v5533 = vld [vmem:[#allocation2 + $0x91] sm:$0xff]
    %v5534 = vld [vmem:[#allocation2 + $0x99] sm:$0xff]
    %v5535 = vld [vmem:[#allocation2 + $0xa9] sm:$0xff]
    %v5536 = vld [vmem:[#allocation2 + $0xb1] sm:$0xff]
    %v5537 = vld [vmem:[#allocation2 + $0xc1] sm:$0xff]
    %v5538 = vld [vmem:[#allocation2 + $0xc9] sm:$0xff]
    %v5539 = vld [vmem:[#allocation2 + $0xd9] sm:$0xff]
    %v5540 = vld [vmem:[#allocation2 + $0xe1] sm:$0xff]
    %v5541 = vld [vmem:[#allocation2 + $0xf1] sm:$0xff]
    %v5542 = vld [vmem:[#allocation2 + $0xf9] sm:$0xff]
    %v5543 = vld [vmem:[#allocation2 + $0x109] sm:$0xff]
    %v5544 = vld [vmem:[#allocation2 + $0x111] sm:$0xff]
    %v5545 = vld [vmem:[#allocation2 + $0x121] sm:$0xff]
    %v5546 = vld [vmem:[#allocation2 + $0x129] sm:$0xff]
    %v5547 = vld [vmem:[#allocation2 + $0x139] sm:$0xff]
    %v5548 = vld [vmem:[#allocation2 + $0x141] sm:$0xff]
    %v5549 = vld [vmem:[#allocation2 + $0x151] sm:$0xff]
    %v5550 = vld [vmem:[#allocation2 + $0x159] sm:$0xff]
    %v5551 = vld [vmem:[#allocation2 + $0x169] sm:$0xff]
    %v5552 = vld [vmem:[#allocation2 + $0x171] sm:$0xff]
    %v5553 = vld [vmem:[#allocation2 + $0x1b1] sm:$0xff]
    %v5554 = vld [vmem:[#allocation2 + $0x1b9] sm:$0xff]
    %v5555 = vld [vmem:[#allocation2 + $0x1c9] sm:$0xff]
    %v5556 = vld [vmem:[#allocation2 + $0x1d1] sm:$0xff]
    %v5557 = vld [vmem:[#allocation2 + $0x1e1] sm:$0xff]
    %v5558 = vld [vmem:[#allocation2 + $0x1e9] sm:$0xff]
    %v5559 = vld [vmem:[#allocation2 + $0x1f9] sm:$0xff]
    %v5560 = vld [vmem:[#allocation2 + $0x201] sm:$0xff]
    %v5561 = vld [vmem:[#allocation2 + $0x211] sm:$0xff]
    %v5562 = vld [vmem:[#allocation2 + $0x219] sm:$0xff]
    %v5563 = vld [vmem:[#allocation2 + $0x229] sm:$0xff]
    %v5564 = vld [vmem:[#allocation2 + $0x231] sm:$0xff]
    %v5565 = vld [vmem:[#allocation2 + $0x241] sm:$0xff]
    %v5566 = vld [vmem:[#allocation2 + $0x249] sm:$0xff]
    %v5567 = vld [vmem:[#allocation2 + $0x259] sm:$0xff]
    %v5568 = vld [vmem:[#allocation2 + $0x261] sm:$0xff]
    %v5569 = vld [vmem:[#allocation2 + $0x271] sm:$0xff]
    %v5570 = vld [vmem:[#allocation2 + $0x279] sm:$0xff]
    %v5571 = vld [vmem:[#allocation2 + $0x289] sm:$0xff]
    %v5572 = vld [vmem:[#allocation2 + $0x291] sm:$0xff]
    %v5573 = vld [vmem:[#allocation2 + $0x2a1] sm:$0xff]
    %v5574 = vld [vmem:[#allocation2 + $0x2a9] sm:$0xff]
    %v5575 = vld [vmem:[#allocation2 + $0x2b9] sm:$0xff]
    %v5576 = vld [vmem:[#allocation2 + $0x2c1] sm:$0xff]
    %v5577 = vld [vmem:[#allocation2 + $0x2d1] sm:$0xff]
    %v5578 = vld [vmem:[#allocation2 + $0x2d9] sm:$0xff]
    %v5579 = vld [vmem:[#allocation2 + $0x2e9] sm:$0xff]
    %v5580 = vld [vmem:[#allocation2 + $0x2f1] sm:$0xff]
    %v5581 = vld [vmem:[#allocation2 + $0x301] sm:$0xff]
    %v5582 = vld [vmem:[#allocation2 + $0x309] sm:$0xff]
    %v5583 = vld [vmem:[#allocation2 + $0x319] sm:$0xff]
    %v5584 = vld [vmem:[#allocation2 + $0x321] sm:$0xff]
    %v5585 = vpack.c.bf16 %v5522, %v5521
    %v5586 = vpack.c.bf16 %v5524, %v5523
    %v5587 = vpack.c.bf16 %v5526, %v5525
    %v5588 = vpack.c.bf16 %v5528, %v5527
    %v5589 = vpack.c.bf16 %v5530, %v5529
    %v5590 = vpack.c.bf16 %v5532, %v5531
    %v5591 = vpack.c.bf16 %v5534, %v5533
    %v5592 = vpack.c.bf16 %v5536, %v5535
    %v5593 = vpack.c.bf16 %v5538, %v5537
    %v5594 = vpack.c.bf16 %v5540, %v5539
    %v5595 = vpack.c.bf16 %v5542, %v5541
    %v5596 = vpack.c.bf16 %v5544, %v5543
    %v5597 = vpack.c.bf16 %v5546, %v5545
    %v5598 = vpack.c.bf16 %v5548, %v5547
    %v5599 = vpack.c.bf16 %v5550, %v5549
    %v5600 = vpack.c.bf16 %v5552, %v5551
    %v5601 = vpack.c.bf16 %v5554, %v5553
    %v5602 = vpack.c.bf16 %v5556, %v5555
    %v5603 = vpack.c.bf16 %v5558, %v5557
    %v5604 = vpack.c.bf16 %v5560, %v5559
    %v5605 = vpack.c.bf16 %v5562, %v5561
    %v5606 = vpack.c.bf16 %v5564, %v5563
    %v5607 = vpack.c.bf16 %v5566, %v5565
    %v5608 = vpack.c.bf16 %v5568, %v5567
    %v5609 = vpack.c.bf16 %v5570, %v5569
    %v5610 = vpack.c.bf16 %v5572, %v5571
    %v5611 = vpack.c.bf16 %v5574, %v5573
    %v5612 = vpack.c.bf16 %v5576, %v5575
    %v5613 = vpack.c.bf16 %v5578, %v5577
    %v5614 = vpack.c.bf16 %v5580, %v5579
    %v5615 = vpack.c.bf16 %v5582, %v5581
    %v5616 = vpack.c.bf16 %v5584, %v5583
    %s5617 = scalar_lea.vmem [#allocation8], 64
    %v5618 = vld [vmem:[%s5617] sm:$0xf]
    %v5619 = vld [vmem:[%s5617 + $0x4] sm:$0xf]
    %v5620 = vld [vmem:[%s5617 + $0x8] sm:$0xf]
    %v5621 = vld [vmem:[%s5617 + $0xc] sm:$0xf]
    %v5622 = vld [vmem:[%s5617 + $0x10] sm:$0xf]
    %v5623 = vld [vmem:[%s5617 + $0x14] sm:$0xf]
    %v5624 = vld [vmem:[%s5617 + $0x18] sm:$0xf]
    %v5625 = vld [vmem:[%s5617 + $0x1c] sm:$0xf]
    %v5626 = vld [vmem:[%s5617 + $0x20] sm:$0xf]
    %v5627 = vld [vmem:[%s5617 + $0x24] sm:$0xf]
    %v5628 = vld [vmem:[%s5617 + $0x28] sm:$0xf]
    %v5629 = vld [vmem:[%s5617 + $0x2c] sm:$0xf]
    %v5630 = vld [vmem:[%s5617 + $0x30] sm:$0xf]
    %v5631 = vld [vmem:[%s5617 + $0x34] sm:$0xf]
    %v5632 = vld [vmem:[%s5617 + $0x38] sm:$0xf]
    %v5633 = vld [vmem:[%s5617 + $0x3c] sm:$0xf]
    %v5650 = vunpack.c.l.b16 %v5618
    %v5651 = vunpack.c.l.b16 %v5619
    %v5652 = vunpack.c.l.b16 %v5620
    %v5653 = vunpack.c.l.b16 %v5621
    %v5654 = vunpack.c.l.b16 %v5622
    %v5655 = vunpack.c.l.b16 %v5623
    %v5656 = vunpack.c.l.b16 %v5624
    %v5657 = vunpack.c.l.b16 %v5625
    %v5658 = vunpack.c.l.b16 %v5626
    %v5659 = vunpack.c.l.b16 %v5627
    %v5660 = vunpack.c.l.b16 %v5628
    %v5661 = vunpack.c.l.b16 %v5629
    %v5662 = vunpack.c.l.b16 %v5630
    %v5663 = vunpack.c.l.b16 %v5631
    %v5664 = vunpack.c.l.b16 %v5632
    %v5665 = vunpack.c.l.b16 %v5633
    %v5666 = vpack.c.b16 %v5651, %v5650
    %v5667 = vpack.c.b16 %v5653, %v5652
    %v5668 = vpack.c.b16 %v5655, %v5654
    %v5669 = vpack.c.b16 %v5657, %v5656
    %v5670 = vpack.c.b16 %v5659, %v5658
    %v5671 = vpack.c.b16 %v5661, %v5660
    %v5672 = vpack.c.b16 %v5663, %v5662
    %v5673 = vpack.c.b16 %v5665, %v5664
    %5682 = vmatprep.subr.bf16.mxu0 0
    %5683 = vmatpush1.bf16.msra.mxu0 %v5673
    %5684 = vmatprep.subr.bf16.mxu0 0
    %5685 = vmatpush1.bf16.msra.mxu0 %v5672
    %5686 = vmatprep.subr.bf16.mxu0 0
    %5687 = vmatpush1.bf16.msra.mxu0 %v5671
    %5688 = vmatprep.subr.bf16.mxu0 0
    %5689 = vmatpush1.bf16.msra.mxu0 %v5670
    %5690 = vmatprep.subr.bf16.mxu0 0
    %5691 = vmatpush1.bf16.msra.mxu0 %v5669
    %5692 = vmatprep.subr.bf16.mxu0 0
    %5693 = vmatpush1.bf16.msra.mxu0 %v5668
    %5694 = vmatprep.subr.bf16.mxu0 0
    %5695 = vmatpush1.bf16.msra.mxu0 %v5667
    %5696 = vmatprep.subr.bf16.mxu0 0
    %5697 = vmatpush1.bf16.msra.mxu0 %v5666
    %5698 = vmatprep.subr.bf16.mxu0 0
    %5699 = vmatpush2.bf16.msra.mxu0 0
    %5700 = vmatprep.subr.bf16.mxu0 0
    %5701 = vmatpush2.bf16.msra.mxu0 0
    %5702 = vmatprep.subr.bf16.mxu0 0
    %5703 = vmatpush2.bf16.msra.mxu0 0
    %5704 = vmatprep.subr.bf16.mxu0 0
    %5705 = vmatpush2.bf16.msra.mxu0 0
    %5706 = vmatprep.subr.bf16.mxu0 0
    %5707 = vmatpush2.bf16.msra.mxu0 0
    %5708 = vmatprep.subr.bf16.mxu0 0
    %5709 = vmatpush2.bf16.msra.mxu0 0
    %5710 = vmatprep.subr.bf16.mxu0 0
    %5711 = vmatpush2.bf16.msra.mxu0 0
    %5712 = vmatprep.subr.bf16.mxu0 0
    %5713 = vmatpush2.bf16.msra.mxu0 0
    %5714 = vmatprep.mubr.bf16.mxu0 0
    %5715 = vmatmul.mubr.bf16.gmra.mxu0 %v5585
    %v5716 = vpop.f32.mrf.mxu0
    %v5717 = vadd.f32 0.0, %v5716
    %v5718 = vpop.f32.mrf.mxu0
    %v5719 = vpop.f32.mrf.mxu0
    %v5720 = vadd.f32 0.0, %v5719
    %v5721 = vpop.f32.mrf.mxu0
    %5722 = vmatprep.mubr.bf16.mxu0 0
    %5723 = vmatmul.mubr.bf16.gmra.mxu0 %v5586
    %v5724 = vpop.f32.mrf.mxu0
    %v5725 = vadd.f32 0.0, %v5724
    %v5726 = vpop.f32.mrf.mxu0
    %v5727 = vpop.f32.mrf.mxu0
    %v5728 = vadd.f32 0.0, %v5727
    %v5729 = vpop.f32.mrf.mxu0
    %5730 = vmatprep.mubr.bf16.mxu0 0
    %5731 = vmatmul.mubr.bf16.gmra.mxu0 %v5587
    %v5732 = vpop.f32.mrf.mxu0
    %v5733 = vadd.f32 0.0, %v5732
    %v5734 = vpop.f32.mrf.mxu0
    %v5735 = vpop.f32.mrf.mxu0
    %v5736 = vadd.f32 0.0, %v5735
    %v5737 = vpop.f32.mrf.mxu0
    %5738 = vmatprep.mubr.bf16.mxu0 0
    %5739 = vmatmul.mubr.bf16.gmra.mxu0 %v5588
    %v5740 = vpop.f32.mrf.mxu0
    %v5741 = vadd.f32 0.0, %v5740
    %v5742 = vpop.f32.mrf.mxu0
    %v5743 = vpop.f32.mrf.mxu0
    %v5744 = vadd.f32 0.0, %v5743
    %v5745 = vpop.f32.mrf.mxu0
    %5746 = vmatprep.mubr.bf16.mxu0 0
    %5747 = vmatmul.mubr.bf16.gmra.mxu0 %v5589
    %v5748 = vpop.f32.mrf.mxu0
    %v5749 = vadd.f32 0.0, %v5748
    %v5750 = vpop.f32.mrf.mxu0
    %v5751 = vpop.f32.mrf.mxu0
    %v5752 = vadd.f32 0.0, %v5751
    %v5753 = vpop.f32.mrf.mxu0
    %5754 = vmatprep.mubr.bf16.mxu0 0
    %5755 = vmatmul.mubr.bf16.gmra.mxu0 %v5590
    %v5756 = vpop.f32.mrf.mxu0
    %v5757 = vadd.f32 0.0, %v5756
    %v5758 = vpop.f32.mrf.mxu0
    %v5759 = vpop.f32.mrf.mxu0
    %v5760 = vadd.f32 0.0, %v5759
    %v5761 = vpop.f32.mrf.mxu0
    %5762 = vmatprep.mubr.bf16.mxu0 0
    %5763 = vmatmul.mubr.bf16.gmra.mxu0 %v5591
    %v5764 = vpop.f32.mrf.mxu0
    %v5765 = vadd.f32 0.0, %v5764
    %v5766 = vpop.f32.mrf.mxu0
    %v5767 = vpop.f32.mrf.mxu0
    %v5768 = vadd.f32 0.0, %v5767
    %v5769 = vpop.f32.mrf.mxu0
    %5770 = vmatprep.mubr.bf16.mxu0 0
    %5771 = vmatmul.mubr.bf16.gmra.mxu0 %v5592
    %v5772 = vpop.f32.mrf.mxu0
    %v5773 = vadd.f32 0.0, %v5772
    %v5774 = vpop.f32.mrf.mxu0
    %v5775 = vpop.f32.mrf.mxu0
    %v5776 = vadd.f32 0.0, %v5775
    %v5777 = vpop.f32.mrf.mxu0
    %5778 = vmatprep.mubr.bf16.mxu0 0
    %5779 = vmatmul.mubr.bf16.gmra.mxu0 %v5593
    %v5780 = vpop.f32.mrf.mxu0
    %v5781 = vadd.f32 0.0, %v5780
    %v5782 = vpop.f32.mrf.mxu0
    %v5783 = vpop.f32.mrf.mxu0
    %v5784 = vadd.f32 0.0, %v5783
    %v5785 = vpop.f32.mrf.mxu0
    %5786 = vmatprep.mubr.bf16.mxu0 0
    %5787 = vmatmul.mubr.bf16.gmra.mxu0 %v5594
    %v5788 = vpop.f32.mrf.mxu0
    %v5789 = vadd.f32 0.0, %v5788
    %v5790 = vpop.f32.mrf.mxu0
    %v5791 = vpop.f32.mrf.mxu0
    %v5792 = vadd.f32 0.0, %v5791
    %v5793 = vpop.f32.mrf.mxu0
    %5794 = vmatprep.mubr.bf16.mxu0 0
    %5795 = vmatmul.mubr.bf16.gmra.mxu0 %v5595
    %v5796 = vpop.f32.mrf.mxu0
    %v5797 = vadd.f32 0.0, %v5796
    %v5798 = vpop.f32.mrf.mxu0
    %v5799 = vpop.f32.mrf.mxu0
    %v5800 = vadd.f32 0.0, %v5799
    %v5801 = vpop.f32.mrf.mxu0
    %5802 = vmatprep.mubr.bf16.mxu0 0
    %5803 = vmatmul.mubr.bf16.gmra.mxu0 %v5596
    %v5804 = vpop.f32.mrf.mxu0
    %v5805 = vadd.f32 0.0, %v5804
    %v5806 = vpop.f32.mrf.mxu0
    %v5807 = vpop.f32.mrf.mxu0
    %v5808 = vadd.f32 0.0, %v5807
    %v5809 = vpop.f32.mrf.mxu0
    %5810 = vmatprep.mubr.bf16.mxu0 0
    %5811 = vmatmul.mubr.bf16.gmra.mxu0 %v5597
    %v5812 = vpop.f32.mrf.mxu0
    %v5813 = vadd.f32 0.0, %v5812
    %v5814 = vpop.f32.mrf.mxu0
    %v5815 = vpop.f32.mrf.mxu0
    %v5816 = vadd.f32 0.0, %v5815
    %v5817 = vpop.f32.mrf.mxu0
    %5818 = vmatprep.mubr.bf16.mxu0 0
    %5819 = vmatmul.mubr.bf16.gmra.mxu0 %v5598
    %v5820 = vpop.f32.mrf.mxu0
    %v5821 = vadd.f32 0.0, %v5820
    %v5822 = vpop.f32.mrf.mxu0
    %v5823 = vpop.f32.mrf.mxu0
    %v5824 = vadd.f32 0.0, %v5823
    %v5825 = vpop.f32.mrf.mxu0
    %5826 = vmatprep.mubr.bf16.mxu0 0
    %5827 = vmatmul.mubr.bf16.gmra.mxu0 %v5599
    %v5828 = vpop.f32.mrf.mxu0
    %v5829 = vadd.f32 0.0, %v5828
    %v5830 = vpop.f32.mrf.mxu0
    %v5831 = vpop.f32.mrf.mxu0
    %v5832 = vadd.f32 0.0, %v5831
    %v5833 = vpop.f32.mrf.mxu0
    %5834 = vmatprep.mubr.bf16.mxu0 0
    %5835 = vmatmul.mubr.bf16.gmra.mxu0 %v5600
    %v5836 = vpop.f32.mrf.mxu0
    %v5837 = vadd.f32 0.0, %v5836
    %v5838 = vpop.f32.mrf.mxu0
    %v5839 = vpop.f32.mrf.mxu0
    %v5840 = vadd.f32 0.0, %v5839
    %v5841 = vpop.f32.mrf.mxu0
    %5842 = vmatprep.mubr.bf16.mxu0 0
    %5843 = vmatmul.mubr.bf16.gmra.mxu0 %v5601
    %v5844 = vpop.f32.mrf.mxu0
    %v5845 = vadd.f32 0.0, %v5844
    %v5846 = vpop.f32.mrf.mxu0
    %v5847 = vpop.f32.mrf.mxu0
    %v5848 = vadd.f32 0.0, %v5847
    %v5849 = vpop.f32.mrf.mxu0
    %5850 = vmatprep.mubr.bf16.mxu0 0
    %5851 = vmatmul.mubr.bf16.gmra.mxu0 %v5602
    %v5852 = vpop.f32.mrf.mxu0
    %v5853 = vadd.f32 0.0, %v5852
    %v5854 = vpop.f32.mrf.mxu0
    %v5855 = vpop.f32.mrf.mxu0
    %v5856 = vadd.f32 0.0, %v5855
    %v5857 = vpop.f32.mrf.mxu0
    %5858 = vmatprep.mubr.bf16.mxu0 0
    %5859 = vmatmul.mubr.bf16.gmra.mxu0 %v5603
    %v5860 = vpop.f32.mrf.mxu0
    %v5861 = vadd.f32 0.0, %v5860
    %v5862 = vpop.f32.mrf.mxu0
    %v5863 = vpop.f32.mrf.mxu0
    %v5864 = vadd.f32 0.0, %v5863
    %v5865 = vpop.f32.mrf.mxu0
    %5866 = vmatprep.mubr.bf16.mxu0 0
    %5867 = vmatmul.mubr.bf16.gmra.mxu0 %v5604
    %v5868 = vpop.f32.mrf.mxu0
    %v5869 = vadd.f32 0.0, %v5868
    %v5870 = vpop.f32.mrf.mxu0
    %v5871 = vpop.f32.mrf.mxu0
    %v5872 = vadd.f32 0.0, %v5871
    %v5873 = vpop.f32.mrf.mxu0
    %5874 = vmatprep.mubr.bf16.mxu0 0
    %5875 = vmatmul.mubr.bf16.gmra.mxu0 %v5605
    %v5876 = vpop.f32.mrf.mxu0
    %v5877 = vadd.f32 0.0, %v5876
    %v5878 = vpop.f32.mrf.mxu0
    %v5879 = vpop.f32.mrf.mxu0
    %v5880 = vadd.f32 0.0, %v5879
    %v5881 = vpop.f32.mrf.mxu0
    %5882 = vmatprep.mubr.bf16.mxu0 0
    %5883 = vmatmul.mubr.bf16.gmra.mxu0 %v5606
    %v5884 = vpop.f32.mrf.mxu0
    %v5885 = vadd.f32 0.0, %v5884
    %v5886 = vpop.f32.mrf.mxu0
    %v5887 = vpop.f32.mrf.mxu0
    %v5888 = vadd.f32 0.0, %v5887
    %v5889 = vpop.f32.mrf.mxu0
    %5890 = vmatprep.mubr.bf16.mxu0 0
    %5891 = vmatmul.mubr.bf16.gmra.mxu0 %v5607
    %v5892 = vpop.f32.mrf.mxu0
    %v5893 = vadd.f32 0.0, %v5892
    %v5894 = vpop.f32.mrf.mxu0
    %v5895 = vpop.f32.mrf.mxu0
    %v5896 = vadd.f32 0.0, %v5895
    %v5897 = vpop.f32.mrf.mxu0
    %5898 = vmatprep.mubr.bf16.mxu0 0
    %5899 = vmatmul.mubr.bf16.gmra.mxu0 %v5608
    %v5900 = vpop.f32.mrf.mxu0
    %v5901 = vadd.f32 0.0, %v5900
    %v5902 = vpop.f32.mrf.mxu0
    %v5903 = vpop.f32.mrf.mxu0
    %v5904 = vadd.f32 0.0, %v5903
    %v5905 = vpop.f32.mrf.mxu0
    %5906 = vmatprep.mubr.bf16.mxu0 0
    %5907 = vmatmul.mubr.bf16.gmra.mxu0 %v5609
    %v5908 = vpop.f32.mrf.mxu0
    %v5909 = vadd.f32 0.0, %v5908
    %v5910 = vpop.f32.mrf.mxu0
    %v5911 = vpop.f32.mrf.mxu0
    %v5912 = vadd.f32 0.0, %v5911
    %v5913 = vpop.f32.mrf.mxu0
    %5914 = vmatprep.mubr.bf16.mxu0 0
    %5915 = vmatmul.mubr.bf16.gmra.mxu0 %v5610
    %v5916 = vpop.f32.mrf.mxu0
    %v5917 = vadd.f32 0.0, %v5916
    %v5918 = vpop.f32.mrf.mxu0
    %v5919 = vpop.f32.mrf.mxu0
    %v5920 = vadd.f32 0.0, %v5919
    %v5921 = vpop.f32.mrf.mxu0
    %5922 = vmatprep.mubr.bf16.mxu0 0
    %5923 = vmatmul.mubr.bf16.gmra.mxu0 %v5611
    %v5924 = vpop.f32.mrf.mxu0
    %v5925 = vadd.f32 0.0, %v5924
    %v5926 = vpop.f32.mrf.mxu0
    %v5927 = vpop.f32.mrf.mxu0
    %v5928 = vadd.f32 0.0, %v5927
    %v5929 = vpop.f32.mrf.mxu0
    %5930 = vmatprep.mubr.bf16.mxu0 0
    %5931 = vmatmul.mubr.bf16.gmra.mxu0 %v5612
    %v5932 = vpop.f32.mrf.mxu0
    %v5933 = vadd.f32 0.0, %v5932
    %v5934 = vpop.f32.mrf.mxu0
    %v5935 = vpop.f32.mrf.mxu0
    %v5936 = vadd.f32 0.0, %v5935
    %v5937 = vpop.f32.mrf.mxu0
    %5938 = vmatprep.mubr.bf16.mxu0 0
    %5939 = vmatmul.mubr.bf16.gmra.mxu0 %v5613
    %v5940 = vpop.f32.mrf.mxu0
    %v5941 = vadd.f32 0.0, %v5940
    %v5942 = vpop.f32.mrf.mxu0
    %v5943 = vpop.f32.mrf.mxu0
    %v5944 = vadd.f32 0.0, %v5943
    %v5945 = vpop.f32.mrf.mxu0
    %5946 = vmatprep.mubr.bf16.mxu0 0
    %5947 = vmatmul.mubr.bf16.gmra.mxu0 %v5614
    %v5948 = vpop.f32.mrf.mxu0
    %v5949 = vadd.f32 0.0, %v5948
    %v5950 = vpop.f32.mrf.mxu0
    %v5951 = vpop.f32.mrf.mxu0
    %v5952 = vadd.f32 0.0, %v5951
    %v5953 = vpop.f32.mrf.mxu0
    %5954 = vmatprep.mubr.bf16.mxu0 0
    %5955 = vmatmul.mubr.bf16.gmra.mxu0 %v5615
    %v5956 = vpop.f32.mrf.mxu0
    %v5957 = vadd.f32 0.0, %v5956
    %v5958 = vpop.f32.mrf.mxu0
    %v5959 = vpop.f32.mrf.mxu0
    %v5960 = vadd.f32 0.0, %v5959
    %v5961 = vpop.f32.mrf.mxu0
    %5962 = vmatprep.mubr.bf16.mxu0 0
    %5963 = vmatmul.mubr.bf16.gmra.mxu0 %v5616
    %v5964 = vpop.f32.mrf.mxu0
    %v5965 = vadd.f32 0.0, %v5964
    %v5966 = vpop.f32.mrf.mxu0
    %v5967 = vpop.f32.mrf.mxu0
    %v5968 = vadd.f32 0.0, %v5967
    %v5969 = vpop.f32.mrf.mxu0
    %5970 = vdwg.mxu0
    %v5987 = vunpack.c.l.b16 %v5505
    %v5988 = vunpack.c.l.b16 %v5506
    %v5989 = vunpack.c.l.b16 %v5507
    %v5990 = vunpack.c.l.b16 %v5508
    %v5991 = vunpack.c.l.b16 %v5509
    %v5992 = vunpack.c.l.b16 %v5510
    %v5993 = vunpack.c.l.b16 %v5511
    %v5994 = vunpack.c.l.b16 %v5512
    %v5995 = vunpack.c.l.b16 %v5513
    %v5996 = vunpack.c.l.b16 %v5514
    %v5997 = vunpack.c.l.b16 %v5515
    %v5998 = vunpack.c.l.b16 %v5516
    %v5999 = vunpack.c.l.b16 %v5517
    %v6000 = vunpack.c.l.b16 %v5518
    %v6001 = vunpack.c.l.b16 %v5519
    %v6002 = vunpack.c.l.b16 %v5520
    %v6003 = vpack.c.b16 %v5988, %v5987
    %v6004 = vpack.c.b16 %v5990, %v5989
    %v6005 = vpack.c.b16 %v5992, %v5991
    %v6006 = vpack.c.b16 %v5994, %v5993
    %v6007 = vpack.c.b16 %v5996, %v5995
    %v6008 = vpack.c.b16 %v5998, %v5997
    %v6009 = vpack.c.b16 %v6000, %v5999
    %v6010 = vpack.c.b16 %v6002, %v6001
    %6019 = vmatprep.subr.bf16.mxu0 0
    %6020 = vmatpush1.bf16.msra.mxu0 %v6010
    %6021 = vmatprep.subr.bf16.mxu0 0
    %6022 = vmatpush1.bf16.msra.mxu0 %v6009
    %6023 = vmatprep.subr.bf16.mxu0 0
    %6024 = vmatpush1.bf16.msra.mxu0 %v6008
    %6025 = vmatprep.subr.bf16.mxu0 0
    %6026 = vmatpush1.bf16.msra.mxu0 %v6007
    %6027 = vmatprep.subr.bf16.mxu0 0
    %6028 = vmatpush1.bf16.msra.mxu0 %v6006
    %6029 = vmatprep.subr.bf16.mxu0 0
    %6030 = vmatpush1.bf16.msra.mxu0 %v6005
    %6031 = vmatprep.subr.bf16.mxu0 0
    %6032 = vmatpush1.bf16.msra.mxu0 %v6004
    %6033 = vmatprep.subr.bf16.mxu0 0
    %6034 = vmatpush1.bf16.msra.mxu0 %v6003
    %6035 = vmatprep.subr.bf16.mxu0 0
    %6036 = vmatpush2.bf16.msra.mxu0 0
    %6037 = vmatprep.subr.bf16.mxu0 0
    %6038 = vmatpush2.bf16.msra.mxu0 0
    %6039 = vmatprep.subr.bf16.mxu0 0
    %6040 = vmatpush2.bf16.msra.mxu0 0
    %6041 = vmatprep.subr.bf16.mxu0 0
    %6042 = vmatpush2.bf16.msra.mxu0 0
    %6043 = vmatprep.subr.bf16.mxu0 0
    %6044 = vmatpush2.bf16.msra.mxu0 0
    %6045 = vmatprep.subr.bf16.mxu0 0
    %6046 = vmatpush2.bf16.msra.mxu0 0
    %6047 = vmatprep.subr.bf16.mxu0 0
    %6048 = vmatpush2.bf16.msra.mxu0 0
    %6049 = vmatprep.subr.bf16.mxu0 0
    %6050 = vmatpush2.bf16.msra.mxu0 0
    %6051 = vmatprep.mubr.bf16.mxu0 0
    %6052 = vmatmul.mubr.bf16.gmra.mxu0 %v5473
    %v6053 = vpop.f32.mrf.mxu0
    %v6054 = vadd.f32 %v5717, %v6053
    %v6055 = vpop.f32.mrf.mxu0
    %v6056 = vpop.f32.mrf.mxu0
    %v6057 = vadd.f32 %v5720, %v6056
    %v6058 = vpop.f32.mrf.mxu0
    %6059 = vmatprep.mubr.bf16.mxu0 0
    %6060 = vmatmul.mubr.bf16.gmra.mxu0 %v5474
    %v6061 = vpop.f32.mrf.mxu0
    %v6062 = vadd.f32 %v5725, %v6061
    %v6063 = vpop.f32.mrf.mxu0
    %v6064 = vpop.f32.mrf.mxu0
    %v6065 = vadd.f32 %v5728, %v6064
    %v6066 = vpop.f32.mrf.mxu0
    %6067 = vmatprep.mubr.bf16.mxu0 0
    %6068 = vmatmul.mubr.bf16.gmra.mxu0 %v5475
    %v6069 = vpop.f32.mrf.mxu0
    %v6070 = vadd.f32 %v5733, %v6069
    %v6071 = vpop.f32.mrf.mxu0
    %v6072 = vpop.f32.mrf.mxu0
    %v6073 = vadd.f32 %v5736, %v6072
    %v6074 = vpop.f32.mrf.mxu0
    %6075 = vmatprep.mubr.bf16.mxu0 0
    %6076 = vmatmul.mubr.bf16.gmra.mxu0 %v5476
    %v6077 = vpop.f32.mrf.mxu0
    %v6078 = vadd.f32 %v5741, %v6077
    %v6079 = vpop.f32.mrf.mxu0
    %v6080 = vpop.f32.mrf.mxu0
    %v6081 = vadd.f32 %v5744, %v6080
    %v6082 = vpop.f32.mrf.mxu0
    %6083 = vmatprep.mubr.bf16.mxu0 0
    %6084 = vmatmul.mubr.bf16.gmra.mxu0 %v5477
    %v6085 = vpop.f32.mrf.mxu0
    %v6086 = vadd.f32 %v5749, %v6085
    %v6087 = vpop.f32.mrf.mxu0
    %v6088 = vpop.f32.mrf.mxu0
    %v6089 = vadd.f32 %v5752, %v6088
    %v6090 = vpop.f32.mrf.mxu0
    %6091 = vmatprep.mubr.bf16.mxu0 0
    %6092 = vmatmul.mubr.bf16.gmra.mxu0 %v5478
    %v6093 = vpop.f32.mrf.mxu0
    %v6094 = vadd.f32 %v5757, %v6093
    %v6095 = vpop.f32.mrf.mxu0
    %v6096 = vpop.f32.mrf.mxu0
    %v6097 = vadd.f32 %v5760, %v6096
    %v6098 = vpop.f32.mrf.mxu0
    %6099 = vmatprep.mubr.bf16.mxu0 0
    %6100 = vmatmul.mubr.bf16.gmra.mxu0 %v5479
    %v6101 = vpop.f32.mrf.mxu0
    %v6102 = vadd.f32 %v5765, %v6101
    %v6103 = vpop.f32.mrf.mxu0
    %v6104 = vpop.f32.mrf.mxu0
    %v6105 = vadd.f32 %v5768, %v6104
    %v6106 = vpop.f32.mrf.mxu0
    %6107 = vmatprep.mubr.bf16.mxu0 0
    %6108 = vmatmul.mubr.bf16.gmra.mxu0 %v5480
    %v6109 = vpop.f32.mrf.mxu0
    %v6110 = vadd.f32 %v5773, %v6109
    %v6111 = vpop.f32.mrf.mxu0
    %v6112 = vpop.f32.mrf.mxu0
    %v6113 = vadd.f32 %v5776, %v6112
    %v6114 = vpop.f32.mrf.mxu0
    %6115 = vmatprep.mubr.bf16.mxu0 0
    %6116 = vmatmul.mubr.bf16.gmra.mxu0 %v5481
    %v6117 = vpop.f32.mrf.mxu0
    %v6118 = vadd.f32 %v5781, %v6117
    %v6119 = vpop.f32.mrf.mxu0
    %v6120 = vpop.f32.mrf.mxu0
    %v6121 = vadd.f32 %v5784, %v6120
    %v6122 = vpop.f32.mrf.mxu0
    %6123 = vmatprep.mubr.bf16.mxu0 0
    %6124 = vmatmul.mubr.bf16.gmra.mxu0 %v5482
    %v6125 = vpop.f32.mrf.mxu0
    %v6126 = vadd.f32 %v5789, %v6125
    %v6127 = vpop.f32.mrf.mxu0
    %v6128 = vpop.f32.mrf.mxu0
    %v6129 = vadd.f32 %v5792, %v6128
    %v6130 = vpop.f32.mrf.mxu0
    %6131 = vmatprep.mubr.bf16.mxu0 0
    %6132 = vmatmul.mubr.bf16.gmra.mxu0 %v5483
    %v6133 = vpop.f32.mrf.mxu0
    %v6134 = vadd.f32 %v5797, %v6133
    %v6135 = vpop.f32.mrf.mxu0
    %v6136 = vpop.f32.mrf.mxu0
    %v6137 = vadd.f32 %v5800, %v6136
    %v6138 = vpop.f32.mrf.mxu0
    %6139 = vmatprep.mubr.bf16.mxu0 0
    %6140 = vmatmul.mubr.bf16.gmra.mxu0 %v5484
    %v6141 = vpop.f32.mrf.mxu0
    %v6142 = vadd.f32 %v5805, %v6141
    %v6143 = vpop.f32.mrf.mxu0
    %v6144 = vpop.f32.mrf.mxu0
    %v6145 = vadd.f32 %v5808, %v6144
    %v6146 = vpop.f32.mrf.mxu0
    %6147 = vmatprep.mubr.bf16.mxu0 0
    %6148 = vmatmul.mubr.bf16.gmra.mxu0 %v5485
    %v6149 = vpop.f32.mrf.mxu0
    %v6150 = vadd.f32 %v5813, %v6149
    %v6151 = vpop.f32.mrf.mxu0
    %v6152 = vpop.f32.mrf.mxu0
    %v6153 = vadd.f32 %v5816, %v6152
    %v6154 = vpop.f32.mrf.mxu0
    %6155 = vmatprep.mubr.bf16.mxu0 0
    %6156 = vmatmul.mubr.bf16.gmra.mxu0 %v5486
    %v6157 = vpop.f32.mrf.mxu0
    %v6158 = vadd.f32 %v5821, %v6157
    %v6159 = vpop.f32.mrf.mxu0
    %v6160 = vpop.f32.mrf.mxu0
    %v6161 = vadd.f32 %v5824, %v6160
    %v6162 = vpop.f32.mrf.mxu0
    %6163 = vmatprep.mubr.bf16.mxu0 0
    %6164 = vmatmul.mubr.bf16.gmra.mxu0 %v5487
    %v6165 = vpop.f32.mrf.mxu0
    %v6166 = vadd.f32 %v5829, %v6165
    %v6167 = vpop.f32.mrf.mxu0
    %v6168 = vpop.f32.mrf.mxu0
    %v6169 = vadd.f32 %v5832, %v6168
    %v6170 = vpop.f32.mrf.mxu0
    %6171 = vmatprep.mubr.bf16.mxu0 0
    %6172 = vmatmul.mubr.bf16.gmra.mxu0 %v5488
    %v6173 = vpop.f32.mrf.mxu0
    %v6174 = vadd.f32 %v5837, %v6173
    %v6175 = vpop.f32.mrf.mxu0
    %v6176 = vpop.f32.mrf.mxu0
    %v6177 = vadd.f32 %v5840, %v6176
    %v6178 = vpop.f32.mrf.mxu0
    %6179 = vmatprep.mubr.bf16.mxu0 0
    %6180 = vmatmul.mubr.bf16.gmra.mxu0 %v5489
    %v6181 = vpop.f32.mrf.mxu0
    %v6182 = vadd.f32 %v5845, %v6181
    %v6183 = vpop.f32.mrf.mxu0
    %v6184 = vpop.f32.mrf.mxu0
    %v6185 = vadd.f32 %v5848, %v6184
    %v6186 = vpop.f32.mrf.mxu0
    %6187 = vmatprep.mubr.bf16.mxu0 0
    %6188 = vmatmul.mubr.bf16.gmra.mxu0 %v5490
    %v6189 = vpop.f32.mrf.mxu0
    %v6190 = vadd.f32 %v5853, %v6189
    %v6191 = vpop.f32.mrf.mxu0
    %v6192 = vpop.f32.mrf.mxu0
    %v6193 = vadd.f32 %v5856, %v6192
    %v6194 = vpop.f32.mrf.mxu0
    %6195 = vmatprep.mubr.bf16.mxu0 0
    %6196 = vmatmul.mubr.bf16.gmra.mxu0 %v5491
    %v6197 = vpop.f32.mrf.mxu0
    %v6198 = vadd.f32 %v5861, %v6197
    %v6199 = vpop.f32.mrf.mxu0
    %v6200 = vpop.f32.mrf.mxu0
    %v6201 = vadd.f32 %v5864, %v6200
    %v6202 = vpop.f32.mrf.mxu0
    %6203 = vmatprep.mubr.bf16.mxu0 0
    %6204 = vmatmul.mubr.bf16.gmra.mxu0 %v5492
    %v6205 = vpop.f32.mrf.mxu0
    %v6206 = vadd.f32 %v5869, %v6205
    %v6207 = vpop.f32.mrf.mxu0
    %v6208 = vpop.f32.mrf.mxu0
    %v6209 = vadd.f32 %v5872, %v6208
    %v6210 = vpop.f32.mrf.mxu0
    %6211 = vmatprep.mubr.bf16.mxu0 0
    %6212 = vmatmul.mubr.bf16.gmra.mxu0 %v5493
    %v6213 = vpop.f32.mrf.mxu0
    %v6214 = vadd.f32 %v5877, %v6213
    %v6215 = vpop.f32.mrf.mxu0
    %v6216 = vpop.f32.mrf.mxu0
    %v6217 = vadd.f32 %v5880, %v6216
    %v6218 = vpop.f32.mrf.mxu0
    %6219 = vmatprep.mubr.bf16.mxu0 0
    %6220 = vmatmul.mubr.bf16.gmra.mxu0 %v5494
    %v6221 = vpop.f32.mrf.mxu0
    %v6222 = vadd.f32 %v5885, %v6221
    %v6223 = vpop.f32.mrf.mxu0
    %v6224 = vpop.f32.mrf.mxu0
    %v6225 = vadd.f32 %v5888, %v6224
    %v6226 = vpop.f32.mrf.mxu0
    %6227 = vmatprep.mubr.bf16.mxu0 0
    %6228 = vmatmul.mubr.bf16.gmra.mxu0 %v5495
    %v6229 = vpop.f32.mrf.mxu0
    %v6230 = vadd.f32 %v5893, %v6229
    %v6231 = vpop.f32.mrf.mxu0
    %v6232 = vpop.f32.mrf.mxu0
    %v6233 = vadd.f32 %v5896, %v6232
    %v6234 = vpop.f32.mrf.mxu0
    %6235 = vmatprep.mubr.bf16.mxu0 0
    %6236 = vmatmul.mubr.bf16.gmra.mxu0 %v5496
    %v6237 = vpop.f32.mrf.mxu0
    %v6238 = vadd.f32 %v5901, %v6237
    %v6239 = vpop.f32.mrf.mxu0
    %v6240 = vpop.f32.mrf.mxu0
    %v6241 = vadd.f32 %v5904, %v6240
    %v6242 = vpop.f32.mrf.mxu0
    %6243 = vmatprep.mubr.bf16.mxu0 0
    %6244 = vmatmul.mubr.bf16.gmra.mxu0 %v5497
    %v6245 = vpop.f32.mrf.mxu0
    %v6246 = vadd.f32 %v5909, %v6245
    %v6247 = vpop.f32.mrf.mxu0
    %v6248 = vpop.f32.mrf.mxu0
    %v6249 = vadd.f32 %v5912, %v6248
    %v6250 = vpop.f32.mrf.mxu0
    %6251 = vmatprep.mubr.bf16.mxu0 0
    %6252 = vmatmul.mubr.bf16.gmra.mxu0 %v5498
    %v6253 = vpop.f32.mrf.mxu0
    %v6254 = vadd.f32 %v5917, %v6253
    %v6255 = vpop.f32.mrf.mxu0
    %v6256 = vpop.f32.mrf.mxu0
    %v6257 = vadd.f32 %v5920, %v6256
    %v6258 = vpop.f32.mrf.mxu0
    %6259 = vmatprep.mubr.bf16.mxu0 0
    %6260 = vmatmul.mubr.bf16.gmra.mxu0 %v5499
    %v6261 = vpop.f32.mrf.mxu0
    %v6262 = vadd.f32 %v5925, %v6261
    %v6263 = vpop.f32.mrf.mxu0
    %v6264 = vpop.f32.mrf.mxu0
    %v6265 = vadd.f32 %v5928, %v6264
    %v6266 = vpop.f32.mrf.mxu0
    %6267 = vmatprep.mubr.bf16.mxu0 0
    %6268 = vmatmul.mubr.bf16.gmra.mxu0 %v5500
    %v6269 = vpop.f32.mrf.mxu0
    %v6270 = vadd.f32 %v5933, %v6269
    %v6271 = vpop.f32.mrf.mxu0
    %v6272 = vpop.f32.mrf.mxu0
    %v6273 = vadd.f32 %v5936, %v6272
    %v6274 = vpop.f32.mrf.mxu0
    %6275 = vmatprep.mubr.bf16.mxu0 0
    %6276 = vmatmul.mubr.bf16.gmra.mxu0 %v5501
    %v6277 = vpop.f32.mrf.mxu0
    %v6278 = vadd.f32 %v5941, %v6277
    %v6279 = vpop.f32.mrf.mxu0
    %v6280 = vpop.f32.mrf.mxu0
    %v6281 = vadd.f32 %v5944, %v6280
    %v6282 = vpop.f32.mrf.mxu0
    %6283 = vmatprep.mubr.bf16.mxu0 0
    %6284 = vmatmul.mubr.bf16.gmra.mxu0 %v5502
    %v6285 = vpop.f32.mrf.mxu0
    %v6286 = vadd.f32 %v5949, %v6285
    %v6287 = vpop.f32.mrf.mxu0
    %v6288 = vpop.f32.mrf.mxu0
    %v6289 = vadd.f32 %v5952, %v6288
    %v6290 = vpop.f32.mrf.mxu0
    %6291 = vmatprep.mubr.bf16.mxu0 0
    %6292 = vmatmul.mubr.bf16.gmra.mxu0 %v5503
    %v6293 = vpop.f32.mrf.mxu0
    %v6294 = vadd.f32 %v5957, %v6293
    %v6295 = vpop.f32.mrf.mxu0
    %v6296 = vpop.f32.mrf.mxu0
    %v6297 = vadd.f32 %v5960, %v6296
    %v6298 = vpop.f32.mrf.mxu0
    %6299 = vmatprep.mubr.bf16.mxu0 0
    %6300 = vmatmul.mubr.bf16.gmra.mxu0 %v5504
    %v6301 = vpop.f32.mrf.mxu0
    %v6302 = vadd.f32 %v5965, %v6301
    %v6303 = vpop.f32.mrf.mxu0
    %v6304 = vpop.f32.mrf.mxu0
    %v6305 = vadd.f32 %v5968, %v6304
    %v6306 = vpop.f32.mrf.mxu0
    %6307 = vdwg.mxu0
    %v6308 = vld [vmem:[#allocation2 + $0x2] sm:$0xff]
    %v6309 = vld [vmem:[#allocation2 + $0xa] sm:$0xff]
    %v6310 = vld [vmem:[#allocation2 + $0x1a] sm:$0xff]
    %v6311 = vld [vmem:[#allocation2 + $0x22] sm:$0xff]
    %v6312 = vld [vmem:[#allocation2 + $0x32] sm:$0xff]
    %v6313 = vld [vmem:[#allocation2 + $0x3a] sm:$0xff]
    %v6314 = vld [vmem:[#allocation2 + $0x4a] sm:$0xff]
    %v6315 = vld [vmem:[#allocation2 + $0x52] sm:$0xff]
    %v6316 = vld [vmem:[#allocation2 + $0x62] sm:$0xff]
    %v6317 = vld [vmem:[#allocation2 + $0x6a] sm:$0xff]
    %v6318 = vld [vmem:[#allocation2 + $0x7a] sm:$0xff]
    %v6319 = vld [vmem:[#allocation2 + $0x82] sm:$0xff]
    %v6320 = vld [vmem:[#allocation2 + $0x92] sm:$0xff]
    %v6321 = vld [vmem:[#allocation2 + $0x9a] sm:$0xff]
    %v6322 = vld [vmem:[#allocation2 + $0xaa] sm:$0xff]
    %v6323 = vld [vmem:[#allocation2 + $0xb2] sm:$0xff]
    %v6324 = vld [vmem:[#allocation2 + $0xc2] sm:$0xff]
    %v6325 = vld [vmem:[#allocation2 + $0xca] sm:$0xff]
    %v6326 = vld [vmem:[#allocation2 + $0xda] sm:$0xff]
    %v6327 = vld [vmem:[#allocation2 + $0xe2] sm:$0xff]
    %v6328 = vld [vmem:[#allocation2 + $0xf2] sm:$0xff]
    %v6329 = vld [vmem:[#allocation2 + $0xfa] sm:$0xff]
    %v6330 = vld [vmem:[#allocation2 + $0x10a] sm:$0xff]
    %v6331 = vld [vmem:[#allocation2 + $0x112] sm:$0xff]
    %v6332 = vld [vmem:[#allocation2 + $0x122] sm:$0xff]
    %v6333 = vld [vmem:[#allocation2 + $0x12a] sm:$0xff]
    %v6334 = vld [vmem:[#allocation2 + $0x13a] sm:$0xff]
    %v6335 = vld [vmem:[#allocation2 + $0x142] sm:$0xff]
    %v6336 = vld [vmem:[#allocation2 + $0x152] sm:$0xff]
    %v6337 = vld [vmem:[#allocation2 + $0x15a] sm:$0xff]
    %v6338 = vld [vmem:[#allocation2 + $0x16a] sm:$0xff]
    %v6339 = vld [vmem:[#allocation2 + $0x172] sm:$0xff]
    %v6340 = vld [vmem:[#allocation2 + $0x1b2] sm:$0xff]
    %v6341 = vld [vmem:[#allocation2 + $0x1ba] sm:$0xff]
    %v6342 = vld [vmem:[#allocation2 + $0x1ca] sm:$0xff]
    %v6343 = vld [vmem:[#allocation2 + $0x1d2] sm:$0xff]
    %v6344 = vld [vmem:[#allocation2 + $0x1e2] sm:$0xff]
    %v6345 = vld [vmem:[#allocation2 + $0x1ea] sm:$0xff]
    %v6346 = vld [vmem:[#allocation2 + $0x1fa] sm:$0xff]
    %v6347 = vld [vmem:[#allocation2 + $0x202] sm:$0xff]
    %v6348 = vld [vmem:[#allocation2 + $0x212] sm:$0xff]
    %v6349 = vld [vmem:[#allocation2 + $0x21a] sm:$0xff]
    %v6350 = vld [vmem:[#allocation2 + $0x22a] sm:$0xff]
    %v6351 = vld [vmem:[#allocation2 + $0x232] sm:$0xff]
    %v6352 = vld [vmem:[#allocation2 + $0x242] sm:$0xff]
    %v6353 = vld [vmem:[#allocation2 + $0x24a] sm:$0xff]
    %v6354 = vld [vmem:[#allocation2 + $0x25a] sm:$0xff]
    %v6355 = vld [vmem:[#allocation2 + $0x262] sm:$0xff]
    %v6356 = vld [vmem:[#allocation2 + $0x272] sm:$0xff]
    %v6357 = vld [vmem:[#allocation2 + $0x27a] sm:$0xff]
    %v6358 = vld [vmem:[#allocation2 + $0x28a] sm:$0xff]
    %v6359 = vld [vmem:[#allocation2 + $0x292] sm:$0xff]
    %v6360 = vld [vmem:[#allocation2 + $0x2a2] sm:$0xff]
    %v6361 = vld [vmem:[#allocation2 + $0x2aa] sm:$0xff]
    %v6362 = vld [vmem:[#allocation2 + $0x2ba] sm:$0xff]
    %v6363 = vld [vmem:[#allocation2 + $0x2c2] sm:$0xff]
    %v6364 = vld [vmem:[#allocation2 + $0x2d2] sm:$0xff]
    %v6365 = vld [vmem:[#allocation2 + $0x2da] sm:$0xff]
    %v6366 = vld [vmem:[#allocation2 + $0x2ea] sm:$0xff]
    %v6367 = vld [vmem:[#allocation2 + $0x2f2] sm:$0xff]
    %v6368 = vld [vmem:[#allocation2 + $0x302] sm:$0xff]
    %v6369 = vld [vmem:[#allocation2 + $0x30a] sm:$0xff]
    %v6370 = vld [vmem:[#allocation2 + $0x31a] sm:$0xff]
    %v6371 = vld [vmem:[#allocation2 + $0x322] sm:$0xff]
    %v6372 = vpack.c.bf16 %v6309, %v6308
    %v6373 = vpack.c.bf16 %v6311, %v6310
    %v6374 = vpack.c.bf16 %v6313, %v6312
    %v6375 = vpack.c.bf16 %v6315, %v6314
    %v6376 = vpack.c.bf16 %v6317, %v6316
    %v6377 = vpack.c.bf16 %v6319, %v6318
    %v6378 = vpack.c.bf16 %v6321, %v6320
    %v6379 = vpack.c.bf16 %v6323, %v6322
    %v6380 = vpack.c.bf16 %v6325, %v6324
    %v6381 = vpack.c.bf16 %v6327, %v6326
    %v6382 = vpack.c.bf16 %v6329, %v6328
    %v6383 = vpack.c.bf16 %v6331, %v6330
    %v6384 = vpack.c.bf16 %v6333, %v6332
    %v6385 = vpack.c.bf16 %v6335, %v6334
    %v6386 = vpack.c.bf16 %v6337, %v6336
    %v6387 = vpack.c.bf16 %v6339, %v6338
    %v6388 = vpack.c.bf16 %v6341, %v6340
    %v6389 = vpack.c.bf16 %v6343, %v6342
    %v6390 = vpack.c.bf16 %v6345, %v6344
    %v6391 = vpack.c.bf16 %v6347, %v6346
    %v6392 = vpack.c.bf16 %v6349, %v6348
    %v6393 = vpack.c.bf16 %v6351, %v6350
    %v6394 = vpack.c.bf16 %v6353, %v6352
    %v6395 = vpack.c.bf16 %v6355, %v6354
    %v6396 = vpack.c.bf16 %v6357, %v6356
    %v6397 = vpack.c.bf16 %v6359, %v6358
    %v6398 = vpack.c.bf16 %v6361, %v6360
    %v6399 = vpack.c.bf16 %v6363, %v6362
    %v6400 = vpack.c.bf16 %v6365, %v6364
    %v6401 = vpack.c.bf16 %v6367, %v6366
    %v6402 = vpack.c.bf16 %v6369, %v6368
    %v6403 = vpack.c.bf16 %v6371, %v6370
    %s6404 = scalar_lea.vmem [#allocation8], 128
    %v6405 = vld [vmem:[%s6404] sm:$0xf]
    %v6406 = vld [vmem:[%s6404 + $0x4] sm:$0xf]
    %v6407 = vld [vmem:[%s6404 + $0x8] sm:$0xf]
    %v6408 = vld [vmem:[%s6404 + $0xc] sm:$0xf]
    %v6409 = vld [vmem:[%s6404 + $0x10] sm:$0xf]
    %v6410 = vld [vmem:[%s6404 + $0x14] sm:$0xf]
    %v6411 = vld [vmem:[%s6404 + $0x18] sm:$0xf]
    %v6412 = vld [vmem:[%s6404 + $0x1c] sm:$0xf]
    %v6413 = vld [vmem:[%s6404 + $0x20] sm:$0xf]
    %v6414 = vld [vmem:[%s6404 + $0x24] sm:$0xf]
    %v6415 = vld [vmem:[%s6404 + $0x28] sm:$0xf]
    %v6416 = vld [vmem:[%s6404 + $0x2c] sm:$0xf]
    %v6417 = vld [vmem:[%s6404 + $0x30] sm:$0xf]
    %v6418 = vld [vmem:[%s6404 + $0x34] sm:$0xf]
    %v6419 = vld [vmem:[%s6404 + $0x38] sm:$0xf]
    %v6420 = vld [vmem:[%s6404 + $0x3c] sm:$0xf]
    %v6437 = vunpack.c.l.b16 %v6405
    %v6438 = vunpack.c.l.b16 %v6406
    %v6439 = vunpack.c.l.b16 %v6407
    %v6440 = vunpack.c.l.b16 %v6408
    %v6441 = vunpack.c.l.b16 %v6409
    %v6442 = vunpack.c.l.b16 %v6410
    %v6443 = vunpack.c.l.b16 %v6411
    %v6444 = vunpack.c.l.b16 %v6412
    %v6445 = vunpack.c.l.b16 %v6413
    %v6446 = vunpack.c.l.b16 %v6414
    %v6447 = vunpack.c.l.b16 %v6415
    %v6448 = vunpack.c.l.b16 %v6416
    %v6449 = vunpack.c.l.b16 %v6417
    %v6450 = vunpack.c.l.b16 %v6418
    %v6451 = vunpack.c.l.b16 %v6419
    %v6452 = vunpack.c.l.b16 %v6420
    %v6453 = vpack.c.b16 %v6438, %v6437
    %v6454 = vpack.c.b16 %v6440, %v6439
    %v6455 = vpack.c.b16 %v6442, %v6441
    %v6456 = vpack.c.b16 %v6444, %v6443
    %v6457 = vpack.c.b16 %v6446, %v6445
    %v6458 = vpack.c.b16 %v6448, %v6447
    %v6459 = vpack.c.b16 %v6450, %v6449
    %v6460 = vpack.c.b16 %v6452, %v6451
    %6469 = vmatprep.subr.bf16.mxu0 0
    %6470 = vmatpush1.bf16.msra.mxu0 %v6460
    %6471 = vmatprep.subr.bf16.mxu0 0
    %6472 = vmatpush1.bf16.msra.mxu0 %v6459
    %6473 = vmatprep.subr.bf16.mxu0 0
    %6474 = vmatpush1.bf16.msra.mxu0 %v6458
    %6475 = vmatprep.subr.bf16.mxu0 0
    %6476 = vmatpush1.bf16.msra.mxu0 %v6457
    %6477 = vmatprep.subr.bf16.mxu0 0
    %6478 = vmatpush1.bf16.msra.mxu0 %v6456
    %6479 = vmatprep.subr.bf16.mxu0 0
    %6480 = vmatpush1.bf16.msra.mxu0 %v6455
    %6481 = vmatprep.subr.bf16.mxu0 0
    %6482 = vmatpush1.bf16.msra.mxu0 %v6454
    %6483 = vmatprep.subr.bf16.mxu0 0
    %6484 = vmatpush1.bf16.msra.mxu0 %v6453
    %6485 = vmatprep.subr.bf16.mxu0 0
    %6486 = vmatpush2.bf16.msra.mxu0 0
    %6487 = vmatprep.subr.bf16.mxu0 0
    %6488 = vmatpush2.bf16.msra.mxu0 0
    %6489 = vmatprep.subr.bf16.mxu0 0
    %6490 = vmatpush2.bf16.msra.mxu0 0
    %6491 = vmatprep.subr.bf16.mxu0 0
    %6492 = vmatpush2.bf16.msra.mxu0 0
    %6493 = vmatprep.subr.bf16.mxu0 0
    %6494 = vmatpush2.bf16.msra.mxu0 0
    %6495 = vmatprep.subr.bf16.mxu0 0
    %6496 = vmatpush2.bf16.msra.mxu0 0
    %6497 = vmatprep.subr.bf16.mxu0 0
    %6498 = vmatpush2.bf16.msra.mxu0 0
    %6499 = vmatprep.subr.bf16.mxu0 0
    %6500 = vmatpush2.bf16.msra.mxu0 0
    %6501 = vmatprep.mubr.bf16.mxu0 0
    %6502 = vmatmul.mubr.bf16.gmra.mxu0 %v6372
    %v6503 = vpop.f32.mrf.mxu0
    %v6504 = vadd.f32 0.0, %v6503
    %v6505 = vpop.f32.mrf.mxu0
    %v6506 = vpop.f32.mrf.mxu0
    %v6507 = vadd.f32 0.0, %v6506
    %v6508 = vpop.f32.mrf.mxu0
    %6509 = vmatprep.mubr.bf16.mxu0 0
    %6510 = vmatmul.mubr.bf16.gmra.mxu0 %v6373
    %v6511 = vpop.f32.mrf.mxu0
    %v6512 = vadd.f32 0.0, %v6511
    %v6513 = vpop.f32.mrf.mxu0
    %v6514 = vpop.f32.mrf.mxu0
    %v6515 = vadd.f32 0.0, %v6514
    %v6516 = vpop.f32.mrf.mxu0
    %6517 = vmatprep.mubr.bf16.mxu0 0
    %6518 = vmatmul.mubr.bf16.gmra.mxu0 %v6374
    %v6519 = vpop.f32.mrf.mxu0
    %v6520 = vadd.f32 0.0, %v6519
    %v6521 = vpop.f32.mrf.mxu0
    %v6522 = vpop.f32.mrf.mxu0
    %v6523 = vadd.f32 0.0, %v6522
    %v6524 = vpop.f32.mrf.mxu0
    %6525 = vmatprep.mubr.bf16.mxu0 0
    %6526 = vmatmul.mubr.bf16.gmra.mxu0 %v6375
    %v6527 = vpop.f32.mrf.mxu0
    %v6528 = vadd.f32 0.0, %v6527
    %v6529 = vpop.f32.mrf.mxu0
    %v6530 = vpop.f32.mrf.mxu0
    %v6531 = vadd.f32 0.0, %v6530
    %v6532 = vpop.f32.mrf.mxu0
    %6533 = vmatprep.mubr.bf16.mxu0 0
    %6534 = vmatmul.mubr.bf16.gmra.mxu0 %v6376
    %v6535 = vpop.f32.mrf.mxu0
    %v6536 = vadd.f32 0.0, %v6535
    %v6537 = vpop.f32.mrf.mxu0
    %v6538 = vpop.f32.mrf.mxu0
    %v6539 = vadd.f32 0.0, %v6538
    %v6540 = vpop.f32.mrf.mxu0
    %6541 = vmatprep.mubr.bf16.mxu0 0
    %6542 = vmatmul.mubr.bf16.gmra.mxu0 %v6377
    %v6543 = vpop.f32.mrf.mxu0
    %v6544 = vadd.f32 0.0, %v6543
    %v6545 = vpop.f32.mrf.mxu0
    %v6546 = vpop.f32.mrf.mxu0
    %v6547 = vadd.f32 0.0, %v6546
    %v6548 = vpop.f32.mrf.mxu0
    %6549 = vmatprep.mubr.bf16.mxu0 0
    %6550 = vmatmul.mubr.bf16.gmra.mxu0 %v6378
    %v6551 = vpop.f32.mrf.mxu0
    %v6552 = vadd.f32 0.0, %v6551
    %v6553 = vpop.f32.mrf.mxu0
    %v6554 = vpop.f32.mrf.mxu0
    %v6555 = vadd.f32 0.0, %v6554
    %v6556 = vpop.f32.mrf.mxu0
    %6557 = vmatprep.mubr.bf16.mxu0 0
    %6558 = vmatmul.mubr.bf16.gmra.mxu0 %v6379
    %v6559 = vpop.f32.mrf.mxu0
    %v6560 = vadd.f32 0.0, %v6559
    %v6561 = vpop.f32.mrf.mxu0
    %v6562 = vpop.f32.mrf.mxu0
    %v6563 = vadd.f32 0.0, %v6562
    %v6564 = vpop.f32.mrf.mxu0
    %6565 = vmatprep.mubr.bf16.mxu0 0
    %6566 = vmatmul.mubr.bf16.gmra.mxu0 %v6380
    %v6567 = vpop.f32.mrf.mxu0
    %v6568 = vadd.f32 0.0, %v6567
    %v6569 = vpop.f32.mrf.mxu0
    %v6570 = vpop.f32.mrf.mxu0
    %v6571 = vadd.f32 0.0, %v6570
    %v6572 = vpop.f32.mrf.mxu0
    %6573 = vmatprep.mubr.bf16.mxu0 0
    %6574 = vmatmul.mubr.bf16.gmra.mxu0 %v6381
    %v6575 = vpop.f32.mrf.mxu0
    %v6576 = vadd.f32 0.0, %v6575
    %v6577 = vpop.f32.mrf.mxu0
    %v6578 = vpop.f32.mrf.mxu0
    %v6579 = vadd.f32 0.0, %v6578
    %v6580 = vpop.f32.mrf.mxu0
    %6581 = vmatprep.mubr.bf16.mxu0 0
    %6582 = vmatmul.mubr.bf16.gmra.mxu0 %v6382
    %v6583 = vpop.f32.mrf.mxu0
    %v6584 = vadd.f32 0.0, %v6583
    %v6585 = vpop.f32.mrf.mxu0
    %v6586 = vpop.f32.mrf.mxu0
    %v6587 = vadd.f32 0.0, %v6586
    %v6588 = vpop.f32.mrf.mxu0
    %6589 = vmatprep.mubr.bf16.mxu0 0
    %6590 = vmatmul.mubr.bf16.gmra.mxu0 %v6383
    %v6591 = vpop.f32.mrf.mxu0
    %v6592 = vadd.f32 0.0, %v6591
    %v6593 = vpop.f32.mrf.mxu0
    %v6594 = vpop.f32.mrf.mxu0
    %v6595 = vadd.f32 0.0, %v6594
    %v6596 = vpop.f32.mrf.mxu0
    %6597 = vmatprep.mubr.bf16.mxu0 0
    %6598 = vmatmul.mubr.bf16.gmra.mxu0 %v6384
    %v6599 = vpop.f32.mrf.mxu0
    %v6600 = vadd.f32 0.0, %v6599
    %v6601 = vpop.f32.mrf.mxu0
    %v6602 = vpop.f32.mrf.mxu0
    %v6603 = vadd.f32 0.0, %v6602
    %v6604 = vpop.f32.mrf.mxu0
    %6605 = vmatprep.mubr.bf16.mxu0 0
    %6606 = vmatmul.mubr.bf16.gmra.mxu0 %v6385
    %v6607 = vpop.f32.mrf.mxu0
    %v6608 = vadd.f32 0.0, %v6607
    %v6609 = vpop.f32.mrf.mxu0
    %v6610 = vpop.f32.mrf.mxu0
    %v6611 = vadd.f32 0.0, %v6610
    %v6612 = vpop.f32.mrf.mxu0
    %6613 = vmatprep.mubr.bf16.mxu0 0
    %6614 = vmatmul.mubr.bf16.gmra.mxu0 %v6386
    %v6615 = vpop.f32.mrf.mxu0
    %v6616 = vadd.f32 0.0, %v6615
    %v6617 = vpop.f32.mrf.mxu0
    %v6618 = vpop.f32.mrf.mxu0
    %v6619 = vadd.f32 0.0, %v6618
    %v6620 = vpop.f32.mrf.mxu0
    %6621 = vmatprep.mubr.bf16.mxu0 0
    %6622 = vmatmul.mubr.bf16.gmra.mxu0 %v6387
    %v6623 = vpop.f32.mrf.mxu0
    %v6624 = vadd.f32 0.0, %v6623
    %v6625 = vpop.f32.mrf.mxu0
    %v6626 = vpop.f32.mrf.mxu0
    %v6627 = vadd.f32 0.0, %v6626
    %v6628 = vpop.f32.mrf.mxu0
    %6629 = vmatprep.mubr.bf16.mxu0 0
    %6630 = vmatmul.mubr.bf16.gmra.mxu0 %v6388
    %v6631 = vpop.f32.mrf.mxu0
    %v6632 = vadd.f32 0.0, %v6631
    %v6633 = vpop.f32.mrf.mxu0
    %v6634 = vpop.f32.mrf.mxu0
    %v6635 = vadd.f32 0.0, %v6634
    %v6636 = vpop.f32.mrf.mxu0
    %6637 = vmatprep.mubr.bf16.mxu0 0
    %6638 = vmatmul.mubr.bf16.gmra.mxu0 %v6389
    %v6639 = vpop.f32.mrf.mxu0
    %v6640 = vadd.f32 0.0, %v6639
    %v6641 = vpop.f32.mrf.mxu0
    %v6642 = vpop.f32.mrf.mxu0
    %v6643 = vadd.f32 0.0, %v6642
    %v6644 = vpop.f32.mrf.mxu0
    %6645 = vmatprep.mubr.bf16.mxu0 0
    %6646 = vmatmul.mubr.bf16.gmra.mxu0 %v6390
    %v6647 = vpop.f32.mrf.mxu0
    %v6648 = vadd.f32 0.0, %v6647
    %v6649 = vpop.f32.mrf.mxu0
    %v6650 = vpop.f32.mrf.mxu0
    %v6651 = vadd.f32 0.0, %v6650
    %v6652 = vpop.f32.mrf.mxu0
    %6653 = vmatprep.mubr.bf16.mxu0 0
    %6654 = vmatmul.mubr.bf16.gmra.mxu0 %v6391
    %v6655 = vpop.f32.mrf.mxu0
    %v6656 = vadd.f32 0.0, %v6655
    %v6657 = vpop.f32.mrf.mxu0
    %v6658 = vpop.f32.mrf.mxu0
    %v6659 = vadd.f32 0.0, %v6658
    %v6660 = vpop.f32.mrf.mxu0
    %6661 = vmatprep.mubr.bf16.mxu0 0
    %6662 = vmatmul.mubr.bf16.gmra.mxu0 %v6392
    %v6663 = vpop.f32.mrf.mxu0
    %v6664 = vadd.f32 0.0, %v6663
    %v6665 = vpop.f32.mrf.mxu0
    %v6666 = vpop.f32.mrf.mxu0
    %v6667 = vadd.f32 0.0, %v6666
    %v6668 = vpop.f32.mrf.mxu0
    %6669 = vmatprep.mubr.bf16.mxu0 0
    %6670 = vmatmul.mubr.bf16.gmra.mxu0 %v6393
    %v6671 = vpop.f32.mrf.mxu0
    %v6672 = vadd.f32 0.0, %v6671
    %v6673 = vpop.f32.mrf.mxu0
    %v6674 = vpop.f32.mrf.mxu0
    %v6675 = vadd.f32 0.0, %v6674
    %v6676 = vpop.f32.mrf.mxu0
    %6677 = vmatprep.mubr.bf16.mxu0 0
    %6678 = vmatmul.mubr.bf16.gmra.mxu0 %v6394
    %v6679 = vpop.f32.mrf.mxu0
    %v6680 = vadd.f32 0.0, %v6679
    %v6681 = vpop.f32.mrf.mxu0
    %v6682 = vpop.f32.mrf.mxu0
    %v6683 = vadd.f32 0.0, %v6682
    %v6684 = vpop.f32.mrf.mxu0
    %6685 = vmatprep.mubr.bf16.mxu0 0
    %6686 = vmatmul.mubr.bf16.gmra.mxu0 %v6395
    %v6687 = vpop.f32.mrf.mxu0
    %v6688 = vadd.f32 0.0, %v6687
    %v6689 = vpop.f32.mrf.mxu0
    %v6690 = vpop.f32.mrf.mxu0
    %v6691 = vadd.f32 0.0, %v6690
    %v6692 = vpop.f32.mrf.mxu0
    %6693 = vmatprep.mubr.bf16.mxu0 0
    %6694 = vmatmul.mubr.bf16.gmra.mxu0 %v6396
    %v6695 = vpop.f32.mrf.mxu0
    %v6696 = vadd.f32 0.0, %v6695
    %v6697 = vpop.f32.mrf.mxu0
    %v6698 = vpop.f32.mrf.mxu0
    %v6699 = vadd.f32 0.0, %v6698
    %v6700 = vpop.f32.mrf.mxu0
    %6701 = vmatprep.mubr.bf16.mxu0 0
    %6702 = vmatmul.mubr.bf16.gmra.mxu0 %v6397
    %v6703 = vpop.f32.mrf.mxu0
    %v6704 = vadd.f32 0.0, %v6703
    %v6705 = vpop.f32.mrf.mxu0
    %v6706 = vpop.f32.mrf.mxu0
    %v6707 = vadd.f32 0.0, %v6706
    %v6708 = vpop.f32.mrf.mxu0
    %6709 = vmatprep.mubr.bf16.mxu0 0
    %6710 = vmatmul.mubr.bf16.gmra.mxu0 %v6398
    %v6711 = vpop.f32.mrf.mxu0
    %v6712 = vadd.f32 0.0, %v6711
    %v6713 = vpop.f32.mrf.mxu0
    %v6714 = vpop.f32.mrf.mxu0
    %v6715 = vadd.f32 0.0, %v6714
    %v6716 = vpop.f32.mrf.mxu0
    %6717 = vmatprep.mubr.bf16.mxu0 0
    %6718 = vmatmul.mubr.bf16.gmra.mxu0 %v6399
    %v6719 = vpop.f32.mrf.mxu0
    %v6720 = vadd.f32 0.0, %v6719
    %v6721 = vpop.f32.mrf.mxu0
    %v6722 = vpop.f32.mrf.mxu0
    %v6723 = vadd.f32 0.0, %v6722
    %v6724 = vpop.f32.mrf.mxu0
    %6725 = vmatprep.mubr.bf16.mxu0 0
    %6726 = vmatmul.mubr.bf16.gmra.mxu0 %v6400
    %v6727 = vpop.f32.mrf.mxu0
    %v6728 = vadd.f32 0.0, %v6727
    %v6729 = vpop.f32.mrf.mxu0
    %v6730 = vpop.f32.mrf.mxu0
    %v6731 = vadd.f32 0.0, %v6730
    %v6732 = vpop.f32.mrf.mxu0
    %6733 = vmatprep.mubr.bf16.mxu0 0
    %6734 = vmatmul.mubr.bf16.gmra.mxu0 %v6401
    %v6735 = vpop.f32.mrf.mxu0
    %v6736 = vadd.f32 0.0, %v6735
    %v6737 = vpop.f32.mrf.mxu0
    %v6738 = vpop.f32.mrf.mxu0
    %v6739 = vadd.f32 0.0, %v6738
    %v6740 = vpop.f32.mrf.mxu0
    %6741 = vmatprep.mubr.bf16.mxu0 0
    %6742 = vmatmul.mubr.bf16.gmra.mxu0 %v6402
    %v6743 = vpop.f32.mrf.mxu0
    %v6744 = vadd.f32 0.0, %v6743
    %v6745 = vpop.f32.mrf.mxu0
    %v6746 = vpop.f32.mrf.mxu0
    %v6747 = vadd.f32 0.0, %v6746
    %v6748 = vpop.f32.mrf.mxu0
    %6749 = vmatprep.mubr.bf16.mxu0 0
    %6750 = vmatmul.mubr.bf16.gmra.mxu0 %v6403
    %v6751 = vpop.f32.mrf.mxu0
    %v6752 = vadd.f32 0.0, %v6751
    %v6753 = vpop.f32.mrf.mxu0
    %v6754 = vpop.f32.mrf.mxu0
    %v6755 = vadd.f32 0.0, %v6754
    %v6756 = vpop.f32.mrf.mxu0
    %6757 = vdwg.mxu0
    %v6758 = vadd.f32 %v6054, %v6504
    %v6759 = vadd.f32 %v6057, %v6507
    %v6760 = vadd.f32 %v6062, %v6512
    %v6761 = vadd.f32 %v6065, %v6515
    %v6762 = vadd.f32 %v6070, %v6520
    %v6763 = vadd.f32 %v6073, %v6523
    %v6764 = vadd.f32 %v6078, %v6528
    %v6765 = vadd.f32 %v6081, %v6531
    %v6766 = vadd.f32 %v6086, %v6536
    %v6767 = vadd.f32 %v6089, %v6539
    %v6768 = vadd.f32 %v6094, %v6544
    %v6769 = vadd.f32 %v6097, %v6547
    %v6770 = vadd.f32 %v6102, %v6552
    %v6771 = vadd.f32 %v6105, %v6555
    %v6772 = vadd.f32 %v6110, %v6560
    %v6773 = vadd.f32 %v6113, %v6563
    %v6774 = vadd.f32 %v6118, %v6568
    %v6775 = vadd.f32 %v6121, %v6571
    %v6776 = vadd.f32 %v6126, %v6576
    %v6777 = vadd.f32 %v6129, %v6579
    %v6778 = vadd.f32 %v6134, %v6584
    %v6779 = vadd.f32 %v6137, %v6587
    %v6780 = vadd.f32 %v6142, %v6592
    %v6781 = vadd.f32 %v6145, %v6595
    %v6782 = vadd.f32 %v6150, %v6600
    %v6783 = vadd.f32 %v6153, %v6603
    %v6784 = vadd.f32 %v6158, %v6608
    %v6785 = vadd.f32 %v6161, %v6611
    %v6786 = vadd.f32 %v6166, %v6616
    %v6787 = vadd.f32 %v6169, %v6619
    %v6788 = vadd.f32 %v6174, %v6624
    %v6789 = vadd.f32 %v6177, %v6627
    %v6790 = vadd.f32 %v6182, %v6632
    %v6791 = vadd.f32 %v6185, %v6635
    %v6792 = vadd.f32 %v6190, %v6640
    %v6793 = vadd.f32 %v6193, %v6643
    %v6794 = vadd.f32 %v6198, %v6648
    %v6795 = vadd.f32 %v6201, %v6651
    %v6796 = vadd.f32 %v6206, %v6656
    %v6797 = vadd.f32 %v6209, %v6659
    %v6798 = vadd.f32 %v6214, %v6664
    %v6799 = vadd.f32 %v6217, %v6667
    %v6800 = vadd.f32 %v6222, %v6672
    %v6801 = vadd.f32 %v6225, %v6675
    %v6802 = vadd.f32 %v6230, %v6680
    %v6803 = vadd.f32 %v6233, %v6683
    %v6804 = vadd.f32 %v6238, %v6688
    %v6805 = vadd.f32 %v6241, %v6691
    %v6806 = vadd.f32 %v6246, %v6696
    %v6807 = vadd.f32 %v6249, %v6699
    %v6808 = vadd.f32 %v6254, %v6704
    %v6809 = vadd.f32 %v6257, %v6707
    %v6810 = vadd.f32 %v6262, %v6712
    %v6811 = vadd.f32 %v6265, %v6715
    %v6812 = vadd.f32 %v6270, %v6720
    %v6813 = vadd.f32 %v6273, %v6723
    %v6814 = vadd.f32 %v6278, %v6728
    %v6815 = vadd.f32 %v6281, %v6731
    %v6816 = vadd.f32 %v6286, %v6736
    %v6817 = vadd.f32 %v6289, %v6739
    %v6818 = vadd.f32 %v6294, %v6744
    %v6819 = vadd.f32 %v6297, %v6747
    %v6820 = vadd.f32 %v6302, %v6752
    %v6821 = vadd.f32 %v6305, %v6755
    %v6822 = vld [vmem:[%s241] sm:$0xff]
    %v6823 = vld [vmem:[%s241 + $0x8] sm:$0xff]
    %v6824 = vld [vmem:[%s241 + $0x18] sm:$0xff]
    %v6825 = vld [vmem:[%s241 + $0x20] sm:$0xff]
    %v6826 = vld [vmem:[%s241 + $0x30] sm:$0xff]
    %v6827 = vld [vmem:[%s241 + $0x38] sm:$0xff]
    %v6828 = vld [vmem:[%s241 + $0x48] sm:$0xff]
    %v6829 = vld [vmem:[%s241 + $0x50] sm:$0xff]
    %v6830 = vld [vmem:[%s241 + $0x60] sm:$0xff]
    %v6831 = vld [vmem:[%s241 + $0x68] sm:$0xff]
    %v6832 = vld [vmem:[%s241 + $0x78] sm:$0xff]
    %v6833 = vld [vmem:[%s241 + $0x80] sm:$0xff]
    %v6834 = vld [vmem:[%s241 + $0x90] sm:$0xff]
    %v6835 = vld [vmem:[%s241 + $0x98] sm:$0xff]
    %v6836 = vld [vmem:[%s241 + $0xa8] sm:$0xff]
    %v6837 = vld [vmem:[%s241 + $0xb0] sm:$0xff]
    %v6838 = vld [vmem:[%s241 + $0xc0] sm:$0xff]
    %v6839 = vld [vmem:[%s241 + $0xc8] sm:$0xff]
    %v6840 = vld [vmem:[%s241 + $0xd8] sm:$0xff]
    %v6841 = vld [vmem:[%s241 + $0xe0] sm:$0xff]
    %v6842 = vld [vmem:[%s241 + $0xf0] sm:$0xff]
    %v6843 = vld [vmem:[%s241 + $0xf8] sm:$0xff]
    %v6844 = vld [vmem:[%s241 + $0x108] sm:$0xff]
    %v6845 = vld [vmem:[%s241 + $0x110] sm:$0xff]
    %v6846 = vld [vmem:[%s241 + $0x120] sm:$0xff]
    %v6847 = vld [vmem:[%s241 + $0x128] sm:$0xff]
    %v6848 = vld [vmem:[%s241 + $0x138] sm:$0xff]
    %v6849 = vld [vmem:[%s241 + $0x140] sm:$0xff]
    %v6850 = vld [vmem:[%s241 + $0x150] sm:$0xff]
    %v6851 = vld [vmem:[%s241 + $0x158] sm:$0xff]
    %v6852 = vld [vmem:[%s241 + $0x168] sm:$0xff]
    %v6853 = vld [vmem:[%s241 + $0x170] sm:$0xff]
    %v6854 = vld [vmem:[%s241 + $0x1b0] sm:$0xff]
    %v6855 = vld [vmem:[%s241 + $0x1b8] sm:$0xff]
    %v6856 = vld [vmem:[%s241 + $0x1c8] sm:$0xff]
    %v6857 = vld [vmem:[%s241 + $0x1d0] sm:$0xff]
    %v6858 = vld [vmem:[%s241 + $0x1e0] sm:$0xff]
    %v6859 = vld [vmem:[%s241 + $0x1e8] sm:$0xff]
    %v6860 = vld [vmem:[%s241 + $0x1f8] sm:$0xff]
    %v6861 = vld [vmem:[%s241 + $0x200] sm:$0xff]
    %v6862 = vld [vmem:[%s241 + $0x210] sm:$0xff]
    %v6863 = vld [vmem:[%s241 + $0x218] sm:$0xff]
    %v6864 = vld [vmem:[%s241 + $0x228] sm:$0xff]
    %v6865 = vld [vmem:[%s241 + $0x230] sm:$0xff]
    %v6866 = vld [vmem:[%s241 + $0x240] sm:$0xff]
    %v6867 = vld [vmem:[%s241 + $0x248] sm:$0xff]
    %v6868 = vld [vmem:[%s241 + $0x258] sm:$0xff]
    %v6869 = vld [vmem:[%s241 + $0x260] sm:$0xff]
    %v6870 = vld [vmem:[%s241 + $0x270] sm:$0xff]
    %v6871 = vld [vmem:[%s241 + $0x278] sm:$0xff]
    %v6872 = vld [vmem:[%s241 + $0x288] sm:$0xff]
    %v6873 = vld [vmem:[%s241 + $0x290] sm:$0xff]
    %v6874 = vld [vmem:[%s241 + $0x2a0] sm:$0xff]
    %v6875 = vld [vmem:[%s241 + $0x2a8] sm:$0xff]
    %v6876 = vld [vmem:[%s241 + $0x2b8] sm:$0xff]
    %v6877 = vld [vmem:[%s241 + $0x2c0] sm:$0xff]
    %v6878 = vld [vmem:[%s241 + $0x2d0] sm:$0xff]
    %v6879 = vld [vmem:[%s241 + $0x2d8] sm:$0xff]
    %v6880 = vld [vmem:[%s241 + $0x2e8] sm:$0xff]
    %v6881 = vld [vmem:[%s241 + $0x2f0] sm:$0xff]
    %v6882 = vld [vmem:[%s241 + $0x300] sm:$0xff]
    %v6883 = vld [vmem:[%s241 + $0x308] sm:$0xff]
    %v6884 = vld [vmem:[%s241 + $0x318] sm:$0xff]
    %v6885 = vld [vmem:[%s241 + $0x320] sm:$0xff]
    %v6886 = vpack.c.bf16 %v6823, %v6822
    %v6887 = vpack.c.bf16 %v6825, %v6824
    %v6888 = vpack.c.bf16 %v6827, %v6826
    %v6889 = vpack.c.bf16 %v6829, %v6828
    %v6890 = vpack.c.bf16 %v6831, %v6830
    %v6891 = vpack.c.bf16 %v6833, %v6832
    %v6892 = vpack.c.bf16 %v6835, %v6834
    %v6893 = vpack.c.bf16 %v6837, %v6836
    %v6894 = vpack.c.bf16 %v6839, %v6838
    %v6895 = vpack.c.bf16 %v6841, %v6840
    %v6896 = vpack.c.bf16 %v6843, %v6842
    %v6897 = vpack.c.bf16 %v6845, %v6844
    %v6898 = vpack.c.bf16 %v6847, %v6846
    %v6899 = vpack.c.bf16 %v6849, %v6848
    %v6900 = vpack.c.bf16 %v6851, %v6850
    %v6901 = vpack.c.bf16 %v6853, %v6852
    %v6902 = vpack.c.bf16 %v6855, %v6854
    %v6903 = vpack.c.bf16 %v6857, %v6856
    %v6904 = vpack.c.bf16 %v6859, %v6858
    %v6905 = vpack.c.bf16 %v6861, %v6860
    %v6906 = vpack.c.bf16 %v6863, %v6862
    %v6907 = vpack.c.bf16 %v6865, %v6864
    %v6908 = vpack.c.bf16 %v6867, %v6866
    %v6909 = vpack.c.bf16 %v6869, %v6868
    %v6910 = vpack.c.bf16 %v6871, %v6870
    %v6911 = vpack.c.bf16 %v6873, %v6872
    %v6912 = vpack.c.bf16 %v6875, %v6874
    %v6913 = vpack.c.bf16 %v6877, %v6876
    %v6914 = vpack.c.bf16 %v6879, %v6878
    %v6915 = vpack.c.bf16 %v6881, %v6880
    %v6916 = vpack.c.bf16 %v6883, %v6882
    %v6917 = vpack.c.bf16 %v6885, %v6884
    %s6918 = scalar_lea.vmem [#allocation8], 192
    %v6919 = vld [vmem:[%s6918] sm:$0xf]
    %v6920 = vld [vmem:[%s6918 + $0x4] sm:$0xf]
    %v6921 = vld [vmem:[%s6918 + $0x8] sm:$0xf]
    %v6922 = vld [vmem:[%s6918 + $0xc] sm:$0xf]
    %v6923 = vld [vmem:[%s6918 + $0x10] sm:$0xf]
    %v6924 = vld [vmem:[%s6918 + $0x14] sm:$0xf]
    %v6925 = vld [vmem:[%s6918 + $0x18] sm:$0xf]
    %v6926 = vld [vmem:[%s6918 + $0x1c] sm:$0xf]
    %v6927 = vld [vmem:[%s6918 + $0x20] sm:$0xf]
    %v6928 = vld [vmem:[%s6918 + $0x24] sm:$0xf]
    %v6929 = vld [vmem:[%s6918 + $0x28] sm:$0xf]
    %v6930 = vld [vmem:[%s6918 + $0x2c] sm:$0xf]
    %v6931 = vld [vmem:[%s6918 + $0x30] sm:$0xf]
    %v6932 = vld [vmem:[%s6918 + $0x34] sm:$0xf]
    %v6933 = vld [vmem:[%s6918 + $0x38] sm:$0xf]
    %v6934 = vld [vmem:[%s6918 + $0x3c] sm:$0xf]
    %v6951 = vunpack.c.l.b16 %v6919
    %v6952 = vunpack.c.l.b16 %v6920
    %v6953 = vunpack.c.l.b16 %v6921
    %v6954 = vunpack.c.l.b16 %v6922
    %v6955 = vunpack.c.l.b16 %v6923
    %v6956 = vunpack.c.l.b16 %v6924
    %v6957 = vunpack.c.l.b16 %v6925
    %v6958 = vunpack.c.l.b16 %v6926
    %v6959 = vunpack.c.l.b16 %v6927
    %v6960 = vunpack.c.l.b16 %v6928
    %v6961 = vunpack.c.l.b16 %v6929
    %v6962 = vunpack.c.l.b16 %v6930
    %v6963 = vunpack.c.l.b16 %v6931
    %v6964 = vunpack.c.l.b16 %v6932
    %v6965 = vunpack.c.l.b16 %v6933
    %v6966 = vunpack.c.l.b16 %v6934
    %v6967 = vpack.c.b16 %v6952, %v6951
    %v6968 = vpack.c.b16 %v6954, %v6953
    %v6969 = vpack.c.b16 %v6956, %v6955
    %v6970 = vpack.c.b16 %v6958, %v6957
    %v6971 = vpack.c.b16 %v6960, %v6959
    %v6972 = vpack.c.b16 %v6962, %v6961
    %v6973 = vpack.c.b16 %v6964, %v6963
    %v6974 = vpack.c.b16 %v6966, %v6965
    %6983 = vmatprep.subr.bf16.mxu0 0
    %6984 = vmatpush1.bf16.msra.mxu0 %v6974
    %6985 = vmatprep.subr.bf16.mxu0 0
    %6986 = vmatpush1.bf16.msra.mxu0 %v6973
    %6987 = vmatprep.subr.bf16.mxu0 0
    %6988 = vmatpush1.bf16.msra.mxu0 %v6972
    %6989 = vmatprep.subr.bf16.mxu0 0
    %6990 = vmatpush1.bf16.msra.mxu0 %v6971
    %6991 = vmatprep.subr.bf16.mxu0 0
    %6992 = vmatpush1.bf16.msra.mxu0 %v6970
    %6993 = vmatprep.subr.bf16.mxu0 0
    %6994 = vmatpush1.bf16.msra.mxu0 %v6969
    %6995 = vmatprep.subr.bf16.mxu0 0
    %6996 = vmatpush1.bf16.msra.mxu0 %v6968
    %6997 = vmatprep.subr.bf16.mxu0 0
    %6998 = vmatpush1.bf16.msra.mxu0 %v6967
    %6999 = vmatprep.subr.bf16.mxu0 0
    %7000 = vmatpush2.bf16.msra.mxu0 0
    %7001 = vmatprep.subr.bf16.mxu0 0
    %7002 = vmatpush2.bf16.msra.mxu0 0
    %7003 = vmatprep.subr.bf16.mxu0 0
    %7004 = vmatpush2.bf16.msra.mxu0 0
    %7005 = vmatprep.subr.bf16.mxu0 0
    %7006 = vmatpush2.bf16.msra.mxu0 0
    %7007 = vmatprep.subr.bf16.mxu0 0
    %7008 = vmatpush2.bf16.msra.mxu0 0
    %7009 = vmatprep.subr.bf16.mxu0 0
    %7010 = vmatpush2.bf16.msra.mxu0 0
    %7011 = vmatprep.subr.bf16.mxu0 0
    %7012 = vmatpush2.bf16.msra.mxu0 0
    %7013 = vmatprep.subr.bf16.mxu0 0
    %7014 = vmatpush2.bf16.msra.mxu0 0
    %7015 = vmatprep.mubr.bf16.mxu0 0
    %7016 = vmatmul.mubr.bf16.gmra.mxu0 %v6886
    %v7017 = vpop.f32.mrf.mxu0
    %v7018 = vadd.f32 0.0, %v7017
    %v7019 = vpop.f32.mrf.mxu0
    %v7020 = vpop.f32.mrf.mxu0
    %v7021 = vadd.f32 0.0, %v7020
    %v7022 = vpop.f32.mrf.mxu0
    %7023 = vmatprep.mubr.bf16.mxu0 0
    %7024 = vmatmul.mubr.bf16.gmra.mxu0 %v6887
    %v7025 = vpop.f32.mrf.mxu0
    %v7026 = vadd.f32 0.0, %v7025
    %v7027 = vpop.f32.mrf.mxu0
    %v7028 = vpop.f32.mrf.mxu0
    %v7029 = vadd.f32 0.0, %v7028
    %v7030 = vpop.f32.mrf.mxu0
    %7031 = vmatprep.mubr.bf16.mxu0 0
    %7032 = vmatmul.mubr.bf16.gmra.mxu0 %v6888
    %v7033 = vpop.f32.mrf.mxu0
    %v7034 = vadd.f32 0.0, %v7033
    %v7035 = vpop.f32.mrf.mxu0
    %v7036 = vpop.f32.mrf.mxu0
    %v7037 = vadd.f32 0.0, %v7036
    %v7038 = vpop.f32.mrf.mxu0
    %7039 = vmatprep.mubr.bf16.mxu0 0
    %7040 = vmatmul.mubr.bf16.gmra.mxu0 %v6889
    %v7041 = vpop.f32.mrf.mxu0
    %v7042 = vadd.f32 0.0, %v7041
    %v7043 = vpop.f32.mrf.mxu0
    %v7044 = vpop.f32.mrf.mxu0
    %v7045 = vadd.f32 0.0, %v7044
    %v7046 = vpop.f32.mrf.mxu0
    %7047 = vmatprep.mubr.bf16.mxu0 0
    %7048 = vmatmul.mubr.bf16.gmra.mxu0 %v6890
    %v7049 = vpop.f32.mrf.mxu0
    %v7050 = vadd.f32 0.0, %v7049
    %v7051 = vpop.f32.mrf.mxu0
    %v7052 = vpop.f32.mrf.mxu0
    %v7053 = vadd.f32 0.0, %v7052
    %v7054 = vpop.f32.mrf.mxu0
    %7055 = vmatprep.mubr.bf16.mxu0 0
    %7056 = vmatmul.mubr.bf16.gmra.mxu0 %v6891
    %v7057 = vpop.f32.mrf.mxu0
    %v7058 = vadd.f32 0.0, %v7057
    %v7059 = vpop.f32.mrf.mxu0
    %v7060 = vpop.f32.mrf.mxu0
    %v7061 = vadd.f32 0.0, %v7060
    %v7062 = vpop.f32.mrf.mxu0
    %7063 = vmatprep.mubr.bf16.mxu0 0
    %7064 = vmatmul.mubr.bf16.gmra.mxu0 %v6892
    %v7065 = vpop.f32.mrf.mxu0
    %v7066 = vadd.f32 0.0, %v7065
    %v7067 = vpop.f32.mrf.mxu0
    %v7068 = vpop.f32.mrf.mxu0
    %v7069 = vadd.f32 0.0, %v7068
    %v7070 = vpop.f32.mrf.mxu0
    %7071 = vmatprep.mubr.bf16.mxu0 0
    %7072 = vmatmul.mubr.bf16.gmra.mxu0 %v6893
    %v7073 = vpop.f32.mrf.mxu0
    %v7074 = vadd.f32 0.0, %v7073
    %v7075 = vpop.f32.mrf.mxu0
    %v7076 = vpop.f32.mrf.mxu0
    %v7077 = vadd.f32 0.0, %v7076
    %v7078 = vpop.f32.mrf.mxu0
    %7079 = vmatprep.mubr.bf16.mxu0 0
    %7080 = vmatmul.mubr.bf16.gmra.mxu0 %v6894
    %v7081 = vpop.f32.mrf.mxu0
    %v7082 = vadd.f32 0.0, %v7081
    %v7083 = vpop.f32.mrf.mxu0
    %v7084 = vpop.f32.mrf.mxu0
    %v7085 = vadd.f32 0.0, %v7084
    %v7086 = vpop.f32.mrf.mxu0
    %7087 = vmatprep.mubr.bf16.mxu0 0
    %7088 = vmatmul.mubr.bf16.gmra.mxu0 %v6895
    %v7089 = vpop.f32.mrf.mxu0
    %v7090 = vadd.f32 0.0, %v7089
    %v7091 = vpop.f32.mrf.mxu0
    %v7092 = vpop.f32.mrf.mxu0
    %v7093 = vadd.f32 0.0, %v7092
    %v7094 = vpop.f32.mrf.mxu0
    %7095 = vmatprep.mubr.bf16.mxu0 0
    %7096 = vmatmul.mubr.bf16.gmra.mxu0 %v6896
    %v7097 = vpop.f32.mrf.mxu0
    %v7098 = vadd.f32 0.0, %v7097
    %v7099 = vpop.f32.mrf.mxu0
    %v7100 = vpop.f32.mrf.mxu0
    %v7101 = vadd.f32 0.0, %v7100
    %v7102 = vpop.f32.mrf.mxu0
    %7103 = vmatprep.mubr.bf16.mxu0 0
    %7104 = vmatmul.mubr.bf16.gmra.mxu0 %v6897
    %v7105 = vpop.f32.mrf.mxu0
    %v7106 = vadd.f32 0.0, %v7105
    %v7107 = vpop.f32.mrf.mxu0
    %v7108 = vpop.f32.mrf.mxu0
    %v7109 = vadd.f32 0.0, %v7108
    %v7110 = vpop.f32.mrf.mxu0
    %7111 = vmatprep.mubr.bf16.mxu0 0
    %7112 = vmatmul.mubr.bf16.gmra.mxu0 %v6898
    %v7113 = vpop.f32.mrf.mxu0
    %v7114 = vadd.f32 0.0, %v7113
    %v7115 = vpop.f32.mrf.mxu0
    %v7116 = vpop.f32.mrf.mxu0
    %v7117 = vadd.f32 0.0, %v7116
    %v7118 = vpop.f32.mrf.mxu0
    %7119 = vmatprep.mubr.bf16.mxu0 0
    %7120 = vmatmul.mubr.bf16.gmra.mxu0 %v6899
    %v7121 = vpop.f32.mrf.mxu0
    %v7122 = vadd.f32 0.0, %v7121
    %v7123 = vpop.f32.mrf.mxu0
    %v7124 = vpop.f32.mrf.mxu0
    %v7125 = vadd.f32 0.0, %v7124
    %v7126 = vpop.f32.mrf.mxu0
    %7127 = vmatprep.mubr.bf16.mxu0 0
    %7128 = vmatmul.mubr.bf16.gmra.mxu0 %v6900
    %v7129 = vpop.f32.mrf.mxu0
    %v7130 = vadd.f32 0.0, %v7129
    %v7131 = vpop.f32.mrf.mxu0
    %v7132 = vpop.f32.mrf.mxu0
    %v7133 = vadd.f32 0.0, %v7132
    %v7134 = vpop.f32.mrf.mxu0
    %7135 = vmatprep.mubr.bf16.mxu0 0
    %7136 = vmatmul.mubr.bf16.gmra.mxu0 %v6901
    %v7137 = vpop.f32.mrf.mxu0
    %v7138 = vadd.f32 0.0, %v7137
    %v7139 = vpop.f32.mrf.mxu0
    %v7140 = vpop.f32.mrf.mxu0
    %v7141 = vadd.f32 0.0, %v7140
    %v7142 = vpop.f32.mrf.mxu0
    %7143 = vmatprep.mubr.bf16.mxu0 0
    %7144 = vmatmul.mubr.bf16.gmra.mxu0 %v6902
    %v7145 = vpop.f32.mrf.mxu0
    %v7146 = vadd.f32 0.0, %v7145
    %v7147 = vpop.f32.mrf.mxu0
    %v7148 = vpop.f32.mrf.mxu0
    %v7149 = vadd.f32 0.0, %v7148
    %v7150 = vpop.f32.mrf.mxu0
    %7151 = vmatprep.mubr.bf16.mxu0 0
    %7152 = vmatmul.mubr.bf16.gmra.mxu0 %v6903
    %v7153 = vpop.f32.mrf.mxu0
    %v7154 = vadd.f32 0.0, %v7153
    %v7155 = vpop.f32.mrf.mxu0
    %v7156 = vpop.f32.mrf.mxu0
    %v7157 = vadd.f32 0.0, %v7156
    %v7158 = vpop.f32.mrf.mxu0
    %7159 = vmatprep.mubr.bf16.mxu0 0
    %7160 = vmatmul.mubr.bf16.gmra.mxu0 %v6904
    %v7161 = vpop.f32.mrf.mxu0
    %v7162 = vadd.f32 0.0, %v7161
    %v7163 = vpop.f32.mrf.mxu0
    %v7164 = vpop.f32.mrf.mxu0
    %v7165 = vadd.f32 0.0, %v7164
    %v7166 = vpop.f32.mrf.mxu0
    %7167 = vmatprep.mubr.bf16.mxu0 0
    %7168 = vmatmul.mubr.bf16.gmra.mxu0 %v6905
    %v7169 = vpop.f32.mrf.mxu0
    %v7170 = vadd.f32 0.0, %v7169
    %v7171 = vpop.f32.mrf.mxu0
    %v7172 = vpop.f32.mrf.mxu0
    %v7173 = vadd.f32 0.0, %v7172
    %v7174 = vpop.f32.mrf.mxu0
    %7175 = vmatprep.mubr.bf16.mxu0 0
    %7176 = vmatmul.mubr.bf16.gmra.mxu0 %v6906
    %v7177 = vpop.f32.mrf.mxu0
    %v7178 = vadd.f32 0.0, %v7177
    %v7179 = vpop.f32.mrf.mxu0
    %v7180 = vpop.f32.mrf.mxu0
    %v7181 = vadd.f32 0.0, %v7180
    %v7182 = vpop.f32.mrf.mxu0
    %7183 = vmatprep.mubr.bf16.mxu0 0
    %7184 = vmatmul.mubr.bf16.gmra.mxu0 %v6907
    %v7185 = vpop.f32.mrf.mxu0
    %v7186 = vadd.f32 0.0, %v7185
    %v7187 = vpop.f32.mrf.mxu0
    %v7188 = vpop.f32.mrf.mxu0
    %v7189 = vadd.f32 0.0, %v7188
    %v7190 = vpop.f32.mrf.mxu0
    %7191 = vmatprep.mubr.bf16.mxu0 0
    %7192 = vmatmul.mubr.bf16.gmra.mxu0 %v6908
    %v7193 = vpop.f32.mrf.mxu0
    %v7194 = vadd.f32 0.0, %v7193
    %v7195 = vpop.f32.mrf.mxu0
    %v7196 = vpop.f32.mrf.mxu0
    %v7197 = vadd.f32 0.0, %v7196
    %v7198 = vpop.f32.mrf.mxu0
    %7199 = vmatprep.mubr.bf16.mxu0 0
    %7200 = vmatmul.mubr.bf16.gmra.mxu0 %v6909
    %v7201 = vpop.f32.mrf.mxu0
    %v7202 = vadd.f32 0.0, %v7201
    %v7203 = vpop.f32.mrf.mxu0
    %v7204 = vpop.f32.mrf.mxu0
    %v7205 = vadd.f32 0.0, %v7204
    %v7206 = vpop.f32.mrf.mxu0
    %7207 = vmatprep.mubr.bf16.mxu0 0
    %7208 = vmatmul.mubr.bf16.gmra.mxu0 %v6910
    %v7209 = vpop.f32.mrf.mxu0
    %v7210 = vadd.f32 0.0, %v7209
    %v7211 = vpop.f32.mrf.mxu0
    %v7212 = vpop.f32.mrf.mxu0
    %v7213 = vadd.f32 0.0, %v7212
    %v7214 = vpop.f32.mrf.mxu0
    %7215 = vmatprep.mubr.bf16.mxu0 0
    %7216 = vmatmul.mubr.bf16.gmra.mxu0 %v6911
    %v7217 = vpop.f32.mrf.mxu0
    %v7218 = vadd.f32 0.0, %v7217
    %v7219 = vpop.f32.mrf.mxu0
    %v7220 = vpop.f32.mrf.mxu0
    %v7221 = vadd.f32 0.0, %v7220
    %v7222 = vpop.f32.mrf.mxu0
    %7223 = vmatprep.mubr.bf16.mxu0 0
    %7224 = vmatmul.mubr.bf16.gmra.mxu0 %v6912
    %v7225 = vpop.f32.mrf.mxu0
    %v7226 = vadd.f32 0.0, %v7225
    %v7227 = vpop.f32.mrf.mxu0
    %v7228 = vpop.f32.mrf.mxu0
    %v7229 = vadd.f32 0.0, %v7228
    %v7230 = vpop.f32.mrf.mxu0
    %7231 = vmatprep.mubr.bf16.mxu0 0
    %7232 = vmatmul.mubr.bf16.gmra.mxu0 %v6913
    %v7233 = vpop.f32.mrf.mxu0
    %v7234 = vadd.f32 0.0, %v7233
    %v7235 = vpop.f32.mrf.mxu0
    %v7236 = vpop.f32.mrf.mxu0
    %v7237 = vadd.f32 0.0, %v7236
    %v7238 = vpop.f32.mrf.mxu0
    %7239 = vmatprep.mubr.bf16.mxu0 0
    %7240 = vmatmul.mubr.bf16.gmra.mxu0 %v6914
    %v7241 = vpop.f32.mrf.mxu0
    %v7242 = vadd.f32 0.0, %v7241
    %v7243 = vpop.f32.mrf.mxu0
    %v7244 = vpop.f32.mrf.mxu0
    %v7245 = vadd.f32 0.0, %v7244
    %v7246 = vpop.f32.mrf.mxu0
    %7247 = vmatprep.mubr.bf16.mxu0 0
    %7248 = vmatmul.mubr.bf16.gmra.mxu0 %v6915
    %v7249 = vpop.f32.mrf.mxu0
    %v7250 = vadd.f32 0.0, %v7249
    %v7251 = vpop.f32.mrf.mxu0
    %v7252 = vpop.f32.mrf.mxu0
    %v7253 = vadd.f32 0.0, %v7252
    %v7254 = vpop.f32.mrf.mxu0
    %7255 = vmatprep.mubr.bf16.mxu0 0
    %7256 = vmatmul.mubr.bf16.gmra.mxu0 %v6916
    %v7257 = vpop.f32.mrf.mxu0
    %v7258 = vadd.f32 0.0, %v7257
    %v7259 = vpop.f32.mrf.mxu0
    %v7260 = vpop.f32.mrf.mxu0
    %v7261 = vadd.f32 0.0, %v7260
    %v7262 = vpop.f32.mrf.mxu0
    %7263 = vmatprep.mubr.bf16.mxu0 0
    %7264 = vmatmul.mubr.bf16.gmra.mxu0 %v6917
    %v7265 = vpop.f32.mrf.mxu0
    %v7266 = vadd.f32 0.0, %v7265
    %v7267 = vpop.f32.mrf.mxu0
    %v7268 = vpop.f32.mrf.mxu0
    %v7269 = vadd.f32 0.0, %v7268
    %v7270 = vpop.f32.mrf.mxu0
    %7271 = vdwg.mxu0
    %v7272 = vadd.f32 %v6758, %v7018
    %v7273 = vadd.f32 %v6759, %v7021
    %v7274 = vadd.f32 %v6760, %v7026
    %v7275 = vadd.f32 %v6761, %v7029
    %v7276 = vadd.f32 %v6762, %v7034
    %v7277 = vadd.f32 %v6763, %v7037
    %v7278 = vadd.f32 %v6764, %v7042
    %v7279 = vadd.f32 %v6765, %v7045
    %v7280 = vadd.f32 %v6766, %v7050
    %v7281 = vadd.f32 %v6767, %v7053
    %v7282 = vadd.f32 %v6768, %v7058
    %v7283 = vadd.f32 %v6769, %v7061
    %v7284 = vadd.f32 %v6770, %v7066
    %v7285 = vadd.f32 %v6771, %v7069
    %v7286 = vadd.f32 %v6772, %v7074
    %v7287 = vadd.f32 %v6773, %v7077
    %v7288 = vadd.f32 %v6774, %v7082
    %v7289 = vadd.f32 %v6775, %v7085
    %v7290 = vadd.f32 %v6776, %v7090
    %v7291 = vadd.f32 %v6777, %v7093
    %v7292 = vadd.f32 %v6778, %v7098
    %v7293 = vadd.f32 %v6779, %v7101
    %v7294 = vadd.f32 %v6780, %v7106
    %v7295 = vadd.f32 %v6781, %v7109
    %v7296 = vadd.f32 %v6782, %v7114
    %v7297 = vadd.f32 %v6783, %v7117
    %v7298 = vadd.f32 %v6784, %v7122
    %v7299 = vadd.f32 %v6785, %v7125
    %v7300 = vadd.f32 %v6786, %v7130
    %v7301 = vadd.f32 %v6787, %v7133
    %v7302 = vadd.f32 %v6788, %v7138
    %v7303 = vadd.f32 %v6789, %v7141
    %v7304 = vadd.f32 %v6790, %v7146
    %v7305 = vadd.f32 %v6791, %v7149
    %v7306 = vadd.f32 %v6792, %v7154
    %v7307 = vadd.f32 %v6793, %v7157
    %v7308 = vadd.f32 %v6794, %v7162
    %v7309 = vadd.f32 %v6795, %v7165
    %v7310 = vadd.f32 %v6796, %v7170
    %v7311 = vadd.f32 %v6797, %v7173
    %v7312 = vadd.f32 %v6798, %v7178
    %v7313 = vadd.f32 %v6799, %v7181
    %v7314 = vadd.f32 %v6800, %v7186
    %v7315 = vadd.f32 %v6801, %v7189
    %v7316 = vadd.f32 %v6802, %v7194
    %v7317 = vadd.f32 %v6803, %v7197
    %v7318 = vadd.f32 %v6804, %v7202
    %v7319 = vadd.f32 %v6805, %v7205
    %v7320 = vadd.f32 %v6806, %v7210
    %v7321 = vadd.f32 %v6807, %v7213
    %v7322 = vadd.f32 %v6808, %v7218
    %v7323 = vadd.f32 %v6809, %v7221
    %v7324 = vadd.f32 %v6810, %v7226
    %v7325 = vadd.f32 %v6811, %v7229
    %v7326 = vadd.f32 %v6812, %v7234
    %v7327 = vadd.f32 %v6813, %v7237
    %v7328 = vadd.f32 %v6814, %v7242
    %v7329 = vadd.f32 %v6815, %v7245
    %v7330 = vadd.f32 %v6816, %v7250
    %v7331 = vadd.f32 %v6817, %v7253
    %v7332 = vadd.f32 %v6818, %v7258
    %v7333 = vadd.f32 %v6819, %v7261
    %v7334 = vadd.f32 %v6820, %v7266
    %v7335 = vadd.f32 %v6821, %v7269
    %v7336 = vld [vmem:[%s241 + $0x1] sm:$0xff]
    %v7337 = vld [vmem:[%s241 + $0x9] sm:$0xff]
    %v7338 = vld [vmem:[%s241 + $0x19] sm:$0xff]
    %v7339 = vld [vmem:[%s241 + $0x21] sm:$0xff]
    %v7340 = vld [vmem:[%s241 + $0x31] sm:$0xff]
    %v7341 = vld [vmem:[%s241 + $0x39] sm:$0xff]
    %v7342 = vld [vmem:[%s241 + $0x49] sm:$0xff]
    %v7343 = vld [vmem:[%s241 + $0x51] sm:$0xff]
    %v7344 = vld [vmem:[%s241 + $0x61] sm:$0xff]
    %v7345 = vld [vmem:[%s241 + $0x69] sm:$0xff]
    %v7346 = vld [vmem:[%s241 + $0x79] sm:$0xff]
    %v7347 = vld [vmem:[%s241 + $0x81] sm:$0xff]
    %v7348 = vld [vmem:[%s241 + $0x91] sm:$0xff]
    %v7349 = vld [vmem:[%s241 + $0x99] sm:$0xff]
    %v7350 = vld [vmem:[%s241 + $0xa9] sm:$0xff]
    %v7351 = vld [vmem:[%s241 + $0xb1] sm:$0xff]
    %v7352 = vld [vmem:[%s241 + $0xc1] sm:$0xff]
    %v7353 = vld [vmem:[%s241 + $0xc9] sm:$0xff]
    %v7354 = vld [vmem:[%s241 + $0xd9] sm:$0xff]
    %v7355 = vld [vmem:[%s241 + $0xe1] sm:$0xff]
    %v7356 = vld [vmem:[%s241 + $0xf1] sm:$0xff]
    %v7357 = vld [vmem:[%s241 + $0xf9] sm:$0xff]
    %v7358 = vld [vmem:[%s241 + $0x109] sm:$0xff]
    %v7359 = vld [vmem:[%s241 + $0x111] sm:$0xff]
    %v7360 = vld [vmem:[%s241 + $0x121] sm:$0xff]
    %v7361 = vld [vmem:[%s241 + $0x129] sm:$0xff]
    %v7362 = vld [vmem:[%s241 + $0x139] sm:$0xff]
    %v7363 = vld [vmem:[%s241 + $0x141] sm:$0xff]
    %v7364 = vld [vmem:[%s241 + $0x151] sm:$0xff]
    %v7365 = vld [vmem:[%s241 + $0x159] sm:$0xff]
    %v7366 = vld [vmem:[%s241 + $0x169] sm:$0xff]
    %v7367 = vld [vmem:[%s241 + $0x171] sm:$0xff]
    %v7368 = vld [vmem:[%s241 + $0x1b1] sm:$0xff]
    %v7369 = vld [vmem:[%s241 + $0x1b9] sm:$0xff]
    %v7370 = vld [vmem:[%s241 + $0x1c9] sm:$0xff]
    %v7371 = vld [vmem:[%s241 + $0x1d1] sm:$0xff]
    %v7372 = vld [vmem:[%s241 + $0x1e1] sm:$0xff]
    %v7373 = vld [vmem:[%s241 + $0x1e9] sm:$0xff]
    %v7374 = vld [vmem:[%s241 + $0x1f9] sm:$0xff]
    %v7375 = vld [vmem:[%s241 + $0x201] sm:$0xff]
    %v7376 = vld [vmem:[%s241 + $0x211] sm:$0xff]
    %v7377 = vld [vmem:[%s241 + $0x219] sm:$0xff]
    %v7378 = vld [vmem:[%s241 + $0x229] sm:$0xff]
    %v7379 = vld [vmem:[%s241 + $0x231] sm:$0xff]
    %v7380 = vld [vmem:[%s241 + $0x241] sm:$0xff]
    %v7381 = vld [vmem:[%s241 + $0x249] sm:$0xff]
    %v7382 = vld [vmem:[%s241 + $0x259] sm:$0xff]
    %v7383 = vld [vmem:[%s241 + $0x261] sm:$0xff]
    %v7384 = vld [vmem:[%s241 + $0x271] sm:$0xff]
    %v7385 = vld [vmem:[%s241 + $0x279] sm:$0xff]
    %v7386 = vld [vmem:[%s241 + $0x289] sm:$0xff]
    %v7387 = vld [vmem:[%s241 + $0x291] sm:$0xff]
    %v7388 = vld [vmem:[%s241 + $0x2a1] sm:$0xff]
    %v7389 = vld [vmem:[%s241 + $0x2a9] sm:$0xff]
    %v7390 = vld [vmem:[%s241 + $0x2b9] sm:$0xff]
    %v7391 = vld [vmem:[%s241 + $0x2c1] sm:$0xff]
    %v7392 = vld [vmem:[%s241 + $0x2d1] sm:$0xff]
    %v7393 = vld [vmem:[%s241 + $0x2d9] sm:$0xff]
    %v7394 = vld [vmem:[%s241 + $0x2e9] sm:$0xff]
    %v7395 = vld [vmem:[%s241 + $0x2f1] sm:$0xff]
    %v7396 = vld [vmem:[%s241 + $0x301] sm:$0xff]
    %v7397 = vld [vmem:[%s241 + $0x309] sm:$0xff]
    %v7398 = vld [vmem:[%s241 + $0x319] sm:$0xff]
    %v7399 = vld [vmem:[%s241 + $0x321] sm:$0xff]
    %v7400 = vpack.c.bf16 %v7337, %v7336
    %v7401 = vpack.c.bf16 %v7339, %v7338
    %v7402 = vpack.c.bf16 %v7341, %v7340
    %v7403 = vpack.c.bf16 %v7343, %v7342
    %v7404 = vpack.c.bf16 %v7345, %v7344
    %v7405 = vpack.c.bf16 %v7347, %v7346
    %v7406 = vpack.c.bf16 %v7349, %v7348
    %v7407 = vpack.c.bf16 %v7351, %v7350
    %v7408 = vpack.c.bf16 %v7353, %v7352
    %v7409 = vpack.c.bf16 %v7355, %v7354
    %v7410 = vpack.c.bf16 %v7357, %v7356
    %v7411 = vpack.c.bf16 %v7359, %v7358
    %v7412 = vpack.c.bf16 %v7361, %v7360
    %v7413 = vpack.c.bf16 %v7363, %v7362
    %v7414 = vpack.c.bf16 %v7365, %v7364
    %v7415 = vpack.c.bf16 %v7367, %v7366
    %v7416 = vpack.c.bf16 %v7369, %v7368
    %v7417 = vpack.c.bf16 %v7371, %v7370
    %v7418 = vpack.c.bf16 %v7373, %v7372
    %v7419 = vpack.c.bf16 %v7375, %v7374
    %v7420 = vpack.c.bf16 %v7377, %v7376
    %v7421 = vpack.c.bf16 %v7379, %v7378
    %v7422 = vpack.c.bf16 %v7381, %v7380
    %v7423 = vpack.c.bf16 %v7383, %v7382
    %v7424 = vpack.c.bf16 %v7385, %v7384
    %v7425 = vpack.c.bf16 %v7387, %v7386
    %v7426 = vpack.c.bf16 %v7389, %v7388
    %v7427 = vpack.c.bf16 %v7391, %v7390
    %v7428 = vpack.c.bf16 %v7393, %v7392
    %v7429 = vpack.c.bf16 %v7395, %v7394
    %v7430 = vpack.c.bf16 %v7397, %v7396
    %v7431 = vpack.c.bf16 %v7399, %v7398
    %s7432 = scalar_lea.vmem [#allocation8], 256
    %v7433 = vld [vmem:[%s7432] sm:$0xf]
    %v7434 = vld [vmem:[%s7432 + $0x4] sm:$0xf]
    %v7435 = vld [vmem:[%s7432 + $0x8] sm:$0xf]
    %v7436 = vld [vmem:[%s7432 + $0xc] sm:$0xf]
    %v7437 = vld [vmem:[%s7432 + $0x10] sm:$0xf]
    %v7438 = vld [vmem:[%s7432 + $0x14] sm:$0xf]
    %v7439 = vld [vmem:[%s7432 + $0x18] sm:$0xf]
    %v7440 = vld [vmem:[%s7432 + $0x1c] sm:$0xf]
    %v7441 = vld [vmem:[%s7432 + $0x20] sm:$0xf]
    %v7442 = vld [vmem:[%s7432 + $0x24] sm:$0xf]
    %v7443 = vld [vmem:[%s7432 + $0x28] sm:$0xf]
    %v7444 = vld [vmem:[%s7432 + $0x2c] sm:$0xf]
    %v7445 = vld [vmem:[%s7432 + $0x30] sm:$0xf]
    %v7446 = vld [vmem:[%s7432 + $0x34] sm:$0xf]
    %v7447 = vld [vmem:[%s7432 + $0x38] sm:$0xf]
    %v7448 = vld [vmem:[%s7432 + $0x3c] sm:$0xf]
    %v7465 = vunpack.c.l.b16 %v7433
    %v7466 = vunpack.c.l.b16 %v7434
    %v7467 = vunpack.c.l.b16 %v7435
    %v7468 = vunpack.c.l.b16 %v7436
    %v7469 = vunpack.c.l.b16 %v7437
    %v7470 = vunpack.c.l.b16 %v7438
    %v7471 = vunpack.c.l.b16 %v7439
    %v7472 = vunpack.c.l.b16 %v7440
    %v7473 = vunpack.c.l.b16 %v7441
    %v7474 = vunpack.c.l.b16 %v7442
    %v7475 = vunpack.c.l.b16 %v7443
    %v7476 = vunpack.c.l.b16 %v7444
    %v7477 = vunpack.c.l.b16 %v7445
    %v7478 = vunpack.c.l.b16 %v7446
    %v7479 = vunpack.c.l.b16 %v7447
    %v7480 = vunpack.c.l.b16 %v7448
    %v7481 = vpack.c.b16 %v7466, %v7465
    %v7482 = vpack.c.b16 %v7468, %v7467
    %v7483 = vpack.c.b16 %v7470, %v7469
    %v7484 = vpack.c.b16 %v7472, %v7471
    %v7485 = vpack.c.b16 %v7474, %v7473
    %v7486 = vpack.c.b16 %v7476, %v7475
    %v7487 = vpack.c.b16 %v7478, %v7477
    %v7488 = vpack.c.b16 %v7480, %v7479
    %7497 = vmatprep.subr.bf16.mxu0 0
    %7498 = vmatpush1.bf16.msra.mxu0 %v7488
    %7499 = vmatprep.subr.bf16.mxu0 0
    %7500 = vmatpush1.bf16.msra.mxu0 %v7487
    %7501 = vmatprep.subr.bf16.mxu0 0
    %7502 = vmatpush1.bf16.msra.mxu0 %v7486
    %7503 = vmatprep.subr.bf16.mxu0 0
    %7504 = vmatpush1.bf16.msra.mxu0 %v7485
    %7505 = vmatprep.subr.bf16.mxu0 0
    %7506 = vmatpush1.bf16.msra.mxu0 %v7484
    %7507 = vmatprep.subr.bf16.mxu0 0
    %7508 = vmatpush1.bf16.msra.mxu0 %v7483
    %7509 = vmatprep.subr.bf16.mxu0 0
    %7510 = vmatpush1.bf16.msra.mxu0 %v7482
    %7511 = vmatprep.subr.bf16.mxu0 0
    %7512 = vmatpush1.bf16.msra.mxu0 %v7481
    %7513 = vmatprep.subr.bf16.mxu0 0
    %7514 = vmatpush2.bf16.msra.mxu0 0
    %7515 = vmatprep.subr.bf16.mxu0 0
    %7516 = vmatpush2.bf16.msra.mxu0 0
    %7517 = vmatprep.subr.bf16.mxu0 0
    %7518 = vmatpush2.bf16.msra.mxu0 0
    %7519 = vmatprep.subr.bf16.mxu0 0
    %7520 = vmatpush2.bf16.msra.mxu0 0
    %7521 = vmatprep.subr.bf16.mxu0 0
    %7522 = vmatpush2.bf16.msra.mxu0 0
    %7523 = vmatprep.subr.bf16.mxu0 0
    %7524 = vmatpush2.bf16.msra.mxu0 0
    %7525 = vmatprep.subr.bf16.mxu0 0
    %7526 = vmatpush2.bf16.msra.mxu0 0
    %7527 = vmatprep.subr.bf16.mxu0 0
    %7528 = vmatpush2.bf16.msra.mxu0 0
    %7529 = vmatprep.mubr.bf16.mxu0 0
    %7530 = vmatmul.mubr.bf16.gmra.mxu0 %v7400
    %v7531 = vpop.f32.mrf.mxu0
    %v7532 = vadd.f32 0.0, %v7531
    %v7533 = vpop.f32.mrf.mxu0
    %v7534 = vpop.f32.mrf.mxu0
    %v7535 = vadd.f32 0.0, %v7534
    %v7536 = vpop.f32.mrf.mxu0
    %7537 = vmatprep.mubr.bf16.mxu0 0
    %7538 = vmatmul.mubr.bf16.gmra.mxu0 %v7401
    %v7539 = vpop.f32.mrf.mxu0
    %v7540 = vadd.f32 0.0, %v7539
    %v7541 = vpop.f32.mrf.mxu0
    %v7542 = vpop.f32.mrf.mxu0
    %v7543 = vadd.f32 0.0, %v7542
    %v7544 = vpop.f32.mrf.mxu0
    %7545 = vmatprep.mubr.bf16.mxu0 0
    %7546 = vmatmul.mubr.bf16.gmra.mxu0 %v7402
    %v7547 = vpop.f32.mrf.mxu0
    %v7548 = vadd.f32 0.0, %v7547
    %v7549 = vpop.f32.mrf.mxu0
    %v7550 = vpop.f32.mrf.mxu0
    %v7551 = vadd.f32 0.0, %v7550
    %v7552 = vpop.f32.mrf.mxu0
    %7553 = vmatprep.mubr.bf16.mxu0 0
    %7554 = vmatmul.mubr.bf16.gmra.mxu0 %v7403
    %v7555 = vpop.f32.mrf.mxu0
    %v7556 = vadd.f32 0.0, %v7555
    %v7557 = vpop.f32.mrf.mxu0
    %v7558 = vpop.f32.mrf.mxu0
    %v7559 = vadd.f32 0.0, %v7558
    %v7560 = vpop.f32.mrf.mxu0
    %7561 = vmatprep.mubr.bf16.mxu0 0
    %7562 = vmatmul.mubr.bf16.gmra.mxu0 %v7404
    %v7563 = vpop.f32.mrf.mxu0
    %v7564 = vadd.f32 0.0, %v7563
    %v7565 = vpop.f32.mrf.mxu0
    %v7566 = vpop.f32.mrf.mxu0
    %v7567 = vadd.f32 0.0, %v7566
    %v7568 = vpop.f32.mrf.mxu0
    %7569 = vmatprep.mubr.bf16.mxu0 0
    %7570 = vmatmul.mubr.bf16.gmra.mxu0 %v7405
    %v7571 = vpop.f32.mrf.mxu0
    %v7572 = vadd.f32 0.0, %v7571
    %v7573 = vpop.f32.mrf.mxu0
    %v7574 = vpop.f32.mrf.mxu0
    %v7575 = vadd.f32 0.0, %v7574
    %v7576 = vpop.f32.mrf.mxu0
    %7577 = vmatprep.mubr.bf16.mxu0 0
    %7578 = vmatmul.mubr.bf16.gmra.mxu0 %v7406
    %v7579 = vpop.f32.mrf.mxu0
    %v7580 = vadd.f32 0.0, %v7579
    %v7581 = vpop.f32.mrf.mxu0
    %v7582 = vpop.f32.mrf.mxu0
    %v7583 = vadd.f32 0.0, %v7582
    %v7584 = vpop.f32.mrf.mxu0
    %7585 = vmatprep.mubr.bf16.mxu0 0
    %7586 = vmatmul.mubr.bf16.gmra.mxu0 %v7407
    %v7587 = vpop.f32.mrf.mxu0
    %v7588 = vadd.f32 0.0, %v7587
    %v7589 = vpop.f32.mrf.mxu0
    %v7590 = vpop.f32.mrf.mxu0
    %v7591 = vadd.f32 0.0, %v7590
    %v7592 = vpop.f32.mrf.mxu0
    %7593 = vmatprep.mubr.bf16.mxu0 0
    %7594 = vmatmul.mubr.bf16.gmra.mxu0 %v7408
    %v7595 = vpop.f32.mrf.mxu0
    %v7596 = vadd.f32 0.0, %v7595
    %v7597 = vpop.f32.mrf.mxu0
    %v7598 = vpop.f32.mrf.mxu0
    %v7599 = vadd.f32 0.0, %v7598
    %v7600 = vpop.f32.mrf.mxu0
    %7601 = vmatprep.mubr.bf16.mxu0 0
    %7602 = vmatmul.mubr.bf16.gmra.mxu0 %v7409
    %v7603 = vpop.f32.mrf.mxu0
    %v7604 = vadd.f32 0.0, %v7603
    %v7605 = vpop.f32.mrf.mxu0
    %v7606 = vpop.f32.mrf.mxu0
    %v7607 = vadd.f32 0.0, %v7606
    %v7608 = vpop.f32.mrf.mxu0
    %7609 = vmatprep.mubr.bf16.mxu0 0
    %7610 = vmatmul.mubr.bf16.gmra.mxu0 %v7410
    %v7611 = vpop.f32.mrf.mxu0
    %v7612 = vadd.f32 0.0, %v7611
    %v7613 = vpop.f32.mrf.mxu0
    %v7614 = vpop.f32.mrf.mxu0
    %v7615 = vadd.f32 0.0, %v7614
    %v7616 = vpop.f32.mrf.mxu0
    %7617 = vmatprep.mubr.bf16.mxu0 0
    %7618 = vmatmul.mubr.bf16.gmra.mxu0 %v7411
    %v7619 = vpop.f32.mrf.mxu0
    %v7620 = vadd.f32 0.0, %v7619
    %v7621 = vpop.f32.mrf.mxu0
    %v7622 = vpop.f32.mrf.mxu0
    %v7623 = vadd.f32 0.0, %v7622
    %v7624 = vpop.f32.mrf.mxu0
    %7625 = vmatprep.mubr.bf16.mxu0 0
    %7626 = vmatmul.mubr.bf16.gmra.mxu0 %v7412
    %v7627 = vpop.f32.mrf.mxu0
    %v7628 = vadd.f32 0.0, %v7627
    %v7629 = vpop.f32.mrf.mxu0
    %v7630 = vpop.f32.mrf.mxu0
    %v7631 = vadd.f32 0.0, %v7630
    %v7632 = vpop.f32.mrf.mxu0
    %7633 = vmatprep.mubr.bf16.mxu0 0
    %7634 = vmatmul.mubr.bf16.gmra.mxu0 %v7413
    %v7635 = vpop.f32.mrf.mxu0
    %v7636 = vadd.f32 0.0, %v7635
    %v7637 = vpop.f32.mrf.mxu0
    %v7638 = vpop.f32.mrf.mxu0
    %v7639 = vadd.f32 0.0, %v7638
    %v7640 = vpop.f32.mrf.mxu0
    %7641 = vmatprep.mubr.bf16.mxu0 0
    %7642 = vmatmul.mubr.bf16.gmra.mxu0 %v7414
    %v7643 = vpop.f32.mrf.mxu0
    %v7644 = vadd.f32 0.0, %v7643
    %v7645 = vpop.f32.mrf.mxu0
    %v7646 = vpop.f32.mrf.mxu0
    %v7647 = vadd.f32 0.0, %v7646
    %v7648 = vpop.f32.mrf.mxu0
    %7649 = vmatprep.mubr.bf16.mxu0 0
    %7650 = vmatmul.mubr.bf16.gmra.mxu0 %v7415
    %v7651 = vpop.f32.mrf.mxu0
    %v7652 = vadd.f32 0.0, %v7651
    %v7653 = vpop.f32.mrf.mxu0
    %v7654 = vpop.f32.mrf.mxu0
    %v7655 = vadd.f32 0.0, %v7654
    %v7656 = vpop.f32.mrf.mxu0
    %7657 = vmatprep.mubr.bf16.mxu0 0
    %7658 = vmatmul.mubr.bf16.gmra.mxu0 %v7416
    %v7659 = vpop.f32.mrf.mxu0
    %v7660 = vadd.f32 0.0, %v7659
    %v7661 = vpop.f32.mrf.mxu0
    %v7662 = vpop.f32.mrf.mxu0
    %v7663 = vadd.f32 0.0, %v7662
    %v7664 = vpop.f32.mrf.mxu0
    %7665 = vmatprep.mubr.bf16.mxu0 0
    %7666 = vmatmul.mubr.bf16.gmra.mxu0 %v7417
    %v7667 = vpop.f32.mrf.mxu0
    %v7668 = vadd.f32 0.0, %v7667
    %v7669 = vpop.f32.mrf.mxu0
    %v7670 = vpop.f32.mrf.mxu0
    %v7671 = vadd.f32 0.0, %v7670
    %v7672 = vpop.f32.mrf.mxu0
    %7673 = vmatprep.mubr.bf16.mxu0 0
    %7674 = vmatmul.mubr.bf16.gmra.mxu0 %v7418
    %v7675 = vpop.f32.mrf.mxu0
    %v7676 = vadd.f32 0.0, %v7675
    %v7677 = vpop.f32.mrf.mxu0
    %v7678 = vpop.f32.mrf.mxu0
    %v7679 = vadd.f32 0.0, %v7678
    %v7680 = vpop.f32.mrf.mxu0
    %7681 = vmatprep.mubr.bf16.mxu0 0
    %7682 = vmatmul.mubr.bf16.gmra.mxu0 %v7419
    %v7683 = vpop.f32.mrf.mxu0
    %v7684 = vadd.f32 0.0, %v7683
    %v7685 = vpop.f32.mrf.mxu0
    %v7686 = vpop.f32.mrf.mxu0
    %v7687 = vadd.f32 0.0, %v7686
    %v7688 = vpop.f32.mrf.mxu0
    %7689 = vmatprep.mubr.bf16.mxu0 0
    %7690 = vmatmul.mubr.bf16.gmra.mxu0 %v7420
    %v7691 = vpop.f32.mrf.mxu0
    %v7692 = vadd.f32 0.0, %v7691
    %v7693 = vpop.f32.mrf.mxu0
    %v7694 = vpop.f32.mrf.mxu0
    %v7695 = vadd.f32 0.0, %v7694
    %v7696 = vpop.f32.mrf.mxu0
    %7697 = vmatprep.mubr.bf16.mxu0 0
    %7698 = vmatmul.mubr.bf16.gmra.mxu0 %v7421
    %v7699 = vpop.f32.mrf.mxu0
    %v7700 = vadd.f32 0.0, %v7699
    %v7701 = vpop.f32.mrf.mxu0
    %v7702 = vpop.f32.mrf.mxu0
    %v7703 = vadd.f32 0.0, %v7702
    %v7704 = vpop.f32.mrf.mxu0
    %7705 = vmatprep.mubr.bf16.mxu0 0
    %7706 = vmatmul.mubr.bf16.gmra.mxu0 %v7422
    %v7707 = vpop.f32.mrf.mxu0
    %v7708 = vadd.f32 0.0, %v7707
    %v7709 = vpop.f32.mrf.mxu0
    %v7710 = vpop.f32.mrf.mxu0
    %v7711 = vadd.f32 0.0, %v7710
    %v7712 = vpop.f32.mrf.mxu0
    %7713 = vmatprep.mubr.bf16.mxu0 0
    %7714 = vmatmul.mubr.bf16.gmra.mxu0 %v7423
    %v7715 = vpop.f32.mrf.mxu0
    %v7716 = vadd.f32 0.0, %v7715
    %v7717 = vpop.f32.mrf.mxu0
    %v7718 = vpop.f32.mrf.mxu0
    %v7719 = vadd.f32 0.0, %v7718
    %v7720 = vpop.f32.mrf.mxu0
    %7721 = vmatprep.mubr.bf16.mxu0 0
    %7722 = vmatmul.mubr.bf16.gmra.mxu0 %v7424
    %v7723 = vpop.f32.mrf.mxu0
    %v7724 = vadd.f32 0.0, %v7723
    %v7725 = vpop.f32.mrf.mxu0
    %v7726 = vpop.f32.mrf.mxu0
    %v7727 = vadd.f32 0.0, %v7726
    %v7728 = vpop.f32.mrf.mxu0
    %7729 = vmatprep.mubr.bf16.mxu0 0
    %7730 = vmatmul.mubr.bf16.gmra.mxu0 %v7425
    %v7731 = vpop.f32.mrf.mxu0
    %v7732 = vadd.f32 0.0, %v7731
    %v7733 = vpop.f32.mrf.mxu0
    %v7734 = vpop.f32.mrf.mxu0
    %v7735 = vadd.f32 0.0, %v7734
    %v7736 = vpop.f32.mrf.mxu0
    %7737 = vmatprep.mubr.bf16.mxu0 0
    %7738 = vmatmul.mubr.bf16.gmra.mxu0 %v7426
    %v7739 = vpop.f32.mrf.mxu0
    %v7740 = vadd.f32 0.0, %v7739
    %v7741 = vpop.f32.mrf.mxu0
    %v7742 = vpop.f32.mrf.mxu0
    %v7743 = vadd.f32 0.0, %v7742
    %v7744 = vpop.f32.mrf.mxu0
    %7745 = vmatprep.mubr.bf16.mxu0 0
    %7746 = vmatmul.mubr.bf16.gmra.mxu0 %v7427
    %v7747 = vpop.f32.mrf.mxu0
    %v7748 = vadd.f32 0.0, %v7747
    %v7749 = vpop.f32.mrf.mxu0
    %v7750 = vpop.f32.mrf.mxu0
    %v7751 = vadd.f32 0.0, %v7750
    %v7752 = vpop.f32.mrf.mxu0
    %7753 = vmatprep.mubr.bf16.mxu0 0
    %7754 = vmatmul.mubr.bf16.gmra.mxu0 %v7428
    %v7755 = vpop.f32.mrf.mxu0
    %v7756 = vadd.f32 0.0, %v7755
    %v7757 = vpop.f32.mrf.mxu0
    %v7758 = vpop.f32.mrf.mxu0
    %v7759 = vadd.f32 0.0, %v7758
    %v7760 = vpop.f32.mrf.mxu0
    %7761 = vmatprep.mubr.bf16.mxu0 0
    %7762 = vmatmul.mubr.bf16.gmra.mxu0 %v7429
    %v7763 = vpop.f32.mrf.mxu0
    %v7764 = vadd.f32 0.0, %v7763
    %v7765 = vpop.f32.mrf.mxu0
    %v7766 = vpop.f32.mrf.mxu0
    %v7767 = vadd.f32 0.0, %v7766
    %v7768 = vpop.f32.mrf.mxu0
    %7769 = vmatprep.mubr.bf16.mxu0 0
    %7770 = vmatmul.mubr.bf16.gmra.mxu0 %v7430
    %v7771 = vpop.f32.mrf.mxu0
    %v7772 = vadd.f32 0.0, %v7771
    %v7773 = vpop.f32.mrf.mxu0
    %v7774 = vpop.f32.mrf.mxu0
    %v7775 = vadd.f32 0.0, %v7774
    %v7776 = vpop.f32.mrf.mxu0
    %7777 = vmatprep.mubr.bf16.mxu0 0
    %7778 = vmatmul.mubr.bf16.gmra.mxu0 %v7431
    %v7779 = vpop.f32.mrf.mxu0
    %v7780 = vadd.f32 0.0, %v7779
    %v7781 = vpop.f32.mrf.mxu0
    %v7782 = vpop.f32.mrf.mxu0
    %v7783 = vadd.f32 0.0, %v7782
    %v7784 = vpop.f32.mrf.mxu0
    %7785 = vdwg.mxu0
    %v7786 = vadd.f32 %v7272, %v7532
    %v7787 = vadd.f32 %v7273, %v7535
    %v7788 = vadd.f32 %v7274, %v7540
    %v7789 = vadd.f32 %v7275, %v7543
    %v7790 = vadd.f32 %v7276, %v7548
    %v7791 = vadd.f32 %v7277, %v7551
    %v7792 = vadd.f32 %v7278, %v7556
    %v7793 = vadd.f32 %v7279, %v7559
    %v7794 = vadd.f32 %v7280, %v7564
    %v7795 = vadd.f32 %v7281, %v7567
    %v7796 = vadd.f32 %v7282, %v7572
    %v7797 = vadd.f32 %v7283, %v7575
    %v7798 = vadd.f32 %v7284, %v7580
    %v7799 = vadd.f32 %v7285, %v7583
    %v7800 = vadd.f32 %v7286, %v7588
    %v7801 = vadd.f32 %v7287, %v7591
    %v7802 = vadd.f32 %v7288, %v7596
    %v7803 = vadd.f32 %v7289, %v7599
    %v7804 = vadd.f32 %v7290, %v7604
    %v7805 = vadd.f32 %v7291, %v7607
    %v7806 = vadd.f32 %v7292, %v7612
    %v7807 = vadd.f32 %v7293, %v7615
    %v7808 = vadd.f32 %v7294, %v7620
    %v7809 = vadd.f32 %v7295, %v7623
    %v7810 = vadd.f32 %v7296, %v7628
    %v7811 = vadd.f32 %v7297, %v7631
    %v7812 = vadd.f32 %v7298, %v7636
    %v7813 = vadd.f32 %v7299, %v7639
    %v7814 = vadd.f32 %v7300, %v7644
    %v7815 = vadd.f32 %v7301, %v7647
    %v7816 = vadd.f32 %v7302, %v7652
    %v7817 = vadd.f32 %v7303, %v7655
    %v7818 = vadd.f32 %v7304, %v7660
    %v7819 = vadd.f32 %v7305, %v7663
    %v7820 = vadd.f32 %v7306, %v7668
    %v7821 = vadd.f32 %v7307, %v7671
    %v7822 = vadd.f32 %v7308, %v7676
    %v7823 = vadd.f32 %v7309, %v7679
    %v7824 = vadd.f32 %v7310, %v7684
    %v7825 = vadd.f32 %v7311, %v7687
    %v7826 = vadd.f32 %v7312, %v7692
    %v7827 = vadd.f32 %v7313, %v7695
    %v7828 = vadd.f32 %v7314, %v7700
    %v7829 = vadd.f32 %v7315, %v7703
    %v7830 = vadd.f32 %v7316, %v7708
    %v7831 = vadd.f32 %v7317, %v7711
    %v7832 = vadd.f32 %v7318, %v7716
    %v7833 = vadd.f32 %v7319, %v7719
    %v7834 = vadd.f32 %v7320, %v7724
    %v7835 = vadd.f32 %v7321, %v7727
    %v7836 = vadd.f32 %v7322, %v7732
    %v7837 = vadd.f32 %v7323, %v7735
    %v7838 = vadd.f32 %v7324, %v7740
    %v7839 = vadd.f32 %v7325, %v7743
    %v7840 = vadd.f32 %v7326, %v7748
    %v7841 = vadd.f32 %v7327, %v7751
    %v7842 = vadd.f32 %v7328, %v7756
    %v7843 = vadd.f32 %v7329, %v7759
    %v7844 = vadd.f32 %v7330, %v7764
    %v7845 = vadd.f32 %v7331, %v7767
    %v7846 = vadd.f32 %v7332, %v7772
    %v7847 = vadd.f32 %v7333, %v7775
    %v7848 = vadd.f32 %v7334, %v7780
    %v7849 = vadd.f32 %v7335, %v7783
    %v7850 = vld [vmem:[%s241 + $0x2] sm:$0xff]
    %v7851 = vld [vmem:[%s241 + $0xa] sm:$0xff]
    %v7852 = vld [vmem:[%s241 + $0x1a] sm:$0xff]
    %v7853 = vld [vmem:[%s241 + $0x22] sm:$0xff]
    %v7854 = vld [vmem:[%s241 + $0x32] sm:$0xff]
    %v7855 = vld [vmem:[%s241 + $0x3a] sm:$0xff]
    %v7856 = vld [vmem:[%s241 + $0x4a] sm:$0xff]
    %v7857 = vld [vmem:[%s241 + $0x52] sm:$0xff]
    %v7858 = vld [vmem:[%s241 + $0x62] sm:$0xff]
    %v7859 = vld [vmem:[%s241 + $0x6a] sm:$0xff]
    %v7860 = vld [vmem:[%s241 + $0x7a] sm:$0xff]
    %v7861 = vld [vmem:[%s241 + $0x82] sm:$0xff]
    %v7862 = vld [vmem:[%s241 + $0x92] sm:$0xff]
    %v7863 = vld [vmem:[%s241 + $0x9a] sm:$0xff]
    %v7864 = vld [vmem:[%s241 + $0xaa] sm:$0xff]
    %v7865 = vld [vmem:[%s241 + $0xb2] sm:$0xff]
    %v7866 = vld [vmem:[%s241 + $0xc2] sm:$0xff]
    %v7867 = vld [vmem:[%s241 + $0xca] sm:$0xff]
    %v7868 = vld [vmem:[%s241 + $0xda] sm:$0xff]
    %v7869 = vld [vmem:[%s241 + $0xe2] sm:$0xff]
    %v7870 = vld [vmem:[%s241 + $0xf2] sm:$0xff]
    %v7871 = vld [vmem:[%s241 + $0xfa] sm:$0xff]
    %v7872 = vld [vmem:[%s241 + $0x10a] sm:$0xff]
    %v7873 = vld [vmem:[%s241 + $0x112] sm:$0xff]
    %v7874 = vld [vmem:[%s241 + $0x122] sm:$0xff]
    %v7875 = vld [vmem:[%s241 + $0x12a] sm:$0xff]
    %v7876 = vld [vmem:[%s241 + $0x13a] sm:$0xff]
    %v7877 = vld [vmem:[%s241 + $0x142] sm:$0xff]
    %v7878 = vld [vmem:[%s241 + $0x152] sm:$0xff]
    %v7879 = vld [vmem:[%s241 + $0x15a] sm:$0xff]
    %v7880 = vld [vmem:[%s241 + $0x16a] sm:$0xff]
    %v7881 = vld [vmem:[%s241 + $0x172] sm:$0xff]
    %v7882 = vld [vmem:[%s241 + $0x1b2] sm:$0xff]
    %v7883 = vld [vmem:[%s241 + $0x1ba] sm:$0xff]
    %v7884 = vld [vmem:[%s241 + $0x1ca] sm:$0xff]
    %v7885 = vld [vmem:[%s241 + $0x1d2] sm:$0xff]
    %v7886 = vld [vmem:[%s241 + $0x1e2] sm:$0xff]
    %v7887 = vld [vmem:[%s241 + $0x1ea] sm:$0xff]
    %v7888 = vld [vmem:[%s241 + $0x1fa] sm:$0xff]
    %v7889 = vld [vmem:[%s241 + $0x202] sm:$0xff]
    %v7890 = vld [vmem:[%s241 + $0x212] sm:$0xff]
    %v7891 = vld [vmem:[%s241 + $0x21a] sm:$0xff]
    %v7892 = vld [vmem:[%s241 + $0x22a] sm:$0xff]
    %v7893 = vld [vmem:[%s241 + $0x232] sm:$0xff]
    %v7894 = vld [vmem:[%s241 + $0x242] sm:$0xff]
    %v7895 = vld [vmem:[%s241 + $0x24a] sm:$0xff]
    %v7896 = vld [vmem:[%s241 + $0x25a] sm:$0xff]
    %v7897 = vld [vmem:[%s241 + $0x262] sm:$0xff]
    %v7898 = vld [vmem:[%s241 + $0x272] sm:$0xff]
    %v7899 = vld [vmem:[%s241 + $0x27a] sm:$0xff]
    %v7900 = vld [vmem:[%s241 + $0x28a] sm:$0xff]
    %v7901 = vld [vmem:[%s241 + $0x292] sm:$0xff]
    %v7902 = vld [vmem:[%s241 + $0x2a2] sm:$0xff]
    %v7903 = vld [vmem:[%s241 + $0x2aa] sm:$0xff]
    %v7904 = vld [vmem:[%s241 + $0x2ba] sm:$0xff]
    %v7905 = vld [vmem:[%s241 + $0x2c2] sm:$0xff]
    %v7906 = vld [vmem:[%s241 + $0x2d2] sm:$0xff]
    %v7907 = vld [vmem:[%s241 + $0x2da] sm:$0xff]
    %v7908 = vld [vmem:[%s241 + $0x2ea] sm:$0xff]
    %v7909 = vld [vmem:[%s241 + $0x2f2] sm:$0xff]
    %v7910 = vld [vmem:[%s241 + $0x302] sm:$0xff]
    %v7911 = vld [vmem:[%s241 + $0x30a] sm:$0xff]
    %v7912 = vld [vmem:[%s241 + $0x31a] sm:$0xff]
    %v7913 = vld [vmem:[%s241 + $0x322] sm:$0xff]
    %v7914 = vpack.c.bf16 %v7851, %v7850
    %v7915 = vpack.c.bf16 %v7853, %v7852
    %v7916 = vpack.c.bf16 %v7855, %v7854
    %v7917 = vpack.c.bf16 %v7857, %v7856
    %v7918 = vpack.c.bf16 %v7859, %v7858
    %v7919 = vpack.c.bf16 %v7861, %v7860
    %v7920 = vpack.c.bf16 %v7863, %v7862
    %v7921 = vpack.c.bf16 %v7865, %v7864
    %v7922 = vpack.c.bf16 %v7867, %v7866
    %v7923 = vpack.c.bf16 %v7869, %v7868
    %v7924 = vpack.c.bf16 %v7871, %v7870
    %v7925 = vpack.c.bf16 %v7873, %v7872
    %v7926 = vpack.c.bf16 %v7875, %v7874
    %v7927 = vpack.c.bf16 %v7877, %v7876
    %v7928 = vpack.c.bf16 %v7879, %v7878
    %v7929 = vpack.c.bf16 %v7881, %v7880
    %v7930 = vpack.c.bf16 %v7883, %v7882
    %v7931 = vpack.c.bf16 %v7885, %v7884
    %v7932 = vpack.c.bf16 %v7887, %v7886
    %v7933 = vpack.c.bf16 %v7889, %v7888
    %v7934 = vpack.c.bf16 %v7891, %v7890
    %v7935 = vpack.c.bf16 %v7893, %v7892
    %v7936 = vpack.c.bf16 %v7895, %v7894
    %v7937 = vpack.c.bf16 %v7897, %v7896
    %v7938 = vpack.c.bf16 %v7899, %v7898
    %v7939 = vpack.c.bf16 %v7901, %v7900
    %v7940 = vpack.c.bf16 %v7903, %v7902
    %v7941 = vpack.c.bf16 %v7905, %v7904
    %v7942 = vpack.c.bf16 %v7907, %v7906
    %v7943 = vpack.c.bf16 %v7909, %v7908
    %v7944 = vpack.c.bf16 %v7911, %v7910
    %v7945 = vpack.c.bf16 %v7913, %v7912
    %s7946 = scalar_lea.vmem [#allocation8], 320
    %v7947 = vld [vmem:[%s7946] sm:$0xf]
    %v7948 = vld [vmem:[%s7946 + $0x4] sm:$0xf]
    %v7949 = vld [vmem:[%s7946 + $0x8] sm:$0xf]
    %v7950 = vld [vmem:[%s7946 + $0xc] sm:$0xf]
    %v7951 = vld [vmem:[%s7946 + $0x10] sm:$0xf]
    %v7952 = vld [vmem:[%s7946 + $0x14] sm:$0xf]
    %v7953 = vld [vmem:[%s7946 + $0x18] sm:$0xf]
    %v7954 = vld [vmem:[%s7946 + $0x1c] sm:$0xf]
    %v7955 = vld [vmem:[%s7946 + $0x20] sm:$0xf]
    %v7956 = vld [vmem:[%s7946 + $0x24] sm:$0xf]
    %v7957 = vld [vmem:[%s7946 + $0x28] sm:$0xf]
    %v7958 = vld [vmem:[%s7946 + $0x2c] sm:$0xf]
    %v7959 = vld [vmem:[%s7946 + $0x30] sm:$0xf]
    %v7960 = vld [vmem:[%s7946 + $0x34] sm:$0xf]
    %v7961 = vld [vmem:[%s7946 + $0x38] sm:$0xf]
    %v7962 = vld [vmem:[%s7946 + $0x3c] sm:$0xf]
    %v7979 = vunpack.c.l.b16 %v7947
    %v7980 = vunpack.c.l.b16 %v7948
    %v7981 = vunpack.c.l.b16 %v7949
    %v7982 = vunpack.c.l.b16 %v7950
    %v7983 = vunpack.c.l.b16 %v7951
    %v7984 = vunpack.c.l.b16 %v7952
    %v7985 = vunpack.c.l.b16 %v7953
    %v7986 = vunpack.c.l.b16 %v7954
    %v7987 = vunpack.c.l.b16 %v7955
    %v7988 = vunpack.c.l.b16 %v7956
    %v7989 = vunpack.c.l.b16 %v7957
    %v7990 = vunpack.c.l.b16 %v7958
    %v7991 = vunpack.c.l.b16 %v7959
    %v7992 = vunpack.c.l.b16 %v7960
    %v7993 = vunpack.c.l.b16 %v7961
    %v7994 = vunpack.c.l.b16 %v7962
    %v7995 = vpack.c.b16 %v7980, %v7979
    %v7996 = vpack.c.b16 %v7982, %v7981
    %v7997 = vpack.c.b16 %v7984, %v7983
    %v7998 = vpack.c.b16 %v7986, %v7985
    %v7999 = vpack.c.b16 %v7988, %v7987
    %v8000 = vpack.c.b16 %v7990, %v7989
    %v8001 = vpack.c.b16 %v7992, %v7991
    %v8002 = vpack.c.b16 %v7994, %v7993
    %8011 = vmatprep.subr.bf16.mxu0 0
    %8012 = vmatpush1.bf16.msra.mxu0 %v8002
    %8013 = vmatprep.subr.bf16.mxu0 0
    %8014 = vmatpush1.bf16.msra.mxu0 %v8001
    %8015 = vmatprep.subr.bf16.mxu0 0
    %8016 = vmatpush1.bf16.msra.mxu0 %v8000
    %8017 = vmatprep.subr.bf16.mxu0 0
    %8018 = vmatpush1.bf16.msra.mxu0 %v7999
    %8019 = vmatprep.subr.bf16.mxu0 0
    %8020 = vmatpush1.bf16.msra.mxu0 %v7998
    %8021 = vmatprep.subr.bf16.mxu0 0
    %8022 = vmatpush1.bf16.msra.mxu0 %v7997
    %8023 = vmatprep.subr.bf16.mxu0 0
    %8024 = vmatpush1.bf16.msra.mxu0 %v7996
    %8025 = vmatprep.subr.bf16.mxu0 0
    %8026 = vmatpush1.bf16.msra.mxu0 %v7995
    %8027 = vmatprep.subr.bf16.mxu0 0
    %8028 = vmatpush2.bf16.msra.mxu0 0
    %8029 = vmatprep.subr.bf16.mxu0 0
    %8030 = vmatpush2.bf16.msra.mxu0 0
    %8031 = vmatprep.subr.bf16.mxu0 0
    %8032 = vmatpush2.bf16.msra.mxu0 0
    %8033 = vmatprep.subr.bf16.mxu0 0
    %8034 = vmatpush2.bf16.msra.mxu0 0
    %8035 = vmatprep.subr.bf16.mxu0 0
    %8036 = vmatpush2.bf16.msra.mxu0 0
    %8037 = vmatprep.subr.bf16.mxu0 0
    %8038 = vmatpush2.bf16.msra.mxu0 0
    %8039 = vmatprep.subr.bf16.mxu0 0
    %8040 = vmatpush2.bf16.msra.mxu0 0
    %8041 = vmatprep.subr.bf16.mxu0 0
    %8042 = vmatpush2.bf16.msra.mxu0 0
    %8043 = vmatprep.mubr.bf16.mxu0 0
    %8044 = vmatmul.mubr.bf16.gmra.mxu0 %v7914
    %v8045 = vpop.f32.mrf.mxu0
    %v8046 = vadd.f32 0.0, %v8045
    %v8047 = vpop.f32.mrf.mxu0
    %v8048 = vpop.f32.mrf.mxu0
    %v8049 = vadd.f32 0.0, %v8048
    %v8050 = vpop.f32.mrf.mxu0
    %8051 = vmatprep.mubr.bf16.mxu0 0
    %8052 = vmatmul.mubr.bf16.gmra.mxu0 %v7915
    %v8053 = vpop.f32.mrf.mxu0
    %v8054 = vadd.f32 0.0, %v8053
    %v8055 = vpop.f32.mrf.mxu0
    %v8056 = vpop.f32.mrf.mxu0
    %v8057 = vadd.f32 0.0, %v8056
    %v8058 = vpop.f32.mrf.mxu0
    %8059 = vmatprep.mubr.bf16.mxu0 0
    %8060 = vmatmul.mubr.bf16.gmra.mxu0 %v7916
    %v8061 = vpop.f32.mrf.mxu0
    %v8062 = vadd.f32 0.0, %v8061
    %v8063 = vpop.f32.mrf.mxu0
    %v8064 = vpop.f32.mrf.mxu0
    %v8065 = vadd.f32 0.0, %v8064
    %v8066 = vpop.f32.mrf.mxu0
    %8067 = vmatprep.mubr.bf16.mxu0 0
    %8068 = vmatmul.mubr.bf16.gmra.mxu0 %v7917
    %v8069 = vpop.f32.mrf.mxu0
    %v8070 = vadd.f32 0.0, %v8069
    %v8071 = vpop.f32.mrf.mxu0
    %v8072 = vpop.f32.mrf.mxu0
    %v8073 = vadd.f32 0.0, %v8072
    %v8074 = vpop.f32.mrf.mxu0
    %8075 = vmatprep.mubr.bf16.mxu0 0
    %8076 = vmatmul.mubr.bf16.gmra.mxu0 %v7918
    %v8077 = vpop.f32.mrf.mxu0
    %v8078 = vadd.f32 0.0, %v8077
    %v8079 = vpop.f32.mrf.mxu0
    %v8080 = vpop.f32.mrf.mxu0
    %v8081 = vadd.f32 0.0, %v8080
    %v8082 = vpop.f32.mrf.mxu0
    %8083 = vmatprep.mubr.bf16.mxu0 0
    %8084 = vmatmul.mubr.bf16.gmra.mxu0 %v7919
    %v8085 = vpop.f32.mrf.mxu0
    %v8086 = vadd.f32 0.0, %v8085
    %v8087 = vpop.f32.mrf.mxu0
    %v8088 = vpop.f32.mrf.mxu0
    %v8089 = vadd.f32 0.0, %v8088
    %v8090 = vpop.f32.mrf.mxu0
    %8091 = vmatprep.mubr.bf16.mxu0 0
    %8092 = vmatmul.mubr.bf16.gmra.mxu0 %v7920
    %v8093 = vpop.f32.mrf.mxu0
    %v8094 = vadd.f32 0.0, %v8093
    %v8095 = vpop.f32.mrf.mxu0
    %v8096 = vpop.f32.mrf.mxu0
    %v8097 = vadd.f32 0.0, %v8096
    %v8098 = vpop.f32.mrf.mxu0
    %8099 = vmatprep.mubr.bf16.mxu0 0
    %8100 = vmatmul.mubr.bf16.gmra.mxu0 %v7921
    %v8101 = vpop.f32.mrf.mxu0
    %v8102 = vadd.f32 0.0, %v8101
    %v8103 = vpop.f32.mrf.mxu0
    %v8104 = vpop.f32.mrf.mxu0
    %v8105 = vadd.f32 0.0, %v8104
    %v8106 = vpop.f32.mrf.mxu0
    %8107 = vmatprep.mubr.bf16.mxu0 0
    %8108 = vmatmul.mubr.bf16.gmra.mxu0 %v7922
    %v8109 = vpop.f32.mrf.mxu0
    %v8110 = vadd.f32 0.0, %v8109
    %v8111 = vpop.f32.mrf.mxu0
    %v8112 = vpop.f32.mrf.mxu0
    %v8113 = vadd.f32 0.0, %v8112
    %v8114 = vpop.f32.mrf.mxu0
    %8115 = vmatprep.mubr.bf16.mxu0 0
    %8116 = vmatmul.mubr.bf16.gmra.mxu0 %v7923
    %v8117 = vpop.f32.mrf.mxu0
    %v8118 = vadd.f32 0.0, %v8117
    %v8119 = vpop.f32.mrf.mxu0
    %v8120 = vpop.f32.mrf.mxu0
    %v8121 = vadd.f32 0.0, %v8120
    %v8122 = vpop.f32.mrf.mxu0
    %8123 = vmatprep.mubr.bf16.mxu0 0
    %8124 = vmatmul.mubr.bf16.gmra.mxu0 %v7924
    %v8125 = vpop.f32.mrf.mxu0
    %v8126 = vadd.f32 0.0, %v8125
    %v8127 = vpop.f32.mrf.mxu0
    %v8128 = vpop.f32.mrf.mxu0
    %v8129 = vadd.f32 0.0, %v8128
    %v8130 = vpop.f32.mrf.mxu0
    %8131 = vmatprep.mubr.bf16.mxu0 0
    %8132 = vmatmul.mubr.bf16.gmra.mxu0 %v7925
    %v8133 = vpop.f32.mrf.mxu0
    %v8134 = vadd.f32 0.0, %v8133
    %v8135 = vpop.f32.mrf.mxu0
    %v8136 = vpop.f32.mrf.mxu0
    %v8137 = vadd.f32 0.0, %v8136
    %v8138 = vpop.f32.mrf.mxu0
    %8139 = vmatprep.mubr.bf16.mxu0 0
    %8140 = vmatmul.mubr.bf16.gmra.mxu0 %v7926
    %v8141 = vpop.f32.mrf.mxu0
    %v8142 = vadd.f32 0.0, %v8141
    %v8143 = vpop.f32.mrf.mxu0
    %v8144 = vpop.f32.mrf.mxu0
    %v8145 = vadd.f32 0.0, %v8144
    %v8146 = vpop.f32.mrf.mxu0
    %8147 = vmatprep.mubr.bf16.mxu0 0
    %8148 = vmatmul.mubr.bf16.gmra.mxu0 %v7927
    %v8149 = vpop.f32.mrf.mxu0
    %v8150 = vadd.f32 0.0, %v8149
    %v8151 = vpop.f32.mrf.mxu0
    %v8152 = vpop.f32.mrf.mxu0
    %v8153 = vadd.f32 0.0, %v8152
    %v8154 = vpop.f32.mrf.mxu0
    %8155 = vmatprep.mubr.bf16.mxu0 0
    %8156 = vmatmul.mubr.bf16.gmra.mxu0 %v7928
    %v8157 = vpop.f32.mrf.mxu0
    %v8158 = vadd.f32 0.0, %v8157
    %v8159 = vpop.f32.mrf.mxu0
    %v8160 = vpop.f32.mrf.mxu0
    %v8161 = vadd.f32 0.0, %v8160
    %v8162 = vpop.f32.mrf.mxu0
    %8163 = vmatprep.mubr.bf16.mxu0 0
    %8164 = vmatmul.mubr.bf16.gmra.mxu0 %v7929
    %v8165 = vpop.f32.mrf.mxu0
    %v8166 = vadd.f32 0.0, %v8165
    %v8167 = vpop.f32.mrf.mxu0
    %v8168 = vpop.f32.mrf.mxu0
    %v8169 = vadd.f32 0.0, %v8168
    %v8170 = vpop.f32.mrf.mxu0
    %8171 = vmatprep.mubr.bf16.mxu0 0
    %8172 = vmatmul.mubr.bf16.gmra.mxu0 %v7930
    %v8173 = vpop.f32.mrf.mxu0
    %v8174 = vadd.f32 0.0, %v8173
    %v8175 = vpop.f32.mrf.mxu0
    %v8176 = vpop.f32.mrf.mxu0
    %v8177 = vadd.f32 0.0, %v8176
    %v8178 = vpop.f32.mrf.mxu0
    %8179 = vmatprep.mubr.bf16.mxu0 0
    %8180 = vmatmul.mubr.bf16.gmra.mxu0 %v7931
    %v8181 = vpop.f32.mrf.mxu0
    %v8182 = vadd.f32 0.0, %v8181
    %v8183 = vpop.f32.mrf.mxu0
    %v8184 = vpop.f32.mrf.mxu0
    %v8185 = vadd.f32 0.0, %v8184
    %v8186 = vpop.f32.mrf.mxu0
    %8187 = vmatprep.mubr.bf16.mxu0 0
    %8188 = vmatmul.mubr.bf16.gmra.mxu0 %v7932
    %v8189 = vpop.f32.mrf.mxu0
    %v8190 = vadd.f32 0.0, %v8189
    %v8191 = vpop.f32.mrf.mxu0
    %v8192 = vpop.f32.mrf.mxu0
    %v8193 = vadd.f32 0.0, %v8192
    %v8194 = vpop.f32.mrf.mxu0
    %8195 = vmatprep.mubr.bf16.mxu0 0
    %8196 = vmatmul.mubr.bf16.gmra.mxu0 %v7933
    %v8197 = vpop.f32.mrf.mxu0
    %v8198 = vadd.f32 0.0, %v8197
    %v8199 = vpop.f32.mrf.mxu0
    %v8200 = vpop.f32.mrf.mxu0
    %v8201 = vadd.f32 0.0, %v8200
    %v8202 = vpop.f32.mrf.mxu0
    %8203 = vmatprep.mubr.bf16.mxu0 0
    %8204 = vmatmul.mubr.bf16.gmra.mxu0 %v7934
    %v8205 = vpop.f32.mrf.mxu0
    %v8206 = vadd.f32 0.0, %v8205
    %v8207 = vpop.f32.mrf.mxu0
    %v8208 = vpop.f32.mrf.mxu0
    %v8209 = vadd.f32 0.0, %v8208
    %v8210 = vpop.f32.mrf.mxu0
    %8211 = vmatprep.mubr.bf16.mxu0 0
    %8212 = vmatmul.mubr.bf16.gmra.mxu0 %v7935
    %v8213 = vpop.f32.mrf.mxu0
    %v8214 = vadd.f32 0.0, %v8213
    %v8215 = vpop.f32.mrf.mxu0
    %v8216 = vpop.f32.mrf.mxu0
    %v8217 = vadd.f32 0.0, %v8216
    %v8218 = vpop.f32.mrf.mxu0
    %8219 = vmatprep.mubr.bf16.mxu0 0
    %8220 = vmatmul.mubr.bf16.gmra.mxu0 %v7936
    %v8221 = vpop.f32.mrf.mxu0
    %v8222 = vadd.f32 0.0, %v8221
    %v8223 = vpop.f32.mrf.mxu0
    %v8224 = vpop.f32.mrf.mxu0
    %v8225 = vadd.f32 0.0, %v8224
    %v8226 = vpop.f32.mrf.mxu0
    %8227 = vmatprep.mubr.bf16.mxu0 0
    %8228 = vmatmul.mubr.bf16.gmra.mxu0 %v7937
    %v8229 = vpop.f32.mrf.mxu0
    %v8230 = vadd.f32 0.0, %v8229
    %v8231 = vpop.f32.mrf.mxu0
    %v8232 = vpop.f32.mrf.mxu0
    %v8233 = vadd.f32 0.0, %v8232
    %v8234 = vpop.f32.mrf.mxu0
    %8235 = vmatprep.mubr.bf16.mxu0 0
    %8236 = vmatmul.mubr.bf16.gmra.mxu0 %v7938
    %v8237 = vpop.f32.mrf.mxu0
    %v8238 = vadd.f32 0.0, %v8237
    %v8239 = vpop.f32.mrf.mxu0
    %v8240 = vpop.f32.mrf.mxu0
    %v8241 = vadd.f32 0.0, %v8240
    %v8242 = vpop.f32.mrf.mxu0
    %8243 = vmatprep.mubr.bf16.mxu0 0
    %8244 = vmatmul.mubr.bf16.gmra.mxu0 %v7939
    %v8245 = vpop.f32.mrf.mxu0
    %v8246 = vadd.f32 0.0, %v8245
    %v8247 = vpop.f32.mrf.mxu0
    %v8248 = vpop.f32.mrf.mxu0
    %v8249 = vadd.f32 0.0, %v8248
    %v8250 = vpop.f32.mrf.mxu0
    %8251 = vmatprep.mubr.bf16.mxu0 0
    %8252 = vmatmul.mubr.bf16.gmra.mxu0 %v7940
    %v8253 = vpop.f32.mrf.mxu0
    %v8254 = vadd.f32 0.0, %v8253
    %v8255 = vpop.f32.mrf.mxu0
    %v8256 = vpop.f32.mrf.mxu0
    %v8257 = vadd.f32 0.0, %v8256
    %v8258 = vpop.f32.mrf.mxu0
    %8259 = vmatprep.mubr.bf16.mxu0 0
    %8260 = vmatmul.mubr.bf16.gmra.mxu0 %v7941
    %v8261 = vpop.f32.mrf.mxu0
    %v8262 = vadd.f32 0.0, %v8261
    %v8263 = vpop.f32.mrf.mxu0
    %v8264 = vpop.f32.mrf.mxu0
    %v8265 = vadd.f32 0.0, %v8264
    %v8266 = vpop.f32.mrf.mxu0
    %8267 = vmatprep.mubr.bf16.mxu0 0
    %8268 = vmatmul.mubr.bf16.gmra.mxu0 %v7942
    %v8269 = vpop.f32.mrf.mxu0
    %v8270 = vadd.f32 0.0, %v8269
    %v8271 = vpop.f32.mrf.mxu0
    %v8272 = vpop.f32.mrf.mxu0
    %v8273 = vadd.f32 0.0, %v8272
    %v8274 = vpop.f32.mrf.mxu0
    %8275 = vmatprep.mubr.bf16.mxu0 0
    %8276 = vmatmul.mubr.bf16.gmra.mxu0 %v7943
    %v8277 = vpop.f32.mrf.mxu0
    %v8278 = vadd.f32 0.0, %v8277
    %v8279 = vpop.f32.mrf.mxu0
    %v8280 = vpop.f32.mrf.mxu0
    %v8281 = vadd.f32 0.0, %v8280
    %v8282 = vpop.f32.mrf.mxu0
    %8283 = vmatprep.mubr.bf16.mxu0 0
    %8284 = vmatmul.mubr.bf16.gmra.mxu0 %v7944
    %v8285 = vpop.f32.mrf.mxu0
    %v8286 = vadd.f32 0.0, %v8285
    %v8287 = vpop.f32.mrf.mxu0
    %v8288 = vpop.f32.mrf.mxu0
    %v8289 = vadd.f32 0.0, %v8288
    %v8290 = vpop.f32.mrf.mxu0
    %8291 = vmatprep.mubr.bf16.mxu0 0
    %8292 = vmatmul.mubr.bf16.gmra.mxu0 %v7945
    %v8293 = vpop.f32.mrf.mxu0
    %v8294 = vadd.f32 0.0, %v8293
    %v8295 = vpop.f32.mrf.mxu0
    %v8296 = vpop.f32.mrf.mxu0
    %v8297 = vadd.f32 0.0, %v8296
    %v8298 = vpop.f32.mrf.mxu0
    %8299 = vdwg.mxu0
    %v8300 = vadd.f32 %v7786, %v8046
    %v8301 = vadd.f32 %v7787, %v8049
    %v8302 = vadd.f32 %v7788, %v8054
    %v8303 = vadd.f32 %v7789, %v8057
    %v8304 = vadd.f32 %v7790, %v8062
    %v8305 = vadd.f32 %v7791, %v8065
    %v8306 = vadd.f32 %v7792, %v8070
    %v8307 = vadd.f32 %v7793, %v8073
    %v8308 = vadd.f32 %v7794, %v8078
    %v8309 = vadd.f32 %v7795, %v8081
    %v8310 = vadd.f32 %v7796, %v8086
    %v8311 = vadd.f32 %v7797, %v8089
    %v8312 = vadd.f32 %v7798, %v8094
    %v8313 = vadd.f32 %v7799, %v8097
    %v8314 = vadd.f32 %v7800, %v8102
    %v8315 = vadd.f32 %v7801, %v8105
    %v8316 = vadd.f32 %v7802, %v8110
    %v8317 = vadd.f32 %v7803, %v8113
    %v8318 = vadd.f32 %v7804, %v8118
    %v8319 = vadd.f32 %v7805, %v8121
    %v8320 = vadd.f32 %v7806, %v8126
    %v8321 = vadd.f32 %v7807, %v8129
    %v8322 = vadd.f32 %v7808, %v8134
    %v8323 = vadd.f32 %v7809, %v8137
    %v8324 = vadd.f32 %v7810, %v8142
    %v8325 = vadd.f32 %v7811, %v8145
    %v8326 = vadd.f32 %v7812, %v8150
    %v8327 = vadd.f32 %v7813, %v8153
    %v8328 = vadd.f32 %v7814, %v8158
    %v8329 = vadd.f32 %v7815, %v8161
    %v8330 = vadd.f32 %v7816, %v8166
    %v8331 = vadd.f32 %v7817, %v8169
    %v8332 = vadd.f32 %v7818, %v8174
    %v8333 = vadd.f32 %v7819, %v8177
    %v8334 = vadd.f32 %v7820, %v8182
    %v8335 = vadd.f32 %v7821, %v8185
    %v8336 = vadd.f32 %v7822, %v8190
    %v8337 = vadd.f32 %v7823, %v8193
    %v8338 = vadd.f32 %v7824, %v8198
    %v8339 = vadd.f32 %v7825, %v8201
    %v8340 = vadd.f32 %v7826, %v8206
    %v8341 = vadd.f32 %v7827, %v8209
    %v8342 = vadd.f32 %v7828, %v8214
    %v8343 = vadd.f32 %v7829, %v8217
    %v8344 = vadd.f32 %v7830, %v8222
    %v8345 = vadd.f32 %v7831, %v8225
    %v8346 = vadd.f32 %v7832, %v8230
    %v8347 = vadd.f32 %v7833, %v8233
    %v8348 = vadd.f32 %v7834, %v8238
    %v8349 = vadd.f32 %v7835, %v8241
    %v8350 = vadd.f32 %v7836, %v8246
    %v8351 = vadd.f32 %v7837, %v8249
    %v8352 = vadd.f32 %v7838, %v8254
    %v8353 = vadd.f32 %v7839, %v8257
    %v8354 = vadd.f32 %v7840, %v8262
    %v8355 = vadd.f32 %v7841, %v8265
    %v8356 = vadd.f32 %v7842, %v8270
    %v8357 = vadd.f32 %v7843, %v8273
    %v8358 = vadd.f32 %v7844, %v8278
    %v8359 = vadd.f32 %v7845, %v8281
    %v8360 = vadd.f32 %v7846, %v8286
    %v8361 = vadd.f32 %v7847, %v8289
    %v8362 = vadd.f32 %v7848, %v8294
    %v8363 = vadd.f32 %v7849, %v8297
    %v8364 = vld [vmem:[%s3261] sm:$0xff]
    %v8365 = vld [vmem:[%s3261 + $0x8] sm:$0xff]
    %v8366 = vld [vmem:[%s3261 + $0x18] sm:$0xff]
    %v8367 = vld [vmem:[%s3261 + $0x20] sm:$0xff]
    %v8368 = vld [vmem:[%s3261 + $0x30] sm:$0xff]
    %v8369 = vld [vmem:[%s3261 + $0x38] sm:$0xff]
    %v8370 = vld [vmem:[%s3261 + $0x48] sm:$0xff]
    %v8371 = vld [vmem:[%s3261 + $0x50] sm:$0xff]
    %v8372 = vld [vmem:[%s3261 + $0x60] sm:$0xff]
    %v8373 = vld [vmem:[%s3261 + $0x68] sm:$0xff]
    %v8374 = vld [vmem:[%s3261 + $0x78] sm:$0xff]
    %v8375 = vld [vmem:[%s3261 + $0x80] sm:$0xff]
    %v8376 = vld [vmem:[%s3261 + $0x90] sm:$0xff]
    %v8377 = vld [vmem:[%s3261 + $0x98] sm:$0xff]
    %v8378 = vld [vmem:[%s3261 + $0xa8] sm:$0xff]
    %v8379 = vld [vmem:[%s3261 + $0xb0] sm:$0xff]
    %v8380 = vld [vmem:[%s3261 + $0xc0] sm:$0xff]
    %v8381 = vld [vmem:[%s3261 + $0xc8] sm:$0xff]
    %v8382 = vld [vmem:[%s3261 + $0xd8] sm:$0xff]
    %v8383 = vld [vmem:[%s3261 + $0xe0] sm:$0xff]
    %v8384 = vld [vmem:[%s3261 + $0xf0] sm:$0xff]
    %v8385 = vld [vmem:[%s3261 + $0xf8] sm:$0xff]
    %v8386 = vld [vmem:[%s3261 + $0x108] sm:$0xff]
    %v8387 = vld [vmem:[%s3261 + $0x110] sm:$0xff]
    %v8388 = vld [vmem:[%s3261 + $0x120] sm:$0xff]
    %v8389 = vld [vmem:[%s3261 + $0x128] sm:$0xff]
    %v8390 = vld [vmem:[%s3261 + $0x138] sm:$0xff]
    %v8391 = vld [vmem:[%s3261 + $0x140] sm:$0xff]
    %v8392 = vld [vmem:[%s3261 + $0x150] sm:$0xff]
    %v8393 = vld [vmem:[%s3261 + $0x158] sm:$0xff]
    %v8394 = vld [vmem:[%s3261 + $0x168] sm:$0xff]
    %v8395 = vld [vmem:[%s3261 + $0x170] sm:$0xff]
    %v8396 = vld [vmem:[%s3261 + $0x1b0] sm:$0xff]
    %v8397 = vld [vmem:[%s3261 + $0x1b8] sm:$0xff]
    %v8398 = vld [vmem:[%s3261 + $0x1c8] sm:$0xff]
    %v8399 = vld [vmem:[%s3261 + $0x1d0] sm:$0xff]
    %v8400 = vld [vmem:[%s3261 + $0x1e0] sm:$0xff]
    %v8401 = vld [vmem:[%s3261 + $0x1e8] sm:$0xff]
    %v8402 = vld [vmem:[%s3261 + $0x1f8] sm:$0xff]
    %v8403 = vld [vmem:[%s3261 + $0x200] sm:$0xff]
    %v8404 = vld [vmem:[%s3261 + $0x210] sm:$0xff]
    %v8405 = vld [vmem:[%s3261 + $0x218] sm:$0xff]
    %v8406 = vld [vmem:[%s3261 + $0x228] sm:$0xff]
    %v8407 = vld [vmem:[%s3261 + $0x230] sm:$0xff]
    %v8408 = vld [vmem:[%s3261 + $0x240] sm:$0xff]
    %v8409 = vld [vmem:[%s3261 + $0x248] sm:$0xff]
    %v8410 = vld [vmem:[%s3261 + $0x258] sm:$0xff]
    %v8411 = vld [vmem:[%s3261 + $0x260] sm:$0xff]
    %v8412 = vld [vmem:[%s3261 + $0x270] sm:$0xff]
    %v8413 = vld [vmem:[%s3261 + $0x278] sm:$0xff]
    %v8414 = vld [vmem:[%s3261 + $0x288] sm:$0xff]
    %v8415 = vld [vmem:[%s3261 + $0x290] sm:$0xff]
    %v8416 = vld [vmem:[%s3261 + $0x2a0] sm:$0xff]
    %v8417 = vld [vmem:[%s3261 + $0x2a8] sm:$0xff]
    %v8418 = vld [vmem:[%s3261 + $0x2b8] sm:$0xff]
    %v8419 = vld [vmem:[%s3261 + $0x2c0] sm:$0xff]
    %v8420 = vld [vmem:[%s3261 + $0x2d0] sm:$0xff]
    %v8421 = vld [vmem:[%s3261 + $0x2d8] sm:$0xff]
    %v8422 = vld [vmem:[%s3261 + $0x2e8] sm:$0xff]
    %v8423 = vld [vmem:[%s3261 + $0x2f0] sm:$0xff]
    %v8424 = vld [vmem:[%s3261 + $0x300] sm:$0xff]
    %v8425 = vld [vmem:[%s3261 + $0x308] sm:$0xff]
    %v8426 = vld [vmem:[%s3261 + $0x318] sm:$0xff]
    %v8427 = vld [vmem:[%s3261 + $0x320] sm:$0xff]
    %v8428 = vpack.c.bf16 %v8365, %v8364
    %v8429 = vpack.c.bf16 %v8367, %v8366
    %v8430 = vpack.c.bf16 %v8369, %v8368
    %v8431 = vpack.c.bf16 %v8371, %v8370
    %v8432 = vpack.c.bf16 %v8373, %v8372
    %v8433 = vpack.c.bf16 %v8375, %v8374
    %v8434 = vpack.c.bf16 %v8377, %v8376
    %v8435 = vpack.c.bf16 %v8379, %v8378
    %v8436 = vpack.c.bf16 %v8381, %v8380
    %v8437 = vpack.c.bf16 %v8383, %v8382
    %v8438 = vpack.c.bf16 %v8385, %v8384
    %v8439 = vpack.c.bf16 %v8387, %v8386
    %v8440 = vpack.c.bf16 %v8389, %v8388
    %v8441 = vpack.c.bf16 %v8391, %v8390
    %v8442 = vpack.c.bf16 %v8393, %v8392
    %v8443 = vpack.c.bf16 %v8395, %v8394
    %v8444 = vpack.c.bf16 %v8397, %v8396
    %v8445 = vpack.c.bf16 %v8399, %v8398
    %v8446 = vpack.c.bf16 %v8401, %v8400
    %v8447 = vpack.c.bf16 %v8403, %v8402
    %v8448 = vpack.c.bf16 %v8405, %v8404
    %v8449 = vpack.c.bf16 %v8407, %v8406
    %v8450 = vpack.c.bf16 %v8409, %v8408
    %v8451 = vpack.c.bf16 %v8411, %v8410
    %v8452 = vpack.c.bf16 %v8413, %v8412
    %v8453 = vpack.c.bf16 %v8415, %v8414
    %v8454 = vpack.c.bf16 %v8417, %v8416
    %v8455 = vpack.c.bf16 %v8419, %v8418
    %v8456 = vpack.c.bf16 %v8421, %v8420
    %v8457 = vpack.c.bf16 %v8423, %v8422
    %v8458 = vpack.c.bf16 %v8425, %v8424
    %v8459 = vpack.c.bf16 %v8427, %v8426
    %s8460 = scalar_lea.vmem [#allocation8], 384
    %v8461 = vld [vmem:[%s8460] sm:$0xf]
    %v8462 = vld [vmem:[%s8460 + $0x4] sm:$0xf]
    %v8463 = vld [vmem:[%s8460 + $0x8] sm:$0xf]
    %v8464 = vld [vmem:[%s8460 + $0xc] sm:$0xf]
    %v8465 = vld [vmem:[%s8460 + $0x10] sm:$0xf]
    %v8466 = vld [vmem:[%s8460 + $0x14] sm:$0xf]
    %v8467 = vld [vmem:[%s8460 + $0x18] sm:$0xf]
    %v8468 = vld [vmem:[%s8460 + $0x1c] sm:$0xf]
    %v8469 = vld [vmem:[%s8460 + $0x20] sm:$0xf]
    %v8470 = vld [vmem:[%s8460 + $0x24] sm:$0xf]
    %v8471 = vld [vmem:[%s8460 + $0x28] sm:$0xf]
    %v8472 = vld [vmem:[%s8460 + $0x2c] sm:$0xf]
    %v8473 = vld [vmem:[%s8460 + $0x30] sm:$0xf]
    %v8474 = vld [vmem:[%s8460 + $0x34] sm:$0xf]
    %v8475 = vld [vmem:[%s8460 + $0x38] sm:$0xf]
    %v8476 = vld [vmem:[%s8460 + $0x3c] sm:$0xf]
    %v8493 = vunpack.c.l.b16 %v8461
    %v8494 = vunpack.c.l.b16 %v8462
    %v8495 = vunpack.c.l.b16 %v8463
    %v8496 = vunpack.c.l.b16 %v8464
    %v8497 = vunpack.c.l.b16 %v8465
    %v8498 = vunpack.c.l.b16 %v8466
    %v8499 = vunpack.c.l.b16 %v8467
    %v8500 = vunpack.c.l.b16 %v8468
    %v8501 = vunpack.c.l.b16 %v8469
    %v8502 = vunpack.c.l.b16 %v8470
    %v8503 = vunpack.c.l.b16 %v8471
    %v8504 = vunpack.c.l.b16 %v8472
    %v8505 = vunpack.c.l.b16 %v8473
    %v8506 = vunpack.c.l.b16 %v8474
    %v8507 = vunpack.c.l.b16 %v8475
    %v8508 = vunpack.c.l.b16 %v8476
    %v8509 = vpack.c.b16 %v8494, %v8493
    %v8510 = vpack.c.b16 %v8496, %v8495
    %v8511 = vpack.c.b16 %v8498, %v8497
    %v8512 = vpack.c.b16 %v8500, %v8499
    %v8513 = vpack.c.b16 %v8502, %v8501
    %v8514 = vpack.c.b16 %v8504, %v8503
    %v8515 = vpack.c.b16 %v8506, %v8505
    %v8516 = vpack.c.b16 %v8508, %v8507
    %8525 = vmatprep.subr.bf16.mxu0 0
    %8526 = vmatpush1.bf16.msra.mxu0 %v8516
    %8527 = vmatprep.subr.bf16.mxu0 0
    %8528 = vmatpush1.bf16.msra.mxu0 %v8515
    %8529 = vmatprep.subr.bf16.mxu0 0
    %8530 = vmatpush1.bf16.msra.mxu0 %v8514
    %8531 = vmatprep.subr.bf16.mxu0 0
    %8532 = vmatpush1.bf16.msra.mxu0 %v8513
    %8533 = vmatprep.subr.bf16.mxu0 0
    %8534 = vmatpush1.bf16.msra.mxu0 %v8512
    %8535 = vmatprep.subr.bf16.mxu0 0
    %8536 = vmatpush1.bf16.msra.mxu0 %v8511
    %8537 = vmatprep.subr.bf16.mxu0 0
    %8538 = vmatpush1.bf16.msra.mxu0 %v8510
    %8539 = vmatprep.subr.bf16.mxu0 0
    %8540 = vmatpush1.bf16.msra.mxu0 %v8509
    %8541 = vmatprep.subr.bf16.mxu0 0
    %8542 = vmatpush2.bf16.msra.mxu0 0
    %8543 = vmatprep.subr.bf16.mxu0 0
    %8544 = vmatpush2.bf16.msra.mxu0 0
    %8545 = vmatprep.subr.bf16.mxu0 0
    %8546 = vmatpush2.bf16.msra.mxu0 0
    %8547 = vmatprep.subr.bf16.mxu0 0
    %8548 = vmatpush2.bf16.msra.mxu0 0
    %8549 = vmatprep.subr.bf16.mxu0 0
    %8550 = vmatpush2.bf16.msra.mxu0 0
    %8551 = vmatprep.subr.bf16.mxu0 0
    %8552 = vmatpush2.bf16.msra.mxu0 0
    %8553 = vmatprep.subr.bf16.mxu0 0
    %8554 = vmatpush2.bf16.msra.mxu0 0
    %8555 = vmatprep.subr.bf16.mxu0 0
    %8556 = vmatpush2.bf16.msra.mxu0 0
    %8557 = vmatprep.mubr.bf16.mxu0 0
    %8558 = vmatmul.mubr.bf16.gmra.mxu0 %v8428
    %v8559 = vpop.f32.mrf.mxu0
    %v8560 = vadd.f32 0.0, %v8559
    %v8561 = vpop.f32.mrf.mxu0
    %v8562 = vpop.f32.mrf.mxu0
    %v8563 = vadd.f32 0.0, %v8562
    %v8564 = vpop.f32.mrf.mxu0
    %8565 = vmatprep.mubr.bf16.mxu0 0
    %8566 = vmatmul.mubr.bf16.gmra.mxu0 %v8429
    %v8567 = vpop.f32.mrf.mxu0
    %v8568 = vadd.f32 0.0, %v8567
    %v8569 = vpop.f32.mrf.mxu0
    %v8570 = vpop.f32.mrf.mxu0
    %v8571 = vadd.f32 0.0, %v8570
    %v8572 = vpop.f32.mrf.mxu0
    %8573 = vmatprep.mubr.bf16.mxu0 0
    %8574 = vmatmul.mubr.bf16.gmra.mxu0 %v8430
    %v8575 = vpop.f32.mrf.mxu0
    %v8576 = vadd.f32 0.0, %v8575
    %v8577 = vpop.f32.mrf.mxu0
    %v8578 = vpop.f32.mrf.mxu0
    %v8579 = vadd.f32 0.0, %v8578
    %v8580 = vpop.f32.mrf.mxu0
    %8581 = vmatprep.mubr.bf16.mxu0 0
    %8582 = vmatmul.mubr.bf16.gmra.mxu0 %v8431
    %v8583 = vpop.f32.mrf.mxu0
    %v8584 = vadd.f32 0.0, %v8583
    %v8585 = vpop.f32.mrf.mxu0
    %v8586 = vpop.f32.mrf.mxu0
    %v8587 = vadd.f32 0.0, %v8586
    %v8588 = vpop.f32.mrf.mxu0
    %8589 = vmatprep.mubr.bf16.mxu0 0
    %8590 = vmatmul.mubr.bf16.gmra.mxu0 %v8432
    %v8591 = vpop.f32.mrf.mxu0
    %v8592 = vadd.f32 0.0, %v8591
    %v8593 = vpop.f32.mrf.mxu0
    %v8594 = vpop.f32.mrf.mxu0
    %v8595 = vadd.f32 0.0, %v8594
    %v8596 = vpop.f32.mrf.mxu0
    %8597 = vmatprep.mubr.bf16.mxu0 0
    %8598 = vmatmul.mubr.bf16.gmra.mxu0 %v8433
    %v8599 = vpop.f32.mrf.mxu0
    %v8600 = vadd.f32 0.0, %v8599
    %v8601 = vpop.f32.mrf.mxu0
    %v8602 = vpop.f32.mrf.mxu0
    %v8603 = vadd.f32 0.0, %v8602
    %v8604 = vpop.f32.mrf.mxu0
    %8605 = vmatprep.mubr.bf16.mxu0 0
    %8606 = vmatmul.mubr.bf16.gmra.mxu0 %v8434
    %v8607 = vpop.f32.mrf.mxu0
    %v8608 = vadd.f32 0.0, %v8607
    %v8609 = vpop.f32.mrf.mxu0
    %v8610 = vpop.f32.mrf.mxu0
    %v8611 = vadd.f32 0.0, %v8610
    %v8612 = vpop.f32.mrf.mxu0
    %8613 = vmatprep.mubr.bf16.mxu0 0
    %8614 = vmatmul.mubr.bf16.gmra.mxu0 %v8435
    %v8615 = vpop.f32.mrf.mxu0
    %v8616 = vadd.f32 0.0, %v8615
    %v8617 = vpop.f32.mrf.mxu0
    %v8618 = vpop.f32.mrf.mxu0
    %v8619 = vadd.f32 0.0, %v8618
    %v8620 = vpop.f32.mrf.mxu0
    %8621 = vmatprep.mubr.bf16.mxu0 0
    %8622 = vmatmul.mubr.bf16.gmra.mxu0 %v8436
    %v8623 = vpop.f32.mrf.mxu0
    %v8624 = vadd.f32 0.0, %v8623
    %v8625 = vpop.f32.mrf.mxu0
    %v8626 = vpop.f32.mrf.mxu0
    %v8627 = vadd.f32 0.0, %v8626
    %v8628 = vpop.f32.mrf.mxu0
    %8629 = vmatprep.mubr.bf16.mxu0 0
    %8630 = vmatmul.mubr.bf16.gmra.mxu0 %v8437
    %v8631 = vpop.f32.mrf.mxu0
    %v8632 = vadd.f32 0.0, %v8631
    %v8633 = vpop.f32.mrf.mxu0
    %v8634 = vpop.f32.mrf.mxu0
    %v8635 = vadd.f32 0.0, %v8634
    %v8636 = vpop.f32.mrf.mxu0
    %8637 = vmatprep.mubr.bf16.mxu0 0
    %8638 = vmatmul.mubr.bf16.gmra.mxu0 %v8438
    %v8639 = vpop.f32.mrf.mxu0
    %v8640 = vadd.f32 0.0, %v8639
    %v8641 = vpop.f32.mrf.mxu0
    %v8642 = vpop.f32.mrf.mxu0
    %v8643 = vadd.f32 0.0, %v8642
    %v8644 = vpop.f32.mrf.mxu0
    %8645 = vmatprep.mubr.bf16.mxu0 0
    %8646 = vmatmul.mubr.bf16.gmra.mxu0 %v8439
    %v8647 = vpop.f32.mrf.mxu0
    %v8648 = vadd.f32 0.0, %v8647
    %v8649 = vpop.f32.mrf.mxu0
    %v8650 = vpop.f32.mrf.mxu0
    %v8651 = vadd.f32 0.0, %v8650
    %v8652 = vpop.f32.mrf.mxu0
    %8653 = vmatprep.mubr.bf16.mxu0 0
    %8654 = vmatmul.mubr.bf16.gmra.mxu0 %v8440
    %v8655 = vpop.f32.mrf.mxu0
    %v8656 = vadd.f32 0.0, %v8655
    %v8657 = vpop.f32.mrf.mxu0
    %v8658 = vpop.f32.mrf.mxu0
    %v8659 = vadd.f32 0.0, %v8658
    %v8660 = vpop.f32.mrf.mxu0
    %8661 = vmatprep.mubr.bf16.mxu0 0
    %8662 = vmatmul.mubr.bf16.gmra.mxu0 %v8441
    %v8663 = vpop.f32.mrf.mxu0
    %v8664 = vadd.f32 0.0, %v8663
    %v8665 = vpop.f32.mrf.mxu0
    %v8666 = vpop.f32.mrf.mxu0
    %v8667 = vadd.f32 0.0, %v8666
    %v8668 = vpop.f32.mrf.mxu0
    %8669 = vmatprep.mubr.bf16.mxu0 0
    %8670 = vmatmul.mubr.bf16.gmra.mxu0 %v8442
    %v8671 = vpop.f32.mrf.mxu0
    %v8672 = vadd.f32 0.0, %v8671
    %v8673 = vpop.f32.mrf.mxu0
    %v8674 = vpop.f32.mrf.mxu0
    %v8675 = vadd.f32 0.0, %v8674
    %v8676 = vpop.f32.mrf.mxu0
    %8677 = vmatprep.mubr.bf16.mxu0 0
    %8678 = vmatmul.mubr.bf16.gmra.mxu0 %v8443
    %v8679 = vpop.f32.mrf.mxu0
    %v8680 = vadd.f32 0.0, %v8679
    %v8681 = vpop.f32.mrf.mxu0
    %v8682 = vpop.f32.mrf.mxu0
    %v8683 = vadd.f32 0.0, %v8682
    %v8684 = vpop.f32.mrf.mxu0
    %8685 = vmatprep.mubr.bf16.mxu0 0
    %8686 = vmatmul.mubr.bf16.gmra.mxu0 %v8444
    %v8687 = vpop.f32.mrf.mxu0
    %v8688 = vadd.f32 0.0, %v8687
    %v8689 = vpop.f32.mrf.mxu0
    %v8690 = vpop.f32.mrf.mxu0
    %v8691 = vadd.f32 0.0, %v8690
    %v8692 = vpop.f32.mrf.mxu0
    %8693 = vmatprep.mubr.bf16.mxu0 0
    %8694 = vmatmul.mubr.bf16.gmra.mxu0 %v8445
    %v8695 = vpop.f32.mrf.mxu0
    %v8696 = vadd.f32 0.0, %v8695
    %v8697 = vpop.f32.mrf.mxu0
    %v8698 = vpop.f32.mrf.mxu0
    %v8699 = vadd.f32 0.0, %v8698
    %v8700 = vpop.f32.mrf.mxu0
    %8701 = vmatprep.mubr.bf16.mxu0 0
    %8702 = vmatmul.mubr.bf16.gmra.mxu0 %v8446
    %v8703 = vpop.f32.mrf.mxu0
    %v8704 = vadd.f32 0.0, %v8703
    %v8705 = vpop.f32.mrf.mxu0
    %v8706 = vpop.f32.mrf.mxu0
    %v8707 = vadd.f32 0.0, %v8706
    %v8708 = vpop.f32.mrf.mxu0
    %8709 = vmatprep.mubr.bf16.mxu0 0
    %8710 = vmatmul.mubr.bf16.gmra.mxu0 %v8447
    %v8711 = vpop.f32.mrf.mxu0
    %v8712 = vadd.f32 0.0, %v8711
    %v8713 = vpop.f32.mrf.mxu0
    %v8714 = vpop.f32.mrf.mxu0
    %v8715 = vadd.f32 0.0, %v8714
    %v8716 = vpop.f32.mrf.mxu0
    %8717 = vmatprep.mubr.bf16.mxu0 0
    %8718 = vmatmul.mubr.bf16.gmra.mxu0 %v8448
    %v8719 = vpop.f32.mrf.mxu0
    %v8720 = vadd.f32 0.0, %v8719
    %v8721 = vpop.f32.mrf.mxu0
    %v8722 = vpop.f32.mrf.mxu0
    %v8723 = vadd.f32 0.0, %v8722
    %v8724 = vpop.f32.mrf.mxu0
    %8725 = vmatprep.mubr.bf16.mxu0 0
    %8726 = vmatmul.mubr.bf16.gmra.mxu0 %v8449
    %v8727 = vpop.f32.mrf.mxu0
    %v8728 = vadd.f32 0.0, %v8727
    %v8729 = vpop.f32.mrf.mxu0
    %v8730 = vpop.f32.mrf.mxu0
    %v8731 = vadd.f32 0.0, %v8730
    %v8732 = vpop.f32.mrf.mxu0
    %8733 = vmatprep.mubr.bf16.mxu0 0
    %8734 = vmatmul.mubr.bf16.gmra.mxu0 %v8450
    %v8735 = vpop.f32.mrf.mxu0
    %v8736 = vadd.f32 0.0, %v8735
    %v8737 = vpop.f32.mrf.mxu0
    %v8738 = vpop.f32.mrf.mxu0
    %v8739 = vadd.f32 0.0, %v8738
    %v8740 = vpop.f32.mrf.mxu0
    %8741 = vmatprep.mubr.bf16.mxu0 0
    %8742 = vmatmul.mubr.bf16.gmra.mxu0 %v8451
    %v8743 = vpop.f32.mrf.mxu0
    %v8744 = vadd.f32 0.0, %v8743
    %v8745 = vpop.f32.mrf.mxu0
    %v8746 = vpop.f32.mrf.mxu0
    %v8747 = vadd.f32 0.0, %v8746
    %v8748 = vpop.f32.mrf.mxu0
    %8749 = vmatprep.mubr.bf16.mxu0 0
    %8750 = vmatmul.mubr.bf16.gmra.mxu0 %v8452
    %v8751 = vpop.f32.mrf.mxu0
    %v8752 = vadd.f32 0.0, %v8751
    %v8753 = vpop.f32.mrf.mxu0
    %v8754 = vpop.f32.mrf.mxu0
    %v8755 = vadd.f32 0.0, %v8754
    %v8756 = vpop.f32.mrf.mxu0
    %8757 = vmatprep.mubr.bf16.mxu0 0
    %8758 = vmatmul.mubr.bf16.gmra.mxu0 %v8453
    %v8759 = vpop.f32.mrf.mxu0
    %v8760 = vadd.f32 0.0, %v8759
    %v8761 = vpop.f32.mrf.mxu0
    %v8762 = vpop.f32.mrf.mxu0
    %v8763 = vadd.f32 0.0, %v8762
    %v8764 = vpop.f32.mrf.mxu0
    %8765 = vmatprep.mubr.bf16.mxu0 0
    %8766 = vmatmul.mubr.bf16.gmra.mxu0 %v8454
    %v8767 = vpop.f32.mrf.mxu0
    %v8768 = vadd.f32 0.0, %v8767
    %v8769 = vpop.f32.mrf.mxu0
    %v8770 = vpop.f32.mrf.mxu0
    %v8771 = vadd.f32 0.0, %v8770
    %v8772 = vpop.f32.mrf.mxu0
    %8773 = vmatprep.mubr.bf16.mxu0 0
    %8774 = vmatmul.mubr.bf16.gmra.mxu0 %v8455
    %v8775 = vpop.f32.mrf.mxu0
    %v8776 = vadd.f32 0.0, %v8775
    %v8777 = vpop.f32.mrf.mxu0
    %v8778 = vpop.f32.mrf.mxu0
    %v8779 = vadd.f32 0.0, %v8778
    %v8780 = vpop.f32.mrf.mxu0
    %8781 = vmatprep.mubr.bf16.mxu0 0
    %8782 = vmatmul.mubr.bf16.gmra.mxu0 %v8456
    %v8783 = vpop.f32.mrf.mxu0
    %v8784 = vadd.f32 0.0, %v8783
    %v8785 = vpop.f32.mrf.mxu0
    %v8786 = vpop.f32.mrf.mxu0
    %v8787 = vadd.f32 0.0, %v8786
    %v8788 = vpop.f32.mrf.mxu0
    %8789 = vmatprep.mubr.bf16.mxu0 0
    %8790 = vmatmul.mubr.bf16.gmra.mxu0 %v8457
    %v8791 = vpop.f32.mrf.mxu0
    %v8792 = vadd.f32 0.0, %v8791
    %v8793 = vpop.f32.mrf.mxu0
    %v8794 = vpop.f32.mrf.mxu0
    %v8795 = vadd.f32 0.0, %v8794
    %v8796 = vpop.f32.mrf.mxu0
    %8797 = vmatprep.mubr.bf16.mxu0 0
    %8798 = vmatmul.mubr.bf16.gmra.mxu0 %v8458
    %v8799 = vpop.f32.mrf.mxu0
    %v8800 = vadd.f32 0.0, %v8799
    %v8801 = vpop.f32.mrf.mxu0
    %v8802 = vpop.f32.mrf.mxu0
    %v8803 = vadd.f32 0.0, %v8802
    %v8804 = vpop.f32.mrf.mxu0
    %8805 = vmatprep.mubr.bf16.mxu0 0
    %8806 = vmatmul.mubr.bf16.gmra.mxu0 %v8459
    %v8807 = vpop.f32.mrf.mxu0
    %v8808 = vadd.f32 0.0, %v8807
    %v8809 = vpop.f32.mrf.mxu0
    %v8810 = vpop.f32.mrf.mxu0
    %v8811 = vadd.f32 0.0, %v8810
    %v8812 = vpop.f32.mrf.mxu0
    %8813 = vdwg.mxu0
    %v8814 = vadd.f32 %v8300, %v8560
    %v8815 = vadd.f32 %v8301, %v8563
    %v8816 = vadd.f32 %v8302, %v8568
    %v8817 = vadd.f32 %v8303, %v8571
    %v8818 = vadd.f32 %v8304, %v8576
    %v8819 = vadd.f32 %v8305, %v8579
    %v8820 = vadd.f32 %v8306, %v8584
    %v8821 = vadd.f32 %v8307, %v8587
    %v8822 = vadd.f32 %v8308, %v8592
    %v8823 = vadd.f32 %v8309, %v8595
    %v8824 = vadd.f32 %v8310, %v8600
    %v8825 = vadd.f32 %v8311, %v8603
    %v8826 = vadd.f32 %v8312, %v8608
    %v8827 = vadd.f32 %v8313, %v8611
    %v8828 = vadd.f32 %v8314, %v8616
    %v8829 = vadd.f32 %v8315, %v8619
    %v8830 = vadd.f32 %v8316, %v8624
    %v8831 = vadd.f32 %v8317, %v8627
    %v8832 = vadd.f32 %v8318, %v8632
    %v8833 = vadd.f32 %v8319, %v8635
    %v8834 = vadd.f32 %v8320, %v8640
    %v8835 = vadd.f32 %v8321, %v8643
    %v8836 = vadd.f32 %v8322, %v8648
    %v8837 = vadd.f32 %v8323, %v8651
    %v8838 = vadd.f32 %v8324, %v8656
    %v8839 = vadd.f32 %v8325, %v8659
    %v8840 = vadd.f32 %v8326, %v8664
    %v8841 = vadd.f32 %v8327, %v8667
    %v8842 = vadd.f32 %v8328, %v8672
    %v8843 = vadd.f32 %v8329, %v8675
    %v8844 = vadd.f32 %v8330, %v8680
    %v8845 = vadd.f32 %v8331, %v8683
    %v8846 = vadd.f32 %v8332, %v8688
    %v8847 = vadd.f32 %v8333, %v8691
    %v8848 = vadd.f32 %v8334, %v8696
    %v8849 = vadd.f32 %v8335, %v8699
    %v8850 = vadd.f32 %v8336, %v8704
    %v8851 = vadd.f32 %v8337, %v8707
    %v8852 = vadd.f32 %v8338, %v8712
    %v8853 = vadd.f32 %v8339, %v8715
    %v8854 = vadd.f32 %v8340, %v8720
    %v8855 = vadd.f32 %v8341, %v8723
    %v8856 = vadd.f32 %v8342, %v8728
    %v8857 = vadd.f32 %v8343, %v8731
    %v8858 = vadd.f32 %v8344, %v8736
    %v8859 = vadd.f32 %v8345, %v8739
    %v8860 = vadd.f32 %v8346, %v8744
    %v8861 = vadd.f32 %v8347, %v8747
    %v8862 = vadd.f32 %v8348, %v8752
    %v8863 = vadd.f32 %v8349, %v8755
    %v8864 = vadd.f32 %v8350, %v8760
    %v8865 = vadd.f32 %v8351, %v8763
    %v8866 = vadd.f32 %v8352, %v8768
    %v8867 = vadd.f32 %v8353, %v8771
    %v8868 = vadd.f32 %v8354, %v8776
    %v8869 = vadd.f32 %v8355, %v8779
    %v8870 = vadd.f32 %v8356, %v8784
    %v8871 = vadd.f32 %v8357, %v8787
    %v8872 = vadd.f32 %v8358, %v8792
    %v8873 = vadd.f32 %v8359, %v8795
    %v8874 = vadd.f32 %v8360, %v8800
    %v8875 = vadd.f32 %v8361, %v8803
    %v8876 = vadd.f32 %v8362, %v8808
    %v8877 = vadd.f32 %v8363, %v8811
    %v8878 = vld [vmem:[%s3261 + $0x1] sm:$0xff]
    %v8879 = vld [vmem:[%s3261 + $0x9] sm:$0xff]
    %v8880 = vld [vmem:[%s3261 + $0x19] sm:$0xff]
    %v8881 = vld [vmem:[%s3261 + $0x21] sm:$0xff]
    %v8882 = vld [vmem:[%s3261 + $0x31] sm:$0xff]
    %v8883 = vld [vmem:[%s3261 + $0x39] sm:$0xff]
    %v8884 = vld [vmem:[%s3261 + $0x49] sm:$0xff]
    %v8885 = vld [vmem:[%s3261 + $0x51] sm:$0xff]
    %v8886 = vld [vmem:[%s3261 + $0x61] sm:$0xff]
    %v8887 = vld [vmem:[%s3261 + $0x69] sm:$0xff]
    %v8888 = vld [vmem:[%s3261 + $0x79] sm:$0xff]
    %v8889 = vld [vmem:[%s3261 + $0x81] sm:$0xff]
    %v8890 = vld [vmem:[%s3261 + $0x91] sm:$0xff]
    %v8891 = vld [vmem:[%s3261 + $0x99] sm:$0xff]
    %v8892 = vld [vmem:[%s3261 + $0xa9] sm:$0xff]
    %v8893 = vld [vmem:[%s3261 + $0xb1] sm:$0xff]
    %v8894 = vld [vmem:[%s3261 + $0xc1] sm:$0xff]
    %v8895 = vld [vmem:[%s3261 + $0xc9] sm:$0xff]
    %v8896 = vld [vmem:[%s3261 + $0xd9] sm:$0xff]
    %v8897 = vld [vmem:[%s3261 + $0xe1] sm:$0xff]
    %v8898 = vld [vmem:[%s3261 + $0xf1] sm:$0xff]
    %v8899 = vld [vmem:[%s3261 + $0xf9] sm:$0xff]
    %v8900 = vld [vmem:[%s3261 + $0x109] sm:$0xff]
    %v8901 = vld [vmem:[%s3261 + $0x111] sm:$0xff]
    %v8902 = vld [vmem:[%s3261 + $0x121] sm:$0xff]
    %v8903 = vld [vmem:[%s3261 + $0x129] sm:$0xff]
    %v8904 = vld [vmem:[%s3261 + $0x139] sm:$0xff]
    %v8905 = vld [vmem:[%s3261 + $0x141] sm:$0xff]
    %v8906 = vld [vmem:[%s3261 + $0x151] sm:$0xff]
    %v8907 = vld [vmem:[%s3261 + $0x159] sm:$0xff]
    %v8908 = vld [vmem:[%s3261 + $0x169] sm:$0xff]
    %v8909 = vld [vmem:[%s3261 + $0x171] sm:$0xff]
    %v8910 = vld [vmem:[%s3261 + $0x1b1] sm:$0xff]
    %v8911 = vld [vmem:[%s3261 + $0x1b9] sm:$0xff]
    %v8912 = vld [vmem:[%s3261 + $0x1c9] sm:$0xff]
    %v8913 = vld [vmem:[%s3261 + $0x1d1] sm:$0xff]
    %v8914 = vld [vmem:[%s3261 + $0x1e1] sm:$0xff]
    %v8915 = vld [vmem:[%s3261 + $0x1e9] sm:$0xff]
    %v8916 = vld [vmem:[%s3261 + $0x1f9] sm:$0xff]
    %v8917 = vld [vmem:[%s3261 + $0x201] sm:$0xff]
    %v8918 = vld [vmem:[%s3261 + $0x211] sm:$0xff]
    %v8919 = vld [vmem:[%s3261 + $0x219] sm:$0xff]
    %v8920 = vld [vmem:[%s3261 + $0x229] sm:$0xff]
    %v8921 = vld [vmem:[%s3261 + $0x231] sm:$0xff]
    %v8922 = vld [vmem:[%s3261 + $0x241] sm:$0xff]
    %v8923 = vld [vmem:[%s3261 + $0x249] sm:$0xff]
    %v8924 = vld [vmem:[%s3261 + $0x259] sm:$0xff]
    %v8925 = vld [vmem:[%s3261 + $0x261] sm:$0xff]
    %v8926 = vld [vmem:[%s3261 + $0x271] sm:$0xff]
    %v8927 = vld [vmem:[%s3261 + $0x279] sm:$0xff]
    %v8928 = vld [vmem:[%s3261 + $0x289] sm:$0xff]
    %v8929 = vld [vmem:[%s3261 + $0x291] sm:$0xff]
    %v8930 = vld [vmem:[%s3261 + $0x2a1] sm:$0xff]
    %v8931 = vld [vmem:[%s3261 + $0x2a9] sm:$0xff]
    %v8932 = vld [vmem:[%s3261 + $0x2b9] sm:$0xff]
    %v8933 = vld [vmem:[%s3261 + $0x2c1] sm:$0xff]
    %v8934 = vld [vmem:[%s3261 + $0x2d1] sm:$0xff]
    %v8935 = vld [vmem:[%s3261 + $0x2d9] sm:$0xff]
    %v8936 = vld [vmem:[%s3261 + $0x2e9] sm:$0xff]
    %v8937 = vld [vmem:[%s3261 + $0x2f1] sm:$0xff]
    %v8938 = vld [vmem:[%s3261 + $0x301] sm:$0xff]
    %v8939 = vld [vmem:[%s3261 + $0x309] sm:$0xff]
    %v8940 = vld [vmem:[%s3261 + $0x319] sm:$0xff]
    %v8941 = vld [vmem:[%s3261 + $0x321] sm:$0xff]
    %v8942 = vpack.c.bf16 %v8879, %v8878
    %v8943 = vpack.c.bf16 %v8881, %v8880
    %v8944 = vpack.c.bf16 %v8883, %v8882
    %v8945 = vpack.c.bf16 %v8885, %v8884
    %v8946 = vpack.c.bf16 %v8887, %v8886
    %v8947 = vpack.c.bf16 %v8889, %v8888
    %v8948 = vpack.c.bf16 %v8891, %v8890
    %v8949 = vpack.c.bf16 %v8893, %v8892
    %v8950 = vpack.c.bf16 %v8895, %v8894
    %v8951 = vpack.c.bf16 %v8897, %v8896
    %v8952 = vpack.c.bf16 %v8899, %v8898
    %v8953 = vpack.c.bf16 %v8901, %v8900
    %v8954 = vpack.c.bf16 %v8903, %v8902
    %v8955 = vpack.c.bf16 %v8905, %v8904
    %v8956 = vpack.c.bf16 %v8907, %v8906
    %v8957 = vpack.c.bf16 %v8909, %v8908
    %v8958 = vpack.c.bf16 %v8911, %v8910
    %v8959 = vpack.c.bf16 %v8913, %v8912
    %v8960 = vpack.c.bf16 %v8915, %v8914
    %v8961 = vpack.c.bf16 %v8917, %v8916
    %v8962 = vpack.c.bf16 %v8919, %v8918
    %v8963 = vpack.c.bf16 %v8921, %v8920
    %v8964 = vpack.c.bf16 %v8923, %v8922
    %v8965 = vpack.c.bf16 %v8925, %v8924
    %v8966 = vpack.c.bf16 %v8927, %v8926
    %v8967 = vpack.c.bf16 %v8929, %v8928
    %v8968 = vpack.c.bf16 %v8931, %v8930
    %v8969 = vpack.c.bf16 %v8933, %v8932
    %v8970 = vpack.c.bf16 %v8935, %v8934
    %v8971 = vpack.c.bf16 %v8937, %v8936
    %v8972 = vpack.c.bf16 %v8939, %v8938
    %v8973 = vpack.c.bf16 %v8941, %v8940
    %s8974 = scalar_lea.vmem [#allocation8], 448
    %v8975 = vld [vmem:[%s8974] sm:$0xf]
    %v8976 = vld [vmem:[%s8974 + $0x4] sm:$0xf]
    %v8977 = vld [vmem:[%s8974 + $0x8] sm:$0xf]
    %v8978 = vld [vmem:[%s8974 + $0xc] sm:$0xf]
    %v8979 = vld [vmem:[%s8974 + $0x10] sm:$0xf]
    %v8980 = vld [vmem:[%s8974 + $0x14] sm:$0xf]
    %v8981 = vld [vmem:[%s8974 + $0x18] sm:$0xf]
    %v8982 = vld [vmem:[%s8974 + $0x1c] sm:$0xf]
    %v8983 = vld [vmem:[%s8974 + $0x20] sm:$0xf]
    %v8984 = vld [vmem:[%s8974 + $0x24] sm:$0xf]
    %v8985 = vld [vmem:[%s8974 + $0x28] sm:$0xf]
    %v8986 = vld [vmem:[%s8974 + $0x2c] sm:$0xf]
    %v8987 = vld [vmem:[%s8974 + $0x30] sm:$0xf]
    %v8988 = vld [vmem:[%s8974 + $0x34] sm:$0xf]
    %v8989 = vld [vmem:[%s8974 + $0x38] sm:$0xf]
    %v8990 = vld [vmem:[%s8974 + $0x3c] sm:$0xf]
    %v9007 = vunpack.c.l.b16 %v8975
    %v9008 = vunpack.c.l.b16 %v8976
    %v9009 = vunpack.c.l.b16 %v8977
    %v9010 = vunpack.c.l.b16 %v8978
    %v9011 = vunpack.c.l.b16 %v8979
    %v9012 = vunpack.c.l.b16 %v8980
    %v9013 = vunpack.c.l.b16 %v8981
    %v9014 = vunpack.c.l.b16 %v8982
    %v9015 = vunpack.c.l.b16 %v8983
    %v9016 = vunpack.c.l.b16 %v8984
    %v9017 = vunpack.c.l.b16 %v8985
    %v9018 = vunpack.c.l.b16 %v8986
    %v9019 = vunpack.c.l.b16 %v8987
    %v9020 = vunpack.c.l.b16 %v8988
    %v9021 = vunpack.c.l.b16 %v8989
    %v9022 = vunpack.c.l.b16 %v8990
    %v9023 = vpack.c.b16 %v9008, %v9007
    %v9024 = vpack.c.b16 %v9010, %v9009
    %v9025 = vpack.c.b16 %v9012, %v9011
    %v9026 = vpack.c.b16 %v9014, %v9013
    %v9027 = vpack.c.b16 %v9016, %v9015
    %v9028 = vpack.c.b16 %v9018, %v9017
    %v9029 = vpack.c.b16 %v9020, %v9019
    %v9030 = vpack.c.b16 %v9022, %v9021
    %9039 = vmatprep.subr.bf16.mxu0 0
    %9040 = vmatpush1.bf16.msra.mxu0 %v9030
    %9041 = vmatprep.subr.bf16.mxu0 0
    %9042 = vmatpush1.bf16.msra.mxu0 %v9029
    %9043 = vmatprep.subr.bf16.mxu0 0
    %9044 = vmatpush1.bf16.msra.mxu0 %v9028
    %9045 = vmatprep.subr.bf16.mxu0 0
    %9046 = vmatpush1.bf16.msra.mxu0 %v9027
    %9047 = vmatprep.subr.bf16.mxu0 0
    %9048 = vmatpush1.bf16.msra.mxu0 %v9026
    %9049 = vmatprep.subr.bf16.mxu0 0
    %9050 = vmatpush1.bf16.msra.mxu0 %v9025
    %9051 = vmatprep.subr.bf16.mxu0 0
    %9052 = vmatpush1.bf16.msra.mxu0 %v9024
    %9053 = vmatprep.subr.bf16.mxu0 0
    %9054 = vmatpush1.bf16.msra.mxu0 %v9023
    %9055 = vmatprep.subr.bf16.mxu0 0
    %9056 = vmatpush2.bf16.msra.mxu0 0
    %9057 = vmatprep.subr.bf16.mxu0 0
    %9058 = vmatpush2.bf16.msra.mxu0 0
    %9059 = vmatprep.subr.bf16.mxu0 0
    %9060 = vmatpush2.bf16.msra.mxu0 0
    %9061 = vmatprep.subr.bf16.mxu0 0
    %9062 = vmatpush2.bf16.msra.mxu0 0
    %9063 = vmatprep.subr.bf16.mxu0 0
    %9064 = vmatpush2.bf16.msra.mxu0 0
    %9065 = vmatprep.subr.bf16.mxu0 0
    %9066 = vmatpush2.bf16.msra.mxu0 0
    %9067 = vmatprep.subr.bf16.mxu0 0
    %9068 = vmatpush2.bf16.msra.mxu0 0
    %9069 = vmatprep.subr.bf16.mxu0 0
    %9070 = vmatpush2.bf16.msra.mxu0 0
    %9071 = vmatprep.mubr.bf16.mxu0 0
    %9072 = vmatmul.mubr.bf16.gmra.mxu0 %v8942
    %v9073 = vpop.f32.mrf.mxu0
    %v9074 = vadd.f32 0.0, %v9073
    %v9075 = vpop.f32.mrf.mxu0
    %v9076 = vpop.f32.mrf.mxu0
    %v9077 = vadd.f32 0.0, %v9076
    %v9078 = vpop.f32.mrf.mxu0
    %9079 = vmatprep.mubr.bf16.mxu0 0
    %9080 = vmatmul.mubr.bf16.gmra.mxu0 %v8943
    %v9081 = vpop.f32.mrf.mxu0
    %v9082 = vadd.f32 0.0, %v9081
    %v9083 = vpop.f32.mrf.mxu0
    %v9084 = vpop.f32.mrf.mxu0
    %v9085 = vadd.f32 0.0, %v9084
    %v9086 = vpop.f32.mrf.mxu0
    %9087 = vmatprep.mubr.bf16.mxu0 0
    %9088 = vmatmul.mubr.bf16.gmra.mxu0 %v8944
    %v9089 = vpop.f32.mrf.mxu0
    %v9090 = vadd.f32 0.0, %v9089
    %v9091 = vpop.f32.mrf.mxu0
    %v9092 = vpop.f32.mrf.mxu0
    %v9093 = vadd.f32 0.0, %v9092
    %v9094 = vpop.f32.mrf.mxu0
    %9095 = vmatprep.mubr.bf16.mxu0 0
    %9096 = vmatmul.mubr.bf16.gmra.mxu0 %v8945
    %v9097 = vpop.f32.mrf.mxu0
    %v9098 = vadd.f32 0.0, %v9097
    %v9099 = vpop.f32.mrf.mxu0
    %v9100 = vpop.f32.mrf.mxu0
    %v9101 = vadd.f32 0.0, %v9100
    %v9102 = vpop.f32.mrf.mxu0
    %9103 = vmatprep.mubr.bf16.mxu0 0
    %9104 = vmatmul.mubr.bf16.gmra.mxu0 %v8946
    %v9105 = vpop.f32.mrf.mxu0
    %v9106 = vadd.f32 0.0, %v9105
    %v9107 = vpop.f32.mrf.mxu0
    %v9108 = vpop.f32.mrf.mxu0
    %v9109 = vadd.f32 0.0, %v9108
    %v9110 = vpop.f32.mrf.mxu0
    %9111 = vmatprep.mubr.bf16.mxu0 0
    %9112 = vmatmul.mubr.bf16.gmra.mxu0 %v8947
    %v9113 = vpop.f32.mrf.mxu0
    %v9114 = vadd.f32 0.0, %v9113
    %v9115 = vpop.f32.mrf.mxu0
    %v9116 = vpop.f32.mrf.mxu0
    %v9117 = vadd.f32 0.0, %v9116
    %v9118 = vpop.f32.mrf.mxu0
    %9119 = vmatprep.mubr.bf16.mxu0 0
    %9120 = vmatmul.mubr.bf16.gmra.mxu0 %v8948
    %v9121 = vpop.f32.mrf.mxu0
    %v9122 = vadd.f32 0.0, %v9121
    %v9123 = vpop.f32.mrf.mxu0
    %v9124 = vpop.f32.mrf.mxu0
    %v9125 = vadd.f32 0.0, %v9124
    %v9126 = vpop.f32.mrf.mxu0
    %9127 = vmatprep.mubr.bf16.mxu0 0
    %9128 = vmatmul.mubr.bf16.gmra.mxu0 %v8949
    %v9129 = vpop.f32.mrf.mxu0
    %v9130 = vadd.f32 0.0, %v9129
    %v9131 = vpop.f32.mrf.mxu0
    %v9132 = vpop.f32.mrf.mxu0
    %v9133 = vadd.f32 0.0, %v9132
    %v9134 = vpop.f32.mrf.mxu0
    %9135 = vmatprep.mubr.bf16.mxu0 0
    %9136 = vmatmul.mubr.bf16.gmra.mxu0 %v8950
    %v9137 = vpop.f32.mrf.mxu0
    %v9138 = vadd.f32 0.0, %v9137
    %v9139 = vpop.f32.mrf.mxu0
    %v9140 = vpop.f32.mrf.mxu0
    %v9141 = vadd.f32 0.0, %v9140
    %v9142 = vpop.f32.mrf.mxu0
    %9143 = vmatprep.mubr.bf16.mxu0 0
    %9144 = vmatmul.mubr.bf16.gmra.mxu0 %v8951
    %v9145 = vpop.f32.mrf.mxu0
    %v9146 = vadd.f32 0.0, %v9145
    %v9147 = vpop.f32.mrf.mxu0
    %v9148 = vpop.f32.mrf.mxu0
    %v9149 = vadd.f32 0.0, %v9148
    %v9150 = vpop.f32.mrf.mxu0
    %9151 = vmatprep.mubr.bf16.mxu0 0
    %9152 = vmatmul.mubr.bf16.gmra.mxu0 %v8952
    %v9153 = vpop.f32.mrf.mxu0
    %v9154 = vadd.f32 0.0, %v9153
    %v9155 = vpop.f32.mrf.mxu0
    %v9156 = vpop.f32.mrf.mxu0
    %v9157 = vadd.f32 0.0, %v9156
    %v9158 = vpop.f32.mrf.mxu0
    %9159 = vmatprep.mubr.bf16.mxu0 0
    %9160 = vmatmul.mubr.bf16.gmra.mxu0 %v8953
    %v9161 = vpop.f32.mrf.mxu0
    %v9162 = vadd.f32 0.0, %v9161
    %v9163 = vpop.f32.mrf.mxu0
    %v9164 = vpop.f32.mrf.mxu0
    %v9165 = vadd.f32 0.0, %v9164
    %v9166 = vpop.f32.mrf.mxu0
    %9167 = vmatprep.mubr.bf16.mxu0 0
    %9168 = vmatmul.mubr.bf16.gmra.mxu0 %v8954
    %v9169 = vpop.f32.mrf.mxu0
    %v9170 = vadd.f32 0.0, %v9169
    %v9171 = vpop.f32.mrf.mxu0
    %v9172 = vpop.f32.mrf.mxu0
    %v9173 = vadd.f32 0.0, %v9172
    %v9174 = vpop.f32.mrf.mxu0
    %9175 = vmatprep.mubr.bf16.mxu0 0
    %9176 = vmatmul.mubr.bf16.gmra.mxu0 %v8955
    %v9177 = vpop.f32.mrf.mxu0
    %v9178 = vadd.f32 0.0, %v9177
    %v9179 = vpop.f32.mrf.mxu0
    %v9180 = vpop.f32.mrf.mxu0
    %v9181 = vadd.f32 0.0, %v9180
    %v9182 = vpop.f32.mrf.mxu0
    %9183 = vmatprep.mubr.bf16.mxu0 0
    %9184 = vmatmul.mubr.bf16.gmra.mxu0 %v8956
    %v9185 = vpop.f32.mrf.mxu0
    %v9186 = vadd.f32 0.0, %v9185
    %v9187 = vpop.f32.mrf.mxu0
    %v9188 = vpop.f32.mrf.mxu0
    %v9189 = vadd.f32 0.0, %v9188
    %v9190 = vpop.f32.mrf.mxu0
    %9191 = vmatprep.mubr.bf16.mxu0 0
    %9192 = vmatmul.mubr.bf16.gmra.mxu0 %v8957
    %v9193 = vpop.f32.mrf.mxu0
    %v9194 = vadd.f32 0.0, %v9193
    %v9195 = vpop.f32.mrf.mxu0
    %v9196 = vpop.f32.mrf.mxu0
    %v9197 = vadd.f32 0.0, %v9196
    %v9198 = vpop.f32.mrf.mxu0
    %9199 = vmatprep.mubr.bf16.mxu0 0
    %9200 = vmatmul.mubr.bf16.gmra.mxu0 %v8958
    %v9201 = vpop.f32.mrf.mxu0
    %v9202 = vadd.f32 0.0, %v9201
    %v9203 = vpop.f32.mrf.mxu0
    %v9204 = vpop.f32.mrf.mxu0
    %v9205 = vadd.f32 0.0, %v9204
    %v9206 = vpop.f32.mrf.mxu0
    %9207 = vmatprep.mubr.bf16.mxu0 0
    %9208 = vmatmul.mubr.bf16.gmra.mxu0 %v8959
    %v9209 = vpop.f32.mrf.mxu0
    %v9210 = vadd.f32 0.0, %v9209
    %v9211 = vpop.f32.mrf.mxu0
    %v9212 = vpop.f32.mrf.mxu0
    %v9213 = vadd.f32 0.0, %v9212
    %v9214 = vpop.f32.mrf.mxu0
    %9215 = vmatprep.mubr.bf16.mxu0 0
    %9216 = vmatmul.mubr.bf16.gmra.mxu0 %v8960
    %v9217 = vpop.f32.mrf.mxu0
    %v9218 = vadd.f32 0.0, %v9217
    %v9219 = vpop.f32.mrf.mxu0
    %v9220 = vpop.f32.mrf.mxu0
    %v9221 = vadd.f32 0.0, %v9220
    %v9222 = vpop.f32.mrf.mxu0
    %9223 = vmatprep.mubr.bf16.mxu0 0
    %9224 = vmatmul.mubr.bf16.gmra.mxu0 %v8961
    %v9225 = vpop.f32.mrf.mxu0
    %v9226 = vadd.f32 0.0, %v9225
    %v9227 = vpop.f32.mrf.mxu0
    %v9228 = vpop.f32.mrf.mxu0
    %v9229 = vadd.f32 0.0, %v9228
    %v9230 = vpop.f32.mrf.mxu0
    %9231 = vmatprep.mubr.bf16.mxu0 0
    %9232 = vmatmul.mubr.bf16.gmra.mxu0 %v8962
    %v9233 = vpop.f32.mrf.mxu0
    %v9234 = vadd.f32 0.0, %v9233
    %v9235 = vpop.f32.mrf.mxu0
    %v9236 = vpop.f32.mrf.mxu0
    %v9237 = vadd.f32 0.0, %v9236
    %v9238 = vpop.f32.mrf.mxu0
    %9239 = vmatprep.mubr.bf16.mxu0 0
    %9240 = vmatmul.mubr.bf16.gmra.mxu0 %v8963
    %v9241 = vpop.f32.mrf.mxu0
    %v9242 = vadd.f32 0.0, %v9241
    %v9243 = vpop.f32.mrf.mxu0
    %v9244 = vpop.f32.mrf.mxu0
    %v9245 = vadd.f32 0.0, %v9244
    %v9246 = vpop.f32.mrf.mxu0
    %9247 = vmatprep.mubr.bf16.mxu0 0
    %9248 = vmatmul.mubr.bf16.gmra.mxu0 %v8964
    %v9249 = vpop.f32.mrf.mxu0
    %v9250 = vadd.f32 0.0, %v9249
    %v9251 = vpop.f32.mrf.mxu0
    %v9252 = vpop.f32.mrf.mxu0
    %v9253 = vadd.f32 0.0, %v9252
    %v9254 = vpop.f32.mrf.mxu0
    %9255 = vmatprep.mubr.bf16.mxu0 0
    %9256 = vmatmul.mubr.bf16.gmra.mxu0 %v8965
    %v9257 = vpop.f32.mrf.mxu0
    %v9258 = vadd.f32 0.0, %v9257
    %v9259 = vpop.f32.mrf.mxu0
    %v9260 = vpop.f32.mrf.mxu0
    %v9261 = vadd.f32 0.0, %v9260
    %v9262 = vpop.f32.mrf.mxu0
    %9263 = vmatprep.mubr.bf16.mxu0 0
    %9264 = vmatmul.mubr.bf16.gmra.mxu0 %v8966
    %v9265 = vpop.f32.mrf.mxu0
    %v9266 = vadd.f32 0.0, %v9265
    %v9267 = vpop.f32.mrf.mxu0
    %v9268 = vpop.f32.mrf.mxu0
    %v9269 = vadd.f32 0.0, %v9268
    %v9270 = vpop.f32.mrf.mxu0
    %9271 = vmatprep.mubr.bf16.mxu0 0
    %9272 = vmatmul.mubr.bf16.gmra.mxu0 %v8967
    %v9273 = vpop.f32.mrf.mxu0
    %v9274 = vadd.f32 0.0, %v9273
    %v9275 = vpop.f32.mrf.mxu0
    %v9276 = vpop.f32.mrf.mxu0
    %v9277 = vadd.f32 0.0, %v9276
    %v9278 = vpop.f32.mrf.mxu0
    %9279 = vmatprep.mubr.bf16.mxu0 0
    %9280 = vmatmul.mubr.bf16.gmra.mxu0 %v8968
    %v9281 = vpop.f32.mrf.mxu0
    %v9282 = vadd.f32 0.0, %v9281
    %v9283 = vpop.f32.mrf.mxu0
    %v9284 = vpop.f32.mrf.mxu0
    %v9285 = vadd.f32 0.0, %v9284
    %v9286 = vpop.f32.mrf.mxu0
    %9287 = vmatprep.mubr.bf16.mxu0 0
    %9288 = vmatmul.mubr.bf16.gmra.mxu0 %v8969
    %v9289 = vpop.f32.mrf.mxu0
    %v9290 = vadd.f32 0.0, %v9289
    %v9291 = vpop.f32.mrf.mxu0
    %v9292 = vpop.f32.mrf.mxu0
    %v9293 = vadd.f32 0.0, %v9292
    %v9294 = vpop.f32.mrf.mxu0
    %9295 = vmatprep.mubr.bf16.mxu0 0
    %9296 = vmatmul.mubr.bf16.gmra.mxu0 %v8970
    %v9297 = vpop.f32.mrf.mxu0
    %v9298 = vadd.f32 0.0, %v9297
    %v9299 = vpop.f32.mrf.mxu0
    %v9300 = vpop.f32.mrf.mxu0
    %v9301 = vadd.f32 0.0, %v9300
    %v9302 = vpop.f32.mrf.mxu0
    %9303 = vmatprep.mubr.bf16.mxu0 0
    %9304 = vmatmul.mubr.bf16.gmra.mxu0 %v8971
    %v9305 = vpop.f32.mrf.mxu0
    %v9306 = vadd.f32 0.0, %v9305
    %v9307 = vpop.f32.mrf.mxu0
    %v9308 = vpop.f32.mrf.mxu0
    %v9309 = vadd.f32 0.0, %v9308
    %v9310 = vpop.f32.mrf.mxu0
    %9311 = vmatprep.mubr.bf16.mxu0 0
    %9312 = vmatmul.mubr.bf16.gmra.mxu0 %v8972
    %v9313 = vpop.f32.mrf.mxu0
    %v9314 = vadd.f32 0.0, %v9313
    %v9315 = vpop.f32.mrf.mxu0
    %v9316 = vpop.f32.mrf.mxu0
    %v9317 = vadd.f32 0.0, %v9316
    %v9318 = vpop.f32.mrf.mxu0
    %9319 = vmatprep.mubr.bf16.mxu0 0
    %9320 = vmatmul.mubr.bf16.gmra.mxu0 %v8973
    %v9321 = vpop.f32.mrf.mxu0
    %v9322 = vadd.f32 0.0, %v9321
    %v9323 = vpop.f32.mrf.mxu0
    %v9324 = vpop.f32.mrf.mxu0
    %v9325 = vadd.f32 0.0, %v9324
    %v9326 = vpop.f32.mrf.mxu0
    %9327 = vdwg.mxu0
    %v9328 = vadd.f32 %v8814, %v9074
    %v9329 = vadd.f32 %v8815, %v9077
    %v9330 = vadd.f32 %v8816, %v9082
    %v9331 = vadd.f32 %v8817, %v9085
    %v9332 = vadd.f32 %v8818, %v9090
    %v9333 = vadd.f32 %v8819, %v9093
    %v9334 = vadd.f32 %v8820, %v9098
    %v9335 = vadd.f32 %v8821, %v9101
    %v9336 = vadd.f32 %v8822, %v9106
    %v9337 = vadd.f32 %v8823, %v9109
    %v9338 = vadd.f32 %v8824, %v9114
    %v9339 = vadd.f32 %v8825, %v9117
    %v9340 = vadd.f32 %v8826, %v9122
    %v9341 = vadd.f32 %v8827, %v9125
    %v9342 = vadd.f32 %v8828, %v9130
    %v9343 = vadd.f32 %v8829, %v9133
    %v9344 = vadd.f32 %v8830, %v9138
    %v9345 = vadd.f32 %v8831, %v9141
    %v9346 = vadd.f32 %v8832, %v9146
    %v9347 = vadd.f32 %v8833, %v9149
    %v9348 = vadd.f32 %v8834, %v9154
    %v9349 = vadd.f32 %v8835, %v9157
    %v9350 = vadd.f32 %v8836, %v9162
    %v9351 = vadd.f32 %v8837, %v9165
    %v9352 = vadd.f32 %v8838, %v9170
    %v9353 = vadd.f32 %v8839, %v9173
    %v9354 = vadd.f32 %v8840, %v9178
    %v9355 = vadd.f32 %v8841, %v9181
    %v9356 = vadd.f32 %v8842, %v9186
    %v9357 = vadd.f32 %v8843, %v9189
    %v9358 = vadd.f32 %v8844, %v9194
    %v9359 = vadd.f32 %v8845, %v9197
    %v9360 = vadd.f32 %v8846, %v9202
    %v9361 = vadd.f32 %v8847, %v9205
    %v9362 = vadd.f32 %v8848, %v9210
    %v9363 = vadd.f32 %v8849, %v9213
    %v9364 = vadd.f32 %v8850, %v9218
    %v9365 = vadd.f32 %v8851, %v9221
    %v9366 = vadd.f32 %v8852, %v9226
    %v9367 = vadd.f32 %v8853, %v9229
    %v9368 = vadd.f32 %v8854, %v9234
    %v9369 = vadd.f32 %v8855, %v9237
    %v9370 = vadd.f32 %v8856, %v9242
    %v9371 = vadd.f32 %v8857, %v9245
    %v9372 = vadd.f32 %v8858, %v9250
    %v9373 = vadd.f32 %v8859, %v9253
    %v9374 = vadd.f32 %v8860, %v9258
    %v9375 = vadd.f32 %v8861, %v9261
    %v9376 = vadd.f32 %v8862, %v9266
    %v9377 = vadd.f32 %v8863, %v9269
    %v9378 = vadd.f32 %v8864, %v9274
    %v9379 = vadd.f32 %v8865, %v9277
    %v9380 = vadd.f32 %v8866, %v9282
    %v9381 = vadd.f32 %v8867, %v9285
    %v9382 = vadd.f32 %v8868, %v9290
    %v9383 = vadd.f32 %v8869, %v9293
    %v9384 = vadd.f32 %v8870, %v9298
    %v9385 = vadd.f32 %v8871, %v9301
    %v9386 = vadd.f32 %v8872, %v9306
    %v9387 = vadd.f32 %v8873, %v9309
    %v9388 = vadd.f32 %v8874, %v9314
    %v9389 = vadd.f32 %v8875, %v9317
    %v9390 = vadd.f32 %v8876, %v9322
    %v9391 = vadd.f32 %v8877, %v9325
    %v9392 = vld [vmem:[%s3261 + $0x2] sm:$0xff]
    %v9393 = vld [vmem:[%s3261 + $0xa] sm:$0xff]
    %v9394 = vld [vmem:[%s3261 + $0x1a] sm:$0xff]
    %v9395 = vld [vmem:[%s3261 + $0x22] sm:$0xff]
    %v9396 = vld [vmem:[%s3261 + $0x32] sm:$0xff]
    %v9397 = vld [vmem:[%s3261 + $0x3a] sm:$0xff]
    %v9398 = vld [vmem:[%s3261 + $0x4a] sm:$0xff]
    %v9399 = vld [vmem:[%s3261 + $0x52] sm:$0xff]
    %v9400 = vld [vmem:[%s3261 + $0x62] sm:$0xff]
    %v9401 = vld [vmem:[%s3261 + $0x6a] sm:$0xff]
    %v9402 = vld [vmem:[%s3261 + $0x7a] sm:$0xff]
    %v9403 = vld [vmem:[%s3261 + $0x82] sm:$0xff]
    %v9404 = vld [vmem:[%s3261 + $0x92] sm:$0xff]
    %v9405 = vld [vmem:[%s3261 + $0x9a] sm:$0xff]
    %v9406 = vld [vmem:[%s3261 + $0xaa] sm:$0xff]
    %v9407 = vld [vmem:[%s3261 + $0xb2] sm:$0xff]
    %v9408 = vld [vmem:[%s3261 + $0xc2] sm:$0xff]
    %v9409 = vld [vmem:[%s3261 + $0xca] sm:$0xff]
    %v9410 = vld [vmem:[%s3261 + $0xda] sm:$0xff]
    %v9411 = vld [vmem:[%s3261 + $0xe2] sm:$0xff]
    %v9412 = vld [vmem:[%s3261 + $0xf2] sm:$0xff]
    %v9413 = vld [vmem:[%s3261 + $0xfa] sm:$0xff]
    %v9414 = vld [vmem:[%s3261 + $0x10a] sm:$0xff]
    %v9415 = vld [vmem:[%s3261 + $0x112] sm:$0xff]
    %v9416 = vld [vmem:[%s3261 + $0x122] sm:$0xff]
    %v9417 = vld [vmem:[%s3261 + $0x12a] sm:$0xff]
    %v9418 = vld [vmem:[%s3261 + $0x13a] sm:$0xff]
    %v9419 = vld [vmem:[%s3261 + $0x142] sm:$0xff]
    %v9420 = vld [vmem:[%s3261 + $0x152] sm:$0xff]
    %v9421 = vld [vmem:[%s3261 + $0x15a] sm:$0xff]
    %v9422 = vld [vmem:[%s3261 + $0x16a] sm:$0xff]
    %v9423 = vld [vmem:[%s3261 + $0x172] sm:$0xff]
    %v9424 = vld [vmem:[%s3261 + $0x1b2] sm:$0xff]
    %v9425 = vld [vmem:[%s3261 + $0x1ba] sm:$0xff]
    %v9426 = vld [vmem:[%s3261 + $0x1ca] sm:$0xff]
    %v9427 = vld [vmem:[%s3261 + $0x1d2] sm:$0xff]
    %v9428 = vld [vmem:[%s3261 + $0x1e2] sm:$0xff]
    %v9429 = vld [vmem:[%s3261 + $0x1ea] sm:$0xff]
    %v9430 = vld [vmem:[%s3261 + $0x1fa] sm:$0xff]
    %v9431 = vld [vmem:[%s3261 + $0x202] sm:$0xff]
    %v9432 = vld [vmem:[%s3261 + $0x212] sm:$0xff]
    %v9433 = vld [vmem:[%s3261 + $0x21a] sm:$0xff]
    %v9434 = vld [vmem:[%s3261 + $0x22a] sm:$0xff]
    %v9435 = vld [vmem:[%s3261 + $0x232] sm:$0xff]
    %v9436 = vld [vmem:[%s3261 + $0x242] sm:$0xff]
    %v9437 = vld [vmem:[%s3261 + $0x24a] sm:$0xff]
    %v9438 = vld [vmem:[%s3261 + $0x25a] sm:$0xff]
    %v9439 = vld [vmem:[%s3261 + $0x262] sm:$0xff]
    %v9440 = vld [vmem:[%s3261 + $0x272] sm:$0xff]
    %v9441 = vld [vmem:[%s3261 + $0x27a] sm:$0xff]
    %v9442 = vld [vmem:[%s3261 + $0x28a] sm:$0xff]
    %v9443 = vld [vmem:[%s3261 + $0x292] sm:$0xff]
    %v9444 = vld [vmem:[%s3261 + $0x2a2] sm:$0xff]
    %v9445 = vld [vmem:[%s3261 + $0x2aa] sm:$0xff]
    %v9446 = vld [vmem:[%s3261 + $0x2ba] sm:$0xff]
    %v9447 = vld [vmem:[%s3261 + $0x2c2] sm:$0xff]
    %v9448 = vld [vmem:[%s3261 + $0x2d2] sm:$0xff]
    %v9449 = vld [vmem:[%s3261 + $0x2da] sm:$0xff]
    %v9450 = vld [vmem:[%s3261 + $0x2ea] sm:$0xff]
    %v9451 = vld [vmem:[%s3261 + $0x2f2] sm:$0xff]
    %v9452 = vld [vmem:[%s3261 + $0x302] sm:$0xff]
    %v9453 = vld [vmem:[%s3261 + $0x30a] sm:$0xff]
    %v9454 = vld [vmem:[%s3261 + $0x31a] sm:$0xff]
    %v9455 = vld [vmem:[%s3261 + $0x322] sm:$0xff]
    %v9456 = vpack.c.bf16 %v9393, %v9392
    %v9457 = vpack.c.bf16 %v9395, %v9394
    %v9458 = vpack.c.bf16 %v9397, %v9396
    %v9459 = vpack.c.bf16 %v9399, %v9398
    %v9460 = vpack.c.bf16 %v9401, %v9400
    %v9461 = vpack.c.bf16 %v9403, %v9402
    %v9462 = vpack.c.bf16 %v9405, %v9404
    %v9463 = vpack.c.bf16 %v9407, %v9406
    %v9464 = vpack.c.bf16 %v9409, %v9408
    %v9465 = vpack.c.bf16 %v9411, %v9410
    %v9466 = vpack.c.bf16 %v9413, %v9412
    %v9467 = vpack.c.bf16 %v9415, %v9414
    %v9468 = vpack.c.bf16 %v9417, %v9416
    %v9469 = vpack.c.bf16 %v9419, %v9418
    %v9470 = vpack.c.bf16 %v9421, %v9420
    %v9471 = vpack.c.bf16 %v9423, %v9422
    %v9472 = vpack.c.bf16 %v9425, %v9424
    %v9473 = vpack.c.bf16 %v9427, %v9426
    %v9474 = vpack.c.bf16 %v9429, %v9428
    %v9475 = vpack.c.bf16 %v9431, %v9430
    %v9476 = vpack.c.bf16 %v9433, %v9432
    %v9477 = vpack.c.bf16 %v9435, %v9434
    %v9478 = vpack.c.bf16 %v9437, %v9436
    %v9479 = vpack.c.bf16 %v9439, %v9438
    %v9480 = vpack.c.bf16 %v9441, %v9440
    %v9481 = vpack.c.bf16 %v9443, %v9442
    %v9482 = vpack.c.bf16 %v9445, %v9444
    %v9483 = vpack.c.bf16 %v9447, %v9446
    %v9484 = vpack.c.bf16 %v9449, %v9448
    %v9485 = vpack.c.bf16 %v9451, %v9450
    %v9486 = vpack.c.bf16 %v9453, %v9452
    %v9487 = vpack.c.bf16 %v9455, %v9454
    %s9488 = scalar_lea.vmem [#allocation8], 512
    %v9489 = vld [vmem:[%s9488] sm:$0xf]
    %v9490 = vld [vmem:[%s9488 + $0x4] sm:$0xf]
    %v9491 = vld [vmem:[%s9488 + $0x8] sm:$0xf]
    %v9492 = vld [vmem:[%s9488 + $0xc] sm:$0xf]
    %v9493 = vld [vmem:[%s9488 + $0x10] sm:$0xf]
    %v9494 = vld [vmem:[%s9488 + $0x14] sm:$0xf]
    %v9495 = vld [vmem:[%s9488 + $0x18] sm:$0xf]
    %v9496 = vld [vmem:[%s9488 + $0x1c] sm:$0xf]
    %v9497 = vld [vmem:[%s9488 + $0x20] sm:$0xf]
    %v9498 = vld [vmem:[%s9488 + $0x24] sm:$0xf]
    %v9499 = vld [vmem:[%s9488 + $0x28] sm:$0xf]
    %v9500 = vld [vmem:[%s9488 + $0x2c] sm:$0xf]
    %v9501 = vld [vmem:[%s9488 + $0x30] sm:$0xf]
    %v9502 = vld [vmem:[%s9488 + $0x34] sm:$0xf]
    %v9503 = vld [vmem:[%s9488 + $0x38] sm:$0xf]
    %v9504 = vld [vmem:[%s9488 + $0x3c] sm:$0xf]
    %v9521 = vunpack.c.l.b16 %v9489
    %v9522 = vunpack.c.l.b16 %v9490
    %v9523 = vunpack.c.l.b16 %v9491
    %v9524 = vunpack.c.l.b16 %v9492
    %v9525 = vunpack.c.l.b16 %v9493
    %v9526 = vunpack.c.l.b16 %v9494
    %v9527 = vunpack.c.l.b16 %v9495
    %v9528 = vunpack.c.l.b16 %v9496
    %v9529 = vunpack.c.l.b16 %v9497
    %v9530 = vunpack.c.l.b16 %v9498
    %v9531 = vunpack.c.l.b16 %v9499
    %v9532 = vunpack.c.l.b16 %v9500
    %v9533 = vunpack.c.l.b16 %v9501
    %v9534 = vunpack.c.l.b16 %v9502
    %v9535 = vunpack.c.l.b16 %v9503
    %v9536 = vunpack.c.l.b16 %v9504
    %v9537 = vpack.c.b16 %v9522, %v9521
    %v9538 = vpack.c.b16 %v9524, %v9523
    %v9539 = vpack.c.b16 %v9526, %v9525
    %v9540 = vpack.c.b16 %v9528, %v9527
    %v9541 = vpack.c.b16 %v9530, %v9529
    %v9542 = vpack.c.b16 %v9532, %v9531
    %v9543 = vpack.c.b16 %v9534, %v9533
    %v9544 = vpack.c.b16 %v9536, %v9535
    %9553 = vmatprep.subr.bf16.mxu0 0
    %9554 = vmatpush1.bf16.msra.mxu0 %v9544
    %9555 = vmatprep.subr.bf16.mxu0 0
    %9556 = vmatpush1.bf16.msra.mxu0 %v9543
    %9557 = vmatprep.subr.bf16.mxu0 0
    %9558 = vmatpush1.bf16.msra.mxu0 %v9542
    %9559 = vmatprep.subr.bf16.mxu0 0
    %9560 = vmatpush1.bf16.msra.mxu0 %v9541
    %9561 = vmatprep.subr.bf16.mxu0 0
    %9562 = vmatpush1.bf16.msra.mxu0 %v9540
    %9563 = vmatprep.subr.bf16.mxu0 0
    %9564 = vmatpush1.bf16.msra.mxu0 %v9539
    %9565 = vmatprep.subr.bf16.mxu0 0
    %9566 = vmatpush1.bf16.msra.mxu0 %v9538
    %9567 = vmatprep.subr.bf16.mxu0 0
    %9568 = vmatpush1.bf16.msra.mxu0 %v9537
    %9569 = vmatprep.subr.bf16.mxu0 0
    %9570 = vmatpush2.bf16.msra.mxu0 0
    %9571 = vmatprep.subr.bf16.mxu0 0
    %9572 = vmatpush2.bf16.msra.mxu0 0
    %9573 = vmatprep.subr.bf16.mxu0 0
    %9574 = vmatpush2.bf16.msra.mxu0 0
    %9575 = vmatprep.subr.bf16.mxu0 0
    %9576 = vmatpush2.bf16.msra.mxu0 0
    %9577 = vmatprep.subr.bf16.mxu0 0
    %9578 = vmatpush2.bf16.msra.mxu0 0
    %9579 = vmatprep.subr.bf16.mxu0 0
    %9580 = vmatpush2.bf16.msra.mxu0 0
    %9581 = vmatprep.subr.bf16.mxu0 0
    %9582 = vmatpush2.bf16.msra.mxu0 0
    %9583 = vmatprep.subr.bf16.mxu0 0
    %9584 = vmatpush2.bf16.msra.mxu0 0
    %9585 = vmatprep.mubr.bf16.mxu0 0
    %9586 = vmatmul.mubr.bf16.gmra.mxu0 %v9456
    %v9587 = vpop.f32.mrf.mxu0
    %v9588 = vadd.f32 0.0, %v9587
    %v9589 = vpop.f32.mrf.mxu0
    %v9590 = vpop.f32.mrf.mxu0
    %v9591 = vadd.f32 0.0, %v9590
    %v9592 = vpop.f32.mrf.mxu0
    %9593 = vmatprep.mubr.bf16.mxu0 0
    %9594 = vmatmul.mubr.bf16.gmra.mxu0 %v9457
    %v9595 = vpop.f32.mrf.mxu0
    %v9596 = vadd.f32 0.0, %v9595
    %v9597 = vpop.f32.mrf.mxu0
    %v9598 = vpop.f32.mrf.mxu0
    %v9599 = vadd.f32 0.0, %v9598
    %v9600 = vpop.f32.mrf.mxu0
    %9601 = vmatprep.mubr.bf16.mxu0 0
    %9602 = vmatmul.mubr.bf16.gmra.mxu0 %v9458
    %v9603 = vpop.f32.mrf.mxu0
    %v9604 = vadd.f32 0.0, %v9603
    %v9605 = vpop.f32.mrf.mxu0
    %v9606 = vpop.f32.mrf.mxu0
    %v9607 = vadd.f32 0.0, %v9606
    %v9608 = vpop.f32.mrf.mxu0
    %9609 = vmatprep.mubr.bf16.mxu0 0
    %9610 = vmatmul.mubr.bf16.gmra.mxu0 %v9459
    %v9611 = vpop.f32.mrf.mxu0
    %v9612 = vadd.f32 0.0, %v9611
    %v9613 = vpop.f32.mrf.mxu0
    %v9614 = vpop.f32.mrf.mxu0
    %v9615 = vadd.f32 0.0, %v9614
    %v9616 = vpop.f32.mrf.mxu0
    %9617 = vmatprep.mubr.bf16.mxu0 0
    %9618 = vmatmul.mubr.bf16.gmra.mxu0 %v9460
    %v9619 = vpop.f32.mrf.mxu0
    %v9620 = vadd.f32 0.0, %v9619
    %v9621 = vpop.f32.mrf.mxu0
    %v9622 = vpop.f32.mrf.mxu0
    %v9623 = vadd.f32 0.0, %v9622
    %v9624 = vpop.f32.mrf.mxu0
    %9625 = vmatprep.mubr.bf16.mxu0 0
    %9626 = vmatmul.mubr.bf16.gmra.mxu0 %v9461
    %v9627 = vpop.f32.mrf.mxu0
    %v9628 = vadd.f32 0.0, %v9627
    %v9629 = vpop.f32.mrf.mxu0
    %v9630 = vpop.f32.mrf.mxu0
    %v9631 = vadd.f32 0.0, %v9630
    %v9632 = vpop.f32.mrf.mxu0
    %9633 = vmatprep.mubr.bf16.mxu0 0
    %9634 = vmatmul.mubr.bf16.gmra.mxu0 %v9462
    %v9635 = vpop.f32.mrf.mxu0
    %v9636 = vadd.f32 0.0, %v9635
    %v9637 = vpop.f32.mrf.mxu0
    %v9638 = vpop.f32.mrf.mxu0
    %v9639 = vadd.f32 0.0, %v9638
    %v9640 = vpop.f32.mrf.mxu0
    %9641 = vmatprep.mubr.bf16.mxu0 0
    %9642 = vmatmul.mubr.bf16.gmra.mxu0 %v9463
    %v9643 = vpop.f32.mrf.mxu0
    %v9644 = vadd.f32 0.0, %v9643
    %v9645 = vpop.f32.mrf.mxu0
    %v9646 = vpop.f32.mrf.mxu0
    %v9647 = vadd.f32 0.0, %v9646
    %v9648 = vpop.f32.mrf.mxu0
    %9649 = vmatprep.mubr.bf16.mxu0 0
    %9650 = vmatmul.mubr.bf16.gmra.mxu0 %v9464
    %v9651 = vpop.f32.mrf.mxu0
    %v9652 = vadd.f32 0.0, %v9651
    %v9653 = vpop.f32.mrf.mxu0
    %v9654 = vpop.f32.mrf.mxu0
    %v9655 = vadd.f32 0.0, %v9654
    %v9656 = vpop.f32.mrf.mxu0
    %9657 = vmatprep.mubr.bf16.mxu0 0
    %9658 = vmatmul.mubr.bf16.gmra.mxu0 %v9465
    %v9659 = vpop.f32.mrf.mxu0
    %v9660 = vadd.f32 0.0, %v9659
    %v9661 = vpop.f32.mrf.mxu0
    %v9662 = vpop.f32.mrf.mxu0
    %v9663 = vadd.f32 0.0, %v9662
    %v9664 = vpop.f32.mrf.mxu0
    %9665 = vmatprep.mubr.bf16.mxu0 0
    %9666 = vmatmul.mubr.bf16.gmra.mxu0 %v9466
    %v9667 = vpop.f32.mrf.mxu0
    %v9668 = vadd.f32 0.0, %v9667
    %v9669 = vpop.f32.mrf.mxu0
    %v9670 = vpop.f32.mrf.mxu0
    %v9671 = vadd.f32 0.0, %v9670
    %v9672 = vpop.f32.mrf.mxu0
    %9673 = vmatprep.mubr.bf16.mxu0 0
    %9674 = vmatmul.mubr.bf16.gmra.mxu0 %v9467
    %v9675 = vpop.f32.mrf.mxu0
    %v9676 = vadd.f32 0.0, %v9675
    %v9677 = vpop.f32.mrf.mxu0
    %v9678 = vpop.f32.mrf.mxu0
    %v9679 = vadd.f32 0.0, %v9678
    %v9680 = vpop.f32.mrf.mxu0
    %9681 = vmatprep.mubr.bf16.mxu0 0
    %9682 = vmatmul.mubr.bf16.gmra.mxu0 %v9468
    %v9683 = vpop.f32.mrf.mxu0
    %v9684 = vadd.f32 0.0, %v9683
    %v9685 = vpop.f32.mrf.mxu0
    %v9686 = vpop.f32.mrf.mxu0
    %v9687 = vadd.f32 0.0, %v9686
    %v9688 = vpop.f32.mrf.mxu0
    %9689 = vmatprep.mubr.bf16.mxu0 0
    %9690 = vmatmul.mubr.bf16.gmra.mxu0 %v9469
    %v9691 = vpop.f32.mrf.mxu0
    %v9692 = vadd.f32 0.0, %v9691
    %v9693 = vpop.f32.mrf.mxu0
    %v9694 = vpop.f32.mrf.mxu0
    %v9695 = vadd.f32 0.0, %v9694
    %v9696 = vpop.f32.mrf.mxu0
    %9697 = vmatprep.mubr.bf16.mxu0 0
    %9698 = vmatmul.mubr.bf16.gmra.mxu0 %v9470
    %v9699 = vpop.f32.mrf.mxu0
    %v9700 = vadd.f32 0.0, %v9699
    %v9701 = vpop.f32.mrf.mxu0
    %v9702 = vpop.f32.mrf.mxu0
    %v9703 = vadd.f32 0.0, %v9702
    %v9704 = vpop.f32.mrf.mxu0
    %9705 = vmatprep.mubr.bf16.mxu0 0
    %9706 = vmatmul.mubr.bf16.gmra.mxu0 %v9471
    %v9707 = vpop.f32.mrf.mxu0
    %v9708 = vadd.f32 0.0, %v9707
    %v9709 = vpop.f32.mrf.mxu0
    %v9710 = vpop.f32.mrf.mxu0
    %v9711 = vadd.f32 0.0, %v9710
    %v9712 = vpop.f32.mrf.mxu0
    %9713 = vmatprep.mubr.bf16.mxu0 0
    %9714 = vmatmul.mubr.bf16.gmra.mxu0 %v9472
    %v9715 = vpop.f32.mrf.mxu0
    %v9716 = vadd.f32 0.0, %v9715
    %v9717 = vpop.f32.mrf.mxu0
    %v9718 = vpop.f32.mrf.mxu0
    %v9719 = vadd.f32 0.0, %v9718
    %v9720 = vpop.f32.mrf.mxu0
    %9721 = vmatprep.mubr.bf16.mxu0 0
    %9722 = vmatmul.mubr.bf16.gmra.mxu0 %v9473
    %v9723 = vpop.f32.mrf.mxu0
    %v9724 = vadd.f32 0.0, %v9723
    %v9725 = vpop.f32.mrf.mxu0
    %v9726 = vpop.f32.mrf.mxu0
    %v9727 = vadd.f32 0.0, %v9726
    %v9728 = vpop.f32.mrf.mxu0
    %9729 = vmatprep.mubr.bf16.mxu0 0
    %9730 = vmatmul.mubr.bf16.gmra.mxu0 %v9474
    %v9731 = vpop.f32.mrf.mxu0
    %v9732 = vadd.f32 0.0, %v9731
    %v9733 = vpop.f32.mrf.mxu0
    %v9734 = vpop.f32.mrf.mxu0
    %v9735 = vadd.f32 0.0, %v9734
    %v9736 = vpop.f32.mrf.mxu0
    %9737 = vmatprep.mubr.bf16.mxu0 0
    %9738 = vmatmul.mubr.bf16.gmra.mxu0 %v9475
    %v9739 = vpop.f32.mrf.mxu0
    %v9740 = vadd.f32 0.0, %v9739
    %v9741 = vpop.f32.mrf.mxu0
    %v9742 = vpop.f32.mrf.mxu0
    %v9743 = vadd.f32 0.0, %v9742
    %v9744 = vpop.f32.mrf.mxu0
    %9745 = vmatprep.mubr.bf16.mxu0 0
    %9746 = vmatmul.mubr.bf16.gmra.mxu0 %v9476
    %v9747 = vpop.f32.mrf.mxu0
    %v9748 = vadd.f32 0.0, %v9747
    %v9749 = vpop.f32.mrf.mxu0
    %v9750 = vpop.f32.mrf.mxu0
    %v9751 = vadd.f32 0.0, %v9750
    %v9752 = vpop.f32.mrf.mxu0
    %9753 = vmatprep.mubr.bf16.mxu0 0
    %9754 = vmatmul.mubr.bf16.gmra.mxu0 %v9477
    %v9755 = vpop.f32.mrf.mxu0
    %v9756 = vadd.f32 0.0, %v9755
    %v9757 = vpop.f32.mrf.mxu0
    %v9758 = vpop.f32.mrf.mxu0
    %v9759 = vadd.f32 0.0, %v9758
    %v9760 = vpop.f32.mrf.mxu0
    %9761 = vmatprep.mubr.bf16.mxu0 0
    %9762 = vmatmul.mubr.bf16.gmra.mxu0 %v9478
    %v9763 = vpop.f32.mrf.mxu0
    %v9764 = vadd.f32 0.0, %v9763
    %v9765 = vpop.f32.mrf.mxu0
    %v9766 = vpop.f32.mrf.mxu0
    %v9767 = vadd.f32 0.0, %v9766
    %v9768 = vpop.f32.mrf.mxu0
    %9769 = vmatprep.mubr.bf16.mxu0 0
    %9770 = vmatmul.mubr.bf16.gmra.mxu0 %v9479
    %v9771 = vpop.f32.mrf.mxu0
    %v9772 = vadd.f32 0.0, %v9771
    %v9773 = vpop.f32.mrf.mxu0
    %v9774 = vpop.f32.mrf.mxu0
    %v9775 = vadd.f32 0.0, %v9774
    %v9776 = vpop.f32.mrf.mxu0
    %9777 = vmatprep.mubr.bf16.mxu0 0
    %9778 = vmatmul.mubr.bf16.gmra.mxu0 %v9480
    %v9779 = vpop.f32.mrf.mxu0
    %v9780 = vadd.f32 0.0, %v9779
    %v9781 = vpop.f32.mrf.mxu0
    %v9782 = vpop.f32.mrf.mxu0
    %v9783 = vadd.f32 0.0, %v9782
    %v9784 = vpop.f32.mrf.mxu0
    %9785 = vmatprep.mubr.bf16.mxu0 0
    %9786 = vmatmul.mubr.bf16.gmra.mxu0 %v9481
    %v9787 = vpop.f32.mrf.mxu0
    %v9788 = vadd.f32 0.0, %v9787
    %v9789 = vpop.f32.mrf.mxu0
    %v9790 = vpop.f32.mrf.mxu0
    %v9791 = vadd.f32 0.0, %v9790
    %v9792 = vpop.f32.mrf.mxu0
    %9793 = vmatprep.mubr.bf16.mxu0 0
    %9794 = vmatmul.mubr.bf16.gmra.mxu0 %v9482
    %v9795 = vpop.f32.mrf.mxu0
    %v9796 = vadd.f32 0.0, %v9795
    %v9797 = vpop.f32.mrf.mxu0
    %v9798 = vpop.f32.mrf.mxu0
    %v9799 = vadd.f32 0.0, %v9798
    %v9800 = vpop.f32.mrf.mxu0
    %9801 = vmatprep.mubr.bf16.mxu0 0
    %9802 = vmatmul.mubr.bf16.gmra.mxu0 %v9483
    %v9803 = vpop.f32.mrf.mxu0
    %v9804 = vadd.f32 0.0, %v9803
    %v9805 = vpop.f32.mrf.mxu0
    %v9806 = vpop.f32.mrf.mxu0
    %v9807 = vadd.f32 0.0, %v9806
    %v9808 = vpop.f32.mrf.mxu0
    %9809 = vmatprep.mubr.bf16.mxu0 0
    %9810 = vmatmul.mubr.bf16.gmra.mxu0 %v9484
    %v9811 = vpop.f32.mrf.mxu0
    %v9812 = vadd.f32 0.0, %v9811
    %v9813 = vpop.f32.mrf.mxu0
    %v9814 = vpop.f32.mrf.mxu0
    %v9815 = vadd.f32 0.0, %v9814
    %v9816 = vpop.f32.mrf.mxu0
    %9817 = vmatprep.mubr.bf16.mxu0 0
    %9818 = vmatmul.mubr.bf16.gmra.mxu0 %v9485
    %v9819 = vpop.f32.mrf.mxu0
    %v9820 = vadd.f32 0.0, %v9819
    %v9821 = vpop.f32.mrf.mxu0
    %v9822 = vpop.f32.mrf.mxu0
    %v9823 = vadd.f32 0.0, %v9822
    %v9824 = vpop.f32.mrf.mxu0
    %9825 = vmatprep.mubr.bf16.mxu0 0
    %9826 = vmatmul.mubr.bf16.gmra.mxu0 %v9486
    %v9827 = vpop.f32.mrf.mxu0
    %v9828 = vadd.f32 0.0, %v9827
    %v9829 = vpop.f32.mrf.mxu0
    %v9830 = vpop.f32.mrf.mxu0
    %v9831 = vadd.f32 0.0, %v9830
    %v9832 = vpop.f32.mrf.mxu0
    %9833 = vmatprep.mubr.bf16.mxu0 0
    %9834 = vmatmul.mubr.bf16.gmra.mxu0 %v9487
    %v9835 = vpop.f32.mrf.mxu0
    %v9836 = vadd.f32 0.0, %v9835
    %v9837 = vpop.f32.mrf.mxu0
    %v9838 = vpop.f32.mrf.mxu0
    %v9839 = vadd.f32 0.0, %v9838
    %v9840 = vpop.f32.mrf.mxu0
    %9841 = vdwg.mxu0
    %v9842 = vadd.f32 %v9328, %v9588
    %v9843 = vadd.f32 %v9329, %v9591
    %v9844 = vadd.f32 %v9330, %v9596
    %v9845 = vadd.f32 %v9331, %v9599
    %v9846 = vadd.f32 %v9332, %v9604
    %v9847 = vadd.f32 %v9333, %v9607
    %v9848 = vadd.f32 %v9334, %v9612
    %v9849 = vadd.f32 %v9335, %v9615
    %v9850 = vadd.f32 %v9336, %v9620
    %v9851 = vadd.f32 %v9337, %v9623
    %v9852 = vadd.f32 %v9338, %v9628
    %v9853 = vadd.f32 %v9339, %v9631
    %v9854 = vadd.f32 %v9340, %v9636
    %v9855 = vadd.f32 %v9341, %v9639
    %v9856 = vadd.f32 %v9342, %v9644
    %v9857 = vadd.f32 %v9343, %v9647
    %v9858 = vadd.f32 %v9344, %v9652
    %v9859 = vadd.f32 %v9345, %v9655
    %v9860 = vadd.f32 %v9346, %v9660
    %v9861 = vadd.f32 %v9347, %v9663
    %v9862 = vadd.f32 %v9348, %v9668
    %v9863 = vadd.f32 %v9349, %v9671
    %v9864 = vadd.f32 %v9350, %v9676
    %v9865 = vadd.f32 %v9351, %v9679
    %v9866 = vadd.f32 %v9352, %v9684
    %v9867 = vadd.f32 %v9353, %v9687
    %v9868 = vadd.f32 %v9354, %v9692
    %v9869 = vadd.f32 %v9355, %v9695
    %v9870 = vadd.f32 %v9356, %v9700
    %v9871 = vadd.f32 %v9357, %v9703
    %v9872 = vadd.f32 %v9358, %v9708
    %v9873 = vadd.f32 %v9359, %v9711
    %v9874 = vadd.f32 %v9360, %v9716
    %v9875 = vadd.f32 %v9361, %v9719
    %v9876 = vadd.f32 %v9362, %v9724
    %v9877 = vadd.f32 %v9363, %v9727
    %v9878 = vadd.f32 %v9364, %v9732
    %v9879 = vadd.f32 %v9365, %v9735
    %v9880 = vadd.f32 %v9366, %v9740
    %v9881 = vadd.f32 %v9367, %v9743
    %v9882 = vadd.f32 %v9368, %v9748
    %v9883 = vadd.f32 %v9369, %v9751
    %v9884 = vadd.f32 %v9370, %v9756
    %v9885 = vadd.f32 %v9371, %v9759
    %v9886 = vadd.f32 %v9372, %v9764
    %v9887 = vadd.f32 %v9373, %v9767
    %v9888 = vadd.f32 %v9374, %v9772
    %v9889 = vadd.f32 %v9375, %v9775
    %v9890 = vadd.f32 %v9376, %v9780
    %v9891 = vadd.f32 %v9377, %v9783
    %v9892 = vadd.f32 %v9378, %v9788
    %v9893 = vadd.f32 %v9379, %v9791
    %v9894 = vadd.f32 %v9380, %v9796
    %v9895 = vadd.f32 %v9381, %v9799
    %v9896 = vadd.f32 %v9382, %v9804
    %v9897 = vadd.f32 %v9383, %v9807
    %v9898 = vadd.f32 %v9384, %v9812
    %v9899 = vadd.f32 %v9385, %v9815
    %v9900 = vadd.f32 %v9386, %v9820
    %v9901 = vadd.f32 %v9387, %v9823
    %v9902 = vadd.f32 %v9388, %v9828
    %v9903 = vadd.f32 %v9389, %v9831
    %v9904 = vadd.f32 %v9390, %v9836
    %v9905 = vadd.f32 %v9391, %v9839
    %v9906 = vadd.f32 %v9842, %v9843
    %v9907 = vadd.f32 %v9906, %v9844
    %v9908 = vadd.f32 %v9907, %v9845
    %v9909 = vadd.f32 %v9908, %v9846
    %v9910 = vadd.f32 %v9909, %v9847
    %v9911 = vadd.f32 %v9910, %v9848
    %v9912 = vadd.f32 %v9911, %v9849
    %v9913 = vadd.f32 %v9912, %v9850
    %v9914 = vadd.f32 %v9913, %v9851
    %v9915 = vadd.f32 %v9914, %v9852
    %v9916 = vadd.f32 %v9915, %v9853
    %v9917 = vadd.f32 %v9916, %v9854
    %v9918 = vadd.f32 %v9917, %v9855
    %v9919 = vadd.f32 %v9918, %v9856
    %v9920 = vadd.f32 %v9919, %v9857
    %v9921 = vadd.f32 %v9920, %v9858
    %v9922 = vadd.f32 %v9921, %v9859
    %v9923 = vadd.f32 %v9922, %v9860
    %v9924 = vadd.f32 %v9923, %v9861
    %v9925 = vadd.f32 %v9924, %v9862
    %v9926 = vadd.f32 %v9925, %v9863
    %v9927 = vadd.f32 %v9926, %v9864
    %v9928 = vadd.f32 %v9927, %v9865
    %v9929 = vadd.f32 %v9928, %v9866
    %v9930 = vadd.f32 %v9929, %v9867
    %v9931 = vadd.f32 %v9930, %v9868
    %v9932 = vadd.f32 %v9931, %v9869
    %v9933 = vadd.f32 %v9932, %v9870
    %v9934 = vadd.f32 %v9933, %v9871
    %v9935 = vadd.f32 %v9934, %v9872
    %v9936 = vadd.f32 %v9935, %v9873
    %v9937 = vadd.f32 %v9936, %v9874
    %v9938 = vadd.f32 %v9937, %v9875
    %v9939 = vadd.f32 %v9938, %v9876
    %v9940 = vadd.f32 %v9939, %v9877
    %v9941 = vadd.f32 %v9940, %v9878
    %v9942 = vadd.f32 %v9941, %v9879
    %v9943 = vadd.f32 %v9942, %v9880
    %v9944 = vadd.f32 %v9943, %v9881
    %v9945 = vadd.f32 %v9944, %v9882
    %v9946 = vadd.f32 %v9945, %v9883
    %v9947 = vadd.f32 %v9946, %v9884
    %v9948 = vadd.f32 %v9947, %v9885
    %v9949 = vadd.f32 %v9948, %v9886
    %v9950 = vadd.f32 %v9949, %v9887
    %v9951 = vadd.f32 %v9950, %v9888
    %v9952 = vadd.f32 %v9951, %v9889
    %v9953 = vadd.f32 %v9952, %v9890
    %v9954 = vadd.f32 %v9953, %v9891
    %v9955 = vadd.f32 %v9954, %v9892
    %v9956 = vadd.f32 %v9955, %v9893
    %v9957 = vadd.f32 %v9956, %v9894
    %v9958 = vadd.f32 %v9957, %v9895
    %v9959 = vadd.f32 %v9958, %v9896
    %v9960 = vadd.f32 %v9959, %v9897
    %v9961 = vadd.f32 %v9960, %v9898
    %v9962 = vadd.f32 %v9961, %v9899
    %v9963 = vadd.f32 %v9962, %v9900
    %v9964 = vadd.f32 %v9963, %v9901
    %v9965 = vadd.f32 %v9964, %v9902
    %v9966 = vadd.f32 %v9965, %v9903
    %v9967 = vadd.f32 %v9966, %v9904
    %v9968 = vadd.f32 %v9967, %v9905
    %v9969 = vrot.slane %v9968, 4
    %v9970 = vadd.f32 %v9968, %v9969
    %v9971 = vrot.slane %v9970, 2
    %v9972 = vadd.f32 %v9970, %v9971
    %v9973 = vrot.slane %v9972, 1
    %v9974 = vadd.f32 %v9972, %v9973
    %v9975 = vmul.f32 %v9974, %v4873
    %v9976 = vsub.f32 %v9842, %v9975
    %v9977 = vsub.f32 %v9843, %v9975
    %v9978 = vsub.f32 %v9844, %v9975
    %v9979 = vsub.f32 %v9845, %v9975
    %v9980 = vsub.f32 %v9846, %v9975
    %v9981 = vsub.f32 %v9847, %v9975
    %v9982 = vsub.f32 %v9848, %v9975
    %v9983 = vsub.f32 %v9849, %v9975
    %v9984 = vsub.f32 %v9850, %v9975
    %v9985 = vsub.f32 %v9851, %v9975
    %v9986 = vsub.f32 %v9852, %v9975
    %v9987 = vsub.f32 %v9853, %v9975
    %v9988 = vsub.f32 %v9854, %v9975
    %v9989 = vsub.f32 %v9855, %v9975
    %v9990 = vsub.f32 %v9856, %v9975
    %v9991 = vsub.f32 %v9857, %v9975
    %v9992 = vsub.f32 %v9858, %v9975
    %v9993 = vsub.f32 %v9859, %v9975
    %v9994 = vsub.f32 %v9860, %v9975
    %v9995 = vsub.f32 %v9861, %v9975
    %v9996 = vsub.f32 %v9862, %v9975
    %v9997 = vsub.f32 %v9863, %v9975
    %v9998 = vsub.f32 %v9864, %v9975
    %v9999 = vsub.f32 %v9865, %v9975
    %v10000 = vsub.f32 %v9866, %v9975
    %v10001 = vsub.f32 %v9867, %v9975
    %v10002 = vsub.f32 %v9868, %v9975
    %v10003 = vsub.f32 %v9869, %v9975
    %v10004 = vsub.f32 %v9870, %v9975
    %v10005 = vsub.f32 %v9871, %v9975
    %v10006 = vsub.f32 %v9872, %v9975
    %v10007 = vsub.f32 %v9873, %v9975
    %v10008 = vsub.f32 %v9874, %v9975
    %v10009 = vsub.f32 %v9875, %v9975
    %v10010 = vsub.f32 %v9876, %v9975
    %v10011 = vsub.f32 %v9877, %v9975
    %v10012 = vsub.f32 %v9878, %v9975
    %v10013 = vsub.f32 %v9879, %v9975
    %v10014 = vsub.f32 %v9880, %v9975
    %v10015 = vsub.f32 %v9881, %v9975
    %v10016 = vsub.f32 %v9882, %v9975
    %v10017 = vsub.f32 %v9883, %v9975
    %v10018 = vsub.f32 %v9884, %v9975
    %v10019 = vsub.f32 %v9885, %v9975
    %v10020 = vsub.f32 %v9886, %v9975
    %v10021 = vsub.f32 %v9887, %v9975
    %v10022 = vsub.f32 %v9888, %v9975
    %v10023 = vsub.f32 %v9889, %v9975
    %v10024 = vsub.f32 %v9890, %v9975
    %v10025 = vsub.f32 %v9891, %v9975
    %v10026 = vsub.f32 %v9892, %v9975
    %v10027 = vsub.f32 %v9893, %v9975
    %v10028 = vsub.f32 %v9894, %v9975
    %v10029 = vsub.f32 %v9895, %v9975
    %v10030 = vsub.f32 %v9896, %v9975
    %v10031 = vsub.f32 %v9897, %v9975
    %v10032 = vsub.f32 %v9898, %v9975
    %v10033 = vsub.f32 %v9899, %v9975
    %v10034 = vsub.f32 %v9900, %v9975
    %v10035 = vsub.f32 %v9901, %v9975
    %v10036 = vsub.f32 %v9902, %v9975
    %v10037 = vsub.f32 %v9903, %v9975
    %v10038 = vsub.f32 %v9904, %v9975
    %v10039 = vsub.f32 %v9905, %v9975
    %v10040 = vmul.f32 %v9976, %v9976
    %v10041 = vmul.f32 %v9977, %v9977
    %v10042 = vmul.f32 %v9978, %v9978
    %v10043 = vmul.f32 %v9979, %v9979
    %v10044 = vmul.f32 %v9980, %v9980
    %v10045 = vmul.f32 %v9981, %v9981
    %v10046 = vmul.f32 %v9982, %v9982
    %v10047 = vmul.f32 %v9983, %v9983
    %v10048 = vmul.f32 %v9984, %v9984
    %v10049 = vmul.f32 %v9985, %v9985
    %v10050 = vmul.f32 %v9986, %v9986
    %v10051 = vmul.f32 %v9987, %v9987
    %v10052 = vmul.f32 %v9988, %v9988
    %v10053 = vmul.f32 %v9989, %v9989
    %v10054 = vmul.f32 %v9990, %v9990
    %v10055 = vmul.f32 %v9991, %v9991
    %v10056 = vmul.f32 %v9992, %v9992
    %v10057 = vmul.f32 %v9993, %v9993
    %v10058 = vmul.f32 %v9994, %v9994
    %v10059 = vmul.f32 %v9995, %v9995
    %v10060 = vmul.f32 %v9996, %v9996
    %v10061 = vmul.f32 %v9997, %v9997
    %v10062 = vmul.f32 %v9998, %v9998
    %v10063 = vmul.f32 %v9999, %v9999
    %v10064 = vmul.f32 %v10000, %v10000
    %v10065 = vmul.f32 %v10001, %v10001
    %v10066 = vmul.f32 %v10002, %v10002
    %v10067 = vmul.f32 %v10003, %v10003
    %v10068 = vmul.f32 %v10004, %v10004
    %v10069 = vmul.f32 %v10005, %v10005
    %v10070 = vmul.f32 %v10006, %v10006
    %v10071 = vmul.f32 %v10007, %v10007
    %v10072 = vmul.f32 %v10008, %v10008
    %v10073 = vmul.f32 %v10009, %v10009
    %v10074 = vmul.f32 %v10010, %v10010
    %v10075 = vmul.f32 %v10011, %v10011
    %v10076 = vmul.f32 %v10012, %v10012
    %v10077 = vmul.f32 %v10013, %v10013
    %v10078 = vmul.f32 %v10014, %v10014
    %v10079 = vmul.f32 %v10015, %v10015
    %v10080 = vmul.f32 %v10016, %v10016
    %v10081 = vmul.f32 %v10017, %v10017
    %v10082 = vmul.f32 %v10018, %v10018
    %v10083 = vmul.f32 %v10019, %v10019
    %v10084 = vmul.f32 %v10020, %v10020
    %v10085 = vmul.f32 %v10021, %v10021
    %v10086 = vmul.f32 %v10022, %v10022
    %v10087 = vmul.f32 %v10023, %v10023
    %v10088 = vmul.f32 %v10024, %v10024
    %v10089 = vmul.f32 %v10025, %v10025
    %v10090 = vmul.f32 %v10026, %v10026
    %v10091 = vmul.f32 %v10027, %v10027
    %v10092 = vmul.f32 %v10028, %v10028
    %v10093 = vmul.f32 %v10029, %v10029
    %v10094 = vmul.f32 %v10030, %v10030
    %v10095 = vmul.f32 %v10031, %v10031
    %v10096 = vmul.f32 %v10032, %v10032
    %v10097 = vmul.f32 %v10033, %v10033
    %v10098 = vmul.f32 %v10034, %v10034
    %v10099 = vmul.f32 %v10035, %v10035
    %v10100 = vmul.f32 %v10036, %v10036
    %v10101 = vmul.f32 %v10037, %v10037
    %v10102 = vmul.f32 %v10038, %v10038
    %v10103 = vmul.f32 %v10039, %v10039
    %v10104 = vadd.f32 %v10040, %v10041
    %v10105 = vadd.f32 %v10104, %v10042
    %v10106 = vadd.f32 %v10105, %v10043
    %v10107 = vadd.f32 %v10106, %v10044
    %v10108 = vadd.f32 %v10107, %v10045
    %v10109 = vadd.f32 %v10108, %v10046
    %v10110 = vadd.f32 %v10109, %v10047
    %v10111 = vadd.f32 %v10110, %v10048
    %v10112 = vadd.f32 %v10111, %v10049
    %v10113 = vadd.f32 %v10112, %v10050
    %v10114 = vadd.f32 %v10113, %v10051
    %v10115 = vadd.f32 %v10114, %v10052
    %v10116 = vadd.f32 %v10115, %v10053
    %v10117 = vadd.f32 %v10116, %v10054
    %v10118 = vadd.f32 %v10117, %v10055
    %v10119 = vadd.f32 %v10118, %v10056
    %v10120 = vadd.f32 %v10119, %v10057
    %v10121 = vadd.f32 %v10120, %v10058
    %v10122 = vadd.f32 %v10121, %v10059
    %v10123 = vadd.f32 %v10122, %v10060
    %v10124 = vadd.f32 %v10123, %v10061
    %v10125 = vadd.f32 %v10124, %v10062
    %v10126 = vadd.f32 %v10125, %v10063
    %v10127 = vadd.f32 %v10126, %v10064
    %v10128 = vadd.f32 %v10127, %v10065
    %v10129 = vadd.f32 %v10128, %v10066
    %v10130 = vadd.f32 %v10129, %v10067
    %v10131 = vadd.f32 %v10130, %v10068
    %v10132 = vadd.f32 %v10131, %v10069
    %v10133 = vadd.f32 %v10132, %v10070
    %v10134 = vadd.f32 %v10133, %v10071
    %v10135 = vadd.f32 %v10134, %v10072
    %v10136 = vadd.f32 %v10135, %v10073
    %v10137 = vadd.f32 %v10136, %v10074
    %v10138 = vadd.f32 %v10137, %v10075
    %v10139 = vadd.f32 %v10138, %v10076
    %v10140 = vadd.f32 %v10139, %v10077
    %v10141 = vadd.f32 %v10140, %v10078
    %v10142 = vadd.f32 %v10141, %v10079
    %v10143 = vadd.f32 %v10142, %v10080
    %v10144 = vadd.f32 %v10143, %v10081
    %v10145 = vadd.f32 %v10144, %v10082
    %v10146 = vadd.f32 %v10145, %v10083
    %v10147 = vadd.f32 %v10146, %v10084
    %v10148 = vadd.f32 %v10147, %v10085
    %v10149 = vadd.f32 %v10148, %v10086
    %v10150 = vadd.f32 %v10149, %v10087
    %v10151 = vadd.f32 %v10150, %v10088
    %v10152 = vadd.f32 %v10151, %v10089
    %v10153 = vadd.f32 %v10152, %v10090
    %v10154 = vadd.f32 %v10153, %v10091
    %v10155 = vadd.f32 %v10154, %v10092
    %v10156 = vadd.f32 %v10155, %v10093
    %v10157 = vadd.f32 %v10156, %v10094
    %v10158 = vadd.f32 %v10157, %v10095
    %v10159 = vadd.f32 %v10158, %v10096
    %v10160 = vadd.f32 %v10159, %v10097
    %v10161 = vadd.f32 %v10160, %v10098
    %v10162 = vadd.f32 %v10161, %v10099
    %v10163 = vadd.f32 %v10162, %v10100
    %v10164 = vadd.f32 %v10163, %v10101
    %v10165 = vadd.f32 %v10164, %v10102
    %v10166 = vadd.f32 %v10165, %v10103
    %v10167 = vrot.slane %v10166, 4
    %v10168 = vadd.f32 %v10166, %v10167
    %v10169 = vrot.slane %v10168, 2
    %v10170 = vadd.f32 %v10168, %v10169
    %v10171 = vrot.slane %v10170, 1
    %v10172 = vadd.f32 %v10170, %v10171
    %v10173 = vmul.f32 %v10172, %v4873
    %v10174 = vadd.f32 %v10173, 1e-05
    %v10175 = vrsqrt.pop %v10174
    %v10176 = vmul.f32 %v9976, %v10175
    %v10177 = vmul.f32 %v9977, %v10175
    %v10178 = vmul.f32 %v9978, %v10175
    %v10179 = vmul.f32 %v9979, %v10175
    %v10180 = vmul.f32 %v9980, %v10175
    %v10181 = vmul.f32 %v9981, %v10175
    %v10182 = vmul.f32 %v9982, %v10175
    %v10183 = vmul.f32 %v9983, %v10175
    %v10184 = vmul.f32 %v9984, %v10175
    %v10185 = vmul.f32 %v9985, %v10175
    %v10186 = vmul.f32 %v9986, %v10175
    %v10187 = vmul.f32 %v9987, %v10175
    %v10188 = vmul.f32 %v9988, %v10175
    %v10189 = vmul.f32 %v9989, %v10175
    %v10190 = vmul.f32 %v9990, %v10175
    %v10191 = vmul.f32 %v9991, %v10175
    %v10192 = vmul.f32 %v9992, %v10175
    %v10193 = vmul.f32 %v9993, %v10175
    %v10194 = vmul.f32 %v9994, %v10175
    %v10195 = vmul.f32 %v9995, %v10175
    %v10196 = vmul.f32 %v9996, %v10175
    %v10197 = vmul.f32 %v9997, %v10175
    %v10198 = vmul.f32 %v9998, %v10175
    %v10199 = vmul.f32 %v9999, %v10175
    %v10200 = vmul.f32 %v10000, %v10175
    %v10201 = vmul.f32 %v10001, %v10175
    %v10202 = vmul.f32 %v10002, %v10175
    %v10203 = vmul.f32 %v10003, %v10175
    %v10204 = vmul.f32 %v10004, %v10175
    %v10205 = vmul.f32 %v10005, %v10175
    %v10206 = vmul.f32 %v10006, %v10175
    %v10207 = vmul.f32 %v10007, %v10175
    %v10208 = vmul.f32 %v10008, %v10175
    %v10209 = vmul.f32 %v10009, %v10175
    %v10210 = vmul.f32 %v10010, %v10175
    %v10211 = vmul.f32 %v10011, %v10175
    %v10212 = vmul.f32 %v10012, %v10175
    %v10213 = vmul.f32 %v10013, %v10175
    %v10214 = vmul.f32 %v10014, %v10175
    %v10215 = vmul.f32 %v10015, %v10175
    %v10216 = vmul.f32 %v10016, %v10175
    %v10217 = vmul.f32 %v10017, %v10175
    %v10218 = vmul.f32 %v10018, %v10175
    %v10219 = vmul.f32 %v10019, %v10175
    %v10220 = vmul.f32 %v10020, %v10175
    %v10221 = vmul.f32 %v10021, %v10175
    %v10222 = vmul.f32 %v10022, %v10175
    %v10223 = vmul.f32 %v10023, %v10175
    %v10224 = vmul.f32 %v10024, %v10175
    %v10225 = vmul.f32 %v10025, %v10175
    %v10226 = vmul.f32 %v10026, %v10175
    %v10227 = vmul.f32 %v10027, %v10175
    %v10228 = vmul.f32 %v10028, %v10175
    %v10229 = vmul.f32 %v10029, %v10175
    %v10230 = vmul.f32 %v10030, %v10175
    %v10231 = vmul.f32 %v10031, %v10175
    %v10232 = vmul.f32 %v10032, %v10175
    %v10233 = vmul.f32 %v10033, %v10175
    %v10234 = vmul.f32 %v10034, %v10175
    %v10235 = vmul.f32 %v10035, %v10175
    %v10236 = vmul.f32 %v10036, %v10175
    %v10237 = vmul.f32 %v10037, %v10175
    %v10238 = vmul.f32 %v10038, %v10175
    %v10239 = vmul.f32 %v10039, %v10175
    %v10240 = vld [vmem:[%s5] sm:$0x1]
    %v10242 = vlaneseq
    %v10243 = vshrl.u32 %v10242, 7
    %v10244 = vsub.s32 0, %v10243
    %v10245 = vrot.slane %v10240, %v10244
    %v10247 = vmul.f32 %v10176, %v10245
    %v10248 = vmul.f32 %v10177, %v10245
    %v10249 = vmul.f32 %v10178, %v10245
    %v10250 = vmul.f32 %v10179, %v10245
    %v10251 = vmul.f32 %v10180, %v10245
    %v10252 = vmul.f32 %v10181, %v10245
    %v10253 = vmul.f32 %v10182, %v10245
    %v10254 = vmul.f32 %v10183, %v10245
    %v10255 = vmul.f32 %v10184, %v10245
    %v10256 = vmul.f32 %v10185, %v10245
    %v10257 = vmul.f32 %v10186, %v10245
    %v10258 = vmul.f32 %v10187, %v10245
    %v10259 = vmul.f32 %v10188, %v10245
    %v10260 = vmul.f32 %v10189, %v10245
    %v10261 = vmul.f32 %v10190, %v10245
    %v10262 = vmul.f32 %v10191, %v10245
    %v10263 = vmul.f32 %v10192, %v10245
    %v10264 = vmul.f32 %v10193, %v10245
    %v10265 = vmul.f32 %v10194, %v10245
    %v10266 = vmul.f32 %v10195, %v10245
    %v10267 = vmul.f32 %v10196, %v10245
    %v10268 = vmul.f32 %v10197, %v10245
    %v10269 = vmul.f32 %v10198, %v10245
    %v10270 = vmul.f32 %v10199, %v10245
    %v10271 = vmul.f32 %v10200, %v10245
    %v10272 = vmul.f32 %v10201, %v10245
    %v10273 = vmul.f32 %v10202, %v10245
    %v10274 = vmul.f32 %v10203, %v10245
    %v10275 = vmul.f32 %v10204, %v10245
    %v10276 = vmul.f32 %v10205, %v10245
    %v10277 = vmul.f32 %v10206, %v10245
    %v10278 = vmul.f32 %v10207, %v10245
    %v10279 = vmul.f32 %v10208, %v10245
    %v10280 = vmul.f32 %v10209, %v10245
    %v10281 = vmul.f32 %v10210, %v10245
    %v10282 = vmul.f32 %v10211, %v10245
    %v10283 = vmul.f32 %v10212, %v10245
    %v10284 = vmul.f32 %v10213, %v10245
    %v10285 = vmul.f32 %v10214, %v10245
    %v10286 = vmul.f32 %v10215, %v10245
    %v10287 = vmul.f32 %v10216, %v10245
    %v10288 = vmul.f32 %v10217, %v10245
    %v10289 = vmul.f32 %v10218, %v10245
    %v10290 = vmul.f32 %v10219, %v10245
    %v10291 = vmul.f32 %v10220, %v10245
    %v10292 = vmul.f32 %v10221, %v10245
    %v10293 = vmul.f32 %v10222, %v10245
    %v10294 = vmul.f32 %v10223, %v10245
    %v10295 = vmul.f32 %v10224, %v10245
    %v10296 = vmul.f32 %v10225, %v10245
    %v10297 = vmul.f32 %v10226, %v10245
    %v10298 = vmul.f32 %v10227, %v10245
    %v10299 = vmul.f32 %v10228, %v10245
    %v10300 = vmul.f32 %v10229, %v10245
    %v10301 = vmul.f32 %v10230, %v10245
    %v10302 = vmul.f32 %v10231, %v10245
    %v10303 = vmul.f32 %v10232, %v10245
    %v10304 = vmul.f32 %v10233, %v10245
    %v10305 = vmul.f32 %v10234, %v10245
    %v10306 = vmul.f32 %v10235, %v10245
    %v10307 = vmul.f32 %v10236, %v10245
    %v10308 = vmul.f32 %v10237, %v10245
    %v10309 = vmul.f32 %v10238, %v10245
    %v10310 = vmul.f32 %v10239, %v10245
    %v10311 = vld [vmem:[%s6] sm:$0x1]
    %v10313 = vlaneseq
    %v10314 = vshrl.u32 %v10313, 7
    %v10315 = vsub.s32 0, %v10314
    %v10316 = vrot.slane %v10311, %v10315
    %v10318 = vadd.f32 %v10247, %v10316
    %v10319 = vadd.f32 %v10248, %v10316
    %v10320 = vadd.f32 %v10249, %v10316
    %v10321 = vadd.f32 %v10250, %v10316
    %v10322 = vadd.f32 %v10251, %v10316
    %v10323 = vadd.f32 %v10252, %v10316
    %v10324 = vadd.f32 %v10253, %v10316
    %v10325 = vadd.f32 %v10254, %v10316
    %v10326 = vadd.f32 %v10255, %v10316
    %v10327 = vadd.f32 %v10256, %v10316
    %v10328 = vadd.f32 %v10257, %v10316
    %v10329 = vadd.f32 %v10258, %v10316
    %v10330 = vadd.f32 %v10259, %v10316
    %v10331 = vadd.f32 %v10260, %v10316
    %v10332 = vadd.f32 %v10261, %v10316
    %v10333 = vadd.f32 %v10262, %v10316
    %v10334 = vadd.f32 %v10263, %v10316
    %v10335 = vadd.f32 %v10264, %v10316
    %v10336 = vadd.f32 %v10265, %v10316
    %v10337 = vadd.f32 %v10266, %v10316
    %v10338 = vadd.f32 %v10267, %v10316
    %v10339 = vadd.f32 %v10268, %v10316
    %v10340 = vadd.f32 %v10269, %v10316
    %v10341 = vadd.f32 %v10270, %v10316
    %v10342 = vadd.f32 %v10271, %v10316
    %v10343 = vadd.f32 %v10272, %v10316
    %v10344 = vadd.f32 %v10273, %v10316
    %v10345 = vadd.f32 %v10274, %v10316
    %v10346 = vadd.f32 %v10275, %v10316
    %v10347 = vadd.f32 %v10276, %v10316
    %v10348 = vadd.f32 %v10277, %v10316
    %v10349 = vadd.f32 %v10278, %v10316
    %v10350 = vadd.f32 %v10279, %v10316
    %v10351 = vadd.f32 %v10280, %v10316
    %v10352 = vadd.f32 %v10281, %v10316
    %v10353 = vadd.f32 %v10282, %v10316
    %v10354 = vadd.f32 %v10283, %v10316
    %v10355 = vadd.f32 %v10284, %v10316
    %v10356 = vadd.f32 %v10285, %v10316
    %v10357 = vadd.f32 %v10286, %v10316
    %v10358 = vadd.f32 %v10287, %v10316
    %v10359 = vadd.f32 %v10288, %v10316
    %v10360 = vadd.f32 %v10289, %v10316
    %v10361 = vadd.f32 %v10290, %v10316
    %v10362 = vadd.f32 %v10291, %v10316
    %v10363 = vadd.f32 %v10292, %v10316
    %v10364 = vadd.f32 %v10293, %v10316
    %v10365 = vadd.f32 %v10294, %v10316
    %v10366 = vadd.f32 %v10295, %v10316
    %v10367 = vadd.f32 %v10296, %v10316
    %v10368 = vadd.f32 %v10297, %v10316
    %v10369 = vadd.f32 %v10298, %v10316
    %v10370 = vadd.f32 %v10299, %v10316
    %v10371 = vadd.f32 %v10300, %v10316
    %v10372 = vadd.f32 %v10301, %v10316
    %v10373 = vadd.f32 %v10302, %v10316
    %v10374 = vadd.f32 %v10303, %v10316
    %v10375 = vadd.f32 %v10304, %v10316
    %v10376 = vadd.f32 %v10305, %v10316
    %v10377 = vadd.f32 %v10306, %v10316
    %v10378 = vadd.f32 %v10307, %v10316
    %v10379 = vadd.f32 %v10308, %v10316
    %v10380 = vadd.f32 %v10309, %v10316
    %v10381 = vadd.f32 %v10310, %v10316
    %v10382 = vadd.f32 %v10318, %v69
    %v10383 = vadd.f32 %v10319, %v70
    %v10384 = vadd.f32 %v10320, %v71
    %v10385 = vadd.f32 %v10321, %v72
    %v10386 = vadd.f32 %v10322, %v73
    %v10387 = vadd.f32 %v10323, %v74
    %v10388 = vadd.f32 %v10324, %v75
    %v10389 = vadd.f32 %v10325, %v76
    %v10390 = vadd.f32 %v10326, %v77
    %v10391 = vadd.f32 %v10327, %v78
    %v10392 = vadd.f32 %v10328, %v79
    %v10393 = vadd.f32 %v10329, %v80
    %v10394 = vadd.f32 %v10330, %v81
    %v10395 = vadd.f32 %v10331, %v82
    %v10396 = vadd.f32 %v10332, %v83
    %v10397 = vadd.f32 %v10333, %v84
    %v10398 = vadd.f32 %v10334, %v85
    %v10399 = vadd.f32 %v10335, %v86
    %v10400 = vadd.f32 %v10336, %v87
    %v10401 = vadd.f32 %v10337, %v88
    %v10402 = vadd.f32 %v10338, %v89
    %v10403 = vadd.f32 %v10339, %v90
    %v10404 = vadd.f32 %v10340, %v91
    %v10405 = vadd.f32 %v10341, %v92
    %v10406 = vadd.f32 %v10342, %v93
    %v10407 = vadd.f32 %v10343, %v94
    %v10408 = vadd.f32 %v10344, %v95
    %v10409 = vadd.f32 %v10345, %v96
    %v10410 = vadd.f32 %v10346, %v97
    %v10411 = vadd.f32 %v10347, %v98
    %v10412 = vadd.f32 %v10348, %v99
    %v10413 = vadd.f32 %v10349, %v100
    %v10414 = vadd.f32 %v10350, %v101
    %v10415 = vadd.f32 %v10351, %v102
    %v10416 = vadd.f32 %v10352, %v103
    %v10417 = vadd.f32 %v10353, %v104
    %v10418 = vadd.f32 %v10354, %v105
    %v10419 = vadd.f32 %v10355, %v106
    %v10420 = vadd.f32 %v10356, %v107
    %v10421 = vadd.f32 %v10357, %v108
    %v10422 = vadd.f32 %v10358, %v109
    %v10423 = vadd.f32 %v10359, %v110
    %v10424 = vadd.f32 %v10360, %v111
    %v10425 = vadd.f32 %v10361, %v112
    %v10426 = vadd.f32 %v10362, %v113
    %v10427 = vadd.f32 %v10363, %v114
    %v10428 = vadd.f32 %v10364, %v115
    %v10429 = vadd.f32 %v10365, %v116
    %v10430 = vadd.f32 %v10366, %v117
    %v10431 = vadd.f32 %v10367, %v118
    %v10432 = vadd.f32 %v10368, %v119
    %v10433 = vadd.f32 %v10369, %v120
    %v10434 = vadd.f32 %v10370, %v121
    %v10435 = vadd.f32 %v10371, %v122
    %v10436 = vadd.f32 %v10372, %v123
    %v10437 = vadd.f32 %v10373, %v124
    %v10438 = vadd.f32 %v10374, %v125
    %v10439 = vadd.f32 %v10375, %v126
    %v10440 = vadd.f32 %v10376, %v127
    %v10441 = vadd.f32 %v10377, %v128
    %v10442 = vadd.f32 %v10378, %v129
    %v10443 = vadd.f32 %v10379, %v130
    %v10444 = vadd.f32 %v10380, %v131
    %v10445 = vadd.f32 %v10381, %v132
    %v10446 = vmax.f32 %v10382, 0.0
    %v10447 = vmax.f32 %v10383, 0.0
    %v10448 = vmax.f32 %v10384, 0.0
    %v10449 = vmax.f32 %v10385, 0.0
    %v10450 = vmax.f32 %v10386, 0.0
    %v10451 = vmax.f32 %v10387, 0.0
    %v10452 = vmax.f32 %v10388, 0.0
    %v10453 = vmax.f32 %v10389, 0.0
    %v10454 = vmax.f32 %v10390, 0.0
    %v10455 = vmax.f32 %v10391, 0.0
    %v10456 = vmax.f32 %v10392, 0.0
    %v10457 = vmax.f32 %v10393, 0.0
    %v10458 = vmax.f32 %v10394, 0.0
    %v10459 = vmax.f32 %v10395, 0.0
    %v10460 = vmax.f32 %v10396, 0.0
    %v10461 = vmax.f32 %v10397, 0.0
    %v10462 = vmax.f32 %v10398, 0.0
    %v10463 = vmax.f32 %v10399, 0.0
    %v10464 = vmax.f32 %v10400, 0.0
    %v10465 = vmax.f32 %v10401, 0.0
    %v10466 = vmax.f32 %v10402, 0.0
    %v10467 = vmax.f32 %v10403, 0.0
    %v10468 = vmax.f32 %v10404, 0.0
    %v10469 = vmax.f32 %v10405, 0.0
    %v10470 = vmax.f32 %v10406, 0.0
    %v10471 = vmax.f32 %v10407, 0.0
    %v10472 = vmax.f32 %v10408, 0.0
    %v10473 = vmax.f32 %v10409, 0.0
    %v10474 = vmax.f32 %v10410, 0.0
    %v10475 = vmax.f32 %v10411, 0.0
    %v10476 = vmax.f32 %v10412, 0.0
    %v10477 = vmax.f32 %v10413, 0.0
    %v10478 = vmax.f32 %v10414, 0.0
    %v10479 = vmax.f32 %v10415, 0.0
    %v10480 = vmax.f32 %v10416, 0.0
    %v10481 = vmax.f32 %v10417, 0.0
    %v10482 = vmax.f32 %v10418, 0.0
    %v10483 = vmax.f32 %v10419, 0.0
    %v10484 = vmax.f32 %v10420, 0.0
    %v10485 = vmax.f32 %v10421, 0.0
    %v10486 = vmax.f32 %v10422, 0.0
    %v10487 = vmax.f32 %v10423, 0.0
    %v10488 = vmax.f32 %v10424, 0.0
    %v10489 = vmax.f32 %v10425, 0.0
    %v10490 = vmax.f32 %v10426, 0.0
    %v10491 = vmax.f32 %v10427, 0.0
    %v10492 = vmax.f32 %v10428, 0.0
    %v10493 = vmax.f32 %v10429, 0.0
    %v10494 = vmax.f32 %v10430, 0.0
    %v10495 = vmax.f32 %v10431, 0.0
    %v10496 = vmax.f32 %v10432, 0.0
    %v10497 = vmax.f32 %v10433, 0.0
    %v10498 = vmax.f32 %v10434, 0.0
    %v10499 = vmax.f32 %v10435, 0.0
    %v10500 = vmax.f32 %v10436, 0.0
    %v10501 = vmax.f32 %v10437, 0.0
    %v10502 = vmax.f32 %v10438, 0.0
    %v10503 = vmax.f32 %v10439, 0.0
    %v10504 = vmax.f32 %v10440, 0.0
    %v10505 = vmax.f32 %v10441, 0.0
    %v10506 = vmax.f32 %v10442, 0.0
    %v10507 = vmax.f32 %v10443, 0.0
    %v10508 = vmax.f32 %v10444, 0.0
    %v10509 = vmax.f32 %v10445, 0.0
    %10510 = vst [vmem:[#allocation9] sm:$0xff] %v10446
    %10511 = vst [vmem:[#allocation9 + $0x8] sm:$0xff] %v10447
    %10512 = vst [vmem:[#allocation9 + $0x10] sm:$0xff] %v10448
    %10513 = vst [vmem:[#allocation9 + $0x18] sm:$0xff] %v10449
    %10514 = vst [vmem:[#allocation9 + $0x20] sm:$0xff] %v10450
    %10515 = vst [vmem:[#allocation9 + $0x28] sm:$0xff] %v10451
    %10516 = vst [vmem:[#allocation9 + $0x30] sm:$0xff] %v10452
    %10517 = vst [vmem:[#allocation9 + $0x38] sm:$0xff] %v10453
    %10518 = vst [vmem:[#allocation9 + $0x40] sm:$0xff] %v10454
    %10519 = vst [vmem:[#allocation9 + $0x48] sm:$0xff] %v10455
    %10520 = vst [vmem:[#allocation9 + $0x50] sm:$0xff] %v10456
    %10521 = vst [vmem:[#allocation9 + $0x58] sm:$0xff] %v10457
    %10522 = vst [vmem:[#allocation9 + $0x60] sm:$0xff] %v10458
    %10523 = vst [vmem:[#allocation9 + $0x68] sm:$0xff] %v10459
    %10524 = vst [vmem:[#allocation9 + $0x70] sm:$0xff] %v10460
    %10525 = vst [vmem:[#allocation9 + $0x78] sm:$0xff] %v10461
    %10526 = vst [vmem:[#allocation9 + $0x80] sm:$0xff] %v10462
    %10527 = vst [vmem:[#allocation9 + $0x88] sm:$0xff] %v10463
    %10528 = vst [vmem:[#allocation9 + $0x90] sm:$0xff] %v10464
    %10529 = vst [vmem:[#allocation9 + $0x98] sm:$0xff] %v10465
    %10530 = vst [vmem:[#allocation9 + $0xa0] sm:$0xff] %v10466
    %10531 = vst [vmem:[#allocation9 + $0xa8] sm:$0xff] %v10467
    %10532 = vst [vmem:[#allocation9 + $0xb0] sm:$0xff] %v10468
    %10533 = vst [vmem:[#allocation9 + $0xb8] sm:$0xff] %v10469
    %10534 = vst [vmem:[#allocation9 + $0xc0] sm:$0xff] %v10470
    %10535 = vst [vmem:[#allocation9 + $0xc8] sm:$0xff] %v10471
    %10536 = vst [vmem:[#allocation9 + $0xd0] sm:$0xff] %v10472
    %10537 = vst [vmem:[#allocation9 + $0xd8] sm:$0xff] %v10473
    %10538 = vst [vmem:[#allocation9 + $0xe0] sm:$0xff] %v10474
    %10539 = vst [vmem:[#allocation9 + $0xe8] sm:$0xff] %v10475
    %10540 = vst [vmem:[#allocation9 + $0xf0] sm:$0xff] %v10476
    %10541 = vst [vmem:[#allocation9 + $0xf8] sm:$0xff] %v10477
    %10542 = vst [vmem:[#allocation9 + $0x100] sm:$0xff] %v10478
    %10543 = vst [vmem:[#allocation9 + $0x108] sm:$0xff] %v10479
    %10544 = vst [vmem:[#allocation9 + $0x110] sm:$0xff] %v10480
    %10545 = vst [vmem:[#allocation9 + $0x118] sm:$0xff] %v10481
    %10546 = vst [vmem:[#allocation9 + $0x120] sm:$0xff] %v10482
    %10547 = vst [vmem:[#allocation9 + $0x128] sm:$0xff] %v10483
    %10548 = vst [vmem:[#allocation9 + $0x130] sm:$0xff] %v10484
    %10549 = vst [vmem:[#allocation9 + $0x138] sm:$0xff] %v10485
    %10550 = vst [vmem:[#allocation9 + $0x140] sm:$0xff] %v10486
    %10551 = vst [vmem:[#allocation9 + $0x148] sm:$0xff] %v10487
    %10552 = vst [vmem:[#allocation9 + $0x150] sm:$0xff] %v10488
    %10553 = vst [vmem:[#allocation9 + $0x158] sm:$0xff] %v10489
    %10554 = vst [vmem:[#allocation9 + $0x160] sm:$0xff] %v10490
    %10555 = vst [vmem:[#allocation9 + $0x168] sm:$0xff] %v10491
    %10556 = vst [vmem:[#allocation9 + $0x170] sm:$0xff] %v10492
    %10557 = vst [vmem:[#allocation9 + $0x178] sm:$0xff] %v10493
    %10558 = vst [vmem:[#allocation9 + $0x180] sm:$0xff] %v10494
    %10559 = vst [vmem:[#allocation9 + $0x188] sm:$0xff] %v10495
    %10560 = vst [vmem:[#allocation9 + $0x190] sm:$0xff] %v10496
    %10561 = vst [vmem:[#allocation9 + $0x198] sm:$0xff] %v10497
    %10562 = vst [vmem:[#allocation9 + $0x1a0] sm:$0xff] %v10498
    %10563 = vst [vmem:[#allocation9 + $0x1a8] sm:$0xff] %v10499
    %10564 = vst [vmem:[#allocation9 + $0x1b0] sm:$0xff] %v10500
    %10565 = vst [vmem:[#allocation9 + $0x1b8] sm:$0xff] %v10501
    %10566 = vst [vmem:[#allocation9 + $0x1c0] sm:$0xff] %v10502
    %10567 = vst [vmem:[#allocation9 + $0x1c8] sm:$0xff] %v10503
    %10568 = vst [vmem:[#allocation9 + $0x1d0] sm:$0xff] %v10504
    %10569 = vst [vmem:[#allocation9 + $0x1d8] sm:$0xff] %v10505
    %10570 = vst [vmem:[#allocation9 + $0x1e0] sm:$0xff] %v10506
    %10571 = vst [vmem:[#allocation9 + $0x1e8] sm:$0xff] %v10507
    %10572 = vst [vmem:[#allocation9 + $0x1f0] sm:$0xff] %v10508
    %10573 = vst [vmem:[#allocation9 + $0x1f8] sm:$0xff] %v10509
    // Predicated region
    $region42: #{tpu_custom_call.1} parent=1 // pred_check
      _
    $region43: #{tpu_custom_call.1} parent=1 // pred_check_branch
      %10575 = sbr.rel (0) target = $region45
    $region44: #{tpu_custom_call.1} parent=1 // pred_region
      %s10577 = ssub.s32 8192, 8192
      %10578 = vsyncadd [#allocation5], %s10577
      %s10579 = sshll.u32 [#allocation9], 4
      %s10580 = int_to_ptr.vmem [resolvable:$true] %s10579
      %10585 = dma.vmem_to_hbm [thread:$0]  %s10580, 8192, %s7, [#allocation5], 128, 128, 8
    $region45: #{tpu_custom_call.1} parent=1 // pred_fallthru
      _
    // Predicated region
    $region46: #{tpu_custom_call.1} parent=1 // pred_check
      _
    $region47: #{tpu_custom_call.1} parent=1 // pred_check_branch
      %10587 = sbr.rel (0) target = $region49
    $region48: #{tpu_custom_call.1} parent=1 // pred_region
      %10588 = dma.done [#allocation5], 8192
    $region49: #{tpu_custom_call.1} parent=1 // pred_fallthru
      _
    %10589 = vsyncpa [#allocation4], 1
    %10590 = vsyncpa [#allocation7], 1
    %10591 = vsyncpa [#allocation5], 1

</llo_original>
